<compile_context>
chip_gen: v7x
topology: tpu7x:2x2x1
jax: 0.10.0
libtpu: 0.0.40
codegen_flags: <defaults>
</compile_context>

<pallas_src>
import jax
import jax.numpy as jnp
from jax.experimental import pallas as pl
from jax.experimental.pallas import tpu as pltpu


# ----------------------------- tiling helper -----------------------------

def _pick_tm(m):
    """Row-tile for the 1x1-conv GEMMs: big enough to amortize per-step overhead,
    small enough that every call produces >= 2 grid blocks (megacore)."""
    if m >= 1024:
        return 512
    if m >= 512:
        return 256
    if m >= 256:
        return 128
    return max(8, ((m + 7) // 8) * 8)


# ------------------- conv1 (1x1) : BN1+ReLU -> matmul -> BN2+ReLU -------------------

def _conv1_kernel(x_ref, w_ref, s1_ref, b1_ref, s2_ref, b2_ref, o_ref):
    # prologue: eval-mode BN1 + ReLU on the input tile, cast to bf16 for the MXU
    a = jnp.maximum(x_ref[...] * s1_ref[...] + b1_ref[...], 0.0).astype(jnp.bfloat16)
    acc = jnp.dot(a, w_ref[...], preferred_element_type=jnp.float32)
    # epilogue: BN2 + ReLU (this is the input of the following 3x3 conv)
    o_ref[...] = jnp.maximum(acc * s2_ref[...] + b2_ref[...], 0.0).astype(o_ref.dtype)


def conv1x1_bnrelu_pre_post(x2, w, s1, b1, s2, b2):
    M, K = x2.shape
    Nout = w.shape[1]
    tm = _pick_tm(M)
    return pl.pallas_call(
        _conv1_kernel,
        out_shape=jax.ShapeDtypeStruct((M, Nout), jnp.bfloat16),
        grid=(pl.cdiv(M, tm),),
        in_specs=[pl.BlockSpec((tm, K), lambda i: (i, 0)),
                  pl.BlockSpec((K, Nout), lambda i: (0, 0)),
                  pl.BlockSpec((1, K), lambda i: (0, 0)),
                  pl.BlockSpec((1, K), lambda i: (0, 0)),
                  pl.BlockSpec((1, Nout), lambda i: (0, 0)),
                  pl.BlockSpec((1, Nout), lambda i: (0, 0))],
        out_specs=pl.BlockSpec((tm, Nout), lambda i: (i, 0)),
        compiler_params=pltpu.CompilerParams(dimension_semantics=("parallel",)),
    )(x2, w, s1.reshape(1, K), b1.reshape(1, K),
      s2.reshape(1, Nout), b2.reshape(1, Nout))


# ------------------------- shortcut 1x1 : BN1+ReLU -> matmul -------------------------

def _shortcut_kernel(x_ref, w_ref, s1_ref, b1_ref, o_ref):
    a = jnp.maximum(x_ref[...] * s1_ref[...] + b1_ref[...], 0.0).astype(jnp.bfloat16)
    o_ref[...] = jnp.dot(a, w_ref[...], preferred_element_type=jnp.float32)


def shortcut_1x1(x2, w, s1, b1):
    M, K = x2.shape
    Nout = w.shape[1]
    tm = _pick_tm(M)
    return pl.pallas_call(
        _shortcut_kernel,
        out_shape=jax.ShapeDtypeStruct((M, Nout), jnp.float32),
        grid=(pl.cdiv(M, tm),),
        in_specs=[pl.BlockSpec((tm, K), lambda i: (i, 0)),
                  pl.BlockSpec((K, Nout), lambda i: (0, 0)),
                  pl.BlockSpec((1, K), lambda i: (0, 0)),
                  pl.BlockSpec((1, K), lambda i: (0, 0))],
        out_specs=pl.BlockSpec((tm, Nout), lambda i: (i, 0)),
        compiler_params=pltpu.CompilerParams(dimension_semantics=("parallel",)),
    )(x2, w, s1.reshape(1, K), b1.reshape(1, K))


# ---------------- conv2 (3x3, pad=1) : implicit GEMM + BN3+ReLU epilogue ----------------

def _make_conv2_kernel(Ho, Wo, stride):
    def kernel(x_ref, w_ref, s3_ref, b3_ref, o_ref):
        # x_ref: (1, Hp, Wp, Cmid) bf16 — relu(bn2(conv1 out)), already zero-padded.
        cmid = x_ref.shape[-1]
        cout = w_ref.shape[-1]
        acc = jnp.zeros((Ho * Wo, cout), jnp.float32)
        for kh in range(3):
            for kw in range(3):
                if stride == 1:
                    patch = x_ref[0, kh:kh + Ho, kw:kw + Wo, :]
                else:
                    # TODO(synk): stride>1 path relies on strided in-kernel slices
                    # (not exercised by the stride=1 test below).
                    patch = x_ref[0,
                                  kh:kh + (Ho - 1) * stride + 1:stride,
                                  kw:kw + (Wo - 1) * stride + 1:stride, :]
                acc = acc + jnp.dot(patch.reshape(Ho * Wo, cmid),
                                    w_ref[kh * 3 + kw],
                                    preferred_element_type=jnp.float32)
        # epilogue: BN3 + ReLU (this feeds conv3)
        out = jnp.maximum(acc * s3_ref[...] + b3_ref[...], 0.0)
        o_ref[0] = out.astype(o_ref.dtype)
    return kernel


def conv3x3_bnrelu(y1p, w9, s3, b3, stride, Ho, Wo):
    # y1p: (N, Hp, Wp, Cmid) bf16 (pre-activated + zero-padded); w9: (9, Cmid, Cout) bf16
    N, Hp, Wp, Cmid = y1p.shape
    Cout = w9.shape[-1]
    kernel = _make_conv2_kernel(Ho, Wo, stride)
    return pl.pallas_call(
        kernel,
        out_shape=jax.ShapeDtypeStruct((N, Ho * Wo, Cout), jnp.bfloat16),
        grid=(N,),
        in_specs=[pl.BlockSpec((1, Hp, Wp, Cmid), lambda n: (n, 0, 0, 0)),
                  pl.BlockSpec((9, Cmid, Cout), lambda n: (0, 0, 0)),
                  pl.BlockSpec((1, Cout), lambda n: (0, 0)),
                  pl.BlockSpec((1, Cout), lambda n: (0, 0))],
        out_specs=pl.BlockSpec((1, Ho * Wo, Cout), lambda n: (n, 0, 0)),
        compiler_params=pltpu.CompilerParams(dimension_semantics=("parallel",)),
    )(y1p, w9, s3.reshape(1, Cout), b3.reshape(1, Cout))


# ------------------- conv3 (1x1) : matmul with fused residual add -------------------

def _conv3_kernel(a_ref, w_ref, sc_ref, o_ref):
    acc = jnp.dot(a_ref[...], w_ref[...], preferred_element_type=jnp.float32)
    o_ref[...] = acc + sc_ref[...]          # residual add fused into the epilogue


def conv1x1_residual(a2, w, sc2):
    M, K = a2.shape
    Nout = w.shape[1]
    tm = _pick_tm(M)
    return pl.pallas_call(
        _conv3_kernel,
        out_shape=jax.ShapeDtypeStruct((M, Nout), jnp.float32),
        grid=(pl.cdiv(M, tm),),
        in_specs=[pl.BlockSpec((tm, K), lambda i: (i, 0)),
                  pl.BlockSpec((K, Nout), lambda i: (0, 0)),
                  pl.BlockSpec((tm, Nout), lambda i: (i, 0))],
        out_specs=pl.BlockSpec((tm, Nout), lambda i: (i, 0)),
        compiler_params=pltpu.CompilerParams(dimension_semantics=("parallel",)),
    )(a2, w, sc2)


# ----------------------------- parameters -----------------------------

def _bn_p(key, c):
    k1, k2, k3, k4 = jax.random.split(key, 4)
    return dict(gamma=1.0 + 0.1 * jax.random.normal(k1, (c,), jnp.float32),
                beta=0.1 * jax.random.normal(k2, (c,), jnp.float32),
                mean=0.1 * jax.random.normal(k3, (c,), jnp.float32),
                var=1.0 + 0.1 * jnp.abs(jax.random.normal(k4, (c,), jnp.float32)))


def _w1x1(key, cin, cout):
    w = jax.random.normal(key, (cin, cout), jnp.float32) / jnp.sqrt(float(cin))
    return w.astype(jnp.bfloat16)          # bf16 once at build time (MXU-native)


def _w3x3(key, cin, cout):
    w = jax.random.normal(key, (3, 3, cin, cout), jnp.float32) / jnp.sqrt(9.0 * cin)
    return w.reshape(9, cin, cout).astype(jnp.bfloat16)


def make_params(key, in_planes, planes, stride=1, expansion=4):
    ks = jax.random.split(key, 7)
    p = dict(bn1=_bn_p(ks[0], in_planes),
             w1=_w1x1(ks[1], in_planes, planes),
             bn2=_bn_p(ks[2], planes),
             w2=_w3x3(ks[3], planes, planes),
             bn3=_bn_p(ks[4], planes),
             w3=_w1x1(ks[5], planes, expansion * planes))
    if stride != 1 or in_planes != expansion * planes:
        p["w_sc"] = _w1x1(ks[6], in_planes, expansion * planes)
    return p


# ----------------------------- forward -----------------------------

def preact_bottleneck_forward(x_nchw, p, stride, eps=1e-5):
    # TODO(synk): eval-mode BatchNorm only (running stats folded to scale/shift);
    # training-mode batch-statistics reduction is not implemented.
    x = jnp.transpose(x_nchw, (0, 2, 3, 1)).astype(jnp.float32)   # NCHW -> NHWC
    N, H, W, Cin = x.shape
    planes = p["w1"].shape[1]
    cout = p["w3"].shape[1]

    def bn_affine(bn):
        s = bn["gamma"] * jax.lax.rsqrt(bn["var"] + eps)
        return s, bn["beta"] - bn["mean"] * s

    s1, b1 = bn_affine(p["bn1"])
    s2, b2 = bn_affine(p["bn2"])
    s3, b3 = bn_affine(p["bn3"])

    Ho = (H - 1) // stride + 1     # conv2 (3x3, pad=1, stride) output spatial size
    Wo = (W - 1) // stride + 1

    # ---- shortcut branch: conv(relu(bn1(x))) if present, else identity x ----
    if "w_sc" in p:
        xs = x[:, ::stride, ::stride, :]               # 1x1 stride == subsample
        sc = shortcut_1x1(xs.reshape(N * Ho * Wo, Cin), p["w_sc"], s1, b1)
    else:
        sc = x.reshape(N * H * W, Cin)                 # stride==1 and Cin==cout here

    # ---- conv1 (1x1): BN1+ReLU prologue, BN2+ReLU epilogue, all in one kernel ----
    y1 = conv1x1_bnrelu_pre_post(x.reshape(N * H * W, Cin), p["w1"], s1, b1, s2, b2)
    y1 = y1.reshape(N, H, W, planes)
    # zero-pad the already-activated tensor (conv2 has padding=1)
    y1p = jnp.pad(y1, ((0, 0), (1, 1), (1, 1), (0, 0)))

    # ---- conv2 (3x3): in-kernel 9-tap reduction, BN3+ReLU epilogue ----
    y2 = conv3x3_bnrelu(y1p, p["w2"], s3, b3, stride, Ho, Wo)
    y2 = y2.reshape(N * Ho * Wo, planes)

    # ---- conv3 (1x1) with the residual add fused into the epilogue ----
    out = conv1x1_residual(y2, p["w3"], sc)
    out = out.reshape(N, Ho, Wo, cout)
    return jnp.transpose(out, (0, 3, 1, 2))            # back to NCHW like torch


if __name__ == "__main__":
    key = jax.random.PRNGKey(0)
    kx, kp = jax.random.split(key)
    # Small PreActBottleneck: in_planes=64, planes=32 (expansion=4 -> 128 out channels),
    # stride=1, 16x16 spatial, batch 2. Shortcut conv is active (64 != 4*32).
    N, Cin, H, W = 2, 64, 16, 16
    planes, stride = 32, 1
    x = jax.random.normal(kx, (N, Cin, H, W), jnp.float32)
    params = make_params(kp, in_planes=Cin, planes=planes, stride=stride)

    fwd = jax.jit(preact_bottleneck_forward, static_argnums=(2,))
    out = fwd(x, params, stride)
    out = jax.block_until_ready(out)

    assert out.shape == (N, 4 * planes, H // stride, W // stride), out.shape
    assert out.dtype == jnp.float32
    assert bool(jnp.all(jnp.isfinite(out)))
    print("KERNEL_OK")
</pallas_src>

<mosaic_0001>
module attributes {stable_mosaic.version = 11 : i64} {
  func.func @_conv1_kernel(%arg0: i32, %arg1: memref<256x64xf32, #tpu.memory_space<vmem>>, %arg2: memref<64x32xbf16, #tpu.memory_space<vmem>>, %arg3: memref<1x64xf32, #tpu.memory_space<vmem>>, %arg4: memref<1x64xf32, #tpu.memory_space<vmem>>, %arg5: memref<1x32xf32, #tpu.memory_space<vmem>>, %arg6: memref<1x32xf32, #tpu.memory_space<vmem>>, %arg7: memref<256x32xbf16, #tpu.memory_space<vmem>>) attributes {dimension_semantics = [#tpu.dimension_semantics<parallel>], iteration_bounds = array<i64: 2>, scalar_prefetch = 0 : i64, scratch_operands = 0 : i64, tpu.core_type = #tpu.core_type<tc>, window_params = [{transform_indices = @transform_0, window_bounds = array<i64: 256, 64>}, {pipeline_mode = #tpu.pipeline_mode<synchronous>, transform_indices = @transform_1, window_bounds = array<i64: 64, 32>}, {pipeline_mode = #tpu.pipeline_mode<synchronous>, transform_indices = @transform_2, window_bounds = array<i64: 1, 64>}, {pipeline_mode = #tpu.pipeline_mode<synchronous>, transform_indices = @transform_3, window_bounds = array<i64: 1, 64>}, {pipeline_mode = #tpu.pipeline_mode<synchronous>, transform_indices = @transform_4, window_bounds = array<i64: 1, 32>}, {pipeline_mode = #tpu.pipeline_mode<synchronous>, transform_indices = @transform_5, window_bounds = array<i64: 1, 32>}, {transform_indices = @transform_6, window_bounds = array<i64: 256, 32>}]} {
    %c0 = arith.constant 0 : index
    %c0_0 = arith.constant 0 : index
    %0 = vector.load %arg1[%c0, %c0_0] : memref<256x64xf32, #tpu.memory_space<vmem>>, vector<256x64xf32>
    %c0_1 = arith.constant 0 : index
    %c0_2 = arith.constant 0 : index
    %1 = vector.load %arg3[%c0_1, %c0_2] : memref<1x64xf32, #tpu.memory_space<vmem>>, vector<1x64xf32>
    %2 = vector.broadcast %1 : vector<1x64xf32> to vector<256x64xf32>
    %3 = arith.mulf %0, %2 : vector<256x64xf32>
    %c0_3 = arith.constant 0 : index
    %c0_4 = arith.constant 0 : index
    %4 = vector.load %arg4[%c0_3, %c0_4] : memref<1x64xf32, #tpu.memory_space<vmem>>, vector<1x64xf32>
    %5 = vector.broadcast %4 : vector<1x64xf32> to vector<256x64xf32>
    %6 = arith.addf %3, %5 : vector<256x64xf32>
    %cst = arith.constant 0.000000e+00 : f32
    %7 = vector.broadcast %cst : f32 to vector<256x64xf32>
    %8 = arith.maximumf %6, %7 : vector<256x64xf32>
    %9 = arith.truncf %8 : vector<256x64xf32> to vector<256x64xbf16>
    %c0_5 = arith.constant 0 : index
    %c0_6 = arith.constant 0 : index
    %10 = vector.load %arg2[%c0_5, %c0_6] : memref<64x32xbf16, #tpu.memory_space<vmem>>, vector<64x32xbf16>
    %cst_7 = arith.constant dense<0.000000e+00> : vector<256x32xf32>
    %11 = tpu.matmul %9, %10, %cst_7 {dimension_numbers = #tpu.dot_dimension_numbers<[1], [0], [0], [1], [0, 0, 1, 1], [], []>} : vector<256x64xbf16>, vector<64x32xbf16>, vector<256x32xf32> -> vector<256x32xf32>
    %c0_8 = arith.constant 0 : index
    %c0_9 = arith.constant 0 : index
    %12 = vector.load %arg5[%c0_8, %c0_9] : memref<1x32xf32, #tpu.memory_space<vmem>>, vector<1x32xf32>
    %13 = vector.broadcast %12 : vector<1x32xf32> to vector<256x32xf32>
    %14 = arith.mulf %11, %13 : vector<256x32xf32>
    %c0_10 = arith.constant 0 : index
    %c0_11 = arith.constant 0 : index
    %15 = vector.load %arg6[%c0_10, %c0_11] : memref<1x32xf32, #tpu.memory_space<vmem>>, vector<1x32xf32>
    %16 = vector.broadcast %15 : vector<1x32xf32> to vector<256x32xf32>
    %17 = arith.addf %14, %16 : vector<256x32xf32>
    %cst_12 = arith.constant 0.000000e+00 : f32
    %18 = vector.broadcast %cst_12 : f32 to vector<256x32xf32>
    %19 = arith.maximumf %17, %18 : vector<256x32xf32>
    %20 = arith.truncf %19 : vector<256x32xf32> to vector<256x32xbf16>
    %c0_13 = arith.constant 0 : index
    %c0_14 = arith.constant 0 : index
    %21 = vector.load %arg7[%c0_13, %c0_14] : memref<256x32xbf16, #tpu.memory_space<vmem>>, vector<256x32xbf16>
    tpu.vector_store %arg7[%c0_13, %c0_14], %20 {strides = array<i32>} : memref<256x32xbf16, #tpu.memory_space<vmem>>, vector<256x32xbf16>,
    return
  }
  func.func @transform_0(%arg0: i32) -> (i32, i32) {
    %c0_i32 = arith.constant 0 : i32
    %c0_i32_0 = arith.constant 0 : i32
    return %arg0, %c0_i32 : i32, i32
  }
  func.func @transform_1(%arg0: i32) -> (i32, i32) {
    %c0_i32 = arith.constant 0 : i32
    %c0_i32_0 = arith.constant 0 : i32
    %c0_i32_1 = arith.constant 0 : i32
    return %c0_i32, %c0_i32_0 : i32, i32
  }
  func.func @transform_2(%arg0: i32) -> (i32, i32) {
    %c0_i32 = arith.constant 0 : i32
    %c0_i32_0 = arith.constant 0 : i32
    %c0_i32_1 = arith.constant 0 : i32
    return %c0_i32, %c0_i32_0 : i32, i32
  }
  func.func @transform_3(%arg0: i32) -> (i32, i32) {
    %c0_i32 = arith.constant 0 : i32
    %c0_i32_0 = arith.constant 0 : i32
    %c0_i32_1 = arith.constant 0 : i32
    return %c0_i32, %c0_i32_0 : i32, i32
  }
  func.func @transform_4(%arg0: i32) -> (i32, i32) {
    %c0_i32 = arith.constant 0 : i32
    %c0_i32_0 = arith.constant 0 : i32
    %c0_i32_1 = arith.constant 0 : i32
    return %c0_i32, %c0_i32_0 : i32, i32
  }
  func.func @transform_5(%arg0: i32) -> (i32, i32) {
    %c0_i32 = arith.constant 0 : i32
    %c0_i32_0 = arith.constant 0 : i32
    %c0_i32_1 = arith.constant 0 : i32
    return %c0_i32, %c0_i32_0 : i32, i32
  }
  func.func @transform_6(%arg0: i32) -> (i32, i32) {
    %c0_i32 = arith.constant 0 : i32
    %c0_i32_0 = arith.constant 0 : i32
    return %arg0, %c0_i32 : i32, i32
  }
}

module attributes {stable_mosaic.version = 11 : i64} {
  func.func @kernel(%arg0: i32, %arg1: memref<1x18x18x32xbf16, #tpu.memory_space<vmem>>, %arg2: memref<9x32x32xbf16, #tpu.memory_space<vmem>>, %arg3: memref<1x32xf32, #tpu.memory_space<vmem>>, %arg4: memref<1x32xf32, #tpu.memory_space<vmem>>, %arg5: memref<1x256x32xbf16, #tpu.memory_space<vmem>>) attributes {dimension_semantics = [#tpu.dimension_semantics<parallel>], iteration_bounds = array<i64: 2>, scalar_prefetch = 0 : i64, scratch_operands = 0 : i64, tpu.core_type = #tpu.core_type<tc>, window_params = [{transform_indices = @transform_0, window_bounds = array<i64: 1, 18, 18, 32>}, {pipeline_mode = #tpu.pipeline_mode<synchronous>, transform_indices = @transform_1, window_bounds = array<i64: 9, 32, 32>}, {pipeline_mode = #tpu.pipeline_mode<synchronous>, transform_indices = @transform_2, window_bounds = array<i64: 1, 32>}, {pipeline_mode = #tpu.pipeline_mode<synchronous>, transform_indices = @transform_3, window_bounds = array<i64: 1, 32>}, {transform_indices = @transform_4, window_bounds = array<i64: 1, 256, 32>}]} {
    %cst = arith.constant 0.000000e+00 : f32
    %0 = vector.broadcast %cst : f32 to vector<256x32xf32>
    %c0 = arith.constant 0 : index
    %c0_0 = arith.constant 0 : index
    %c0_1 = arith.constant 0 : index
    %c0_2 = arith.constant 0 : index
    %1 = vector.load %arg1[%c0, %c0_0, %c0_1, %c0_2] : memref<1x18x18x32xbf16, #tpu.memory_space<vmem>>, vector<1x16x16x32xbf16>
    %2 = vector.shape_cast %1 : vector<1x16x16x32xbf16> to vector<16x16x32xbf16>
    %3 = vector.shape_cast %2 : vector<16x16x32xbf16> to vector<256x32xbf16>
    %c0_3 = arith.constant 0 : index
    %c0_4 = arith.constant 0 : index
    %c0_5 = arith.constant 0 : index
    %4 = vector.load %arg2[%c0_3, %c0_4, %c0_5] : memref<9x32x32xbf16, #tpu.memory_space<vmem>>, vector<1x32x32xbf16>
    %5 = vector.shape_cast %4 : vector<1x32x32xbf16> to vector<32x32xbf16>
    %cst_6 = arith.constant dense<0.000000e+00> : vector<256x32xf32>
    %6 = tpu.matmul %3, %5, %cst_6 {dimension_numbers = #tpu.dot_dimension_numbers<[1], [0], [0], [1], [0, 0, 1, 1], [], []>} : vector<256x32xbf16>, vector<32x32xbf16>, vector<256x32xf32> -> vector<256x32xf32>
    %7 = arith.addf %0, %6 : vector<256x32xf32>
    %c0_7 = arith.constant 0 : index
    %c0_8 = arith.constant 0 : index
    %c1 = arith.constant 1 : index
    %c0_9 = arith.constant 0 : index
    %8 = vector.load %arg1[%c0_7, %c0_8, %c1, %c0_9] : memref<1x18x18x32xbf16, #tpu.memory_space<vmem>>, vector<1x16x16x32xbf16>
    %9 = vector.shape_cast %8 : vector<1x16x16x32xbf16> to vector<16x16x32xbf16>
    %10 = vector.shape_cast %9 : vector<16x16x32xbf16> to vector<256x32xbf16>
    %c1_10 = arith.constant 1 : index
    %c0_11 = arith.constant 0 : index
    %c0_12 = arith.constant 0 : index
    %11 = vector.load %arg2[%c1_10, %c0_11, %c0_12] : memref<9x32x32xbf16, #tpu.memory_space<vmem>>, vector<1x32x32xbf16>
    %12 = vector.shape_cast %11 : vector<1x32x32xbf16> to vector<32x32xbf16>
    %cst_13 = arith.constant dense<0.000000e+00> : vector<256x32xf32>
    %13 = tpu.matmul %10, %12, %cst_13 {dimension_numbers = #tpu.dot_dimension_numbers<[1], [0], [0], [1], [0, 0, 1, 1], [], []>} : vector<256x32xbf16>, vector<32x32xbf16>, vector<256x32xf32> -> vector<256x32xf32>
    %14 = arith.addf %7, %13 : vector<256x32xf32>
    %c0_14 = arith.constant 0 : index
    %c0_15 = arith.constant 0 : index
    %c2 = arith.constant 2 : index
    %c0_16 = arith.constant 0 : index
    %15 = vector.load %arg1[%c0_14, %c0_15, %c2, %c0_16] : memref<1x18x18x32xbf16, #tpu.memory_space<vmem>>, vector<1x16x16x32xbf16>
    %16 = vector.shape_cast %15 : vector<1x16x16x32xbf16> to vector<16x16x32xbf16>
    %17 = vector.shape_cast %16 : vector<16x16x32xbf16> to vector<256x32xbf16>
    %c2_17 = arith.constant 2 : index
    %c0_18 = arith.constant 0 : index
    %c0_19 = arith.constant 0 : index
    %18 = vector.load %arg2[%c2_17, %c0_18, %c0_19] : memref<9x32x32xbf16, #tpu.memory_space<vmem>>, vector<1x32x32xbf16>
    %19 = vector.shape_cast %18 : vector<1x32x32xbf16> to vector<32x32xbf16>
    %cst_20 = arith.constant dense<0.000000e+00> : vector<256x32xf32>
    %20 = tpu.matmul %17, %19, %cst_20 {dimension_numbers = #tpu.dot_dimension_numbers<[1], [0], [0], [1], [0, 0, 1, 1], [], []>} : vector<256x32xbf16>, vector<32x32xbf16>, vector<256x32xf32> -> vector<256x32xf32>
    %21 = arith.addf %14, %20 : vector<256x32xf32>
    %c0_21 = arith.constant 0 : index
    %c1_22 = arith.constant 1 : index
    %c0_23 = arith.constant 0 : index
    %c0_24 = arith.constant 0 : index
    %22 = vector.load %arg1[%c0_21, %c1_22, %c0_23, %c0_24] : memref<1x18x18x32xbf16, #tpu.memory_space<vmem>>, vector<1x16x16x32xbf16>
    %23 = vector.shape_cast %22 : vector<1x16x16x32xbf16> to vector<16x16x32xbf16>
    %24 = vector.shape_cast %23 : vector<16x16x32xbf16> to vector<256x32xbf16>
    %c3 = arith.constant 3 : index
    %c0_25 = arith.constant 0 : index
    %c0_26 = arith.constant 0 : index
    %25 = vector.load %arg2[%c3, %c0_25, %c0_26] : memref<9x32x32xbf16, #tpu.memory_space<vmem>>, vector<1x32x32xbf16>
    %26 = vector.shape_cast %25 : vector<1x32x32xbf16> to vector<32x32xbf16>
    %cst_27 = arith.constant dense<0.000000e+00> : vector<256x32xf32>
    %27 = tpu.matmul %24, %26, %cst_27 {dimension_numbers = #tpu.dot_dimension_numbers<[1], [0], [0], [1], [0, 0, 1, 1], [], []>} : vector<256x32xbf16>, vector<32x32xbf16>, vector<256x32xf32> -> vector<256x32xf32>
    %28 = arith.addf %21, %27 : vector<256x32xf32>
    %c0_28 = arith.constant 0 : index
    %c1_29 = arith.constant 1 : index
    %c1_30 = arith.constant 1 : index
    %c0_31 = arith.constant 0 : index
    %29 = vector.load %arg1[%c0_28, %c1_29, %c1_30, %c0_31] : memref<1x18x18x32xbf16, #tpu.memory_space<vmem>>, vector<1x16x16x32xbf16>
    %30 = vector.shape_cast %29 : vector<1x16x16x32xbf16> to vector<16x16x32xbf16>
    %31 = vector.shape_cast %30 : vector<16x16x32xbf16> to vector<256x32xbf16>
    %c4 = arith.constant 4 : index
    %c0_32 = arith.constant 0 : index
    %c0_33 = arith.constant 0 : index
    %32 = vector.load %arg2[%c4, %c0_32, %c0_33] : memref<9x32x32xbf16, #tpu.memory_space<vmem>>, vector<1x32x32xbf16>
    %33 = vector.shape_cast %32 : vector<1x32x32xbf16> to vector<32x32xbf16>
    %cst_34 = arith.constant dense<0.000000e+00> : vector<256x32xf32>
    %34 = tpu.matmul %31, %33, %cst_34 {dimension_numbers = #tpu.dot_dimension_numbers<[1], [0], [0], [1], [0, 0, 1, 1], [], []>} : vector<256x32xbf16>, vector<32x32xbf16>, vector<256x32xf32> -> vector<256x32xf32>
    %35 = arith.addf %28, %34 : vector<256x32xf32>
    %c0_35 = arith.constant 0 : index
    %c1_36 = arith.constant 1 : index
    %c2_37 = arith.constant 2 : index
    %c0_38 = arith.constant 0 : index
    %36 = vector.load %arg1[%c0_35, %c1_36, %c2_37, %c0_38] : memref<1x18x18x32xbf16, #tpu.memory_space<vmem>>, vector<1x16x16x32xbf16>
    %37 = vector.shape_cast %36 : vector<1x16x16x32xbf16> to vector<16x16x32xbf16>
    %38 = vector.shape_cast %37 : vector<16x16x32xbf16> to vector<256x32xbf16>
    %c5 = arith.constant 5 : index
    %c0_39 = arith.constant 0 : index
    %c0_40 = arith.constant 0 : index
    %39 = vector.load %arg2[%c5, %c0_39, %c0_40] : memref<9x32x32xbf16, #tpu.memory_space<vmem>>, vector<1x32x32xbf16>
    %40 = vector.shape_cast %39 : vector<1x32x32xbf16> to vector<32x32xbf16>
    %cst_41 = arith.constant dense<0.000000e+00> : vector<256x32xf32>
    %41 = tpu.matmul %38, %40, %cst_41 {dimension_numbers = #tpu.dot_dimension_numbers<[1], [0], [0], [1], [0, 0, 1, 1], [], []>} : vector<256x32xbf16>, vector<32x32xbf16>, vector<256x32xf32> -> vector<256x32xf32>
    %42 = arith.addf %35, %41 : vector<256x32xf32>
    %c0_42 = arith.constant 0 : index
    %c2_43 = arith.constant 2 : index
    %c0_44 = arith.constant 0 : index
    %c0_45 = arith.constant 0 : index
    %43 = vector.load %arg1[%c0_42, %c2_43, %c0_44, %c0_45] : memref<1x18x18x32xbf16, #tpu.memory_space<vmem>>, vector<1x16x16x32xbf16>
    %44 = vector.shape_cast %43 : vector<1x16x16x32xbf16> to vector<16x16x32xbf16>
    %45 = vector.shape_cast %44 : vector<16x16x32xbf16> to vector<256x32xbf16>
    %c6 = arith.constant 6 : index
    %c0_46 = arith.constant 0 : index
    %c0_47 = arith.constant 0 : index
    %46 = vector.load %arg2[%c6, %c0_46, %c0_47] : memref<9x32x32xbf16, #tpu.memory_space<vmem>>, vector<1x32x32xbf16>
    %47 = vector.shape_cast %46 : vector<1x32x32xbf16> to vector<32x32xbf16>
    %cst_48 = arith.constant dense<0.000000e+00> : vector<256x32xf32>
    %48 = tpu.matmul %45, %47, %cst_48 {dimension_numbers = #tpu.dot_dimension_numbers<[1], [0], [0], [1], [0, 0, 1, 1], [], []>} : vector<256x32xbf16>, vector<32x32xbf16>, vector<256x32xf32> -> vector<256x32xf32>
    %49 = arith.addf %42, %48 : vector<256x32xf32>
    %c0_49 = arith.constant 0 : index
    %c2_50 = arith.constant 2 : index
    %c1_51 = arith.constant 1 : index
    %c0_52 = arith.constant 0 : index
    %50 = vector.load %arg1[%c0_49, %c2_50, %c1_51, %c0_52] : memref<1x18x18x32xbf16, #tpu.memory_space<vmem>>, vector<1x16x16x32xbf16>
    %51 = vector.shape_cast %50 : vector<1x16x16x32xbf16> to vector<16x16x32xbf16>
    %52 = vector.shape_cast %51 : vector<16x16x32xbf16> to vector<256x32xbf16>
    %c7 = arith.constant 7 : index
    %c0_53 = arith.constant 0 : index
    %c0_54 = arith.constant 0 : index
    %53 = vector.load %arg2[%c7, %c0_53, %c0_54] : memref<9x32x32xbf16, #tpu.memory_space<vmem>>, vector<1x32x32xbf16>
    %54 = vector.shape_cast %53 : vector<1x32x32xbf16> to vector<32x32xbf16>
    %cst_55 = arith.constant dense<0.000000e+00> : vector<256x32xf32>
    %55 = tpu.matmul %52, %54, %cst_55 {dimension_numbers = #tpu.dot_dimension_numbers<[1], [0], [0], [1], [0, 0, 1, 1], [], []>} : vector<256x32xbf16>, vector<32x32xbf16>, vector<256x32xf32> -> vector<256x32xf32>
    %56 = arith.addf %49, %55 : vector<256x32xf32>
    %c0_56 = arith.constant 0 : index
    %c2_57 = arith.constant 2 : index
    %c2_58 = arith.constant 2 : index
    %c0_59 = arith.constant 0 : index
    %57 = vector.load %arg1[%c0_56, %c2_57, %c2_58, %c0_59] : memref<1x18x18x32xbf16, #tpu.memory_space<vmem>>, vector<1x16x16x32xbf16>
    %58 = vector.shape_cast %57 : vector<1x16x16x32xbf16> to vector<16x16x32xbf16>
    %59 = vector.shape_cast %58 : vector<16x16x32xbf16> to vector<256x32xbf16>
    %c8 = arith.constant 8 : index
    %c0_60 = arith.constant 0 : index
    %c0_61 = arith.constant 0 : index
    %60 = vector.load %arg2[%c8, %c0_60, %c0_61] : memref<9x32x32xbf16, #tpu.memory_space<vmem>>, vector<1x32x32xbf16>
    %61 = vector.shape_cast %60 : vector<1x32x32xbf16> to vector<32x32xbf16>
    %cst_62 = arith.constant dense<0.000000e+00> : vector<256x32xf32>
    %62 = tpu.matmul %59, %61, %cst_62 {dimension_numbers = #tpu.dot_dimension_numbers<[1], [0], [0], [1], [0, 0, 1, 1], [], []>} : vector<256x32xbf16>, vector<32x32xbf16>, vector<256x32xf32> -> vector<256x32xf32>
    %63 = arith.addf %56, %62 : vector<256x32xf32>
    %c0_63 = arith.constant 0 : index
    %c0_64 = arith.constant 0 : index
    %64 = vector.load %arg3[%c0_63, %c0_64] : memref<1x32xf32, #tpu.memory_space<vmem>>, vector<1x32xf32>
    %65 = vector.broadcast %64 : vector<1x32xf32> to vector<256x32xf32>
    %66 = arith.mulf %63, %65 : vector<256x32xf32>
    %c0_65 = arith.constant 0 : index
    %c0_66 = arith.constant 0 : index
    %67 = vector.load %arg4[%c0_65, %c0_66] : memref<1x32xf32, #tpu.memory_space<vmem>>, vector<1x32xf32>
    %68 = vector.broadcast %67 : vector<1x32xf32> to vector<256x32xf32>
    %69 = arith.addf %66, %68 : vector<256x32xf32>
    %cst_67 = arith.constant 0.000000e+00 : f32
    %70 = vector.broadcast %cst_67 : f32 to vector<256x32xf32>
    %71 = arith.maximumf %69, %70 : vector<256x32xf32>
    %72 = arith.truncf %71 : vector<256x32xf32> to vector<256x32xbf16>
    %c0_68 = arith.constant 0 : index
    %c0_69 = arith.constant 0 : index
    %c0_70 = arith.constant 0 : index
    %73 = vector.load %arg5[%c0_68, %c0_69, %c0_70] : memref<1x256x32xbf16, #tpu.memory_space<vmem>>, vector<1x256x32xbf16>
    %74 = vector.shape_cast %73 : vector<1x256x32xbf16> to vector<256x32xbf16>
    %75 = vector.shape_cast %72 : vector<256x32xbf16> to vector<1x256x32xbf16>
    tpu.vector_store %arg5[%c0_68, %c0_69, %c0_70], %75 {strides = array<i32>} : memref<1x256x32xbf16, #tpu.memory_space<vmem>>, vector<1x256x32xbf16>,
    return
  }
  func.func @transform_0(%arg0: i32) -> (i32, i32, i32, i32) {
    %c0_i32 = arith.constant 0 : i32
    %c0_i32_0 = arith.constant 0 : i32
    %c0_i32_1 = arith.constant 0 : i32
    %c0_i32_2 = arith.constant 0 : i32
    return %arg0, %c0_i32, %c0_i32_0, %c0_i32_1 : i32, i32, i32, i32
  }
  func.func @transform_1(%arg0: i32) -> (i32, i32, i32) {
    %c0_i32 = arith.constant 0 : i32
    %c0_i32_0 = arith.constant 0 : i32
    %c0_i32_1 = arith.constant 0 : i32
    %c0_i32_2 = arith.constant 0 : i32
    return %c0_i32, %c0_i32_0, %c0_i32_1 : i32, i32, i32
  }
  func.func @transform_2(%arg0: i32) -> (i32, i32) {
    %c0_i32 = arith.constant 0 : i32
    %c0_i32_0 = arith.constant 0 : i32
    %c0_i32_1 = arith.constant 0 : i32
    return %c0_i32, %c0_i32_0 : i32, i32
  }
  func.func @transform_3(%arg0: i32) -> (i32, i32) {
    %c0_i32 = arith.constant 0 : i32
    %c0_i32_0 = arith.constant 0 : i32
    %c0_i32_1 = arith.constant 0 : i32
    return %c0_i32, %c0_i32_0 : i32, i32
  }
  func.func @transform_4(%arg0: i32) -> (i32, i32, i32) {
    %c0_i32 = arith.constant 0 : i32
    %c0_i32_0 = arith.constant 0 : i32
    %c0_i32_1 = arith.constant 0 : i32
    return %arg0, %c0_i32, %c0_i32_0 : i32, i32, i32
  }
}

module attributes {stable_mosaic.version = 11 : i64} {
  func.func @_shortcut_kernel(%arg0: i32, %arg1: memref<256x64xf32, #tpu.memory_space<vmem>>, %arg2: memref<64x128xbf16, #tpu.memory_space<vmem>>, %arg3: memref<1x64xf32, #tpu.memory_space<vmem>>, %arg4: memref<1x64xf32, #tpu.memory_space<vmem>>, %arg5: memref<256x128xf32, #tpu.memory_space<vmem>>) attributes {dimension_semantics = [#tpu.dimension_semantics<parallel>], iteration_bounds = array<i64: 2>, scalar_prefetch = 0 : i64, scratch_operands = 0 : i64, tpu.core_type = #tpu.core_type<tc>, window_params = [{transform_indices = @transform_0, window_bounds = array<i64: 256, 64>}, {pipeline_mode = #tpu.pipeline_mode<synchronous>, transform_indices = @transform_1, window_bounds = array<i64: 64, 128>}, {pipeline_mode = #tpu.pipeline_mode<synchronous>, transform_indices = @transform_2, window_bounds = array<i64: 1, 64>}, {pipeline_mode = #tpu.pipeline_mode<synchronous>, transform_indices = @transform_3, window_bounds = array<i64: 1, 64>}, {transform_indices = @transform_4, window_bounds = array<i64: 256, 128>}]} {
    %c0 = arith.constant 0 : index
    %c0_0 = arith.constant 0 : index
    %0 = vector.load %arg1[%c0, %c0_0] : memref<256x64xf32, #tpu.memory_space<vmem>>, vector<256x64xf32>
    %c0_1 = arith.constant 0 : index
    %c0_2 = arith.constant 0 : index
    %1 = vector.load %arg3[%c0_1, %c0_2] : memref<1x64xf32, #tpu.memory_space<vmem>>, vector<1x64xf32>
    %2 = vector.broadcast %1 : vector<1x64xf32> to vector<256x64xf32>
    %3 = arith.mulf %0, %2 : vector<256x64xf32>
    %c0_3 = arith.constant 0 : index
    %c0_4 = arith.constant 0 : index
    %4 = vector.load %arg4[%c0_3, %c0_4] : memref<1x64xf32, #tpu.memory_space<vmem>>, vector<1x64xf32>
    %5 = vector.broadcast %4 : vector<1x64xf32> to vector<256x64xf32>
    %6 = arith.addf %3, %5 : vector<256x64xf32>
    %cst = arith.constant 0.000000e+00 : f32
    %7 = vector.broadcast %cst : f32 to vector<256x64xf32>
    %8 = arith.maximumf %6, %7 : vector<256x64xf32>
    %9 = arith.truncf %8 : vector<256x64xf32> to vector<256x64xbf16>
    %c0_5 = arith.constant 0 : index
    %c0_6 = arith.constant 0 : index
    %10 = vector.load %arg2[%c0_5, %c0_6] : memref<64x128xbf16, #tpu.memory_space<vmem>>, vector<64x128xbf16>
    %cst_7 = arith.constant dense<0.000000e+00> : vector<256x128xf32>
    %11 = tpu.matmul %9, %10, %cst_7 {dimension_numbers = #tpu.dot_dimension_numbers<[1], [0], [0], [1], [0, 0, 1, 1], [], []>} : vector<256x64xbf16>, vector<64x128xbf16>, vector<256x128xf32> -> vector<256x128xf32>
    %c0_8 = arith.constant 0 : index
    %c0_9 = arith.constant 0 : index
    %12 = vector.load %arg5[%c0_8, %c0_9] : memref<256x128xf32, #tpu.memory_space<vmem>>, vector<256x128xf32>
    tpu.vector_store %arg5[%c0_8, %c0_9], %11 {strides = array<i32>} : memref<256x128xf32, #tpu.memory_space<vmem>>, vector<256x128xf32>,
    return
  }
  func.func @transform_0(%arg0: i32) -> (i32, i32) {
    %c0_i32 = arith.constant 0 : i32
    %c0_i32_0 = arith.constant 0 : i32
    return %arg0, %c0_i32 : i32, i32
  }
  func.func @transform_1(%arg0: i32) -> (i32, i32) {
    %c0_i32 = arith.constant 0 : i32
    %c0_i32_0 = arith.constant 0 : i32
    %c0_i32_1 = arith.constant 0 : i32
    return %c0_i32, %c0_i32_0 : i32, i32
  }
  func.func @transform_2(%arg0: i32) -> (i32, i32) {
    %c0_i32 = arith.constant 0 : i32
    %c0_i32_0 = arith.constant 0 : i32
    %c0_i32_1 = arith.constant 0 : i32
    return %c0_i32, %c0_i32_0 : i32, i32
  }
  func.func @transform_3(%arg0: i32) -> (i32, i32) {
    %c0_i32 = arith.constant 0 : i32
    %c0_i32_0 = arith.constant 0 : i32
    %c0_i32_1 = arith.constant 0 : i32
    return %c0_i32, %c0_i32_0 : i32, i32
  }
  func.func @transform_4(%arg0: i32) -> (i32, i32) {
    %c0_i32 = arith.constant 0 : i32
    %c0_i32_0 = arith.constant 0 : i32
    return %arg0, %c0_i32 : i32, i32
  }
}

module attributes {stable_mosaic.version = 11 : i64} {
  func.func @_conv3_kernel(%arg0: i32, %arg1: memref<256x32xbf16, #tpu.memory_space<vmem>>, %arg2: memref<32x128xbf16, #tpu.memory_space<vmem>>, %arg3: memref<256x128xf32, #tpu.memory_space<vmem>>, %arg4: memref<256x128xf32, #tpu.memory_space<vmem>>) attributes {dimension_semantics = [#tpu.dimension_semantics<parallel>], iteration_bounds = array<i64: 2>, scalar_prefetch = 0 : i64, scratch_operands = 0 : i64, tpu.core_type = #tpu.core_type<tc>, window_params = [{transform_indices = @transform_0, window_bounds = array<i64: 256, 32>}, {pipeline_mode = #tpu.pipeline_mode<synchronous>, transform_indices = @transform_1, window_bounds = array<i64: 32, 128>}, {transform_indices = @transform_2, window_bounds = array<i64: 256, 128>}, {transform_indices = @transform_3, window_bounds = array<i64: 256, 128>}]} {
    %c0 = arith.constant 0 : index
    %c0_0 = arith.constant 0 : index
    %0 = vector.load %arg1[%c0, %c0_0] : memref<256x32xbf16, #tpu.memory_space<vmem>>, vector<256x32xbf16>
    %c0_1 = arith.constant 0 : index
    %c0_2 = arith.constant 0 : index
    %1 = vector.load %arg2[%c0_1, %c0_2] : memref<32x128xbf16, #tpu.memory_space<vmem>>, vector<32x128xbf16>
    %cst = arith.constant dense<0.000000e+00> : vector<256x128xf32>
    %2 = tpu.matmul %0, %1, %cst {dimension_numbers = #tpu.dot_dimension_numbers<[1], [0], [0], [1], [0, 0, 1, 1], [], []>} : vector<256x32xbf16>, vector<32x128xbf16>, vector<256x128xf32> -> vector<256x128xf32>
    %c0_3 = arith.constant 0 : index
    %c0_4 = arith.constant 0 : index
    %3 = vector.load %arg3[%c0_3, %c0_4] : memref<256x128xf32, #tpu.memory_space<vmem>>, vector<256x128xf32>
    %4 = arith.addf %2, %3 : vector<256x128xf32>
    %c0_5 = arith.constant 0 : index
    %c0_6 = arith.constant 0 : index
    %5 = vector.load %arg4[%c0_5, %c0_6] : memref<256x128xf32, #tpu.memory_space<vmem>>, vector<256x128xf32>
    tpu.vector_store %arg4[%c0_5, %c0_6], %4 {strides = array<i32>} : memref<256x128xf32, #tpu.memory_space<vmem>>, vector<256x128xf32>,
    return
  }
  func.func @transform_0(%arg0: i32) -> (i32, i32) {
    %c0_i32 = arith.constant 0 : i32
    %c0_i32_0 = arith.constant 0 : i32
    return %arg0, %c0_i32 : i32, i32
  }
  func.func @transform_1(%arg0: i32) -> (i32, i32) {
    %c0_i32 = arith.constant 0 : i32
    %c0_i32_0 = arith.constant 0 : i32
    %c0_i32_1 = arith.constant 0 : i32
    return %c0_i32, %c0_i32_0 : i32, i32
  }
  func.func @transform_2(%arg0: i32) -> (i32, i32) {
    %c0_i32 = arith.constant 0 : i32
    %c0_i32_0 = arith.constant 0 : i32
    return %arg0, %c0_i32 : i32, i32
  }
  func.func @transform_3(%arg0: i32) -> (i32, i32) {
    %c0_i32 = arith.constant 0 : i32
    %c0_i32_0 = arith.constant 0 : i32
    return %arg0, %c0_i32 : i32, i32
  }
}

</mosaic_0001>

<llo_original>
// kernel: preact_bottleneck_forward.5
$region0: #{preact_bottleneck_forward.5}
  #allocation0 [shape = 'u32[]', space=smem, size = 0x4, offset = 0x4, fixed_abs, tag = 'smem constant byte address 0x4 - core index']
  #allocation1 [shape = 'u32[144,128]{1,0:T(1,128)}', space=vmem, size = 0x12000, scoped, tag = 'internal scratch']
  %s0 = inlined_call_operand.hbm [shape: f32[512,64], index: 0, kind: input, shape index: {}]
  %s1 = inlined_call_operand.vmem [shape: bf16[64,32], index: 1, kind: input, shape index: {}]
  %s2 = inlined_call_operand.vmem [shape: f32[1,64], index: 2, kind: input, shape index: {}]
  %s3 = inlined_call_operand.vmem [shape: f32[1,64], index: 3, kind: input, shape index: {}]
  %s4 = inlined_call_operand.vmem [shape: f32[1,32], index: 4, kind: input, shape index: {}]
  %s5 = inlined_call_operand.vmem [shape: f32[1,32], index: 5, kind: input, shape index: {}]
  %s6 = inlined_call_operand.vmem [shape: bf16[512,32], index: 6, kind: output, shape index: {}]
  %s7 = sld [smem:[#allocation0]]
  $region61: #{preact_bottleneck_forward.5} parent=0
    _
  %s9 = ssub.s32 1, %s7
  %s10 = scalar_select 0, %s9, %s7
  $region1: #{preact_bottleneck_forward.5} parent=0
    #allocation2 [shape = 'u8[262144]{0}', space=vmem, size = 0x40000, scoped, tag = 'input window, operand 0']
    #allocation3 [shape = 's32[2]{0}', space=sflag, size = 0x8, scoped, tag = 'scoped memory for preact_bottleneck_forward.5']
    %11 = vsyncpa [#allocation3], 0
    %s12 = scalar_lea.sflag [#allocation3], 1
    %13 = vsyncpa %s12, 0
    loop: start=0, step=1, limit=4
    $region2: #{preact_bottleneck_forward.5} parent=1 // loop_pre_header
      _
    $region3: #{preact_bottleneck_forward.5} parent=1 // loop_header
      %s15 = sphi 0, %s19
      %p16 = scmp.ge.s32.totalorder %s15, 4
      %s25 = sphi 0, %s27
      %s28 = sphi 0, %s25
      %s29 = sphi 0, %s28
      %s45 = sphi 0, %s29
      %s49 = sphi 0, %s49
      %s51 = sphi 0, %s49
      %s52 = sphi 0, %s51
      %s66 = sphi 0, %s52
      %s70 = sphi 0, %s70
      %s72 = sphi 0, %s70
      %s73 = sphi 0, %s72
      %s87 = sphi 0, %s73
      %s91 = sphi 0, %s91
      %s93 = sphi 0, %s91
      %s94 = sphi 0, %s93
      %s108 = sphi 0, %s94
      %s112 = sphi 0, %s112
      %s114 = sphi 0, %s112
      %s115 = sphi 0, %s114
      %s129 = sphi 0, %s115
      %s133 = sphi 0, %s133
      %s135 = sphi 0, %s133
      %s136 = sphi 0, %s135
      %s150 = sphi 0, %s136
      %s156 = sphi 0, %s158
      %s159 = sphi 0, %s156
      %s160 = sphi 0, %s159
      %s176 = sphi 0, %s160
    $region4: #{preact_bottleneck_forward.5} parent=1 // loop_header_branch
      %18 = sbr.rel (%p16) target = $region8
    $region5: #{preact_bottleneck_forward.5} parent=1 // loop_body
      %s20 = ssub.s32 %s15, 1
      %s21 = ssub.s32 %s15, 2
      %s22 = sadd.s32 %s15, 1
      %s23 = ssub.s32 %s15, %s22
      %p24 = scmp.eq.s32.totalorder %s23, 0
      %s26 = sadd.s32 %s25, 1
      %s27 = scalar_select %p24, %s25, %s26
      %p30 = pneg %p24
      %p31 = scmp.eq.s32.totalorder %s15, 1
      %p32 = por %p30, %p31
      %p33 = scmp.ne.s32.totalorder %s25, %s28
      %p34 = scmp.eq.s32.totalorder %s15, 0
      %p35 = por %p33, %p34
      %p36 = scmp.ne.s32.totalorder %s25, %s28
      %p37 = scmp.eq.s32.totalorder %s20, 1
      %p38 = por %p36, %p37
      %p39 = scmp.ne.s32.totalorder %s28, %s29
      %p40 = scmp.eq.s32.totalorder %s20, 0
      %p41 = por %p39, %p40
      %p42 = scmp.ne.s32.totalorder %s28, %s29
      %p43 = scmp.eq.s32.totalorder %s21, 1
      %p44 = por %p42, %p43
      %p46 = scmp.ne.s32.totalorder %s29, %s45
      %p47 = scmp.eq.s32.totalorder %s21, 0
      %p48 = por %p46, %p47
      %s50 = sadd.s32 %s49, 1
      %p53 = scmp.eq.s32.totalorder %s15, 1
      %p54 = scmp.ne.s32.totalorder %s49, %s51
      %p55 = scmp.eq.s32.totalorder %s15, 0
      %p56 = por %p54, %p55
      %p57 = scmp.ne.s32.totalorder %s49, %s51
      %p58 = scmp.eq.s32.totalorder %s20, 1
      %p59 = por %p57, %p58
      %p60 = scmp.ne.s32.totalorder %s51, %s52
      %p61 = scmp.eq.s32.totalorder %s20, 0
      %p62 = por %p60, %p61
      %p63 = scmp.ne.s32.totalorder %s51, %s52
      %p64 = scmp.eq.s32.totalorder %s21, 1
      %p65 = por %p63, %p64
      %p67 = scmp.ne.s32.totalorder %s52, %s66
      %p68 = scmp.eq.s32.totalorder %s21, 0
      %p69 = por %p67, %p68
      %s71 = sadd.s32 %s70, 1
      %p74 = scmp.eq.s32.totalorder %s15, 1
      %p75 = scmp.ne.s32.totalorder %s70, %s72
      %p76 = scmp.eq.s32.totalorder %s15, 0
      %p77 = por %p75, %p76
      %p78 = scmp.ne.s32.totalorder %s70, %s72
      %p79 = scmp.eq.s32.totalorder %s20, 1
      %p80 = por %p78, %p79
      %p81 = scmp.ne.s32.totalorder %s72, %s73
      %p82 = scmp.eq.s32.totalorder %s20, 0
      %p83 = por %p81, %p82
      %p84 = scmp.ne.s32.totalorder %s72, %s73
      %p85 = scmp.eq.s32.totalorder %s21, 1
      %p86 = por %p84, %p85
      %p88 = scmp.ne.s32.totalorder %s73, %s87
      %p89 = scmp.eq.s32.totalorder %s21, 0
      %p90 = por %p88, %p89
      %s92 = sadd.s32 %s91, 1
      %p95 = scmp.eq.s32.totalorder %s15, 1
      %p96 = scmp.ne.s32.totalorder %s91, %s93
      %p97 = scmp.eq.s32.totalorder %s15, 0
      %p98 = por %p96, %p97
      %p99 = scmp.ne.s32.totalorder %s91, %s93
      %p100 = scmp.eq.s32.totalorder %s20, 1
      %p101 = por %p99, %p100
      %p102 = scmp.ne.s32.totalorder %s93, %s94
      %p103 = scmp.eq.s32.totalorder %s20, 0
      %p104 = por %p102, %p103
      %p105 = scmp.ne.s32.totalorder %s93, %s94
      %p106 = scmp.eq.s32.totalorder %s21, 1
      %p107 = por %p105, %p106
      %p109 = scmp.ne.s32.totalorder %s94, %s108
      %p110 = scmp.eq.s32.totalorder %s21, 0
      %p111 = por %p109, %p110
      %s113 = sadd.s32 %s112, 1
      %p116 = scmp.eq.s32.totalorder %s15, 1
      %p117 = scmp.ne.s32.totalorder %s112, %s114
      %p118 = scmp.eq.s32.totalorder %s15, 0
      %p119 = por %p117, %p118
      %p120 = scmp.ne.s32.totalorder %s112, %s114
      %p121 = scmp.eq.s32.totalorder %s20, 1
      %p122 = por %p120, %p121
      %p123 = scmp.ne.s32.totalorder %s114, %s115
      %p124 = scmp.eq.s32.totalorder %s20, 0
      %p125 = por %p123, %p124
      %p126 = scmp.ne.s32.totalorder %s114, %s115
      %p127 = scmp.eq.s32.totalorder %s21, 1
      %p128 = por %p126, %p127
      %p130 = scmp.ne.s32.totalorder %s115, %s129
      %p131 = scmp.eq.s32.totalorder %s21, 0
      %p132 = por %p130, %p131
      %s134 = sadd.s32 %s133, 1
      %p137 = scmp.eq.s32.totalorder %s15, 1
      %p138 = scmp.ne.s32.totalorder %s133, %s135
      %p139 = scmp.eq.s32.totalorder %s15, 0
      %p140 = por %p138, %p139
      %p141 = scmp.ne.s32.totalorder %s133, %s135
      %p142 = scmp.eq.s32.totalorder %s20, 1
      %p143 = por %p141, %p142
      %p144 = scmp.ne.s32.totalorder %s135, %s136
      %p145 = scmp.eq.s32.totalorder %s20, 0
      %p146 = por %p144, %p145
      %p147 = scmp.ne.s32.totalorder %s135, %s136
      %p148 = scmp.eq.s32.totalorder %s21, 1
      %p149 = por %p147, %p148
      %p151 = scmp.ne.s32.totalorder %s136, %s150
      %p152 = scmp.eq.s32.totalorder %s21, 0
      %p153 = por %p151, %p152
      %s154 = ssub.s32 %s15, %s22
      %p155 = scmp.eq.s32.totalorder %s154, 0
      %s157 = sadd.s32 %s156, 1
      %s158 = scalar_select %p155, %s156, %s157
      %p161 = pneg %p155
      %p162 = scmp.eq.s32.totalorder %s15, 1
      %p163 = por %p161, %p162
      %p164 = scmp.ne.s32.totalorder %s156, %s159
      %p165 = scmp.eq.s32.totalorder %s15, 0
      %p166 = por %p164, %p165
      %p167 = scmp.ne.s32.totalorder %s156, %s159
      %p168 = scmp.eq.s32.totalorder %s20, 1
      %p169 = por %p167, %p168
      %p170 = scmp.ne.s32.totalorder %s159, %s160
      %p171 = scmp.eq.s32.totalorder %s20, 0
      %p172 = por %p170, %p171
      %p173 = scmp.ne.s32.totalorder %s159, %s160
      %p174 = scmp.eq.s32.totalorder %s21, 1
      %p175 = por %p173, %p174
      %p177 = scmp.ne.s32.totalorder %s160, %s176
      %p178 = scmp.eq.s32.totalorder %s21, 0
      %p179 = por %p177, %p178
      %p180 = scmp.le.s32.totalorder 1, %s15
      %p181 = scmp.lt.s32.totalorder %s15, 3
      %p182 = pnand %p180, %p181
      %p183 = pneg %p182
      // Predicated region
      $region9: #{preact_bottleneck_forward.5} parent=5 // pred_check
        _
      $region10: #{preact_bottleneck_forward.5} parent=5 // pred_check_branch
        %185 = sbr.rel (%p182) target = $region12
      $region11: #{preact_bottleneck_forward.5} parent=5 // pred_region
        %s186 = ssub.s32 %s15, 1
        // Predicated region
        $region13: #{preact_bottleneck_forward.5} parent=11 // pred_check
          %p187 = pneg %p62
        $region14: #{preact_bottleneck_forward.5} parent=11 // pred_check_branch
          %189 = sbr.rel (%p187) target = $region16
        $region15: #{preact_bottleneck_forward.5} parent=11 // pred_region
          _
        $region16: #{preact_bottleneck_forward.5} parent=11 // pred_fallthru
          _
        // Predicated region
        $region17: #{preact_bottleneck_forward.5} parent=11 // pred_check
          %p190 = pneg %p83
        $region18: #{preact_bottleneck_forward.5} parent=11 // pred_check_branch
          %192 = sbr.rel (%p190) target = $region20
        $region19: #{preact_bottleneck_forward.5} parent=11 // pred_region
          _
        $region20: #{preact_bottleneck_forward.5} parent=11 // pred_fallthru
          _
        // Predicated region
        $region21: #{preact_bottleneck_forward.5} parent=11 // pred_check
          %p193 = pneg %p104
        $region22: #{preact_bottleneck_forward.5} parent=11 // pred_check_branch
          %195 = sbr.rel (%p193) target = $region24
        $region23: #{preact_bottleneck_forward.5} parent=11 // pred_region
          _
        $region24: #{preact_bottleneck_forward.5} parent=11 // pred_fallthru
          _
        // Predicated region
        $region25: #{preact_bottleneck_forward.5} parent=11 // pred_check
          %p196 = pneg %p125
        $region26: #{preact_bottleneck_forward.5} parent=11 // pred_check_branch
          %198 = sbr.rel (%p196) target = $region28
        $region27: #{preact_bottleneck_forward.5} parent=11 // pred_region
          _
        $region28: #{preact_bottleneck_forward.5} parent=11 // pred_fallthru
          _
        // Predicated region
        $region29: #{preact_bottleneck_forward.5} parent=11 // pred_check
          %p199 = pneg %p146
        $region30: #{preact_bottleneck_forward.5} parent=11 // pred_check_branch
          %201 = sbr.rel (%p199) target = $region32
        $region31: #{preact_bottleneck_forward.5} parent=11 // pred_region
          _
        $region32: #{preact_bottleneck_forward.5} parent=11 // pred_fallthru
          _
      $region12: #{preact_bottleneck_forward.5} parent=5 // pred_fallthru
        _
      %p202 = scmp.lt.s32.totalorder %s15, 2
      // Predicated region
      $region33: #{preact_bottleneck_forward.5} parent=5 // pred_check
        %p203 = pneg %p202
      $region34: #{preact_bottleneck_forward.5} parent=5 // pred_check_branch
        %205 = sbr.rel (%p203) target = $region36
      $region35: #{preact_bottleneck_forward.5} parent=5 // pred_region
        // Predicated region
        $region37: #{preact_bottleneck_forward.5} parent=35 // pred_check
          %p206 = pneg %p35
        $region38: #{preact_bottleneck_forward.5} parent=35 // pred_check_branch
          %208 = sbr.rel (%p206) target = $region40
        $region39: #{preact_bottleneck_forward.5} parent=35 // pred_region
          %s209 = sand.u32 %s25, 1
          %s210 = scalar_lea.sflag [#allocation3], %s209
          %s211 = sand.u32 %s25, 1
          %s212 = smul.addr %s211, 256
          %s213 = scalar_lea.vmem [#allocation2], %s212
          %s214 = smul.u32 32, %s15
          %s216 = ssub.s32 4096, 4096
          %217 = vsyncadd %s210, %s216
          %s218 = smul.addr %s214, 128
          %s219 = scalar_lea.hbm %s0, %s218
          %s220 = sshll.u32 %s213, 4
          %s221 = int_to_ptr.vmem [resolvable:$true] %s220
          %226 = dma.hbm_to_vmem [thread:$0]  %s219, 4096, %s221, %s210, 128, 128, 8
        $region40: #{preact_bottleneck_forward.5} parent=35 // pred_fallthru
          _
      $region36: #{preact_bottleneck_forward.5} parent=5 // pred_fallthru
        _
      %p227 = scmp.le.s32.totalorder 1, %s15
      %p228 = scmp.lt.s32.totalorder %s15, 3
      %p229 = pnand %p227, %p228
      %p230 = pneg %p229
      // Predicated region
      $region41: #{preact_bottleneck_forward.5} parent=5 // pred_check
        _
      $region42: #{preact_bottleneck_forward.5} parent=5 // pred_check_branch
        %232 = sbr.rel (%p229) target = $region44
      $region43: #{preact_bottleneck_forward.5} parent=5 // pred_region
        %s233 = ssub.s32 %s15, 1
        %s234 = sand.u32 %s28, 1
        %s235 = scalar_lea.sflag [#allocation3], %s234
        %s236 = sand.u32 %s28, 1
        %s237 = smul.addr %s236, 256
        %s238 = scalar_lea.vmem [#allocation2], %s237
        // Predicated region
        $region45: #{preact_bottleneck_forward.5} parent=43 // pred_check
          %p239 = pneg %p41
        $region46: #{preact_bottleneck_forward.5} parent=43 // pred_check_branch
          %241 = sbr.rel (%p239) target = $region48
        $region47: #{preact_bottleneck_forward.5} parent=43 // pred_region
          %242 = dma.done %s235, 4096
        $region48: #{preact_bottleneck_forward.5} parent=43 // pred_fallthru
          _
        %s243 = sand.u32 %s28, 1
        %s244 = scalar_lea.sflag [#allocation3], %s243
        %s245 = sand.u32 %s28, 1
        %s246 = smul.addr %s245, 256
        %s247 = scalar_lea.vmem [#allocation2], %s246
        %p248 = pneg %p41
        %p249 = pneg %p38
        %p250 = pneg %p62
        %p251 = pneg %p59
        %p252 = pneg %p83
        %p253 = pneg %p80
        %p254 = pneg %p104
        %p255 = pneg %p101
        %p256 = pneg %p125
        %p257 = pneg %p122
        %p258 = pneg %p146
        %p259 = pneg %p143
        %p260 = pneg %p172
        %p261 = pneg %p169
        %s262 = smul.u32 32, %s20
        %p263 = scmp.lt.s32.totalorder %s262, 63
        %s264 = scalar_select %p263, %s262, 63
        %s265 = smul.addr %s264, 4
        %s266 = scalar_lea.vmem %s6, %s265
        %s267 = smul.u32 32, %s20
        %s268 = smul.u32 32, %s20
        %p269 = scmp.lt.s32.totalorder %s268, 63
        %s270 = scalar_select %p269, %s268, 63
        %s271 = smul.addr %s270, 4
        %s272 = scalar_lea.vmem %s6, %s271
        %s273 = smul.u32 32, %s20
        %v275 = vld [vmem:[%s238] sm:$0xff]
        %v276 = vld [vmem:[%s238 + $0x8] sm:$0xff]
        %v277 = vld [vmem:[%s238 + $0x10] sm:$0xff]
        %v278 = vld [vmem:[%s238 + $0x18] sm:$0xff]
        %v279 = vld [vmem:[%s238 + $0x20] sm:$0xff]
        %v280 = vld [vmem:[%s238 + $0x28] sm:$0xff]
        %v281 = vld [vmem:[%s238 + $0x30] sm:$0xff]
        %v282 = vld [vmem:[%s238 + $0x38] sm:$0xff]
        %v283 = vld [vmem:[%s238 + $0x40] sm:$0xff]
        %v284 = vld [vmem:[%s238 + $0x48] sm:$0xff]
        %v285 = vld [vmem:[%s238 + $0x50] sm:$0xff]
        %v286 = vld [vmem:[%s238 + $0x58] sm:$0xff]
        %v287 = vld [vmem:[%s238 + $0x60] sm:$0xff]
        %v288 = vld [vmem:[%s238 + $0x68] sm:$0xff]
        %v289 = vld [vmem:[%s238 + $0x70] sm:$0xff]
        %v290 = vld [vmem:[%s238 + $0x78] sm:$0xff]
        %v291 = vld [vmem:[%s238 + $0x80] sm:$0xff]
        %v292 = vld [vmem:[%s238 + $0x88] sm:$0xff]
        %v293 = vld [vmem:[%s238 + $0x90] sm:$0xff]
        %v294 = vld [vmem:[%s238 + $0x98] sm:$0xff]
        %v295 = vld [vmem:[%s238 + $0xa0] sm:$0xff]
        %v296 = vld [vmem:[%s238 + $0xa8] sm:$0xff]
        %v297 = vld [vmem:[%s238 + $0xb0] sm:$0xff]
        %v298 = vld [vmem:[%s238 + $0xb8] sm:$0xff]
        %v299 = vld [vmem:[%s238 + $0xc0] sm:$0xff]
        %v300 = vld [vmem:[%s238 + $0xc8] sm:$0xff]
        %v301 = vld [vmem:[%s238 + $0xd0] sm:$0xff]
        %v302 = vld [vmem:[%s238 + $0xd8] sm:$0xff]
        %v303 = vld [vmem:[%s238 + $0xe0] sm:$0xff]
        %v304 = vld [vmem:[%s238 + $0xe8] sm:$0xff]
        %v305 = vld [vmem:[%s238 + $0xf0] sm:$0xff]
        %v306 = vld [vmem:[%s238 + $0xf8] sm:$0xff]
        %v307 = vld [vmem:[%s2] sm:$0x1]
        %v309 = vlaneseq
        %v310 = vshrl.u32 %v309, 7
        %v311 = vsub.s32 0, %v310
        %v312 = vrot.slane %v307, %v311
        %v314 = vmul.f32 %v275, %v312
        %v315 = vmul.f32 %v276, %v312
        %v316 = vmul.f32 %v277, %v312
        %v317 = vmul.f32 %v278, %v312
        %v318 = vmul.f32 %v279, %v312
        %v319 = vmul.f32 %v280, %v312
        %v320 = vmul.f32 %v281, %v312
        %v321 = vmul.f32 %v282, %v312
        %v322 = vmul.f32 %v283, %v312
        %v323 = vmul.f32 %v284, %v312
        %v324 = vmul.f32 %v285, %v312
        %v325 = vmul.f32 %v286, %v312
        %v326 = vmul.f32 %v287, %v312
        %v327 = vmul.f32 %v288, %v312
        %v328 = vmul.f32 %v289, %v312
        %v329 = vmul.f32 %v290, %v312
        %v330 = vmul.f32 %v291, %v312
        %v331 = vmul.f32 %v292, %v312
        %v332 = vmul.f32 %v293, %v312
        %v333 = vmul.f32 %v294, %v312
        %v334 = vmul.f32 %v295, %v312
        %v335 = vmul.f32 %v296, %v312
        %v336 = vmul.f32 %v297, %v312
        %v337 = vmul.f32 %v298, %v312
        %v338 = vmul.f32 %v299, %v312
        %v339 = vmul.f32 %v300, %v312
        %v340 = vmul.f32 %v301, %v312
        %v341 = vmul.f32 %v302, %v312
        %v342 = vmul.f32 %v303, %v312
        %v343 = vmul.f32 %v304, %v312
        %v344 = vmul.f32 %v305, %v312
        %v345 = vmul.f32 %v306, %v312
        %v346 = vld [vmem:[%s3] sm:$0x1]
        %v348 = vlaneseq
        %v349 = vshrl.u32 %v348, 7
        %v350 = vsub.s32 0, %v349
        %v351 = vrot.slane %v346, %v350
        %v353 = vadd.f32 %v314, %v351
        %v354 = vadd.f32 %v315, %v351
        %v355 = vadd.f32 %v316, %v351
        %v356 = vadd.f32 %v317, %v351
        %v357 = vadd.f32 %v318, %v351
        %v358 = vadd.f32 %v319, %v351
        %v359 = vadd.f32 %v320, %v351
        %v360 = vadd.f32 %v321, %v351
        %v361 = vadd.f32 %v322, %v351
        %v362 = vadd.f32 %v323, %v351
        %v363 = vadd.f32 %v324, %v351
        %v364 = vadd.f32 %v325, %v351
        %v365 = vadd.f32 %v326, %v351
        %v366 = vadd.f32 %v327, %v351
        %v367 = vadd.f32 %v328, %v351
        %v368 = vadd.f32 %v329, %v351
        %v369 = vadd.f32 %v330, %v351
        %v370 = vadd.f32 %v331, %v351
        %v371 = vadd.f32 %v332, %v351
        %v372 = vadd.f32 %v333, %v351
        %v373 = vadd.f32 %v334, %v351
        %v374 = vadd.f32 %v335, %v351
        %v375 = vadd.f32 %v336, %v351
        %v376 = vadd.f32 %v337, %v351
        %v377 = vadd.f32 %v338, %v351
        %v378 = vadd.f32 %v339, %v351
        %v379 = vadd.f32 %v340, %v351
        %v380 = vadd.f32 %v341, %v351
        %v381 = vadd.f32 %v342, %v351
        %v382 = vadd.f32 %v343, %v351
        %v383 = vadd.f32 %v344, %v351
        %v384 = vadd.f32 %v345, %v351
        %v385 = vmax.f32 %v353, 0.0
        %v386 = vmax.f32 %v354, 0.0
        %v387 = vmax.f32 %v355, 0.0
        %v388 = vmax.f32 %v356, 0.0
        %v389 = vmax.f32 %v357, 0.0
        %v390 = vmax.f32 %v358, 0.0
        %v391 = vmax.f32 %v359, 0.0
        %v392 = vmax.f32 %v360, 0.0
        %v393 = vmax.f32 %v361, 0.0
        %v394 = vmax.f32 %v362, 0.0
        %v395 = vmax.f32 %v363, 0.0
        %v396 = vmax.f32 %v364, 0.0
        %v397 = vmax.f32 %v365, 0.0
        %v398 = vmax.f32 %v366, 0.0
        %v399 = vmax.f32 %v367, 0.0
        %v400 = vmax.f32 %v368, 0.0
        %v401 = vmax.f32 %v369, 0.0
        %v402 = vmax.f32 %v370, 0.0
        %v403 = vmax.f32 %v371, 0.0
        %v404 = vmax.f32 %v372, 0.0
        %v405 = vmax.f32 %v373, 0.0
        %v406 = vmax.f32 %v374, 0.0
        %v407 = vmax.f32 %v375, 0.0
        %v408 = vmax.f32 %v376, 0.0
        %v409 = vmax.f32 %v377, 0.0
        %v410 = vmax.f32 %v378, 0.0
        %v411 = vmax.f32 %v379, 0.0
        %v412 = vmax.f32 %v380, 0.0
        %v413 = vmax.f32 %v381, 0.0
        %v414 = vmax.f32 %v382, 0.0
        %v415 = vmax.f32 %v383, 0.0
        %v416 = vmax.f32 %v384, 0.0
        %v417 = vpack.c.bf16 %v386, %v385
        %v418 = vpack.c.bf16 %v388, %v387
        %v419 = vpack.c.bf16 %v390, %v389
        %v420 = vpack.c.bf16 %v392, %v391
        %v421 = vpack.c.bf16 %v394, %v393
        %v422 = vpack.c.bf16 %v396, %v395
        %v423 = vpack.c.bf16 %v398, %v397
        %v424 = vpack.c.bf16 %v400, %v399
        %v425 = vpack.c.bf16 %v402, %v401
        %v426 = vpack.c.bf16 %v404, %v403
        %v427 = vpack.c.bf16 %v406, %v405
        %v428 = vpack.c.bf16 %v408, %v407
        %v429 = vpack.c.bf16 %v410, %v409
        %v430 = vpack.c.bf16 %v412, %v411
        %v431 = vpack.c.bf16 %v414, %v413
        %v432 = vpack.c.bf16 %v416, %v415
        %v433 = vld [vmem:[%s1] sm:$0xf]
        %v434 = vld [vmem:[%s1 + $0x4] sm:$0xf]
        %v435 = vld [vmem:[%s1 + $0x8] sm:$0xf]
        %v436 = vld [vmem:[%s1 + $0xc] sm:$0xf]
        %v437 = vld [vmem:[%s1 + $0x10] sm:$0xf]
        %v438 = vld [vmem:[%s1 + $0x14] sm:$0xf]
        %v439 = vld [vmem:[%s1 + $0x18] sm:$0xf]
        %v440 = vld [vmem:[%s1 + $0x1c] sm:$0xf]
        %v449 = vunpack.c.l.b16 %v433
        %v450 = vunpack.c.l.b16 %v434
        %v451 = vunpack.c.l.b16 %v435
        %v452 = vunpack.c.l.b16 %v436
        %v453 = vunpack.c.l.b16 %v437
        %v454 = vunpack.c.l.b16 %v438
        %v455 = vunpack.c.l.b16 %v439
        %v456 = vunpack.c.l.b16 %v440
        %v457 = vpack.c.b16 %v450, %v449
        %v458 = vpack.c.b16 %v452, %v451
        %v459 = vpack.c.b16 %v454, %v453
        %v460 = vpack.c.b16 %v456, %v455
        %vm465 = vcmask 523264
        %v467 = vsel %vm465, %v417, 0
        %v470 = vsel %vm465, %v418, 0
        %v473 = vsel %vm465, %v419, 0
        %v476 = vsel %vm465, %v420, 0
        %v479 = vsel %vm465, %v421, 0
        %v482 = vsel %vm465, %v422, 0
        %v485 = vsel %vm465, %v423, 0
        %v488 = vsel %vm465, %v424, 0
        %v491 = vsel %vm465, %v425, 0
        %v494 = vsel %vm465, %v426, 0
        %v497 = vsel %vm465, %v427, 0
        %v500 = vsel %vm465, %v428, 0
        %v503 = vsel %vm465, %v429, 0
        %v506 = vsel %vm465, %v430, 0
        %v509 = vsel %vm465, %v431, 0
        %v512 = vsel %vm465, %v432, 0
        %514 = vmatprep.subr.bf16.mxu0 0
        %515 = vmatpush1.bf16.msra.mxu0 %v457
        %516 = vmatprep.subr.bf16.mxu0 0
        %517 = vmatpush1.bf16.msra.mxu0 %v458
        %518 = vmatprep.subr.bf16.mxu0 0
        %519 = vmatpush1.bf16.msra.mxu0 %v459
        %520 = vmatprep.subr.bf16.mxu0 0
        %521 = vmatpush1.bf16.msra.mxu0 %v460
        %522 = vmatprep.subr.bf16.mxu0 0
        %523 = vmatpush1.bf16.msra.mxu0 0
        %524 = vmatprep.subr.bf16.mxu0 0
        %525 = vmatpush1.bf16.msra.mxu0 0
        %526 = vmatprep.subr.bf16.mxu0 0
        %527 = vmatpush1.bf16.msra.mxu0 0
        %528 = vmatprep.subr.bf16.mxu0 0
        %529 = vmatpush1.bf16.msra.mxu0 0
        %530 = vmatprep.subr.bf16.mxu0 0
        %531 = vmatpush1.bf16.msra.mxu0 0
        %532 = vmatprep.subr.bf16.mxu0 0
        %533 = vmatpush1.bf16.msra.mxu0 0
        %534 = vmatprep.subr.bf16.mxu0 0
        %535 = vmatpush1.bf16.msra.mxu0 0
        %536 = vmatprep.subr.bf16.mxu0 0
        %537 = vmatpush1.bf16.msra.mxu0 0
        %538 = vmatprep.subr.bf16.mxu0 0
        %539 = vmatpush1.bf16.msra.mxu0 0
        %540 = vmatprep.subr.bf16.mxu0 0
        %541 = vmatpush1.bf16.msra.mxu0 0
        %542 = vmatprep.subr.bf16.mxu0 0
        %543 = vmatpush1.bf16.msra.mxu0 0
        %544 = vmatprep.subr.bf16.mxu0 0
        %545 = vmatpush1.bf16.msra.mxu0 0
        %546 = vmatprep.mubr.bf16.mxu0 0
        %547 = vmatmul.mubr.bf16.gmra.mrb[0].mxu0 %v467
        %v548 = vpop.f32.mrb[0].mxu0
        %v549 = vadd.f32 0.0, %v548
        %v550 = vpop.f32.mrb[0].mxu0
        %v551 = vpop.f32.mrb[0].mxu0
        %v552 = vadd.f32 0.0, %v551
        %v553 = vpop.f32.mrb[0].mxu0
        %554 = vmatprep.mubr.bf16.mxu0 0
        %555 = vmatmul.mubr.bf16.gmra.mrb[0].mxu0 %v470
        %v556 = vpop.f32.mrb[0].mxu0
        %v557 = vadd.f32 0.0, %v556
        %v558 = vpop.f32.mrb[0].mxu0
        %v559 = vpop.f32.mrb[0].mxu0
        %v560 = vadd.f32 0.0, %v559
        %v561 = vpop.f32.mrb[0].mxu0
        %562 = vmatprep.mubr.bf16.mxu0 0
        %563 = vmatmul.mubr.bf16.gmra.mrb[0].mxu0 %v473
        %v564 = vpop.f32.mrb[0].mxu0
        %v565 = vadd.f32 0.0, %v564
        %v566 = vpop.f32.mrb[0].mxu0
        %v567 = vpop.f32.mrb[0].mxu0
        %v568 = vadd.f32 0.0, %v567
        %v569 = vpop.f32.mrb[0].mxu0
        %570 = vmatprep.mubr.bf16.mxu0 0
        %571 = vmatmul.mubr.bf16.gmra.mrb[0].mxu0 %v476
        %v572 = vpop.f32.mrb[0].mxu0
        %v573 = vadd.f32 0.0, %v572
        %v574 = vpop.f32.mrb[0].mxu0
        %v575 = vpop.f32.mrb[0].mxu0
        %v576 = vadd.f32 0.0, %v575
        %v577 = vpop.f32.mrb[0].mxu0
        %578 = vmatprep.mubr.bf16.mxu0 0
        %579 = vmatmul.mubr.bf16.gmra.mrb[0].mxu0 %v479
        %v580 = vpop.f32.mrb[0].mxu0
        %v581 = vadd.f32 0.0, %v580
        %v582 = vpop.f32.mrb[0].mxu0
        %v583 = vpop.f32.mrb[0].mxu0
        %v584 = vadd.f32 0.0, %v583
        %v585 = vpop.f32.mrb[0].mxu0
        %586 = vmatprep.mubr.bf16.mxu0 0
        %587 = vmatmul.mubr.bf16.gmra.mrb[0].mxu0 %v482
        %v588 = vpop.f32.mrb[0].mxu0
        %v589 = vadd.f32 0.0, %v588
        %v590 = vpop.f32.mrb[0].mxu0
        %v591 = vpop.f32.mrb[0].mxu0
        %v592 = vadd.f32 0.0, %v591
        %v593 = vpop.f32.mrb[0].mxu0
        %594 = vmatprep.mubr.bf16.mxu0 0
        %595 = vmatmul.mubr.bf16.gmra.mrb[0].mxu0 %v485
        %v596 = vpop.f32.mrb[0].mxu0
        %v597 = vadd.f32 0.0, %v596
        %v598 = vpop.f32.mrb[0].mxu0
        %v599 = vpop.f32.mrb[0].mxu0
        %v600 = vadd.f32 0.0, %v599
        %v601 = vpop.f32.mrb[0].mxu0
        %602 = vmatprep.mubr.bf16.mxu0 0
        %603 = vmatmul.mubr.bf16.gmra.mrb[0].mxu0 %v488
        %v604 = vpop.f32.mrb[0].mxu0
        %v605 = vadd.f32 0.0, %v604
        %v606 = vpop.f32.mrb[0].mxu0
        %v607 = vpop.f32.mrb[0].mxu0
        %v608 = vadd.f32 0.0, %v607
        %v609 = vpop.f32.mrb[0].mxu0
        %610 = vmatprep.mubr.bf16.mxu0 0
        %611 = vmatmul.mubr.bf16.gmra.mrb[0].mxu0 %v491
        %v612 = vpop.f32.mrb[0].mxu0
        %v613 = vadd.f32 0.0, %v612
        %v614 = vpop.f32.mrb[0].mxu0
        %v615 = vpop.f32.mrb[0].mxu0
        %v616 = vadd.f32 0.0, %v615
        %v617 = vpop.f32.mrb[0].mxu0
        %618 = vmatprep.mubr.bf16.mxu0 0
        %619 = vmatmul.mubr.bf16.gmra.mrb[0].mxu0 %v494
        %v620 = vpop.f32.mrb[0].mxu0
        %v621 = vadd.f32 0.0, %v620
        %v622 = vpop.f32.mrb[0].mxu0
        %v623 = vpop.f32.mrb[0].mxu0
        %v624 = vadd.f32 0.0, %v623
        %v625 = vpop.f32.mrb[0].mxu0
        %626 = vmatprep.mubr.bf16.mxu0 0
        %627 = vmatmul.mubr.bf16.gmra.mrb[0].mxu0 %v497
        %v628 = vpop.f32.mrb[0].mxu0
        %v629 = vadd.f32 0.0, %v628
        %v630 = vpop.f32.mrb[0].mxu0
        %v631 = vpop.f32.mrb[0].mxu0
        %v632 = vadd.f32 0.0, %v631
        %v633 = vpop.f32.mrb[0].mxu0
        %634 = vmatprep.mubr.bf16.mxu0 0
        %635 = vmatmul.mubr.bf16.gmra.mrb[0].mxu0 %v500
        %v636 = vpop.f32.mrb[0].mxu0
        %v637 = vadd.f32 0.0, %v636
        %v638 = vpop.f32.mrb[0].mxu0
        %v639 = vpop.f32.mrb[0].mxu0
        %v640 = vadd.f32 0.0, %v639
        %v641 = vpop.f32.mrb[0].mxu0
        %642 = vmatprep.mubr.bf16.mxu0 0
        %643 = vmatmul.mubr.bf16.gmra.mrb[0].mxu0 %v503
        %v644 = vpop.f32.mrb[0].mxu0
        %v645 = vadd.f32 0.0, %v644
        %v646 = vpop.f32.mrb[0].mxu0
        %v647 = vpop.f32.mrb[0].mxu0
        %v648 = vadd.f32 0.0, %v647
        %v649 = vpop.f32.mrb[0].mxu0
        %650 = vmatprep.mubr.bf16.mxu0 0
        %651 = vmatmul.mubr.bf16.gmra.mrb[0].mxu0 %v506
        %v652 = vpop.f32.mrb[0].mxu0
        %v653 = vadd.f32 0.0, %v652
        %v654 = vpop.f32.mrb[0].mxu0
        %v655 = vpop.f32.mrb[0].mxu0
        %v656 = vadd.f32 0.0, %v655
        %v657 = vpop.f32.mrb[0].mxu0
        %658 = vmatprep.mubr.bf16.mxu0 0
        %659 = vmatmul.mubr.bf16.gmra.mrb[0].mxu0 %v509
        %v660 = vpop.f32.mrb[0].mxu0
        %v661 = vadd.f32 0.0, %v660
        %v662 = vpop.f32.mrb[0].mxu0
        %v663 = vpop.f32.mrb[0].mxu0
        %v664 = vadd.f32 0.0, %v663
        %v665 = vpop.f32.mrb[0].mxu0
        %666 = vmatprep.mubr.bf16.mxu0 0
        %667 = vmatmul.mubr.bf16.gmra.mrb[0].mxu0 %v512
        %v668 = vpop.f32.mrb[0].mxu0
        %v669 = vadd.f32 0.0, %v668
        %v670 = vpop.f32.mrb[0].mxu0
        %v671 = vpop.f32.mrb[0].mxu0
        %v672 = vadd.f32 0.0, %v671
        %v673 = vpop.f32.mrb[0].mxu0
        %674 = vdwg.mxu0
        %v675 = vld [vmem:[%s4] sm:$0x1]
        %v677 = vlaneseq
        %v678 = vshrl.u32 %v677, 7
        %v679 = vsub.s32 0, %v678
        %v680 = vrot.slane %v675, %v679
        %v682 = vmul.f32 %v549, %v680
        %v683 = vmul.f32 %v552, %v680
        %v684 = vmul.f32 %v557, %v680
        %v685 = vmul.f32 %v560, %v680
        %v686 = vmul.f32 %v565, %v680
        %v687 = vmul.f32 %v568, %v680
        %v688 = vmul.f32 %v573, %v680
        %v689 = vmul.f32 %v576, %v680
        %v690 = vmul.f32 %v581, %v680
        %v691 = vmul.f32 %v584, %v680
        %v692 = vmul.f32 %v589, %v680
        %v693 = vmul.f32 %v592, %v680
        %v694 = vmul.f32 %v597, %v680
        %v695 = vmul.f32 %v600, %v680
        %v696 = vmul.f32 %v605, %v680
        %v697 = vmul.f32 %v608, %v680
        %v698 = vmul.f32 %v613, %v680
        %v699 = vmul.f32 %v616, %v680
        %v700 = vmul.f32 %v621, %v680
        %v701 = vmul.f32 %v624, %v680
        %v702 = vmul.f32 %v629, %v680
        %v703 = vmul.f32 %v632, %v680
        %v704 = vmul.f32 %v637, %v680
        %v705 = vmul.f32 %v640, %v680
        %v706 = vmul.f32 %v645, %v680
        %v707 = vmul.f32 %v648, %v680
        %v708 = vmul.f32 %v653, %v680
        %v709 = vmul.f32 %v656, %v680
        %v710 = vmul.f32 %v661, %v680
        %v711 = vmul.f32 %v664, %v680
        %v712 = vmul.f32 %v669, %v680
        %v713 = vmul.f32 %v672, %v680
        %v714 = vld [vmem:[%s5] sm:$0x1]
        %v716 = vlaneseq
        %v717 = vshrl.u32 %v716, 7
        %v718 = vsub.s32 0, %v717
        %v719 = vrot.slane %v714, %v718
        %v721 = vadd.f32 %v682, %v719
        %v722 = vadd.f32 %v683, %v719
        %v723 = vadd.f32 %v684, %v719
        %v724 = vadd.f32 %v685, %v719
        %v725 = vadd.f32 %v686, %v719
        %v726 = vadd.f32 %v687, %v719
        %v727 = vadd.f32 %v688, %v719
        %v728 = vadd.f32 %v689, %v719
        %v729 = vadd.f32 %v690, %v719
        %v730 = vadd.f32 %v691, %v719
        %v731 = vadd.f32 %v692, %v719
        %v732 = vadd.f32 %v693, %v719
        %v733 = vadd.f32 %v694, %v719
        %v734 = vadd.f32 %v695, %v719
        %v735 = vadd.f32 %v696, %v719
        %v736 = vadd.f32 %v697, %v719
        %v737 = vadd.f32 %v698, %v719
        %v738 = vadd.f32 %v699, %v719
        %v739 = vadd.f32 %v700, %v719
        %v740 = vadd.f32 %v701, %v719
        %v741 = vadd.f32 %v702, %v719
        %v742 = vadd.f32 %v703, %v719
        %v743 = vadd.f32 %v704, %v719
        %v744 = vadd.f32 %v705, %v719
        %v745 = vadd.f32 %v706, %v719
        %v746 = vadd.f32 %v707, %v719
        %v747 = vadd.f32 %v708, %v719
        %v748 = vadd.f32 %v709, %v719
        %v749 = vadd.f32 %v710, %v719
        %v750 = vadd.f32 %v711, %v719
        %v751 = vadd.f32 %v712, %v719
        %v752 = vadd.f32 %v713, %v719
        %v753 = vmax.f32 %v721, 0.0
        %v754 = vmax.f32 %v722, 0.0
        %v755 = vmax.f32 %v723, 0.0
        %v756 = vmax.f32 %v724, 0.0
        %v757 = vmax.f32 %v725, 0.0
        %v758 = vmax.f32 %v726, 0.0
        %v759 = vmax.f32 %v727, 0.0
        %v760 = vmax.f32 %v728, 0.0
        %v761 = vmax.f32 %v729, 0.0
        %v762 = vmax.f32 %v730, 0.0
        %v763 = vmax.f32 %v731, 0.0
        %v764 = vmax.f32 %v732, 0.0
        %v765 = vmax.f32 %v733, 0.0
        %v766 = vmax.f32 %v734, 0.0
        %v767 = vmax.f32 %v735, 0.0
        %v768 = vmax.f32 %v736, 0.0
        %v769 = vmax.f32 %v737, 0.0
        %v770 = vmax.f32 %v738, 0.0
        %v771 = vmax.f32 %v739, 0.0
        %v772 = vmax.f32 %v740, 0.0
        %v773 = vmax.f32 %v741, 0.0
        %v774 = vmax.f32 %v742, 0.0
        %v775 = vmax.f32 %v743, 0.0
        %v776 = vmax.f32 %v744, 0.0
        %v777 = vmax.f32 %v745, 0.0
        %v778 = vmax.f32 %v746, 0.0
        %v779 = vmax.f32 %v747, 0.0
        %v780 = vmax.f32 %v748, 0.0
        %v781 = vmax.f32 %v749, 0.0
        %v782 = vmax.f32 %v750, 0.0
        %v783 = vmax.f32 %v751, 0.0
        %v784 = vmax.f32 %v752, 0.0
        %v785 = vpack.c.bf16 %v754, %v753
        %v786 = vpack.c.bf16 %v756, %v755
        %v787 = vpack.c.bf16 %v758, %v757
        %v788 = vpack.c.bf16 %v760, %v759
        %v789 = vpack.c.bf16 %v762, %v761
        %v790 = vpack.c.bf16 %v764, %v763
        %v791 = vpack.c.bf16 %v766, %v765
        %v792 = vpack.c.bf16 %v768, %v767
        %v793 = vpack.c.bf16 %v770, %v769
        %v794 = vpack.c.bf16 %v772, %v771
        %v795 = vpack.c.bf16 %v774, %v773
        %v796 = vpack.c.bf16 %v776, %v775
        %v797 = vpack.c.bf16 %v778, %v777
        %v798 = vpack.c.bf16 %v780, %v779
        %v799 = vpack.c.bf16 %v782, %v781
        %v800 = vpack.c.bf16 %v784, %v783
        %v817 = vunpack.c.l.b16 %v785
        %v818 = vunpack.c.h.b16 %v785
        %v819 = vunpack.c.l.b16 %v786
        %v820 = vunpack.c.h.b16 %v786
        %v821 = vunpack.c.l.b16 %v787
        %v822 = vunpack.c.h.b16 %v787
        %v823 = vunpack.c.l.b16 %v788
        %v824 = vunpack.c.h.b16 %v788
        %v825 = vunpack.c.l.b16 %v789
        %v826 = vunpack.c.h.b16 %v789
        %v827 = vunpack.c.l.b16 %v790
        %v828 = vunpack.c.h.b16 %v790
        %v829 = vunpack.c.l.b16 %v791
        %v830 = vunpack.c.h.b16 %v791
        %v831 = vunpack.c.l.b16 %v792
        %v832 = vunpack.c.h.b16 %v792
        %v833 = vunpack.c.l.b16 %v793
        %v834 = vunpack.c.h.b16 %v793
        %v835 = vunpack.c.l.b16 %v794
        %v836 = vunpack.c.h.b16 %v794
        %v837 = vunpack.c.l.b16 %v795
        %v838 = vunpack.c.h.b16 %v795
        %v839 = vunpack.c.l.b16 %v796
        %v840 = vunpack.c.h.b16 %v796
        %v841 = vunpack.c.l.b16 %v797
        %v842 = vunpack.c.h.b16 %v797
        %v843 = vunpack.c.l.b16 %v798
        %v844 = vunpack.c.h.b16 %v798
        %v845 = vunpack.c.l.b16 %v799
        %v846 = vunpack.c.h.b16 %v799
        %v847 = vunpack.c.l.b16 %v800
        %v848 = vunpack.c.h.b16 %v800
        %v849 = vpack.c.b16 %v817, %v817
        %v850 = vpack.c.b16 %v818, %v818
        %v851 = vpack.c.b16 %v819, %v819
        %v852 = vpack.c.b16 %v820, %v820
        %v853 = vpack.c.b16 %v821, %v821
        %v854 = vpack.c.b16 %v822, %v822
        %v855 = vpack.c.b16 %v823, %v823
        %v856 = vpack.c.b16 %v824, %v824
        %v857 = vpack.c.b16 %v825, %v825
        %v858 = vpack.c.b16 %v826, %v826
        %v859 = vpack.c.b16 %v827, %v827
        %v860 = vpack.c.b16 %v828, %v828
        %v861 = vpack.c.b16 %v829, %v829
        %v862 = vpack.c.b16 %v830, %v830
        %v863 = vpack.c.b16 %v831, %v831
        %v864 = vpack.c.b16 %v832, %v832
        %v865 = vpack.c.b16 %v833, %v833
        %v866 = vpack.c.b16 %v834, %v834
        %v867 = vpack.c.b16 %v835, %v835
        %v868 = vpack.c.b16 %v836, %v836
        %v869 = vpack.c.b16 %v837, %v837
        %v870 = vpack.c.b16 %v838, %v838
        %v871 = vpack.c.b16 %v839, %v839
        %v872 = vpack.c.b16 %v840, %v840
        %v873 = vpack.c.b16 %v841, %v841
        %v874 = vpack.c.b16 %v842, %v842
        %v875 = vpack.c.b16 %v843, %v843
        %v876 = vpack.c.b16 %v844, %v844
        %v877 = vpack.c.b16 %v845, %v845
        %v878 = vpack.c.b16 %v846, %v846
        %v879 = vpack.c.b16 %v847, %v847
        %v880 = vpack.c.b16 %v848, %v848
        %vm913 = vcmask 257024
        %914 = vst.msk [vmem:[%s272] sm:$0xf] %vm913, %v849
        %915 = vst.msk [vmem:[%s272 + $0x4] sm:$0xf] %vm913, %v850
        %916 = vst.msk [vmem:[%s272 + $0x8] sm:$0xf] %vm913, %v851
        %917 = vst.msk [vmem:[%s272 + $0xc] sm:$0xf] %vm913, %v852
        %918 = vst.msk [vmem:[%s272 + $0x10] sm:$0xf] %vm913, %v853
        %919 = vst.msk [vmem:[%s272 + $0x14] sm:$0xf] %vm913, %v854
        %920 = vst.msk [vmem:[%s272 + $0x18] sm:$0xf] %vm913, %v855
        %921 = vst.msk [vmem:[%s272 + $0x1c] sm:$0xf] %vm913, %v856
        %922 = vst.msk [vmem:[%s272 + $0x20] sm:$0xf] %vm913, %v857
        %923 = vst.msk [vmem:[%s272 + $0x24] sm:$0xf] %vm913, %v858
        %924 = vst.msk [vmem:[%s272 + $0x28] sm:$0xf] %vm913, %v859
        %925 = vst.msk [vmem:[%s272 + $0x2c] sm:$0xf] %vm913, %v860
        %926 = vst.msk [vmem:[%s272 + $0x30] sm:$0xf] %vm913, %v861
        %927 = vst.msk [vmem:[%s272 + $0x34] sm:$0xf] %vm913, %v862
        %928 = vst.msk [vmem:[%s272 + $0x38] sm:$0xf] %vm913, %v863
        %929 = vst.msk [vmem:[%s272 + $0x3c] sm:$0xf] %vm913, %v864
        %930 = vst.msk [vmem:[%s272 + $0x40] sm:$0xf] %vm913, %v865
        %931 = vst.msk [vmem:[%s272 + $0x44] sm:$0xf] %vm913, %v866
        %932 = vst.msk [vmem:[%s272 + $0x48] sm:$0xf] %vm913, %v867
        %933 = vst.msk [vmem:[%s272 + $0x4c] sm:$0xf] %vm913, %v868
        %934 = vst.msk [vmem:[%s272 + $0x50] sm:$0xf] %vm913, %v869
        %935 = vst.msk [vmem:[%s272 + $0x54] sm:$0xf] %vm913, %v870
        %936 = vst.msk [vmem:[%s272 + $0x58] sm:$0xf] %vm913, %v871
        %937 = vst.msk [vmem:[%s272 + $0x5c] sm:$0xf] %vm913, %v872
        %938 = vst.msk [vmem:[%s272 + $0x60] sm:$0xf] %vm913, %v873
        %939 = vst.msk [vmem:[%s272 + $0x64] sm:$0xf] %vm913, %v874
        %940 = vst.msk [vmem:[%s272 + $0x68] sm:$0xf] %vm913, %v875
        %941 = vst.msk [vmem:[%s272 + $0x6c] sm:$0xf] %vm913, %v876
        %942 = vst.msk [vmem:[%s272 + $0x70] sm:$0xf] %vm913, %v877
        %943 = vst.msk [vmem:[%s272 + $0x74] sm:$0xf] %vm913, %v878
        %944 = vst.msk [vmem:[%s272 + $0x78] sm:$0xf] %vm913, %v879
        %945 = vst.msk [vmem:[%s272 + $0x7c] sm:$0xf] %vm913, %v880
        %s946 = smul.u32 32, %s20
        %p947 = scmp.lt.s32.totalorder %s946, 63
        %s948 = scalar_select %p947, %s946, 63
        %s949 = smul.addr %s948, 4
        %s950 = scalar_lea.vmem %s6, %s949
        // Predicated region
        $region49: #{preact_bottleneck_forward.5} parent=43 // pred_check
          %p951 = pneg %p169
        $region50: #{preact_bottleneck_forward.5} parent=43 // pred_check_branch
          %953 = sbr.rel (%p951) target = $region52
        $region51: #{preact_bottleneck_forward.5} parent=43 // pred_region
          %s954 = smul.u32 32, %s20
        $region52: #{preact_bottleneck_forward.5} parent=43 // pred_fallthru
          _
      $region44: #{preact_bottleneck_forward.5} parent=5 // pred_fallthru
        _
      %p955 = scmp.le.s32.totalorder 2, %s15
      // Predicated region
      $region53: #{preact_bottleneck_forward.5} parent=5 // pred_check
        %p956 = pneg %p955
      $region54: #{preact_bottleneck_forward.5} parent=5 // pred_check_branch
        %958 = sbr.rel (%p956) target = $region56
      $region55: #{preact_bottleneck_forward.5} parent=5 // pred_region
        %s959 = ssub.s32 %s15, 2
        // Predicated region
        $region57: #{preact_bottleneck_forward.5} parent=55 // pred_check
          %p960 = pneg %p175
        $region58: #{preact_bottleneck_forward.5} parent=55 // pred_check_branch
          %962 = sbr.rel (%p960) target = $region60
        $region59: #{preact_bottleneck_forward.5} parent=55 // pred_region
          %s963 = smul.u32 32, %s21
          %p964 = scmp.lt.s32.totalorder %s963, 63
          %s965 = scalar_select %p964, %s963, 63
          %s966 = smul.addr %s965, 4
          %s967 = scalar_lea.vmem %s6, %s966
        $region60: #{preact_bottleneck_forward.5} parent=55 // pred_fallthru
          _
      $region56: #{preact_bottleneck_forward.5} parent=5 // pred_fallthru
        _
    $region6: #{preact_bottleneck_forward.5} parent=1 // loop_footer
      %s19 = sadd.s32 1, %s15
    $region7: #{preact_bottleneck_forward.5} parent=1 // loop_footer_branch
      %14 = sbr.rel target = $region3
    $region8: #{preact_bottleneck_forward.5} parent=1 // loop_exit
      _
    %968 = vsyncpa [#allocation3], 1
    %s969 = scalar_lea.sflag [#allocation3], 1
    %970 = vsyncpa %s969, 1

// kernel: preact_bottleneck_forward.4
$region0: #{preact_bottleneck_forward.4}
  #allocation0 [shape = 'u32[]', space=smem, size = 0x4, offset = 0x4, fixed_abs, tag = 'smem constant byte address 0x4 - core index']
  #allocation1 [shape = 'u32[144,128]{1,0:T(1,128)}', space=vmem, size = 0x12000, scoped, tag = 'internal scratch']
  %s0 = inlined_call_operand.vmem [shape: f32[512,64], index: 0, kind: input, shape index: {}]
  %s1 = inlined_call_operand.vmem [shape: bf16[64,128], index: 1, kind: input, shape index: {}]
  %s2 = inlined_call_operand.vmem [shape: f32[1,64], index: 2, kind: input, shape index: {}]
  %s3 = inlined_call_operand.vmem [shape: f32[1,64], index: 3, kind: input, shape index: {}]
  %s4 = inlined_call_operand.vmem [shape: f32[512,128], index: 4, kind: output, shape index: {}]
  %s5 = sld [smem:[#allocation0]]
  $region49: #{preact_bottleneck_forward.4} parent=0
    _
  %s7 = ssub.s32 1, %s5
  %s8 = scalar_select 0, %s7, %s5
  loop: start=0, step=1, limit=4
  $region2: #{preact_bottleneck_forward.4} parent=0 // loop_pre_header
    _
  $region3: #{preact_bottleneck_forward.4} parent=0 // loop_header
    %s10 = sphi 0, %s14
    %p11 = scmp.ge.s32.totalorder %s10, 4
    %s20 = sphi 0, %s22
    %s23 = sphi 0, %s20
    %s24 = sphi 0, %s23
    %s40 = sphi 0, %s24
    %s44 = sphi 0, %s44
    %s46 = sphi 0, %s44
    %s47 = sphi 0, %s46
    %s61 = sphi 0, %s47
    %s65 = sphi 0, %s65
    %s67 = sphi 0, %s65
    %s68 = sphi 0, %s67
    %s82 = sphi 0, %s68
    %s86 = sphi 0, %s86
    %s88 = sphi 0, %s86
    %s89 = sphi 0, %s88
    %s103 = sphi 0, %s89
    %s109 = sphi 0, %s111
    %s112 = sphi 0, %s109
    %s113 = sphi 0, %s112
    %s129 = sphi 0, %s113
  $region4: #{preact_bottleneck_forward.4} parent=0 // loop_header_branch
    %13 = sbr.rel (%p11) target = $region8
  $region5: #{preact_bottleneck_forward.4} parent=0 // loop_body
    %s15 = ssub.s32 %s10, 1
    %s16 = ssub.s32 %s10, 2
    %s17 = sadd.s32 %s10, 1
    %s18 = ssub.s32 %s10, %s17
    %p19 = scmp.eq.s32.totalorder %s18, 0
    %s21 = sadd.s32 %s20, 1
    %s22 = scalar_select %p19, %s20, %s21
    %p25 = pneg %p19
    %p26 = scmp.eq.s32.totalorder %s10, 1
    %p27 = por %p25, %p26
    %p28 = scmp.ne.s32.totalorder %s20, %s23
    %p29 = scmp.eq.s32.totalorder %s10, 0
    %p30 = por %p28, %p29
    %p31 = scmp.ne.s32.totalorder %s20, %s23
    %p32 = scmp.eq.s32.totalorder %s15, 1
    %p33 = por %p31, %p32
    %p34 = scmp.ne.s32.totalorder %s23, %s24
    %p35 = scmp.eq.s32.totalorder %s15, 0
    %p36 = por %p34, %p35
    %p37 = scmp.ne.s32.totalorder %s23, %s24
    %p38 = scmp.eq.s32.totalorder %s16, 1
    %p39 = por %p37, %p38
    %p41 = scmp.ne.s32.totalorder %s24, %s40
    %p42 = scmp.eq.s32.totalorder %s16, 0
    %p43 = por %p41, %p42
    %s45 = sadd.s32 %s44, 1
    %p48 = scmp.eq.s32.totalorder %s10, 1
    %p49 = scmp.ne.s32.totalorder %s44, %s46
    %p50 = scmp.eq.s32.totalorder %s10, 0
    %p51 = por %p49, %p50
    %p52 = scmp.ne.s32.totalorder %s44, %s46
    %p53 = scmp.eq.s32.totalorder %s15, 1
    %p54 = por %p52, %p53
    %p55 = scmp.ne.s32.totalorder %s46, %s47
    %p56 = scmp.eq.s32.totalorder %s15, 0
    %p57 = por %p55, %p56
    %p58 = scmp.ne.s32.totalorder %s46, %s47
    %p59 = scmp.eq.s32.totalorder %s16, 1
    %p60 = por %p58, %p59
    %p62 = scmp.ne.s32.totalorder %s47, %s61
    %p63 = scmp.eq.s32.totalorder %s16, 0
    %p64 = por %p62, %p63
    %s66 = sadd.s32 %s65, 1
    %p69 = scmp.eq.s32.totalorder %s10, 1
    %p70 = scmp.ne.s32.totalorder %s65, %s67
    %p71 = scmp.eq.s32.totalorder %s10, 0
    %p72 = por %p70, %p71
    %p73 = scmp.ne.s32.totalorder %s65, %s67
    %p74 = scmp.eq.s32.totalorder %s15, 1
    %p75 = por %p73, %p74
    %p76 = scmp.ne.s32.totalorder %s67, %s68
    %p77 = scmp.eq.s32.totalorder %s15, 0
    %p78 = por %p76, %p77
    %p79 = scmp.ne.s32.totalorder %s67, %s68
    %p80 = scmp.eq.s32.totalorder %s16, 1
    %p81 = por %p79, %p80
    %p83 = scmp.ne.s32.totalorder %s68, %s82
    %p84 = scmp.eq.s32.totalorder %s16, 0
    %p85 = por %p83, %p84
    %s87 = sadd.s32 %s86, 1
    %p90 = scmp.eq.s32.totalorder %s10, 1
    %p91 = scmp.ne.s32.totalorder %s86, %s88
    %p92 = scmp.eq.s32.totalorder %s10, 0
    %p93 = por %p91, %p92
    %p94 = scmp.ne.s32.totalorder %s86, %s88
    %p95 = scmp.eq.s32.totalorder %s15, 1
    %p96 = por %p94, %p95
    %p97 = scmp.ne.s32.totalorder %s88, %s89
    %p98 = scmp.eq.s32.totalorder %s15, 0
    %p99 = por %p97, %p98
    %p100 = scmp.ne.s32.totalorder %s88, %s89
    %p101 = scmp.eq.s32.totalorder %s16, 1
    %p102 = por %p100, %p101
    %p104 = scmp.ne.s32.totalorder %s89, %s103
    %p105 = scmp.eq.s32.totalorder %s16, 0
    %p106 = por %p104, %p105
    %s107 = ssub.s32 %s10, %s17
    %p108 = scmp.eq.s32.totalorder %s107, 0
    %s110 = sadd.s32 %s109, 1
    %s111 = scalar_select %p108, %s109, %s110
    %p114 = pneg %p108
    %p115 = scmp.eq.s32.totalorder %s10, 1
    %p116 = por %p114, %p115
    %p117 = scmp.ne.s32.totalorder %s109, %s112
    %p118 = scmp.eq.s32.totalorder %s10, 0
    %p119 = por %p117, %p118
    %p120 = scmp.ne.s32.totalorder %s109, %s112
    %p121 = scmp.eq.s32.totalorder %s15, 1
    %p122 = por %p120, %p121
    %p123 = scmp.ne.s32.totalorder %s112, %s113
    %p124 = scmp.eq.s32.totalorder %s15, 0
    %p125 = por %p123, %p124
    %p126 = scmp.ne.s32.totalorder %s112, %s113
    %p127 = scmp.eq.s32.totalorder %s16, 1
    %p128 = por %p126, %p127
    %p130 = scmp.ne.s32.totalorder %s113, %s129
    %p131 = scmp.eq.s32.totalorder %s16, 0
    %p132 = por %p130, %p131
    %p133 = scmp.le.s32.totalorder 1, %s10
    %p134 = scmp.lt.s32.totalorder %s10, 3
    %p135 = pnand %p133, %p134
    %p136 = pneg %p135
    // Predicated region
    $region9: #{preact_bottleneck_forward.4} parent=5 // pred_check
      _
    $region10: #{preact_bottleneck_forward.4} parent=5 // pred_check_branch
      %138 = sbr.rel (%p135) target = $region12
    $region11: #{preact_bottleneck_forward.4} parent=5 // pred_region
      %s139 = ssub.s32 %s10, 1
      // Predicated region
      $region13: #{preact_bottleneck_forward.4} parent=11 // pred_check
        %p140 = pneg %p57
      $region14: #{preact_bottleneck_forward.4} parent=11 // pred_check_branch
        %142 = sbr.rel (%p140) target = $region16
      $region15: #{preact_bottleneck_forward.4} parent=11 // pred_region
        _
      $region16: #{preact_bottleneck_forward.4} parent=11 // pred_fallthru
        _
      // Predicated region
      $region17: #{preact_bottleneck_forward.4} parent=11 // pred_check
        %p143 = pneg %p78
      $region18: #{preact_bottleneck_forward.4} parent=11 // pred_check_branch
        %145 = sbr.rel (%p143) target = $region20
      $region19: #{preact_bottleneck_forward.4} parent=11 // pred_region
        _
      $region20: #{preact_bottleneck_forward.4} parent=11 // pred_fallthru
        _
      // Predicated region
      $region21: #{preact_bottleneck_forward.4} parent=11 // pred_check
        %p146 = pneg %p99
      $region22: #{preact_bottleneck_forward.4} parent=11 // pred_check_branch
        %148 = sbr.rel (%p146) target = $region24
      $region23: #{preact_bottleneck_forward.4} parent=11 // pred_region
        _
      $region24: #{preact_bottleneck_forward.4} parent=11 // pred_fallthru
        _
    $region12: #{preact_bottleneck_forward.4} parent=5 // pred_fallthru
      _
    %p149 = scmp.lt.s32.totalorder %s10, 2
    // Predicated region
    $region25: #{preact_bottleneck_forward.4} parent=5 // pred_check
      %p150 = pneg %p149
    $region26: #{preact_bottleneck_forward.4} parent=5 // pred_check_branch
      %152 = sbr.rel (%p150) target = $region28
    $region27: #{preact_bottleneck_forward.4} parent=5 // pred_region
      // Predicated region
      $region29: #{preact_bottleneck_forward.4} parent=27 // pred_check
        %p153 = pneg %p30
      $region30: #{preact_bottleneck_forward.4} parent=27 // pred_check_branch
        %155 = sbr.rel (%p153) target = $region32
      $region31: #{preact_bottleneck_forward.4} parent=27 // pred_region
        %s156 = smul.u32 32, %s10
        %p157 = scmp.lt.s32.totalorder %s156, 63
        %s158 = scalar_select %p157, %s156, 63
        %s159 = smul.addr %s158, 8
        %s160 = scalar_lea.vmem %s0, %s159
        %s161 = smul.u32 32, %s10
      $region32: #{preact_bottleneck_forward.4} parent=27 // pred_fallthru
        _
    $region28: #{preact_bottleneck_forward.4} parent=5 // pred_fallthru
      _
    %p162 = scmp.le.s32.totalorder 1, %s10
    %p163 = scmp.lt.s32.totalorder %s10, 3
    %p164 = pnand %p162, %p163
    %p165 = pneg %p164
    // Predicated region
    $region33: #{preact_bottleneck_forward.4} parent=5 // pred_check
      _
    $region34: #{preact_bottleneck_forward.4} parent=5 // pred_check_branch
      %167 = sbr.rel (%p164) target = $region36
    $region35: #{preact_bottleneck_forward.4} parent=5 // pred_region
      %s168 = ssub.s32 %s10, 1
      %s169 = smul.u32 32, %s15
      %p170 = scmp.lt.s32.totalorder %s169, 63
      %s171 = scalar_select %p170, %s169, 63
      %s172 = smul.addr %s171, 8
      %s173 = scalar_lea.vmem %s0, %s172
      %p174 = pneg %p36
      %p175 = pneg %p33
      %p176 = pneg %p57
      %p177 = pneg %p54
      %p178 = pneg %p78
      %p179 = pneg %p75
      %p180 = pneg %p99
      %p181 = pneg %p96
      %p182 = pneg %p125
      %p183 = pneg %p122
      %s184 = smul.u32 32, %s15
      %p185 = scmp.lt.s32.totalorder %s184, 63
      %s186 = scalar_select %p185, %s184, 63
      %s187 = smul.addr %s186, 8
      %s188 = scalar_lea.vmem %s4, %s187
      %s189 = smul.u32 32, %s15
      %p190 = scmp.lt.s32.totalorder %s189, 63
      %s191 = scalar_select %p190, %s189, 63
      %s192 = smul.addr %s191, 8
      %s193 = scalar_lea.vmem %s0, %s192
      %s194 = smul.u32 32, %s15
      %s195 = smul.u32 32, %s15
      %p196 = scmp.lt.s32.totalorder %s195, 63
      %s197 = scalar_select %p196, %s195, 63
      %s198 = smul.addr %s197, 8
      %s199 = scalar_lea.vmem %s4, %s198
      %s200 = smul.u32 32, %s15
      %v202 = vld [vmem:[%s193] sm:$0xff]
      %v203 = vld [vmem:[%s193 + $0x8] sm:$0xff]
      %v204 = vld [vmem:[%s193 + $0x10] sm:$0xff]
      %v205 = vld [vmem:[%s193 + $0x18] sm:$0xff]
      %v206 = vld [vmem:[%s193 + $0x20] sm:$0xff]
      %v207 = vld [vmem:[%s193 + $0x28] sm:$0xff]
      %v208 = vld [vmem:[%s193 + $0x30] sm:$0xff]
      %v209 = vld [vmem:[%s193 + $0x38] sm:$0xff]
      %v210 = vld [vmem:[%s193 + $0x40] sm:$0xff]
      %v211 = vld [vmem:[%s193 + $0x48] sm:$0xff]
      %v212 = vld [vmem:[%s193 + $0x50] sm:$0xff]
      %v213 = vld [vmem:[%s193 + $0x58] sm:$0xff]
      %v214 = vld [vmem:[%s193 + $0x60] sm:$0xff]
      %v215 = vld [vmem:[%s193 + $0x68] sm:$0xff]
      %v216 = vld [vmem:[%s193 + $0x70] sm:$0xff]
      %v217 = vld [vmem:[%s193 + $0x78] sm:$0xff]
      %v218 = vld [vmem:[%s193 + $0x80] sm:$0xff]
      %v219 = vld [vmem:[%s193 + $0x88] sm:$0xff]
      %v220 = vld [vmem:[%s193 + $0x90] sm:$0xff]
      %v221 = vld [vmem:[%s193 + $0x98] sm:$0xff]
      %v222 = vld [vmem:[%s193 + $0xa0] sm:$0xff]
      %v223 = vld [vmem:[%s193 + $0xa8] sm:$0xff]
      %v224 = vld [vmem:[%s193 + $0xb0] sm:$0xff]
      %v225 = vld [vmem:[%s193 + $0xb8] sm:$0xff]
      %v226 = vld [vmem:[%s193 + $0xc0] sm:$0xff]
      %v227 = vld [vmem:[%s193 + $0xc8] sm:$0xff]
      %v228 = vld [vmem:[%s193 + $0xd0] sm:$0xff]
      %v229 = vld [vmem:[%s193 + $0xd8] sm:$0xff]
      %v230 = vld [vmem:[%s193 + $0xe0] sm:$0xff]
      %v231 = vld [vmem:[%s193 + $0xe8] sm:$0xff]
      %v232 = vld [vmem:[%s193 + $0xf0] sm:$0xff]
      %v233 = vld [vmem:[%s193 + $0xf8] sm:$0xff]
      %v234 = vld [vmem:[%s2] sm:$0x1]
      %v236 = vlaneseq
      %v237 = vshrl.u32 %v236, 7
      %v238 = vsub.s32 0, %v237
      %v239 = vrot.slane %v234, %v238
      %v241 = vmul.f32 %v202, %v239
      %v242 = vmul.f32 %v203, %v239
      %v243 = vmul.f32 %v204, %v239
      %v244 = vmul.f32 %v205, %v239
      %v245 = vmul.f32 %v206, %v239
      %v246 = vmul.f32 %v207, %v239
      %v247 = vmul.f32 %v208, %v239
      %v248 = vmul.f32 %v209, %v239
      %v249 = vmul.f32 %v210, %v239
      %v250 = vmul.f32 %v211, %v239
      %v251 = vmul.f32 %v212, %v239
      %v252 = vmul.f32 %v213, %v239
      %v253 = vmul.f32 %v214, %v239
      %v254 = vmul.f32 %v215, %v239
      %v255 = vmul.f32 %v216, %v239
      %v256 = vmul.f32 %v217, %v239
      %v257 = vmul.f32 %v218, %v239
      %v258 = vmul.f32 %v219, %v239
      %v259 = vmul.f32 %v220, %v239
      %v260 = vmul.f32 %v221, %v239
      %v261 = vmul.f32 %v222, %v239
      %v262 = vmul.f32 %v223, %v239
      %v263 = vmul.f32 %v224, %v239
      %v264 = vmul.f32 %v225, %v239
      %v265 = vmul.f32 %v226, %v239
      %v266 = vmul.f32 %v227, %v239
      %v267 = vmul.f32 %v228, %v239
      %v268 = vmul.f32 %v229, %v239
      %v269 = vmul.f32 %v230, %v239
      %v270 = vmul.f32 %v231, %v239
      %v271 = vmul.f32 %v232, %v239
      %v272 = vmul.f32 %v233, %v239
      %v273 = vld [vmem:[%s3] sm:$0x1]
      %v275 = vlaneseq
      %v276 = vshrl.u32 %v275, 7
      %v277 = vsub.s32 0, %v276
      %v278 = vrot.slane %v273, %v277
      %v280 = vadd.f32 %v241, %v278
      %v281 = vadd.f32 %v242, %v278
      %v282 = vadd.f32 %v243, %v278
      %v283 = vadd.f32 %v244, %v278
      %v284 = vadd.f32 %v245, %v278
      %v285 = vadd.f32 %v246, %v278
      %v286 = vadd.f32 %v247, %v278
      %v287 = vadd.f32 %v248, %v278
      %v288 = vadd.f32 %v249, %v278
      %v289 = vadd.f32 %v250, %v278
      %v290 = vadd.f32 %v251, %v278
      %v291 = vadd.f32 %v252, %v278
      %v292 = vadd.f32 %v253, %v278
      %v293 = vadd.f32 %v254, %v278
      %v294 = vadd.f32 %v255, %v278
      %v295 = vadd.f32 %v256, %v278
      %v296 = vadd.f32 %v257, %v278
      %v297 = vadd.f32 %v258, %v278
      %v298 = vadd.f32 %v259, %v278
      %v299 = vadd.f32 %v260, %v278
      %v300 = vadd.f32 %v261, %v278
      %v301 = vadd.f32 %v262, %v278
      %v302 = vadd.f32 %v263, %v278
      %v303 = vadd.f32 %v264, %v278
      %v304 = vadd.f32 %v265, %v278
      %v305 = vadd.f32 %v266, %v278
      %v306 = vadd.f32 %v267, %v278
      %v307 = vadd.f32 %v268, %v278
      %v308 = vadd.f32 %v269, %v278
      %v309 = vadd.f32 %v270, %v278
      %v310 = vadd.f32 %v271, %v278
      %v311 = vadd.f32 %v272, %v278
      %v312 = vmax.f32 %v280, 0.0
      %v313 = vmax.f32 %v281, 0.0
      %v314 = vmax.f32 %v282, 0.0
      %v315 = vmax.f32 %v283, 0.0
      %v316 = vmax.f32 %v284, 0.0
      %v317 = vmax.f32 %v285, 0.0
      %v318 = vmax.f32 %v286, 0.0
      %v319 = vmax.f32 %v287, 0.0
      %v320 = vmax.f32 %v288, 0.0
      %v321 = vmax.f32 %v289, 0.0
      %v322 = vmax.f32 %v290, 0.0
      %v323 = vmax.f32 %v291, 0.0
      %v324 = vmax.f32 %v292, 0.0
      %v325 = vmax.f32 %v293, 0.0
      %v326 = vmax.f32 %v294, 0.0
      %v327 = vmax.f32 %v295, 0.0
      %v328 = vmax.f32 %v296, 0.0
      %v329 = vmax.f32 %v297, 0.0
      %v330 = vmax.f32 %v298, 0.0
      %v331 = vmax.f32 %v299, 0.0
      %v332 = vmax.f32 %v300, 0.0
      %v333 = vmax.f32 %v301, 0.0
      %v334 = vmax.f32 %v302, 0.0
      %v335 = vmax.f32 %v303, 0.0
      %v336 = vmax.f32 %v304, 0.0
      %v337 = vmax.f32 %v305, 0.0
      %v338 = vmax.f32 %v306, 0.0
      %v339 = vmax.f32 %v307, 0.0
      %v340 = vmax.f32 %v308, 0.0
      %v341 = vmax.f32 %v309, 0.0
      %v342 = vmax.f32 %v310, 0.0
      %v343 = vmax.f32 %v311, 0.0
      %v344 = vpack.c.bf16 %v313, %v312
      %v345 = vpack.c.bf16 %v315, %v314
      %v346 = vpack.c.bf16 %v317, %v316
      %v347 = vpack.c.bf16 %v319, %v318
      %v348 = vpack.c.bf16 %v321, %v320
      %v349 = vpack.c.bf16 %v323, %v322
      %v350 = vpack.c.bf16 %v325, %v324
      %v351 = vpack.c.bf16 %v327, %v326
      %v352 = vpack.c.bf16 %v329, %v328
      %v353 = vpack.c.bf16 %v331, %v330
      %v354 = vpack.c.bf16 %v333, %v332
      %v355 = vpack.c.bf16 %v335, %v334
      %v356 = vpack.c.bf16 %v337, %v336
      %v357 = vpack.c.bf16 %v339, %v338
      %v358 = vpack.c.bf16 %v341, %v340
      %v359 = vpack.c.bf16 %v343, %v342
      %v360 = vld [vmem:[%s1] sm:$0xf]
      %v361 = vld [vmem:[%s1 + $0x4] sm:$0xf]
      %v362 = vld [vmem:[%s1 + $0x8] sm:$0xf]
      %v363 = vld [vmem:[%s1 + $0xc] sm:$0xf]
      %v364 = vld [vmem:[%s1 + $0x10] sm:$0xf]
      %v365 = vld [vmem:[%s1 + $0x14] sm:$0xf]
      %v366 = vld [vmem:[%s1 + $0x18] sm:$0xf]
      %v367 = vld [vmem:[%s1 + $0x1c] sm:$0xf]
      %v376 = vunpack.c.l.b16 %v360
      %v377 = vunpack.c.l.b16 %v361
      %v378 = vunpack.c.l.b16 %v362
      %v379 = vunpack.c.l.b16 %v363
      %v380 = vunpack.c.l.b16 %v364
      %v381 = vunpack.c.l.b16 %v365
      %v382 = vunpack.c.l.b16 %v366
      %v383 = vunpack.c.l.b16 %v367
      %v384 = vpack.c.b16 %v377, %v376
      %v385 = vpack.c.b16 %v379, %v378
      %v386 = vpack.c.b16 %v381, %v380
      %v387 = vpack.c.b16 %v383, %v382
      %vm392 = vcmask 523264
      %v394 = vsel %vm392, %v344, 0
      %v397 = vsel %vm392, %v345, 0
      %v400 = vsel %vm392, %v346, 0
      %v403 = vsel %vm392, %v347, 0
      %v406 = vsel %vm392, %v348, 0
      %v409 = vsel %vm392, %v349, 0
      %v412 = vsel %vm392, %v350, 0
      %v415 = vsel %vm392, %v351, 0
      %v418 = vsel %vm392, %v352, 0
      %v421 = vsel %vm392, %v353, 0
      %v424 = vsel %vm392, %v354, 0
      %v427 = vsel %vm392, %v355, 0
      %v430 = vsel %vm392, %v356, 0
      %v433 = vsel %vm392, %v357, 0
      %v436 = vsel %vm392, %v358, 0
      %v439 = vsel %vm392, %v359, 0
      %441 = vmatprep.subr.bf16.mxu0 0
      %442 = vmatpush1.bf16.msra.mxu0 %v384
      %443 = vmatprep.subr.bf16.mxu0 0
      %444 = vmatpush1.bf16.msra.mxu0 %v385
      %445 = vmatprep.subr.bf16.mxu0 0
      %446 = vmatpush1.bf16.msra.mxu0 %v386
      %447 = vmatprep.subr.bf16.mxu0 0
      %448 = vmatpush1.bf16.msra.mxu0 %v387
      %449 = vmatprep.subr.bf16.mxu0 0
      %450 = vmatpush1.bf16.msra.mxu0 0
      %451 = vmatprep.subr.bf16.mxu0 0
      %452 = vmatpush1.bf16.msra.mxu0 0
      %453 = vmatprep.subr.bf16.mxu0 0
      %454 = vmatpush1.bf16.msra.mxu0 0
      %455 = vmatprep.subr.bf16.mxu0 0
      %456 = vmatpush1.bf16.msra.mxu0 0
      %457 = vmatprep.subr.bf16.mxu0 0
      %458 = vmatpush1.bf16.msra.mxu0 0
      %459 = vmatprep.subr.bf16.mxu0 0
      %460 = vmatpush1.bf16.msra.mxu0 0
      %461 = vmatprep.subr.bf16.mxu0 0
      %462 = vmatpush1.bf16.msra.mxu0 0
      %463 = vmatprep.subr.bf16.mxu0 0
      %464 = vmatpush1.bf16.msra.mxu0 0
      %465 = vmatprep.subr.bf16.mxu0 0
      %466 = vmatpush1.bf16.msra.mxu0 0
      %467 = vmatprep.subr.bf16.mxu0 0
      %468 = vmatpush1.bf16.msra.mxu0 0
      %469 = vmatprep.subr.bf16.mxu0 0
      %470 = vmatpush1.bf16.msra.mxu0 0
      %471 = vmatprep.subr.bf16.mxu0 0
      %472 = vmatpush1.bf16.msra.mxu0 0
      %473 = vmatprep.mubr.bf16.mxu0 0
      %474 = vmatmul.mubr.bf16.gmra.mrb[0].mxu0 %v394
      %v475 = vpop.f32.mrb[0].mxu0
      %v476 = vadd.f32 0.0, %v475
      %v477 = vpop.f32.mrb[0].mxu0
      %v478 = vpop.f32.mrb[0].mxu0
      %v479 = vadd.f32 0.0, %v478
      %v480 = vpop.f32.mrb[0].mxu0
      %481 = vmatprep.mubr.bf16.mxu0 0
      %482 = vmatmul.mubr.bf16.gmra.mrb[0].mxu0 %v397
      %v483 = vpop.f32.mrb[0].mxu0
      %v484 = vadd.f32 0.0, %v483
      %v485 = vpop.f32.mrb[0].mxu0
      %v486 = vpop.f32.mrb[0].mxu0
      %v487 = vadd.f32 0.0, %v486
      %v488 = vpop.f32.mrb[0].mxu0
      %489 = vmatprep.mubr.bf16.mxu0 0
      %490 = vmatmul.mubr.bf16.gmra.mrb[0].mxu0 %v400
      %v491 = vpop.f32.mrb[0].mxu0
      %v492 = vadd.f32 0.0, %v491
      %v493 = vpop.f32.mrb[0].mxu0
      %v494 = vpop.f32.mrb[0].mxu0
      %v495 = vadd.f32 0.0, %v494
      %v496 = vpop.f32.mrb[0].mxu0
      %497 = vmatprep.mubr.bf16.mxu0 0
      %498 = vmatmul.mubr.bf16.gmra.mrb[0].mxu0 %v403
      %v499 = vpop.f32.mrb[0].mxu0
      %v500 = vadd.f32 0.0, %v499
      %v501 = vpop.f32.mrb[0].mxu0
      %v502 = vpop.f32.mrb[0].mxu0
      %v503 = vadd.f32 0.0, %v502
      %v504 = vpop.f32.mrb[0].mxu0
      %505 = vmatprep.mubr.bf16.mxu0 0
      %506 = vmatmul.mubr.bf16.gmra.mrb[0].mxu0 %v406
      %v507 = vpop.f32.mrb[0].mxu0
      %v508 = vadd.f32 0.0, %v507
      %v509 = vpop.f32.mrb[0].mxu0
      %v510 = vpop.f32.mrb[0].mxu0
      %v511 = vadd.f32 0.0, %v510
      %v512 = vpop.f32.mrb[0].mxu0
      %513 = vmatprep.mubr.bf16.mxu0 0
      %514 = vmatmul.mubr.bf16.gmra.mrb[0].mxu0 %v409
      %v515 = vpop.f32.mrb[0].mxu0
      %v516 = vadd.f32 0.0, %v515
      %v517 = vpop.f32.mrb[0].mxu0
      %v518 = vpop.f32.mrb[0].mxu0
      %v519 = vadd.f32 0.0, %v518
      %v520 = vpop.f32.mrb[0].mxu0
      %521 = vmatprep.mubr.bf16.mxu0 0
      %522 = vmatmul.mubr.bf16.gmra.mrb[0].mxu0 %v412
      %v523 = vpop.f32.mrb[0].mxu0
      %v524 = vadd.f32 0.0, %v523
      %v525 = vpop.f32.mrb[0].mxu0
      %v526 = vpop.f32.mrb[0].mxu0
      %v527 = vadd.f32 0.0, %v526
      %v528 = vpop.f32.mrb[0].mxu0
      %529 = vmatprep.mubr.bf16.mxu0 0
      %530 = vmatmul.mubr.bf16.gmra.mrb[0].mxu0 %v415
      %v531 = vpop.f32.mrb[0].mxu0
      %v532 = vadd.f32 0.0, %v531
      %v533 = vpop.f32.mrb[0].mxu0
      %v534 = vpop.f32.mrb[0].mxu0
      %v535 = vadd.f32 0.0, %v534
      %v536 = vpop.f32.mrb[0].mxu0
      %537 = vmatprep.mubr.bf16.mxu0 0
      %538 = vmatmul.mubr.bf16.gmra.mrb[0].mxu0 %v418
      %v539 = vpop.f32.mrb[0].mxu0
      %v540 = vadd.f32 0.0, %v539
      %v541 = vpop.f32.mrb[0].mxu0
      %v542 = vpop.f32.mrb[0].mxu0
      %v543 = vadd.f32 0.0, %v542
      %v544 = vpop.f32.mrb[0].mxu0
      %545 = vmatprep.mubr.bf16.mxu0 0
      %546 = vmatmul.mubr.bf16.gmra.mrb[0].mxu0 %v421
      %v547 = vpop.f32.mrb[0].mxu0
      %v548 = vadd.f32 0.0, %v547
      %v549 = vpop.f32.mrb[0].mxu0
      %v550 = vpop.f32.mrb[0].mxu0
      %v551 = vadd.f32 0.0, %v550
      %v552 = vpop.f32.mrb[0].mxu0
      %553 = vmatprep.mubr.bf16.mxu0 0
      %554 = vmatmul.mubr.bf16.gmra.mrb[0].mxu0 %v424
      %v555 = vpop.f32.mrb[0].mxu0
      %v556 = vadd.f32 0.0, %v555
      %v557 = vpop.f32.mrb[0].mxu0
      %v558 = vpop.f32.mrb[0].mxu0
      %v559 = vadd.f32 0.0, %v558
      %v560 = vpop.f32.mrb[0].mxu0
      %561 = vmatprep.mubr.bf16.mxu0 0
      %562 = vmatmul.mubr.bf16.gmra.mrb[0].mxu0 %v427
      %v563 = vpop.f32.mrb[0].mxu0
      %v564 = vadd.f32 0.0, %v563
      %v565 = vpop.f32.mrb[0].mxu0
      %v566 = vpop.f32.mrb[0].mxu0
      %v567 = vadd.f32 0.0, %v566
      %v568 = vpop.f32.mrb[0].mxu0
      %569 = vmatprep.mubr.bf16.mxu0 0
      %570 = vmatmul.mubr.bf16.gmra.mrb[0].mxu0 %v430
      %v571 = vpop.f32.mrb[0].mxu0
      %v572 = vadd.f32 0.0, %v571
      %v573 = vpop.f32.mrb[0].mxu0
      %v574 = vpop.f32.mrb[0].mxu0
      %v575 = vadd.f32 0.0, %v574
      %v576 = vpop.f32.mrb[0].mxu0
      %577 = vmatprep.mubr.bf16.mxu0 0
      %578 = vmatmul.mubr.bf16.gmra.mrb[0].mxu0 %v433
      %v579 = vpop.f32.mrb[0].mxu0
      %v580 = vadd.f32 0.0, %v579
      %v581 = vpop.f32.mrb[0].mxu0
      %v582 = vpop.f32.mrb[0].mxu0
      %v583 = vadd.f32 0.0, %v582
      %v584 = vpop.f32.mrb[0].mxu0
      %585 = vmatprep.mubr.bf16.mxu0 0
      %586 = vmatmul.mubr.bf16.gmra.mrb[0].mxu0 %v436
      %v587 = vpop.f32.mrb[0].mxu0
      %v588 = vadd.f32 0.0, %v587
      %v589 = vpop.f32.mrb[0].mxu0
      %v590 = vpop.f32.mrb[0].mxu0
      %v591 = vadd.f32 0.0, %v590
      %v592 = vpop.f32.mrb[0].mxu0
      %593 = vmatprep.mubr.bf16.mxu0 0
      %594 = vmatmul.mubr.bf16.gmra.mrb[0].mxu0 %v439
      %v595 = vpop.f32.mrb[0].mxu0
      %v596 = vadd.f32 0.0, %v595
      %v597 = vpop.f32.mrb[0].mxu0
      %v598 = vpop.f32.mrb[0].mxu0
      %v599 = vadd.f32 0.0, %v598
      %v600 = vpop.f32.mrb[0].mxu0
      %601 = vdwg.mxu0
      %602 = vst [vmem:[%s199] sm:$0xff] %v476
      %603 = vst [vmem:[%s199 + $0x8] sm:$0xff] %v479
      %604 = vst [vmem:[%s199 + $0x10] sm:$0xff] %v484
      %605 = vst [vmem:[%s199 + $0x18] sm:$0xff] %v487
      %606 = vst [vmem:[%s199 + $0x20] sm:$0xff] %v492
      %607 = vst [vmem:[%s199 + $0x28] sm:$0xff] %v495
      %608 = vst [vmem:[%s199 + $0x30] sm:$0xff] %v500
      %609 = vst [vmem:[%s199 + $0x38] sm:$0xff] %v503
      %610 = vst [vmem:[%s199 + $0x40] sm:$0xff] %v508
      %611 = vst [vmem:[%s199 + $0x48] sm:$0xff] %v511
      %612 = vst [vmem:[%s199 + $0x50] sm:$0xff] %v516
      %613 = vst [vmem:[%s199 + $0x58] sm:$0xff] %v519
      %614 = vst [vmem:[%s199 + $0x60] sm:$0xff] %v524
      %615 = vst [vmem:[%s199 + $0x68] sm:$0xff] %v527
      %616 = vst [vmem:[%s199 + $0x70] sm:$0xff] %v532
      %617 = vst [vmem:[%s199 + $0x78] sm:$0xff] %v535
      %618 = vst [vmem:[%s199 + $0x80] sm:$0xff] %v540
      %619 = vst [vmem:[%s199 + $0x88] sm:$0xff] %v543
      %620 = vst [vmem:[%s199 + $0x90] sm:$0xff] %v548
      %621 = vst [vmem:[%s199 + $0x98] sm:$0xff] %v551
      %622 = vst [vmem:[%s199 + $0xa0] sm:$0xff] %v556
      %623 = vst [vmem:[%s199 + $0xa8] sm:$0xff] %v559
      %624 = vst [vmem:[%s199 + $0xb0] sm:$0xff] %v564
      %625 = vst [vmem:[%s199 + $0xb8] sm:$0xff] %v567
      %626 = vst [vmem:[%s199 + $0xc0] sm:$0xff] %v572
      %627 = vst [vmem:[%s199 + $0xc8] sm:$0xff] %v575
      %628 = vst [vmem:[%s199 + $0xd0] sm:$0xff] %v580
      %629 = vst [vmem:[%s199 + $0xd8] sm:$0xff] %v583
      %630 = vst [vmem:[%s199 + $0xe0] sm:$0xff] %v588
      %631 = vst [vmem:[%s199 + $0xe8] sm:$0xff] %v591
      %632 = vst [vmem:[%s199 + $0xf0] sm:$0xff] %v596
      %633 = vst [vmem:[%s199 + $0xf8] sm:$0xff] %v599
      %s634 = smul.u32 32, %s15
      %p635 = scmp.lt.s32.totalorder %s634, 63
      %s636 = scalar_select %p635, %s634, 63
      %s637 = smul.addr %s636, 8
      %s638 = scalar_lea.vmem %s4, %s637
      // Predicated region
      $region37: #{preact_bottleneck_forward.4} parent=35 // pred_check
        %p639 = pneg %p122
      $region38: #{preact_bottleneck_forward.4} parent=35 // pred_check_branch
        %641 = sbr.rel (%p639) target = $region40
      $region39: #{preact_bottleneck_forward.4} parent=35 // pred_region
        %s642 = smul.u32 32, %s15
      $region40: #{preact_bottleneck_forward.4} parent=35 // pred_fallthru
        _
    $region36: #{preact_bottleneck_forward.4} parent=5 // pred_fallthru
      _
    %p643 = scmp.le.s32.totalorder 2, %s10
    // Predicated region
    $region41: #{preact_bottleneck_forward.4} parent=5 // pred_check
      %p644 = pneg %p643
    $region42: #{preact_bottleneck_forward.4} parent=5 // pred_check_branch
      %646 = sbr.rel (%p644) target = $region44
    $region43: #{preact_bottleneck_forward.4} parent=5 // pred_region
      %s647 = ssub.s32 %s10, 2
      // Predicated region
      $region45: #{preact_bottleneck_forward.4} parent=43 // pred_check
        %p648 = pneg %p128
      $region46: #{preact_bottleneck_forward.4} parent=43 // pred_check_branch
        %650 = sbr.rel (%p648) target = $region48
      $region47: #{preact_bottleneck_forward.4} parent=43 // pred_region
        %s651 = smul.u32 32, %s16
        %p652 = scmp.lt.s32.totalorder %s651, 63
        %s653 = scalar_select %p652, %s651, 63
        %s654 = smul.addr %s653, 8
        %s655 = scalar_lea.vmem %s4, %s654
      $region48: #{preact_bottleneck_forward.4} parent=43 // pred_fallthru
        _
    $region44: #{preact_bottleneck_forward.4} parent=5 // pred_fallthru
      _
  $region6: #{preact_bottleneck_forward.4} parent=0 // loop_footer
    %s14 = sadd.s32 1, %s10
  $region7: #{preact_bottleneck_forward.4} parent=0 // loop_footer_branch
    %9 = sbr.rel target = $region3
  $region8: #{preact_bottleneck_forward.4} parent=0 // loop_exit
    _

// kernel: preact_bottleneck_forward.7
$region0: #{preact_bottleneck_forward.7}
  #allocation0 [shape = 'u32[]', space=smem, size = 0x4, offset = 0x4, fixed_abs, tag = 'smem constant byte address 0x4 - core index']
  #allocation1 [shape = 'u32[144,128]{1,0:T(1,128)}', space=vmem, size = 0x12000, scoped, tag = 'internal scratch']
  %s0 = inlined_call_operand.vmem [shape: bf16[512,32], index: 0, kind: input, shape index: {}]
  %s1 = inlined_call_operand.vmem [shape: bf16[32,128], index: 1, kind: input, shape index: {}]
  %s2 = inlined_call_operand.vmem [shape: f32[512,128], index: 2, kind: input, shape index: {}]
  %s3 = inlined_call_operand.hbm [shape: f32[512,128], index: 3, kind: output, shape index: {}]
  %s4 = sld [smem:[#allocation0]]
  $region45: #{preact_bottleneck_forward.7} parent=0
    _
  %s6 = ssub.s32 1, %s4
  %s7 = scalar_select 0, %s6, %s4
  $region1: #{preact_bottleneck_forward.7} parent=0
    #allocation2 [shape = 'u8[262144]{0}', space=vmem, size = 0x40000, scoped, tag = 'output window, operand 0']
    #allocation3 [shape = 's32[2]{0}', space=sflag, size = 0x8, scoped, tag = 'scoped memory for preact_bottleneck_forward.7']
    %8 = vsyncpa [#allocation3], 0
    %s9 = scalar_lea.sflag [#allocation3], 1
    %10 = vsyncpa %s9, 0
    loop: start=0, step=1, limit=4
    $region2: #{preact_bottleneck_forward.7} parent=1 // loop_pre_header
      _
    $region3: #{preact_bottleneck_forward.7} parent=1 // loop_header
      %s12 = sphi 0, %s16
      %p13 = scmp.ge.s32.totalorder %s12, 4
      %s22 = sphi 0, %s24
      %s25 = sphi 0, %s22
      %s26 = sphi 0, %s25
      %s42 = sphi 0, %s26
      %s46 = sphi 0, %s46
      %s48 = sphi 0, %s46
      %s49 = sphi 0, %s48
      %s63 = sphi 0, %s49
      %s69 = sphi 0, %s71
      %s72 = sphi 0, %s69
      %s73 = sphi 0, %s72
      %s89 = sphi 0, %s73
      %s95 = sphi 0, %s97
      %s98 = sphi 0, %s95
      %s99 = sphi 0, %s98
      %s115 = sphi 0, %s99
    $region4: #{preact_bottleneck_forward.7} parent=1 // loop_header_branch
      %15 = sbr.rel (%p13) target = $region8
    $region5: #{preact_bottleneck_forward.7} parent=1 // loop_body
      %s17 = ssub.s32 %s12, 1
      %s18 = ssub.s32 %s12, 2
      %s19 = sadd.s32 %s12, 1
      %s20 = ssub.s32 %s12, %s19
      %p21 = scmp.eq.s32.totalorder %s20, 0
      %s23 = sadd.s32 %s22, 1
      %s24 = scalar_select %p21, %s22, %s23
      %p27 = pneg %p21
      %p28 = scmp.eq.s32.totalorder %s12, 1
      %p29 = por %p27, %p28
      %p30 = scmp.ne.s32.totalorder %s22, %s25
      %p31 = scmp.eq.s32.totalorder %s12, 0
      %p32 = por %p30, %p31
      %p33 = scmp.ne.s32.totalorder %s22, %s25
      %p34 = scmp.eq.s32.totalorder %s17, 1
      %p35 = por %p33, %p34
      %p36 = scmp.ne.s32.totalorder %s25, %s26
      %p37 = scmp.eq.s32.totalorder %s17, 0
      %p38 = por %p36, %p37
      %p39 = scmp.ne.s32.totalorder %s25, %s26
      %p40 = scmp.eq.s32.totalorder %s18, 1
      %p41 = por %p39, %p40
      %p43 = scmp.ne.s32.totalorder %s26, %s42
      %p44 = scmp.eq.s32.totalorder %s18, 0
      %p45 = por %p43, %p44
      %s47 = sadd.s32 %s46, 1
      %p50 = scmp.eq.s32.totalorder %s12, 1
      %p51 = scmp.ne.s32.totalorder %s46, %s48
      %p52 = scmp.eq.s32.totalorder %s12, 0
      %p53 = por %p51, %p52
      %p54 = scmp.ne.s32.totalorder %s46, %s48
      %p55 = scmp.eq.s32.totalorder %s17, 1
      %p56 = por %p54, %p55
      %p57 = scmp.ne.s32.totalorder %s48, %s49
      %p58 = scmp.eq.s32.totalorder %s17, 0
      %p59 = por %p57, %p58
      %p60 = scmp.ne.s32.totalorder %s48, %s49
      %p61 = scmp.eq.s32.totalorder %s18, 1
      %p62 = por %p60, %p61
      %p64 = scmp.ne.s32.totalorder %s49, %s63
      %p65 = scmp.eq.s32.totalorder %s18, 0
      %p66 = por %p64, %p65
      %s67 = ssub.s32 %s12, %s19
      %p68 = scmp.eq.s32.totalorder %s67, 0
      %s70 = sadd.s32 %s69, 1
      %s71 = scalar_select %p68, %s69, %s70
      %p74 = pneg %p68
      %p75 = scmp.eq.s32.totalorder %s12, 1
      %p76 = por %p74, %p75
      %p77 = scmp.ne.s32.totalorder %s69, %s72
      %p78 = scmp.eq.s32.totalorder %s12, 0
      %p79 = por %p77, %p78
      %p80 = scmp.ne.s32.totalorder %s69, %s72
      %p81 = scmp.eq.s32.totalorder %s17, 1
      %p82 = por %p80, %p81
      %p83 = scmp.ne.s32.totalorder %s72, %s73
      %p84 = scmp.eq.s32.totalorder %s17, 0
      %p85 = por %p83, %p84
      %p86 = scmp.ne.s32.totalorder %s72, %s73
      %p87 = scmp.eq.s32.totalorder %s18, 1
      %p88 = por %p86, %p87
      %p90 = scmp.ne.s32.totalorder %s73, %s89
      %p91 = scmp.eq.s32.totalorder %s18, 0
      %p92 = por %p90, %p91
      %s93 = ssub.s32 %s12, %s19
      %p94 = scmp.eq.s32.totalorder %s93, 0
      %s96 = sadd.s32 %s95, 1
      %s97 = scalar_select %p94, %s95, %s96
      %p100 = pneg %p94
      %p101 = scmp.eq.s32.totalorder %s12, 1
      %p102 = por %p100, %p101
      %p103 = scmp.ne.s32.totalorder %s95, %s98
      %p104 = scmp.eq.s32.totalorder %s12, 0
      %p105 = por %p103, %p104
      %p106 = scmp.ne.s32.totalorder %s95, %s98
      %p107 = scmp.eq.s32.totalorder %s17, 1
      %p108 = por %p106, %p107
      %p109 = scmp.ne.s32.totalorder %s98, %s99
      %p110 = scmp.eq.s32.totalorder %s17, 0
      %p111 = por %p109, %p110
      %p112 = scmp.ne.s32.totalorder %s98, %s99
      %p113 = scmp.eq.s32.totalorder %s18, 1
      %p114 = por %p112, %p113
      %p116 = scmp.ne.s32.totalorder %s99, %s115
      %p117 = scmp.eq.s32.totalorder %s18, 0
      %p118 = por %p116, %p117
      %p119 = scmp.le.s32.totalorder 1, %s12
      %p120 = scmp.lt.s32.totalorder %s12, 3
      %p121 = pnand %p119, %p120
      %p122 = pneg %p121
      // Predicated region
      $region9: #{preact_bottleneck_forward.7} parent=5 // pred_check
        _
      $region10: #{preact_bottleneck_forward.7} parent=5 // pred_check_branch
        %124 = sbr.rel (%p121) target = $region12
      $region11: #{preact_bottleneck_forward.7} parent=5 // pred_region
        %s125 = ssub.s32 %s12, 1
        // Predicated region
        $region13: #{preact_bottleneck_forward.7} parent=11 // pred_check
          %p126 = pneg %p59
        $region14: #{preact_bottleneck_forward.7} parent=11 // pred_check_branch
          %128 = sbr.rel (%p126) target = $region16
        $region15: #{preact_bottleneck_forward.7} parent=11 // pred_region
          _
        $region16: #{preact_bottleneck_forward.7} parent=11 // pred_fallthru
          _
      $region12: #{preact_bottleneck_forward.7} parent=5 // pred_fallthru
        _
      %p129 = scmp.lt.s32.totalorder %s12, 2
      // Predicated region
      $region17: #{preact_bottleneck_forward.7} parent=5 // pred_check
        %p130 = pneg %p129
      $region18: #{preact_bottleneck_forward.7} parent=5 // pred_check_branch
        %132 = sbr.rel (%p130) target = $region20
      $region19: #{preact_bottleneck_forward.7} parent=5 // pred_region
        // Predicated region
        $region21: #{preact_bottleneck_forward.7} parent=19 // pred_check
          %p133 = pneg %p32
        $region22: #{preact_bottleneck_forward.7} parent=19 // pred_check_branch
          %135 = sbr.rel (%p133) target = $region24
        $region23: #{preact_bottleneck_forward.7} parent=19 // pred_region
          %s136 = smul.u32 32, %s12
          %p137 = scmp.lt.s32.totalorder %s136, 63
          %s138 = scalar_select %p137, %s136, 63
          %s139 = smul.addr %s138, 4
          %s140 = scalar_lea.vmem %s0, %s139
          %s141 = smul.u32 32, %s12
        $region24: #{preact_bottleneck_forward.7} parent=19 // pred_fallthru
          _
        // Predicated region
        $region25: #{preact_bottleneck_forward.7} parent=19 // pred_check
          %p142 = pneg %p79
        $region26: #{preact_bottleneck_forward.7} parent=19 // pred_check_branch
          %144 = sbr.rel (%p142) target = $region28
        $region27: #{preact_bottleneck_forward.7} parent=19 // pred_region
          %s145 = smul.u32 32, %s12
          %p146 = scmp.lt.s32.totalorder %s145, 63
          %s147 = scalar_select %p146, %s145, 63
          %s148 = smul.addr %s147, 8
          %s149 = scalar_lea.vmem %s2, %s148
          %s150 = smul.u32 32, %s12
        $region28: #{preact_bottleneck_forward.7} parent=19 // pred_fallthru
          _
      $region20: #{preact_bottleneck_forward.7} parent=5 // pred_fallthru
        _
      %p151 = scmp.le.s32.totalorder 1, %s12
      %p152 = scmp.lt.s32.totalorder %s12, 3
      %p153 = pnand %p151, %p152
      %p154 = pneg %p153
      // Predicated region
      $region29: #{preact_bottleneck_forward.7} parent=5 // pred_check
        _
      $region30: #{preact_bottleneck_forward.7} parent=5 // pred_check_branch
        %156 = sbr.rel (%p153) target = $region32
      $region31: #{preact_bottleneck_forward.7} parent=5 // pred_region
        %s157 = ssub.s32 %s12, 1
        %s158 = smul.u32 32, %s17
        %p159 = scmp.lt.s32.totalorder %s158, 63
        %s160 = scalar_select %p159, %s158, 63
        %s161 = smul.addr %s160, 4
        %s162 = scalar_lea.vmem %s0, %s161
        %p163 = pneg %p38
        %p164 = pneg %p35
        %p165 = pneg %p59
        %p166 = pneg %p56
        %s167 = smul.u32 32, %s17
        %p168 = scmp.lt.s32.totalorder %s167, 63
        %s169 = scalar_select %p168, %s167, 63
        %s170 = smul.addr %s169, 8
        %s171 = scalar_lea.vmem %s2, %s170
        %p172 = pneg %p85
        %p173 = pneg %p82
        %p174 = pneg %p111
        %p175 = pneg %p108
        %s176 = sand.u32 %s98, 1
        %s177 = scalar_lea.sflag [#allocation3], %s176
        %s178 = sand.u32 %s98, 1
        %s179 = smul.addr %s178, 256
        %s180 = scalar_lea.vmem [#allocation2], %s179
        %s181 = smul.u32 32, %s17
        %p182 = scmp.lt.s32.totalorder %s181, 63
        %s183 = scalar_select %p182, %s181, 63
        %s184 = smul.addr %s183, 4
        %s185 = scalar_lea.vmem %s0, %s184
        %s186 = smul.u32 32, %s17
        %s187 = smul.u32 32, %s17
        %p188 = scmp.lt.s32.totalorder %s187, 63
        %s189 = scalar_select %p188, %s187, 63
        %s190 = smul.addr %s189, 8
        %s191 = scalar_lea.vmem %s2, %s190
        %s192 = smul.u32 32, %s17
        %s193 = smul.u32 32, %s17
        %v195 = vld [vmem:[%s185] sm:$0xf]
        %v196 = vld [vmem:[%s185 + $0x4] sm:$0xf]
        %v197 = vld [vmem:[%s185 + $0x8] sm:$0xf]
        %v198 = vld [vmem:[%s185 + $0xc] sm:$0xf]
        %v199 = vld [vmem:[%s185 + $0x10] sm:$0xf]
        %v200 = vld [vmem:[%s185 + $0x14] sm:$0xf]
        %v201 = vld [vmem:[%s185 + $0x18] sm:$0xf]
        %v202 = vld [vmem:[%s185 + $0x1c] sm:$0xf]
        %v203 = vld [vmem:[%s185 + $0x20] sm:$0xf]
        %v204 = vld [vmem:[%s185 + $0x24] sm:$0xf]
        %v205 = vld [vmem:[%s185 + $0x28] sm:$0xf]
        %v206 = vld [vmem:[%s185 + $0x2c] sm:$0xf]
        %v207 = vld [vmem:[%s185 + $0x30] sm:$0xf]
        %v208 = vld [vmem:[%s185 + $0x34] sm:$0xf]
        %v209 = vld [vmem:[%s185 + $0x38] sm:$0xf]
        %v210 = vld [vmem:[%s185 + $0x3c] sm:$0xf]
        %v211 = vld [vmem:[%s185 + $0x40] sm:$0xf]
        %v212 = vld [vmem:[%s185 + $0x44] sm:$0xf]
        %v213 = vld [vmem:[%s185 + $0x48] sm:$0xf]
        %v214 = vld [vmem:[%s185 + $0x4c] sm:$0xf]
        %v215 = vld [vmem:[%s185 + $0x50] sm:$0xf]
        %v216 = vld [vmem:[%s185 + $0x54] sm:$0xf]
        %v217 = vld [vmem:[%s185 + $0x58] sm:$0xf]
        %v218 = vld [vmem:[%s185 + $0x5c] sm:$0xf]
        %v219 = vld [vmem:[%s185 + $0x60] sm:$0xf]
        %v220 = vld [vmem:[%s185 + $0x64] sm:$0xf]
        %v221 = vld [vmem:[%s185 + $0x68] sm:$0xf]
        %v222 = vld [vmem:[%s185 + $0x6c] sm:$0xf]
        %v223 = vld [vmem:[%s185 + $0x70] sm:$0xf]
        %v224 = vld [vmem:[%s185 + $0x74] sm:$0xf]
        %v225 = vld [vmem:[%s185 + $0x78] sm:$0xf]
        %v226 = vld [vmem:[%s185 + $0x7c] sm:$0xf]
        %v227 = vld [vmem:[%s1] sm:$0xf]
        %v228 = vld [vmem:[%s1 + $0x4] sm:$0xf]
        %v229 = vld [vmem:[%s1 + $0x8] sm:$0xf]
        %v230 = vld [vmem:[%s1 + $0xc] sm:$0xf]
        %v231 = vld [vmem:[%s191] sm:$0xff]
        %v232 = vld [vmem:[%s191 + $0x8] sm:$0xff]
        %v233 = vld [vmem:[%s191 + $0x10] sm:$0xff]
        %v234 = vld [vmem:[%s191 + $0x18] sm:$0xff]
        %v235 = vld [vmem:[%s191 + $0x20] sm:$0xff]
        %v236 = vld [vmem:[%s191 + $0x28] sm:$0xff]
        %v237 = vld [vmem:[%s191 + $0x30] sm:$0xff]
        %v238 = vld [vmem:[%s191 + $0x38] sm:$0xff]
        %v239 = vld [vmem:[%s191 + $0x40] sm:$0xff]
        %v240 = vld [vmem:[%s191 + $0x48] sm:$0xff]
        %v241 = vld [vmem:[%s191 + $0x50] sm:$0xff]
        %v242 = vld [vmem:[%s191 + $0x58] sm:$0xff]
        %v243 = vld [vmem:[%s191 + $0x60] sm:$0xff]
        %v244 = vld [vmem:[%s191 + $0x68] sm:$0xff]
        %v245 = vld [vmem:[%s191 + $0x70] sm:$0xff]
        %v246 = vld [vmem:[%s191 + $0x78] sm:$0xff]
        %v247 = vld [vmem:[%s191 + $0x80] sm:$0xff]
        %v248 = vld [vmem:[%s191 + $0x88] sm:$0xff]
        %v249 = vld [vmem:[%s191 + $0x90] sm:$0xff]
        %v250 = vld [vmem:[%s191 + $0x98] sm:$0xff]
        %v251 = vld [vmem:[%s191 + $0xa0] sm:$0xff]
        %v252 = vld [vmem:[%s191 + $0xa8] sm:$0xff]
        %v253 = vld [vmem:[%s191 + $0xb0] sm:$0xff]
        %v254 = vld [vmem:[%s191 + $0xb8] sm:$0xff]
        %v255 = vld [vmem:[%s191 + $0xc0] sm:$0xff]
        %v256 = vld [vmem:[%s191 + $0xc8] sm:$0xff]
        %v257 = vld [vmem:[%s191 + $0xd0] sm:$0xff]
        %v258 = vld [vmem:[%s191 + $0xd8] sm:$0xff]
        %v259 = vld [vmem:[%s191 + $0xe0] sm:$0xff]
        %v260 = vld [vmem:[%s191 + $0xe8] sm:$0xff]
        %v261 = vld [vmem:[%s191 + $0xf0] sm:$0xff]
        %v262 = vld [vmem:[%s191 + $0xf8] sm:$0xff]
        %v295 = vunpack.c.l.b16 %v195
        %v296 = vunpack.c.l.b16 %v196
        %v297 = vunpack.c.l.b16 %v197
        %v298 = vunpack.c.l.b16 %v198
        %v299 = vunpack.c.l.b16 %v199
        %v300 = vunpack.c.l.b16 %v200
        %v301 = vunpack.c.l.b16 %v201
        %v302 = vunpack.c.l.b16 %v202
        %v303 = vunpack.c.l.b16 %v203
        %v304 = vunpack.c.l.b16 %v204
        %v305 = vunpack.c.l.b16 %v205
        %v306 = vunpack.c.l.b16 %v206
        %v307 = vunpack.c.l.b16 %v207
        %v308 = vunpack.c.l.b16 %v208
        %v309 = vunpack.c.l.b16 %v209
        %v310 = vunpack.c.l.b16 %v210
        %v311 = vunpack.c.l.b16 %v211
        %v312 = vunpack.c.l.b16 %v212
        %v313 = vunpack.c.l.b16 %v213
        %v314 = vunpack.c.l.b16 %v214
        %v315 = vunpack.c.l.b16 %v215
        %v316 = vunpack.c.l.b16 %v216
        %v317 = vunpack.c.l.b16 %v217
        %v318 = vunpack.c.l.b16 %v218
        %v319 = vunpack.c.l.b16 %v219
        %v320 = vunpack.c.l.b16 %v220
        %v321 = vunpack.c.l.b16 %v221
        %v322 = vunpack.c.l.b16 %v222
        %v323 = vunpack.c.l.b16 %v223
        %v324 = vunpack.c.l.b16 %v224
        %v325 = vunpack.c.l.b16 %v225
        %v326 = vunpack.c.l.b16 %v226
        %v327 = vpack.c.b16 %v296, %v295
        %v328 = vpack.c.b16 %v298, %v297
        %v329 = vpack.c.b16 %v300, %v299
        %v330 = vpack.c.b16 %v302, %v301
        %v331 = vpack.c.b16 %v304, %v303
        %v332 = vpack.c.b16 %v306, %v305
        %v333 = vpack.c.b16 %v308, %v307
        %v334 = vpack.c.b16 %v310, %v309
        %v335 = vpack.c.b16 %v312, %v311
        %v336 = vpack.c.b16 %v314, %v313
        %v337 = vpack.c.b16 %v316, %v315
        %v338 = vpack.c.b16 %v318, %v317
        %v339 = vpack.c.b16 %v320, %v319
        %v340 = vpack.c.b16 %v322, %v321
        %v341 = vpack.c.b16 %v324, %v323
        %v342 = vpack.c.b16 %v326, %v325
        %v347 = vunpack.c.l.b16 %v227
        %v348 = vunpack.c.l.b16 %v228
        %v349 = vunpack.c.l.b16 %v229
        %v350 = vunpack.c.l.b16 %v230
        %v351 = vpack.c.b16 %v348, %v347
        %v352 = vpack.c.b16 %v350, %v349
        %vm355 = vcmask 261120
        %v357 = vsel %vm355, %v327, 0
        %v360 = vsel %vm355, %v328, 0
        %v363 = vsel %vm355, %v329, 0
        %v366 = vsel %vm355, %v330, 0
        %v369 = vsel %vm355, %v331, 0
        %v372 = vsel %vm355, %v332, 0
        %v375 = vsel %vm355, %v333, 0
        %v378 = vsel %vm355, %v334, 0
        %v381 = vsel %vm355, %v335, 0
        %v384 = vsel %vm355, %v336, 0
        %v387 = vsel %vm355, %v337, 0
        %v390 = vsel %vm355, %v338, 0
        %v393 = vsel %vm355, %v339, 0
        %v396 = vsel %vm355, %v340, 0
        %v399 = vsel %vm355, %v341, 0
        %v402 = vsel %vm355, %v342, 0
        %404 = vmatprep.subr.bf16.mxu0 0
        %405 = vmatpush1.bf16.msra.mxu0 %v351
        %406 = vmatprep.subr.bf16.mxu0 0
        %407 = vmatpush1.bf16.msra.mxu0 %v352
        %408 = vmatprep.subr.bf16.mxu0 0
        %409 = vmatpush1.bf16.msra.mxu0 0
        %410 = vmatprep.subr.bf16.mxu0 0
        %411 = vmatpush1.bf16.msra.mxu0 0
        %412 = vmatprep.subr.bf16.mxu0 0
        %413 = vmatpush1.bf16.msra.mxu0 0
        %414 = vmatprep.subr.bf16.mxu0 0
        %415 = vmatpush1.bf16.msra.mxu0 0
        %416 = vmatprep.subr.bf16.mxu0 0
        %417 = vmatpush1.bf16.msra.mxu0 0
        %418 = vmatprep.subr.bf16.mxu0 0
        %419 = vmatpush1.bf16.msra.mxu0 0
        %420 = vmatprep.subr.bf16.mxu0 0
        %421 = vmatpush1.bf16.msra.mxu0 0
        %422 = vmatprep.subr.bf16.mxu0 0
        %423 = vmatpush1.bf16.msra.mxu0 0
        %424 = vmatprep.subr.bf16.mxu0 0
        %425 = vmatpush1.bf16.msra.mxu0 0
        %426 = vmatprep.subr.bf16.mxu0 0
        %427 = vmatpush1.bf16.msra.mxu0 0
        %428 = vmatprep.subr.bf16.mxu0 0
        %429 = vmatpush1.bf16.msra.mxu0 0
        %430 = vmatprep.subr.bf16.mxu0 0
        %431 = vmatpush1.bf16.msra.mxu0 0
        %432 = vmatprep.subr.bf16.mxu0 0
        %433 = vmatpush1.bf16.msra.mxu0 0
        %434 = vmatprep.subr.bf16.mxu0 0
        %435 = vmatpush1.bf16.msra.mxu0 0
        %436 = vmatprep.mubr.bf16.mxu0 0
        %437 = vmatmul.mubr.bf16.gmra.mrb[0].mxu0 %v357
        %v438 = vpop.f32.mrb[0].mxu0
        %v439 = vadd.f32 %v231, %v438
        %v440 = vpop.f32.mrb[0].mxu0
        %v441 = vpop.f32.mrb[0].mxu0
        %v442 = vadd.f32 %v232, %v441
        %v443 = vpop.f32.mrb[0].mxu0
        %444 = vmatprep.mubr.bf16.mxu0 0
        %445 = vmatmul.mubr.bf16.gmra.mrb[0].mxu0 %v360
        %v446 = vpop.f32.mrb[0].mxu0
        %v447 = vadd.f32 %v233, %v446
        %v448 = vpop.f32.mrb[0].mxu0
        %v449 = vpop.f32.mrb[0].mxu0
        %v450 = vadd.f32 %v234, %v449
        %v451 = vpop.f32.mrb[0].mxu0
        %452 = vmatprep.mubr.bf16.mxu0 0
        %453 = vmatmul.mubr.bf16.gmra.mrb[0].mxu0 %v363
        %v454 = vpop.f32.mrb[0].mxu0
        %v455 = vadd.f32 %v235, %v454
        %v456 = vpop.f32.mrb[0].mxu0
        %v457 = vpop.f32.mrb[0].mxu0
        %v458 = vadd.f32 %v236, %v457
        %v459 = vpop.f32.mrb[0].mxu0
        %460 = vmatprep.mubr.bf16.mxu0 0
        %461 = vmatmul.mubr.bf16.gmra.mrb[0].mxu0 %v366
        %v462 = vpop.f32.mrb[0].mxu0
        %v463 = vadd.f32 %v237, %v462
        %v464 = vpop.f32.mrb[0].mxu0
        %v465 = vpop.f32.mrb[0].mxu0
        %v466 = vadd.f32 %v238, %v465
        %v467 = vpop.f32.mrb[0].mxu0
        %468 = vmatprep.mubr.bf16.mxu0 0
        %469 = vmatmul.mubr.bf16.gmra.mrb[0].mxu0 %v369
        %v470 = vpop.f32.mrb[0].mxu0
        %v471 = vadd.f32 %v239, %v470
        %v472 = vpop.f32.mrb[0].mxu0
        %v473 = vpop.f32.mrb[0].mxu0
        %v474 = vadd.f32 %v240, %v473
        %v475 = vpop.f32.mrb[0].mxu0
        %476 = vmatprep.mubr.bf16.mxu0 0
        %477 = vmatmul.mubr.bf16.gmra.mrb[0].mxu0 %v372
        %v478 = vpop.f32.mrb[0].mxu0
        %v479 = vadd.f32 %v241, %v478
        %v480 = vpop.f32.mrb[0].mxu0
        %v481 = vpop.f32.mrb[0].mxu0
        %v482 = vadd.f32 %v242, %v481
        %v483 = vpop.f32.mrb[0].mxu0
        %484 = vmatprep.mubr.bf16.mxu0 0
        %485 = vmatmul.mubr.bf16.gmra.mrb[0].mxu0 %v375
        %v486 = vpop.f32.mrb[0].mxu0
        %v487 = vadd.f32 %v243, %v486
        %v488 = vpop.f32.mrb[0].mxu0
        %v489 = vpop.f32.mrb[0].mxu0
        %v490 = vadd.f32 %v244, %v489
        %v491 = vpop.f32.mrb[0].mxu0
        %492 = vmatprep.mubr.bf16.mxu0 0
        %493 = vmatmul.mubr.bf16.gmra.mrb[0].mxu0 %v378
        %v494 = vpop.f32.mrb[0].mxu0
        %v495 = vadd.f32 %v245, %v494
        %v496 = vpop.f32.mrb[0].mxu0
        %v497 = vpop.f32.mrb[0].mxu0
        %v498 = vadd.f32 %v246, %v497
        %v499 = vpop.f32.mrb[0].mxu0
        %500 = vmatprep.mubr.bf16.mxu0 0
        %501 = vmatmul.mubr.bf16.gmra.mrb[0].mxu0 %v381
        %v502 = vpop.f32.mrb[0].mxu0
        %v503 = vadd.f32 %v247, %v502
        %v504 = vpop.f32.mrb[0].mxu0
        %v505 = vpop.f32.mrb[0].mxu0
        %v506 = vadd.f32 %v248, %v505
        %v507 = vpop.f32.mrb[0].mxu0
        %508 = vmatprep.mubr.bf16.mxu0 0
        %509 = vmatmul.mubr.bf16.gmra.mrb[0].mxu0 %v384
        %v510 = vpop.f32.mrb[0].mxu0
        %v511 = vadd.f32 %v249, %v510
        %v512 = vpop.f32.mrb[0].mxu0
        %v513 = vpop.f32.mrb[0].mxu0
        %v514 = vadd.f32 %v250, %v513
        %v515 = vpop.f32.mrb[0].mxu0
        %516 = vmatprep.mubr.bf16.mxu0 0
        %517 = vmatmul.mubr.bf16.gmra.mrb[0].mxu0 %v387
        %v518 = vpop.f32.mrb[0].mxu0
        %v519 = vadd.f32 %v251, %v518
        %v520 = vpop.f32.mrb[0].mxu0
        %v521 = vpop.f32.mrb[0].mxu0
        %v522 = vadd.f32 %v252, %v521
        %v523 = vpop.f32.mrb[0].mxu0
        %524 = vmatprep.mubr.bf16.mxu0 0
        %525 = vmatmul.mubr.bf16.gmra.mrb[0].mxu0 %v390
        %v526 = vpop.f32.mrb[0].mxu0
        %v527 = vadd.f32 %v253, %v526
        %v528 = vpop.f32.mrb[0].mxu0
        %v529 = vpop.f32.mrb[0].mxu0
        %v530 = vadd.f32 %v254, %v529
        %v531 = vpop.f32.mrb[0].mxu0
        %532 = vmatprep.mubr.bf16.mxu0 0
        %533 = vmatmul.mubr.bf16.gmra.mrb[0].mxu0 %v393
        %v534 = vpop.f32.mrb[0].mxu0
        %v535 = vadd.f32 %v255, %v534
        %v536 = vpop.f32.mrb[0].mxu0
        %v537 = vpop.f32.mrb[0].mxu0
        %v538 = vadd.f32 %v256, %v537
        %v539 = vpop.f32.mrb[0].mxu0
        %540 = vmatprep.mubr.bf16.mxu0 0
        %541 = vmatmul.mubr.bf16.gmra.mrb[0].mxu0 %v396
        %v542 = vpop.f32.mrb[0].mxu0
        %v543 = vadd.f32 %v257, %v542
        %v544 = vpop.f32.mrb[0].mxu0
        %v545 = vpop.f32.mrb[0].mxu0
        %v546 = vadd.f32 %v258, %v545
        %v547 = vpop.f32.mrb[0].mxu0
        %548 = vmatprep.mubr.bf16.mxu0 0
        %549 = vmatmul.mubr.bf16.gmra.mrb[0].mxu0 %v399
        %v550 = vpop.f32.mrb[0].mxu0
        %v551 = vadd.f32 %v259, %v550
        %v552 = vpop.f32.mrb[0].mxu0
        %v553 = vpop.f32.mrb[0].mxu0
        %v554 = vadd.f32 %v260, %v553
        %v555 = vpop.f32.mrb[0].mxu0
        %556 = vmatprep.mubr.bf16.mxu0 0
        %557 = vmatmul.mubr.bf16.gmra.mrb[0].mxu0 %v402
        %v558 = vpop.f32.mrb[0].mxu0
        %v559 = vadd.f32 %v261, %v558
        %v560 = vpop.f32.mrb[0].mxu0
        %v561 = vpop.f32.mrb[0].mxu0
        %v562 = vadd.f32 %v262, %v561
        %v563 = vpop.f32.mrb[0].mxu0
        %564 = vdwg.mxu0
        %565 = vst [vmem:[%s180] sm:$0xff] %v439
        %566 = vst [vmem:[%s180 + $0x8] sm:$0xff] %v442
        %567 = vst [vmem:[%s180 + $0x10] sm:$0xff] %v447
        %568 = vst [vmem:[%s180 + $0x18] sm:$0xff] %v450
        %569 = vst [vmem:[%s180 + $0x20] sm:$0xff] %v455
        %570 = vst [vmem:[%s180 + $0x28] sm:$0xff] %v458
        %571 = vst [vmem:[%s180 + $0x30] sm:$0xff] %v463
        %572 = vst [vmem:[%s180 + $0x38] sm:$0xff] %v466
        %573 = vst [vmem:[%s180 + $0x40] sm:$0xff] %v471
        %574 = vst [vmem:[%s180 + $0x48] sm:$0xff] %v474
        %575 = vst [vmem:[%s180 + $0x50] sm:$0xff] %v479
        %576 = vst [vmem:[%s180 + $0x58] sm:$0xff] %v482
        %577 = vst [vmem:[%s180 + $0x60] sm:$0xff] %v487
        %578 = vst [vmem:[%s180 + $0x68] sm:$0xff] %v490
        %579 = vst [vmem:[%s180 + $0x70] sm:$0xff] %v495
        %580 = vst [vmem:[%s180 + $0x78] sm:$0xff] %v498
        %581 = vst [vmem:[%s180 + $0x80] sm:$0xff] %v503
        %582 = vst [vmem:[%s180 + $0x88] sm:$0xff] %v506
        %583 = vst [vmem:[%s180 + $0x90] sm:$0xff] %v511
        %584 = vst [vmem:[%s180 + $0x98] sm:$0xff] %v514
        %585 = vst [vmem:[%s180 + $0xa0] sm:$0xff] %v519
        %586 = vst [vmem:[%s180 + $0xa8] sm:$0xff] %v522
        %587 = vst [vmem:[%s180 + $0xb0] sm:$0xff] %v527
        %588 = vst [vmem:[%s180 + $0xb8] sm:$0xff] %v530
        %589 = vst [vmem:[%s180 + $0xc0] sm:$0xff] %v535
        %590 = vst [vmem:[%s180 + $0xc8] sm:$0xff] %v538
        %591 = vst [vmem:[%s180 + $0xd0] sm:$0xff] %v543
        %592 = vst [vmem:[%s180 + $0xd8] sm:$0xff] %v546
        %593 = vst [vmem:[%s180 + $0xe0] sm:$0xff] %v551
        %594 = vst [vmem:[%s180 + $0xe8] sm:$0xff] %v554
        %595 = vst [vmem:[%s180 + $0xf0] sm:$0xff] %v559
        %596 = vst [vmem:[%s180 + $0xf8] sm:$0xff] %v562
        %s597 = sand.u32 %s98, 1
        %s598 = scalar_lea.sflag [#allocation3], %s597
        %s599 = sand.u32 %s98, 1
        %s600 = smul.addr %s599, 256
        %s601 = scalar_lea.vmem [#allocation2], %s600
        // Predicated region
        $region33: #{preact_bottleneck_forward.7} parent=31 // pred_check
          %p602 = pneg %p108
        $region34: #{preact_bottleneck_forward.7} parent=31 // pred_check_branch
          %604 = sbr.rel (%p602) target = $region36
        $region35: #{preact_bottleneck_forward.7} parent=31 // pred_region
          %s605 = smul.u32 32, %s17
          %s607 = ssub.s32 4096, 4096
          %608 = vsyncadd %s598, %s607
          %s609 = smul.addr %s605, 128
          %s610 = scalar_lea.hbm %s3, %s609
          %s611 = sshll.u32 %s601, 4
          %s612 = int_to_ptr.vmem [resolvable:$true] %s611
          %617 = dma.vmem_to_hbm [thread:$0]  %s612, 4096, %s610, %s598, 128, 128, 8
        $region36: #{preact_bottleneck_forward.7} parent=31 // pred_fallthru
          _
      $region32: #{preact_bottleneck_forward.7} parent=5 // pred_fallthru
        _
      %p618 = scmp.le.s32.totalorder 2, %s12
      // Predicated region
      $region37: #{preact_bottleneck_forward.7} parent=5 // pred_check
        %p619 = pneg %p618
      $region38: #{preact_bottleneck_forward.7} parent=5 // pred_check_branch
        %621 = sbr.rel (%p619) target = $region40
      $region39: #{preact_bottleneck_forward.7} parent=5 // pred_region
        %s622 = ssub.s32 %s12, 2
        // Predicated region
        $region41: #{preact_bottleneck_forward.7} parent=39 // pred_check
          %p623 = pneg %p114
        $region42: #{preact_bottleneck_forward.7} parent=39 // pred_check_branch
          %625 = sbr.rel (%p623) target = $region44
        $region43: #{preact_bottleneck_forward.7} parent=39 // pred_region
          %s626 = sand.u32 %s99, 1
          %s627 = scalar_lea.sflag [#allocation3], %s626
          %s628 = sand.u32 %s99, 1
          %s629 = smul.addr %s628, 256
          %s630 = scalar_lea.vmem [#allocation2], %s629
          %631 = dma.done %s627, 4096
        $region44: #{preact_bottleneck_forward.7} parent=39 // pred_fallthru
          _
      $region40: #{preact_bottleneck_forward.7} parent=5 // pred_fallthru
        _
    $region6: #{preact_bottleneck_forward.7} parent=1 // loop_footer
      %s16 = sadd.s32 1, %s12
    $region7: #{preact_bottleneck_forward.7} parent=1 // loop_footer_branch
      %11 = sbr.rel target = $region3
    $region8: #{preact_bottleneck_forward.7} parent=1 // loop_exit
      _
    %632 = vsyncpa [#allocation3], 1
    %s633 = scalar_lea.sflag [#allocation3], 1
    %634 = vsyncpa %s633, 1

// kernel: preact_bottleneck_forward.6
$region0: #{preact_bottleneck_forward.6}
  #allocation0 [shape = 'u32[]', space=smem, size = 0x4, offset = 0x4, fixed_abs, tag = 'smem constant byte address 0x4 - core index']
  #allocation1 [shape = 'u32[144,128]{1,0:T(1,128)}', space=vmem, size = 0x12000, scoped, tag = 'internal scratch']
  %s0 = inlined_call_operand.vmem [shape: bf16[2,18,18,32], index: 0, kind: input, shape index: {}]
  %s1 = inlined_call_operand.vmem [shape: bf16[9,32,32], index: 1, kind: input, shape index: {}]
  %s2 = inlined_call_operand.vmem [shape: f32[1,32], index: 2, kind: input, shape index: {}]
  %s3 = inlined_call_operand.vmem [shape: f32[1,32], index: 3, kind: input, shape index: {}]
  %s4 = inlined_call_operand.vmem [shape: bf16[2,256,32], index: 4, kind: output, shape index: {}]
  %s5 = sld [smem:[#allocation0]]
  $region49: #{preact_bottleneck_forward.6} parent=0
    _
  %s7 = ssub.s32 1, %s5
  %s8 = scalar_select 0, %s7, %s5
  loop: start=0, step=1, limit=4
  $region2: #{preact_bottleneck_forward.6} parent=0 // loop_pre_header
    _
  $region3: #{preact_bottleneck_forward.6} parent=0 // loop_header
    %s10 = sphi 0, %s14
    %p11 = scmp.ge.s32.totalorder %s10, 4
    %s20 = sphi 0, %s22
    %s23 = sphi 0, %s20
    %s24 = sphi 0, %s23
    %s40 = sphi 0, %s24
    %s44 = sphi 0, %s44
    %s46 = sphi 0, %s44
    %s47 = sphi 0, %s46
    %s61 = sphi 0, %s47
    %s65 = sphi 0, %s65
    %s67 = sphi 0, %s65
    %s68 = sphi 0, %s67
    %s82 = sphi 0, %s68
    %s86 = sphi 0, %s86
    %s88 = sphi 0, %s86
    %s89 = sphi 0, %s88
    %s103 = sphi 0, %s89
    %s109 = sphi 0, %s111
    %s112 = sphi 0, %s109
    %s113 = sphi 0, %s112
    %s129 = sphi 0, %s113
  $region4: #{preact_bottleneck_forward.6} parent=0 // loop_header_branch
    %13 = sbr.rel (%p11) target = $region8
  $region5: #{preact_bottleneck_forward.6} parent=0 // loop_body
    %s15 = ssub.s32 %s10, 1
    %s16 = ssub.s32 %s10, 2
    %s17 = sadd.s32 %s10, 1
    %s18 = ssub.s32 %s10, %s17
    %p19 = scmp.eq.s32.totalorder %s18, 0
    %s21 = sadd.s32 %s20, 1
    %s22 = scalar_select %p19, %s20, %s21
    %p25 = pneg %p19
    %p26 = scmp.eq.s32.totalorder %s10, 1
    %p27 = por %p25, %p26
    %p28 = scmp.ne.s32.totalorder %s20, %s23
    %p29 = scmp.eq.s32.totalorder %s10, 0
    %p30 = por %p28, %p29
    %p31 = scmp.ne.s32.totalorder %s20, %s23
    %p32 = scmp.eq.s32.totalorder %s15, 1
    %p33 = por %p31, %p32
    %p34 = scmp.ne.s32.totalorder %s23, %s24
    %p35 = scmp.eq.s32.totalorder %s15, 0
    %p36 = por %p34, %p35
    %p37 = scmp.ne.s32.totalorder %s23, %s24
    %p38 = scmp.eq.s32.totalorder %s16, 1
    %p39 = por %p37, %p38
    %p41 = scmp.ne.s32.totalorder %s24, %s40
    %p42 = scmp.eq.s32.totalorder %s16, 0
    %p43 = por %p41, %p42
    %s45 = sadd.s32 %s44, 1
    %p48 = scmp.eq.s32.totalorder %s10, 1
    %p49 = scmp.ne.s32.totalorder %s44, %s46
    %p50 = scmp.eq.s32.totalorder %s10, 0
    %p51 = por %p49, %p50
    %p52 = scmp.ne.s32.totalorder %s44, %s46
    %p53 = scmp.eq.s32.totalorder %s15, 1
    %p54 = por %p52, %p53
    %p55 = scmp.ne.s32.totalorder %s46, %s47
    %p56 = scmp.eq.s32.totalorder %s15, 0
    %p57 = por %p55, %p56
    %p58 = scmp.ne.s32.totalorder %s46, %s47
    %p59 = scmp.eq.s32.totalorder %s16, 1
    %p60 = por %p58, %p59
    %p62 = scmp.ne.s32.totalorder %s47, %s61
    %p63 = scmp.eq.s32.totalorder %s16, 0
    %p64 = por %p62, %p63
    %s66 = sadd.s32 %s65, 1
    %p69 = scmp.eq.s32.totalorder %s10, 1
    %p70 = scmp.ne.s32.totalorder %s65, %s67
    %p71 = scmp.eq.s32.totalorder %s10, 0
    %p72 = por %p70, %p71
    %p73 = scmp.ne.s32.totalorder %s65, %s67
    %p74 = scmp.eq.s32.totalorder %s15, 1
    %p75 = por %p73, %p74
    %p76 = scmp.ne.s32.totalorder %s67, %s68
    %p77 = scmp.eq.s32.totalorder %s15, 0
    %p78 = por %p76, %p77
    %p79 = scmp.ne.s32.totalorder %s67, %s68
    %p80 = scmp.eq.s32.totalorder %s16, 1
    %p81 = por %p79, %p80
    %p83 = scmp.ne.s32.totalorder %s68, %s82
    %p84 = scmp.eq.s32.totalorder %s16, 0
    %p85 = por %p83, %p84
    %s87 = sadd.s32 %s86, 1
    %p90 = scmp.eq.s32.totalorder %s10, 1
    %p91 = scmp.ne.s32.totalorder %s86, %s88
    %p92 = scmp.eq.s32.totalorder %s10, 0
    %p93 = por %p91, %p92
    %p94 = scmp.ne.s32.totalorder %s86, %s88
    %p95 = scmp.eq.s32.totalorder %s15, 1
    %p96 = por %p94, %p95
    %p97 = scmp.ne.s32.totalorder %s88, %s89
    %p98 = scmp.eq.s32.totalorder %s15, 0
    %p99 = por %p97, %p98
    %p100 = scmp.ne.s32.totalorder %s88, %s89
    %p101 = scmp.eq.s32.totalorder %s16, 1
    %p102 = por %p100, %p101
    %p104 = scmp.ne.s32.totalorder %s89, %s103
    %p105 = scmp.eq.s32.totalorder %s16, 0
    %p106 = por %p104, %p105
    %s107 = ssub.s32 %s10, %s17
    %p108 = scmp.eq.s32.totalorder %s107, 0
    %s110 = sadd.s32 %s109, 1
    %s111 = scalar_select %p108, %s109, %s110
    %p114 = pneg %p108
    %p115 = scmp.eq.s32.totalorder %s10, 1
    %p116 = por %p114, %p115
    %p117 = scmp.ne.s32.totalorder %s109, %s112
    %p118 = scmp.eq.s32.totalorder %s10, 0
    %p119 = por %p117, %p118
    %p120 = scmp.ne.s32.totalorder %s109, %s112
    %p121 = scmp.eq.s32.totalorder %s15, 1
    %p122 = por %p120, %p121
    %p123 = scmp.ne.s32.totalorder %s112, %s113
    %p124 = scmp.eq.s32.totalorder %s15, 0
    %p125 = por %p123, %p124
    %p126 = scmp.ne.s32.totalorder %s112, %s113
    %p127 = scmp.eq.s32.totalorder %s16, 1
    %p128 = por %p126, %p127
    %p130 = scmp.ne.s32.totalorder %s113, %s129
    %p131 = scmp.eq.s32.totalorder %s16, 0
    %p132 = por %p130, %p131
    %p133 = scmp.le.s32.totalorder 1, %s10
    %p134 = scmp.lt.s32.totalorder %s10, 3
    %p135 = pnand %p133, %p134
    %p136 = pneg %p135
    // Predicated region
    $region9: #{preact_bottleneck_forward.6} parent=5 // pred_check
      _
    $region10: #{preact_bottleneck_forward.6} parent=5 // pred_check_branch
      %138 = sbr.rel (%p135) target = $region12
    $region11: #{preact_bottleneck_forward.6} parent=5 // pred_region
      %s139 = ssub.s32 %s10, 1
      // Predicated region
      $region13: #{preact_bottleneck_forward.6} parent=11 // pred_check
        %p140 = pneg %p57
      $region14: #{preact_bottleneck_forward.6} parent=11 // pred_check_branch
        %142 = sbr.rel (%p140) target = $region16
      $region15: #{preact_bottleneck_forward.6} parent=11 // pred_region
        _
      $region16: #{preact_bottleneck_forward.6} parent=11 // pred_fallthru
        _
      // Predicated region
      $region17: #{preact_bottleneck_forward.6} parent=11 // pred_check
        %p143 = pneg %p78
      $region18: #{preact_bottleneck_forward.6} parent=11 // pred_check_branch
        %145 = sbr.rel (%p143) target = $region20
      $region19: #{preact_bottleneck_forward.6} parent=11 // pred_region
        _
      $region20: #{preact_bottleneck_forward.6} parent=11 // pred_fallthru
        _
      // Predicated region
      $region21: #{preact_bottleneck_forward.6} parent=11 // pred_check
        %p146 = pneg %p99
      $region22: #{preact_bottleneck_forward.6} parent=11 // pred_check_branch
        %148 = sbr.rel (%p146) target = $region24
      $region23: #{preact_bottleneck_forward.6} parent=11 // pred_region
        _
      $region24: #{preact_bottleneck_forward.6} parent=11 // pred_fallthru
        _
    $region12: #{preact_bottleneck_forward.6} parent=5 // pred_fallthru
      _
    %p149 = scmp.lt.s32.totalorder %s10, 2
    // Predicated region
    $region25: #{preact_bottleneck_forward.6} parent=5 // pred_check
      %p150 = pneg %p149
    $region26: #{preact_bottleneck_forward.6} parent=5 // pred_check_branch
      %152 = sbr.rel (%p150) target = $region28
    $region27: #{preact_bottleneck_forward.6} parent=5 // pred_region
      // Predicated region
      $region29: #{preact_bottleneck_forward.6} parent=27 // pred_check
        %p153 = pneg %p30
      $region30: #{preact_bottleneck_forward.6} parent=27 // pred_check_branch
        %155 = sbr.rel (%p153) target = $region32
      $region31: #{preact_bottleneck_forward.6} parent=27 // pred_region
        %p156 = scmp.lt.s32.totalorder %s10, 1
        %s157 = scalar_select %p156, %s10, 1
        %s158 = smul.addr %s157, 54
        %s159 = smul.addr %s158, 4
        %s160 = scalar_lea.vmem %s0, %s159
      $region32: #{preact_bottleneck_forward.6} parent=27 // pred_fallthru
        _
    $region28: #{preact_bottleneck_forward.6} parent=5 // pred_fallthru
      _
    %p161 = scmp.le.s32.totalorder 1, %s10
    %p162 = scmp.lt.s32.totalorder %s10, 3
    %p163 = pnand %p161, %p162
    %p164 = pneg %p163
    // Predicated region
    $region33: #{preact_bottleneck_forward.6} parent=5 // pred_check
      _
    $region34: #{preact_bottleneck_forward.6} parent=5 // pred_check_branch
      %166 = sbr.rel (%p163) target = $region36
    $region35: #{preact_bottleneck_forward.6} parent=5 // pred_region
      %s167 = ssub.s32 %s10, 1
      %p168 = scmp.lt.s32.totalorder %s15, 1
      %s169 = scalar_select %p168, %s15, 1
      %s170 = smul.addr %s169, 54
      %s171 = smul.addr %s170, 4
      %s172 = scalar_lea.vmem %s0, %s171
      %p173 = pneg %p36
      %p174 = pneg %p33
      %p175 = pneg %p57
      %p176 = pneg %p54
      %p177 = pneg %p78
      %p178 = pneg %p75
      %p179 = pneg %p99
      %p180 = pneg %p96
      %p181 = pneg %p125
      %p182 = pneg %p122
      %p183 = scmp.lt.s32.totalorder %s15, 1
      %s184 = scalar_select %p183, %s15, 1
      %s185 = smul.addr %s184, 32
      %s186 = smul.addr %s185, 4
      %s187 = scalar_lea.vmem %s4, %s186
      %p188 = scmp.lt.s32.totalorder %s15, 1
      %s189 = scalar_select %p188, %s15, 1
      %s190 = smul.addr %s189, 54
      %s191 = smul.addr %s190, 4
      %s192 = scalar_lea.vmem %s0, %s191
      %p193 = scmp.lt.s32.totalorder %s15, 1
      %s194 = scalar_select %p193, %s15, 1
      %s195 = smul.addr %s194, 32
      %s196 = smul.addr %s195, 4
      %s197 = scalar_lea.vmem %s4, %s196
      %v199 = vld [vmem:[%s192] sm:$0xf]
      %v200 = vld [vmem:[%s192 + $0x4] sm:$0xf]
      %v201 = vld [vmem:[%s192 + $0xc] sm:$0xf]
      %v202 = vld [vmem:[%s192 + $0x10] sm:$0xf]
      %v203 = vld [vmem:[%s192 + $0x18] sm:$0xf]
      %v204 = vld [vmem:[%s192 + $0x1c] sm:$0xf]
      %v205 = vld [vmem:[%s192 + $0x24] sm:$0xf]
      %v206 = vld [vmem:[%s192 + $0x28] sm:$0xf]
      %v207 = vld [vmem:[%s192 + $0x30] sm:$0xf]
      %v208 = vld [vmem:[%s192 + $0x34] sm:$0xf]
      %v209 = vld [vmem:[%s192 + $0x3c] sm:$0xf]
      %v210 = vld [vmem:[%s192 + $0x40] sm:$0xf]
      %v211 = vld [vmem:[%s192 + $0x48] sm:$0xf]
      %v212 = vld [vmem:[%s192 + $0x4c] sm:$0xf]
      %v213 = vld [vmem:[%s192 + $0x54] sm:$0xf]
      %v214 = vld [vmem:[%s192 + $0x58] sm:$0xf]
      %v215 = vld [vmem:[%s192 + $0x60] sm:$0xf]
      %v216 = vld [vmem:[%s192 + $0x64] sm:$0xf]
      %v217 = vld [vmem:[%s192 + $0x6c] sm:$0xf]
      %v218 = vld [vmem:[%s192 + $0x70] sm:$0xf]
      %v219 = vld [vmem:[%s192 + $0x78] sm:$0xf]
      %v220 = vld [vmem:[%s192 + $0x7c] sm:$0xf]
      %v221 = vld [vmem:[%s192 + $0x84] sm:$0xf]
      %v222 = vld [vmem:[%s192 + $0x88] sm:$0xf]
      %v223 = vld [vmem:[%s192 + $0x90] sm:$0xf]
      %v224 = vld [vmem:[%s192 + $0x94] sm:$0xf]
      %v225 = vld [vmem:[%s192 + $0x9c] sm:$0xf]
      %v226 = vld [vmem:[%s192 + $0xa0] sm:$0xf]
      %v227 = vld [vmem:[%s192 + $0xa8] sm:$0xf]
      %v228 = vld [vmem:[%s192 + $0xac] sm:$0xf]
      %v229 = vld [vmem:[%s192 + $0xb4] sm:$0xf]
      %v230 = vld [vmem:[%s192 + $0xb8] sm:$0xf]
      %v231 = vld [vmem:[%s1] sm:$0xf]
      %v232 = vld [vmem:[%s1 + $0x4] sm:$0xf]
      %v233 = vld [vmem:[%s1 + $0x8] sm:$0xf]
      %v234 = vld [vmem:[%s1 + $0xc] sm:$0xf]
      %v235 = vld [vmem:[%s192 + $0x8] sm:$0x1]
      %v236 = vld [vmem:[%s192 + $0x14] sm:$0x1]
      %v237 = vld [vmem:[%s192 + $0x20] sm:$0x1]
      %v238 = vld [vmem:[%s192 + $0x2c] sm:$0x1]
      %v239 = vld [vmem:[%s192 + $0x38] sm:$0x1]
      %v240 = vld [vmem:[%s192 + $0x44] sm:$0x1]
      %v241 = vld [vmem:[%s192 + $0x50] sm:$0x1]
      %v242 = vld [vmem:[%s192 + $0x5c] sm:$0x1]
      %v243 = vld [vmem:[%s192 + $0x68] sm:$0x1]
      %v244 = vld [vmem:[%s192 + $0x74] sm:$0x1]
      %v245 = vld [vmem:[%s192 + $0x80] sm:$0x1]
      %v246 = vld [vmem:[%s192 + $0x8c] sm:$0x1]
      %v247 = vld [vmem:[%s192 + $0x98] sm:$0x1]
      %v248 = vld [vmem:[%s192 + $0xa4] sm:$0x1]
      %v249 = vld [vmem:[%s192 + $0xb0] sm:$0x1]
      %v250 = vld [vmem:[%s192 + $0xbc] sm:$0x1]
      %vm251 = vsmask.f32 3328
      %vm252 = vsmask.f32 7440
      %vm253 = vmor %vm251, %vm252
      %v255 = vshrl.u32 %v199, 16
      %v257 = vrot.slane %v255, 4
      %v258 = vshll.u32 %v199, 16
      %v260 = vrot.slane %v258, 5
      %v261 = vor.u32 %v257, %v260
      %v262 = vrot.slane %v261, 4
      %v264 = vshll.u32 %v200, 16
      %v266 = vrot.slane %v264, 5
      %v267 = vsel %vm253, %v262, %v266
      %v268 = vshrl.u32 %v200, 16
      %v270 = vrot.slane %v268, 4
      %v271 = vor.u32 %v270, %v266
      %v272 = vrot.slane %v271, 4
      %v274 = vshll.u32 %v235, 16
      %v276 = vrot.slane %v274, 5
      %v277 = vsel %vm253, %v272, %v276
      %v279 = vshrl.u32 %v201, 16
      %v281 = vrot.slane %v279, 4
      %v282 = vshll.u32 %v201, 16
      %v284 = vrot.slane %v282, 5
      %v285 = vor.u32 %v281, %v284
      %v286 = vrot.slane %v285, 4
      %v288 = vshll.u32 %v202, 16
      %v290 = vrot.slane %v288, 5
      %v291 = vsel %vm253, %v286, %v290
      %v292 = vshrl.u32 %v202, 16
      %v294 = vrot.slane %v292, 4
      %v295 = vor.u32 %v294, %v290
      %v296 = vrot.slane %v295, 4
      %v298 = vshll.u32 %v236, 16
      %v300 = vrot.slane %v298, 5
      %v301 = vsel %vm253, %v296, %v300
      %v303 = vshrl.u32 %v203, 16
      %v305 = vrot.slane %v303, 4
      %v306 = vshll.u32 %v203, 16
      %v308 = vrot.slane %v306, 5
      %v309 = vor.u32 %v305, %v308
      %v310 = vrot.slane %v309, 4
      %v312 = vshll.u32 %v204, 16
      %v314 = vrot.slane %v312, 5
      %v315 = vsel %vm253, %v310, %v314
      %v316 = vshrl.u32 %v204, 16
      %v318 = vrot.slane %v316, 4
      %v319 = vor.u32 %v318, %v314
      %v320 = vrot.slane %v319, 4
      %v322 = vshll.u32 %v237, 16
      %v324 = vrot.slane %v322, 5
      %v325 = vsel %vm253, %v320, %v324
      %v327 = vshrl.u32 %v205, 16
      %v329 = vrot.slane %v327, 4
      %v330 = vshll.u32 %v205, 16
      %v332 = vrot.slane %v330, 5
      %v333 = vor.u32 %v329, %v332
      %v334 = vrot.slane %v333, 4
      %v336 = vshll.u32 %v206, 16
      %v338 = vrot.slane %v336, 5
      %v339 = vsel %vm253, %v334, %v338
      %v340 = vshrl.u32 %v206, 16
      %v342 = vrot.slane %v340, 4
      %v343 = vor.u32 %v342, %v338
      %v344 = vrot.slane %v343, 4
      %v346 = vshll.u32 %v238, 16
      %v348 = vrot.slane %v346, 5
      %v349 = vsel %vm253, %v344, %v348
      %v351 = vshrl.u32 %v207, 16
      %v353 = vrot.slane %v351, 4
      %v354 = vshll.u32 %v207, 16
      %v356 = vrot.slane %v354, 5
      %v357 = vor.u32 %v353, %v356
      %v358 = vrot.slane %v357, 4
      %v360 = vshll.u32 %v208, 16
      %v362 = vrot.slane %v360, 5
      %v363 = vsel %vm253, %v358, %v362
      %v364 = vshrl.u32 %v208, 16
      %v366 = vrot.slane %v364, 4
      %v367 = vor.u32 %v366, %v362
      %v368 = vrot.slane %v367, 4
      %v370 = vshll.u32 %v239, 16
      %v372 = vrot.slane %v370, 5
      %v373 = vsel %vm253, %v368, %v372
      %v375 = vshrl.u32 %v209, 16
      %v377 = vrot.slane %v375, 4
      %v378 = vshll.u32 %v209, 16
      %v380 = vrot.slane %v378, 5
      %v381 = vor.u32 %v377, %v380
      %v382 = vrot.slane %v381, 4
      %v384 = vshll.u32 %v210, 16
      %v386 = vrot.slane %v384, 5
      %v387 = vsel %vm253, %v382, %v386
      %v388 = vshrl.u32 %v210, 16
      %v390 = vrot.slane %v388, 4
      %v391 = vor.u32 %v390, %v386
      %v392 = vrot.slane %v391, 4
      %v394 = vshll.u32 %v240, 16
      %v396 = vrot.slane %v394, 5
      %v397 = vsel %vm253, %v392, %v396
      %v399 = vshrl.u32 %v211, 16
      %v401 = vrot.slane %v399, 4
      %v402 = vshll.u32 %v211, 16
      %v404 = vrot.slane %v402, 5
      %v405 = vor.u32 %v401, %v404
      %v406 = vrot.slane %v405, 4
      %v408 = vshll.u32 %v212, 16
      %v410 = vrot.slane %v408, 5
      %v411 = vsel %vm253, %v406, %v410
      %v412 = vshrl.u32 %v212, 16
      %v414 = vrot.slane %v412, 4
      %v415 = vor.u32 %v414, %v410
      %v416 = vrot.slane %v415, 4
      %v418 = vshll.u32 %v241, 16
      %v420 = vrot.slane %v418, 5
      %v421 = vsel %vm253, %v416, %v420
      %v423 = vshrl.u32 %v213, 16
      %v425 = vrot.slane %v423, 4
      %v426 = vshll.u32 %v213, 16
      %v428 = vrot.slane %v426, 5
      %v429 = vor.u32 %v425, %v428
      %v430 = vrot.slane %v429, 4
      %v432 = vshll.u32 %v214, 16
      %v434 = vrot.slane %v432, 5
      %v435 = vsel %vm253, %v430, %v434
      %v436 = vshrl.u32 %v214, 16
      %v438 = vrot.slane %v436, 4
      %v439 = vor.u32 %v438, %v434
      %v440 = vrot.slane %v439, 4
      %v442 = vshll.u32 %v242, 16
      %v444 = vrot.slane %v442, 5
      %v445 = vsel %vm253, %v440, %v444
      %v447 = vshrl.u32 %v215, 16
      %v449 = vrot.slane %v447, 4
      %v450 = vshll.u32 %v215, 16
      %v452 = vrot.slane %v450, 5
      %v453 = vor.u32 %v449, %v452
      %v454 = vrot.slane %v453, 4
      %v456 = vshll.u32 %v216, 16
      %v458 = vrot.slane %v456, 5
      %v459 = vsel %vm253, %v454, %v458
      %v460 = vshrl.u32 %v216, 16
      %v462 = vrot.slane %v460, 4
      %v463 = vor.u32 %v462, %v458
      %v464 = vrot.slane %v463, 4
      %v466 = vshll.u32 %v243, 16
      %v468 = vrot.slane %v466, 5
      %v469 = vsel %vm253, %v464, %v468
      %v471 = vshrl.u32 %v217, 16
      %v473 = vrot.slane %v471, 4
      %v474 = vshll.u32 %v217, 16
      %v476 = vrot.slane %v474, 5
      %v477 = vor.u32 %v473, %v476
      %v478 = vrot.slane %v477, 4
      %v480 = vshll.u32 %v218, 16
      %v482 = vrot.slane %v480, 5
      %v483 = vsel %vm253, %v478, %v482
      %v484 = vshrl.u32 %v218, 16
      %v486 = vrot.slane %v484, 4
      %v487 = vor.u32 %v486, %v482
      %v488 = vrot.slane %v487, 4
      %v490 = vshll.u32 %v244, 16
      %v492 = vrot.slane %v490, 5
      %v493 = vsel %vm253, %v488, %v492
      %v495 = vshrl.u32 %v219, 16
      %v497 = vrot.slane %v495, 4
      %v498 = vshll.u32 %v219, 16
      %v500 = vrot.slane %v498, 5
      %v501 = vor.u32 %v497, %v500
      %v502 = vrot.slane %v501, 4
      %v504 = vshll.u32 %v220, 16
      %v506 = vrot.slane %v504, 5
      %v507 = vsel %vm253, %v502, %v506
      %v508 = vshrl.u32 %v220, 16
      %v510 = vrot.slane %v508, 4
      %v511 = vor.u32 %v510, %v506
      %v512 = vrot.slane %v511, 4
      %v514 = vshll.u32 %v245, 16
      %v516 = vrot.slane %v514, 5
      %v517 = vsel %vm253, %v512, %v516
      %v519 = vshrl.u32 %v221, 16
      %v521 = vrot.slane %v519, 4
      %v522 = vshll.u32 %v221, 16
      %v524 = vrot.slane %v522, 5
      %v525 = vor.u32 %v521, %v524
      %v526 = vrot.slane %v525, 4
      %v528 = vshll.u32 %v222, 16
      %v530 = vrot.slane %v528, 5
      %v531 = vsel %vm253, %v526, %v530
      %v532 = vshrl.u32 %v222, 16
      %v534 = vrot.slane %v532, 4
      %v535 = vor.u32 %v534, %v530
      %v536 = vrot.slane %v535, 4
      %v538 = vshll.u32 %v246, 16
      %v540 = vrot.slane %v538, 5
      %v541 = vsel %vm253, %v536, %v540
      %v543 = vshrl.u32 %v223, 16
      %v545 = vrot.slane %v543, 4
      %v546 = vshll.u32 %v223, 16
      %v548 = vrot.slane %v546, 5
      %v549 = vor.u32 %v545, %v548
      %v550 = vrot.slane %v549, 4
      %v552 = vshll.u32 %v224, 16
      %v554 = vrot.slane %v552, 5
      %v555 = vsel %vm253, %v550, %v554
      %v556 = vshrl.u32 %v224, 16
      %v558 = vrot.slane %v556, 4
      %v559 = vor.u32 %v558, %v554
      %v560 = vrot.slane %v559, 4
      %v562 = vshll.u32 %v247, 16
      %v564 = vrot.slane %v562, 5
      %v565 = vsel %vm253, %v560, %v564
      %v567 = vshrl.u32 %v225, 16
      %v569 = vrot.slane %v567, 4
      %v570 = vshll.u32 %v225, 16
      %v572 = vrot.slane %v570, 5
      %v573 = vor.u32 %v569, %v572
      %v574 = vrot.slane %v573, 4
      %v576 = vshll.u32 %v226, 16
      %v578 = vrot.slane %v576, 5
      %v579 = vsel %vm253, %v574, %v578
      %v580 = vshrl.u32 %v226, 16
      %v582 = vrot.slane %v580, 4
      %v583 = vor.u32 %v582, %v578
      %v584 = vrot.slane %v583, 4
      %v586 = vshll.u32 %v248, 16
      %v588 = vrot.slane %v586, 5
      %v589 = vsel %vm253, %v584, %v588
      %v591 = vshrl.u32 %v227, 16
      %v593 = vrot.slane %v591, 4
      %v594 = vshll.u32 %v227, 16
      %v596 = vrot.slane %v594, 5
      %v597 = vor.u32 %v593, %v596
      %v598 = vrot.slane %v597, 4
      %v600 = vshll.u32 %v228, 16
      %v602 = vrot.slane %v600, 5
      %v603 = vsel %vm253, %v598, %v602
      %v604 = vshrl.u32 %v228, 16
      %v606 = vrot.slane %v604, 4
      %v607 = vor.u32 %v606, %v602
      %v608 = vrot.slane %v607, 4
      %v610 = vshll.u32 %v249, 16
      %v612 = vrot.slane %v610, 5
      %v613 = vsel %vm253, %v608, %v612
      %v615 = vshrl.u32 %v229, 16
      %v617 = vrot.slane %v615, 4
      %v618 = vshll.u32 %v229, 16
      %v620 = vrot.slane %v618, 5
      %v621 = vor.u32 %v617, %v620
      %v622 = vrot.slane %v621, 4
      %v624 = vshll.u32 %v230, 16
      %v626 = vrot.slane %v624, 5
      %v627 = vsel %vm253, %v622, %v626
      %v628 = vshrl.u32 %v230, 16
      %v630 = vrot.slane %v628, 4
      %v631 = vor.u32 %v630, %v626
      %v632 = vrot.slane %v631, 4
      %v634 = vshll.u32 %v250, 16
      %v636 = vrot.slane %v634, 5
      %v637 = vsel %vm253, %v632, %v636
      %s638 = scalar_lea.vmem %s1, 16
      %v639 = vld [vmem:[%s638] sm:$0xf]
      %v640 = vld [vmem:[%s638 + $0x4] sm:$0xf]
      %v641 = vld [vmem:[%s638 + $0x8] sm:$0xf]
      %v642 = vld [vmem:[%s638 + $0xc] sm:$0xf]
      %v643 = vunpack.c.l.b16 %v267
      %v644 = vunpack.c.l.b16 %v277
      %v645 = vunpack.c.l.b16 %v291
      %v646 = vunpack.c.l.b16 %v301
      %v647 = vunpack.c.l.b16 %v315
      %v648 = vunpack.c.l.b16 %v325
      %v649 = vunpack.c.l.b16 %v339
      %v650 = vunpack.c.l.b16 %v349
      %v651 = vunpack.c.l.b16 %v363
      %v652 = vunpack.c.l.b16 %v373
      %v653 = vunpack.c.l.b16 %v387
      %v654 = vunpack.c.l.b16 %v397
      %v655 = vunpack.c.l.b16 %v411
      %v656 = vunpack.c.l.b16 %v421
      %v657 = vunpack.c.l.b16 %v435
      %v658 = vunpack.c.l.b16 %v445
      %v659 = vunpack.c.l.b16 %v459
      %v660 = vunpack.c.l.b16 %v469
      %v661 = vunpack.c.l.b16 %v483
      %v662 = vunpack.c.l.b16 %v493
      %v663 = vunpack.c.l.b16 %v507
      %v664 = vunpack.c.l.b16 %v517
      %v665 = vunpack.c.l.b16 %v531
      %v666 = vunpack.c.l.b16 %v541
      %v667 = vunpack.c.l.b16 %v555
      %v668 = vunpack.c.l.b16 %v565
      %v669 = vunpack.c.l.b16 %v579
      %v670 = vunpack.c.l.b16 %v589
      %v671 = vunpack.c.l.b16 %v603
      %v672 = vunpack.c.l.b16 %v613
      %v673 = vunpack.c.l.b16 %v627
      %v674 = vunpack.c.l.b16 %v637
      %v675 = vpack.c.b16 %v644, %v643
      %v676 = vpack.c.b16 %v646, %v645
      %v677 = vpack.c.b16 %v648, %v647
      %v678 = vpack.c.b16 %v650, %v649
      %v679 = vpack.c.b16 %v652, %v651
      %v680 = vpack.c.b16 %v654, %v653
      %v681 = vpack.c.b16 %v656, %v655
      %v682 = vpack.c.b16 %v658, %v657
      %v683 = vpack.c.b16 %v660, %v659
      %v684 = vpack.c.b16 %v662, %v661
      %v685 = vpack.c.b16 %v664, %v663
      %v686 = vpack.c.b16 %v666, %v665
      %v687 = vpack.c.b16 %v668, %v667
      %v688 = vpack.c.b16 %v670, %v669
      %v689 = vpack.c.b16 %v672, %v671
      %v690 = vpack.c.b16 %v674, %v673
      %v695 = vunpack.c.l.b16 %v639
      %v696 = vunpack.c.l.b16 %v640
      %v697 = vunpack.c.l.b16 %v641
      %v698 = vunpack.c.l.b16 %v642
      %v699 = vpack.c.b16 %v696, %v695
      %v700 = vpack.c.b16 %v698, %v697
      %vm703 = vcmask 261120
      %v705 = vsel %vm703, %v675, 0
      %v708 = vsel %vm703, %v676, 0
      %v711 = vsel %vm703, %v677, 0
      %v714 = vsel %vm703, %v678, 0
      %v717 = vsel %vm703, %v679, 0
      %v720 = vsel %vm703, %v680, 0
      %v723 = vsel %vm703, %v681, 0
      %v726 = vsel %vm703, %v682, 0
      %v729 = vsel %vm703, %v683, 0
      %v732 = vsel %vm703, %v684, 0
      %v735 = vsel %vm703, %v685, 0
      %v738 = vsel %vm703, %v686, 0
      %v741 = vsel %vm703, %v687, 0
      %v744 = vsel %vm703, %v688, 0
      %v747 = vsel %vm703, %v689, 0
      %v750 = vsel %vm703, %v690, 0
      %752 = vmatprep.subr.bf16.mxu0 0
      %753 = vmatpush1.bf16.msra.mxu0 %v699
      %754 = vmatprep.subr.bf16.mxu0 0
      %755 = vmatpush1.bf16.msra.mxu0 %v700
      %756 = vmatprep.subr.bf16.mxu0 0
      %757 = vmatpush1.bf16.msra.mxu0 0
      %758 = vmatprep.subr.bf16.mxu0 0
      %759 = vmatpush1.bf16.msra.mxu0 0
      %760 = vmatprep.subr.bf16.mxu0 0
      %761 = vmatpush1.bf16.msra.mxu0 0
      %762 = vmatprep.subr.bf16.mxu0 0
      %763 = vmatpush1.bf16.msra.mxu0 0
      %764 = vmatprep.subr.bf16.mxu0 0
      %765 = vmatpush1.bf16.msra.mxu0 0
      %766 = vmatprep.subr.bf16.mxu0 0
      %767 = vmatpush1.bf16.msra.mxu0 0
      %768 = vmatprep.subr.bf16.mxu0 0
      %769 = vmatpush1.bf16.msra.mxu0 0
      %770 = vmatprep.subr.bf16.mxu0 0
      %771 = vmatpush1.bf16.msra.mxu0 0
      %772 = vmatprep.subr.bf16.mxu0 0
      %773 = vmatpush1.bf16.msra.mxu0 0
      %774 = vmatprep.subr.bf16.mxu0 0
      %775 = vmatpush1.bf16.msra.mxu0 0
      %776 = vmatprep.subr.bf16.mxu0 0
      %777 = vmatpush1.bf16.msra.mxu0 0
      %778 = vmatprep.subr.bf16.mxu0 0
      %779 = vmatpush1.bf16.msra.mxu0 0
      %780 = vmatprep.subr.bf16.mxu0 0
      %781 = vmatpush1.bf16.msra.mxu0 0
      %782 = vmatprep.subr.bf16.mxu0 0
      %783 = vmatpush1.bf16.msra.mxu0 0
      %784 = vmatprep.mubr.bf16.mxu0 0
      %785 = vmatmul.mubr.bf16.gmra.mrb[0].mxu0 %v705
      %v786 = vpop.f32.mrb[0].mxu0
      %v787 = vadd.f32 0.0, %v786
      %v788 = vpop.f32.mrb[0].mxu0
      %v789 = vpop.f32.mrb[0].mxu0
      %v790 = vadd.f32 0.0, %v789
      %v791 = vpop.f32.mrb[0].mxu0
      %792 = vmatprep.mubr.bf16.mxu0 0
      %793 = vmatmul.mubr.bf16.gmra.mrb[0].mxu0 %v708
      %v794 = vpop.f32.mrb[0].mxu0
      %v795 = vadd.f32 0.0, %v794
      %v796 = vpop.f32.mrb[0].mxu0
      %v797 = vpop.f32.mrb[0].mxu0
      %v798 = vadd.f32 0.0, %v797
      %v799 = vpop.f32.mrb[0].mxu0
      %800 = vmatprep.mubr.bf16.mxu0 0
      %801 = vmatmul.mubr.bf16.gmra.mrb[0].mxu0 %v711
      %v802 = vpop.f32.mrb[0].mxu0
      %v803 = vadd.f32 0.0, %v802
      %v804 = vpop.f32.mrb[0].mxu0
      %v805 = vpop.f32.mrb[0].mxu0
      %v806 = vadd.f32 0.0, %v805
      %v807 = vpop.f32.mrb[0].mxu0
      %808 = vmatprep.mubr.bf16.mxu0 0
      %809 = vmatmul.mubr.bf16.gmra.mrb[0].mxu0 %v714
      %v810 = vpop.f32.mrb[0].mxu0
      %v811 = vadd.f32 0.0, %v810
      %v812 = vpop.f32.mrb[0].mxu0
      %v813 = vpop.f32.mrb[0].mxu0
      %v814 = vadd.f32 0.0, %v813
      %v815 = vpop.f32.mrb[0].mxu0
      %816 = vmatprep.mubr.bf16.mxu0 0
      %817 = vmatmul.mubr.bf16.gmra.mrb[0].mxu0 %v717
      %v818 = vpop.f32.mrb[0].mxu0
      %v819 = vadd.f32 0.0, %v818
      %v820 = vpop.f32.mrb[0].mxu0
      %v821 = vpop.f32.mrb[0].mxu0
      %v822 = vadd.f32 0.0, %v821
      %v823 = vpop.f32.mrb[0].mxu0
      %824 = vmatprep.mubr.bf16.mxu0 0
      %825 = vmatmul.mubr.bf16.gmra.mrb[0].mxu0 %v720
      %v826 = vpop.f32.mrb[0].mxu0
      %v827 = vadd.f32 0.0, %v826
      %v828 = vpop.f32.mrb[0].mxu0
      %v829 = vpop.f32.mrb[0].mxu0
      %v830 = vadd.f32 0.0, %v829
      %v831 = vpop.f32.mrb[0].mxu0
      %832 = vmatprep.mubr.bf16.mxu0 0
      %833 = vmatmul.mubr.bf16.gmra.mrb[0].mxu0 %v723
      %v834 = vpop.f32.mrb[0].mxu0
      %v835 = vadd.f32 0.0, %v834
      %v836 = vpop.f32.mrb[0].mxu0
      %v837 = vpop.f32.mrb[0].mxu0
      %v838 = vadd.f32 0.0, %v837
      %v839 = vpop.f32.mrb[0].mxu0
      %840 = vmatprep.mubr.bf16.mxu0 0
      %841 = vmatmul.mubr.bf16.gmra.mrb[0].mxu0 %v726
      %v842 = vpop.f32.mrb[0].mxu0
      %v843 = vadd.f32 0.0, %v842
      %v844 = vpop.f32.mrb[0].mxu0
      %v845 = vpop.f32.mrb[0].mxu0
      %v846 = vadd.f32 0.0, %v845
      %v847 = vpop.f32.mrb[0].mxu0
      %848 = vmatprep.mubr.bf16.mxu0 0
      %849 = vmatmul.mubr.bf16.gmra.mrb[0].mxu0 %v729
      %v850 = vpop.f32.mrb[0].mxu0
      %v851 = vadd.f32 0.0, %v850
      %v852 = vpop.f32.mrb[0].mxu0
      %v853 = vpop.f32.mrb[0].mxu0
      %v854 = vadd.f32 0.0, %v853
      %v855 = vpop.f32.mrb[0].mxu0
      %856 = vmatprep.mubr.bf16.mxu0 0
      %857 = vmatmul.mubr.bf16.gmra.mrb[0].mxu0 %v732
      %v858 = vpop.f32.mrb[0].mxu0
      %v859 = vadd.f32 0.0, %v858
      %v860 = vpop.f32.mrb[0].mxu0
      %v861 = vpop.f32.mrb[0].mxu0
      %v862 = vadd.f32 0.0, %v861
      %v863 = vpop.f32.mrb[0].mxu0
      %864 = vmatprep.mubr.bf16.mxu0 0
      %865 = vmatmul.mubr.bf16.gmra.mrb[0].mxu0 %v735
      %v866 = vpop.f32.mrb[0].mxu0
      %v867 = vadd.f32 0.0, %v866
      %v868 = vpop.f32.mrb[0].mxu0
      %v869 = vpop.f32.mrb[0].mxu0
      %v870 = vadd.f32 0.0, %v869
      %v871 = vpop.f32.mrb[0].mxu0
      %872 = vmatprep.mubr.bf16.mxu0 0
      %873 = vmatmul.mubr.bf16.gmra.mrb[0].mxu0 %v738
      %v874 = vpop.f32.mrb[0].mxu0
      %v875 = vadd.f32 0.0, %v874
      %v876 = vpop.f32.mrb[0].mxu0
      %v877 = vpop.f32.mrb[0].mxu0
      %v878 = vadd.f32 0.0, %v877
      %v879 = vpop.f32.mrb[0].mxu0
      %880 = vmatprep.mubr.bf16.mxu0 0
      %881 = vmatmul.mubr.bf16.gmra.mrb[0].mxu0 %v741
      %v882 = vpop.f32.mrb[0].mxu0
      %v883 = vadd.f32 0.0, %v882
      %v884 = vpop.f32.mrb[0].mxu0
      %v885 = vpop.f32.mrb[0].mxu0
      %v886 = vadd.f32 0.0, %v885
      %v887 = vpop.f32.mrb[0].mxu0
      %888 = vmatprep.mubr.bf16.mxu0 0
      %889 = vmatmul.mubr.bf16.gmra.mrb[0].mxu0 %v744
      %v890 = vpop.f32.mrb[0].mxu0
      %v891 = vadd.f32 0.0, %v890
      %v892 = vpop.f32.mrb[0].mxu0
      %v893 = vpop.f32.mrb[0].mxu0
      %v894 = vadd.f32 0.0, %v893
      %v895 = vpop.f32.mrb[0].mxu0
      %896 = vmatprep.mubr.bf16.mxu0 0
      %897 = vmatmul.mubr.bf16.gmra.mrb[0].mxu0 %v747
      %v898 = vpop.f32.mrb[0].mxu0
      %v899 = vadd.f32 0.0, %v898
      %v900 = vpop.f32.mrb[0].mxu0
      %v901 = vpop.f32.mrb[0].mxu0
      %v902 = vadd.f32 0.0, %v901
      %v903 = vpop.f32.mrb[0].mxu0
      %904 = vmatprep.mubr.bf16.mxu0 0
      %905 = vmatmul.mubr.bf16.gmra.mrb[0].mxu0 %v750
      %v906 = vpop.f32.mrb[0].mxu0
      %v907 = vadd.f32 0.0, %v906
      %v908 = vpop.f32.mrb[0].mxu0
      %v909 = vpop.f32.mrb[0].mxu0
      %v910 = vadd.f32 0.0, %v909
      %v911 = vpop.f32.mrb[0].mxu0
      %912 = vdwg.mxu0
      %v945 = vunpack.c.l.b16 %v199
      %v946 = vunpack.c.l.b16 %v200
      %v947 = vunpack.c.l.b16 %v201
      %v948 = vunpack.c.l.b16 %v202
      %v949 = vunpack.c.l.b16 %v203
      %v950 = vunpack.c.l.b16 %v204
      %v951 = vunpack.c.l.b16 %v205
      %v952 = vunpack.c.l.b16 %v206
      %v953 = vunpack.c.l.b16 %v207
      %v954 = vunpack.c.l.b16 %v208
      %v955 = vunpack.c.l.b16 %v209
      %v956 = vunpack.c.l.b16 %v210
      %v957 = vunpack.c.l.b16 %v211
      %v958 = vunpack.c.l.b16 %v212
      %v959 = vunpack.c.l.b16 %v213
      %v960 = vunpack.c.l.b16 %v214
      %v961 = vunpack.c.l.b16 %v215
      %v962 = vunpack.c.l.b16 %v216
      %v963 = vunpack.c.l.b16 %v217
      %v964 = vunpack.c.l.b16 %v218
      %v965 = vunpack.c.l.b16 %v219
      %v966 = vunpack.c.l.b16 %v220
      %v967 = vunpack.c.l.b16 %v221
      %v968 = vunpack.c.l.b16 %v222
      %v969 = vunpack.c.l.b16 %v223
      %v970 = vunpack.c.l.b16 %v224
      %v971 = vunpack.c.l.b16 %v225
      %v972 = vunpack.c.l.b16 %v226
      %v973 = vunpack.c.l.b16 %v227
      %v974 = vunpack.c.l.b16 %v228
      %v975 = vunpack.c.l.b16 %v229
      %v976 = vunpack.c.l.b16 %v230
      %v977 = vpack.c.b16 %v946, %v945
      %v978 = vpack.c.b16 %v948, %v947
      %v979 = vpack.c.b16 %v950, %v949
      %v980 = vpack.c.b16 %v952, %v951
      %v981 = vpack.c.b16 %v954, %v953
      %v982 = vpack.c.b16 %v956, %v955
      %v983 = vpack.c.b16 %v958, %v957
      %v984 = vpack.c.b16 %v960, %v959
      %v985 = vpack.c.b16 %v962, %v961
      %v986 = vpack.c.b16 %v964, %v963
      %v987 = vpack.c.b16 %v966, %v965
      %v988 = vpack.c.b16 %v968, %v967
      %v989 = vpack.c.b16 %v970, %v969
      %v990 = vpack.c.b16 %v972, %v971
      %v991 = vpack.c.b16 %v974, %v973
      %v992 = vpack.c.b16 %v976, %v975
      %v997 = vunpack.c.l.b16 %v231
      %v998 = vunpack.c.l.b16 %v232
      %v999 = vunpack.c.l.b16 %v233
      %v1000 = vunpack.c.l.b16 %v234
      %v1001 = vpack.c.b16 %v998, %v997
      %v1002 = vpack.c.b16 %v1000, %v999
      %v1006 = vsel %vm703, %v977, 0
      %v1009 = vsel %vm703, %v978, 0
      %v1012 = vsel %vm703, %v979, 0
      %v1015 = vsel %vm703, %v980, 0
      %v1018 = vsel %vm703, %v981, 0
      %v1021 = vsel %vm703, %v982, 0
      %v1024 = vsel %vm703, %v983, 0
      %v1027 = vsel %vm703, %v984, 0
      %v1030 = vsel %vm703, %v985, 0
      %v1033 = vsel %vm703, %v986, 0
      %v1036 = vsel %vm703, %v987, 0
      %v1039 = vsel %vm703, %v988, 0
      %v1042 = vsel %vm703, %v989, 0
      %v1045 = vsel %vm703, %v990, 0
      %v1048 = vsel %vm703, %v991, 0
      %v1051 = vsel %vm703, %v992, 0
      %1053 = vmatprep.subr.bf16.mxu0 0
      %1054 = vmatpush1.bf16.msra.mxu0 %v1001
      %1055 = vmatprep.subr.bf16.mxu0 0
      %1056 = vmatpush1.bf16.msra.mxu0 %v1002
      %1057 = vmatprep.subr.bf16.mxu0 0
      %1058 = vmatpush1.bf16.msra.mxu0 0
      %1059 = vmatprep.subr.bf16.mxu0 0
      %1060 = vmatpush1.bf16.msra.mxu0 0
      %1061 = vmatprep.subr.bf16.mxu0 0
      %1062 = vmatpush1.bf16.msra.mxu0 0
      %1063 = vmatprep.subr.bf16.mxu0 0
      %1064 = vmatpush1.bf16.msra.mxu0 0
      %1065 = vmatprep.subr.bf16.mxu0 0
      %1066 = vmatpush1.bf16.msra.mxu0 0
      %1067 = vmatprep.subr.bf16.mxu0 0
      %1068 = vmatpush1.bf16.msra.mxu0 0
      %1069 = vmatprep.subr.bf16.mxu0 0
      %1070 = vmatpush1.bf16.msra.mxu0 0
      %1071 = vmatprep.subr.bf16.mxu0 0
      %1072 = vmatpush1.bf16.msra.mxu0 0
      %1073 = vmatprep.subr.bf16.mxu0 0
      %1074 = vmatpush1.bf16.msra.mxu0 0
      %1075 = vmatprep.subr.bf16.mxu0 0
      %1076 = vmatpush1.bf16.msra.mxu0 0
      %1077 = vmatprep.subr.bf16.mxu0 0
      %1078 = vmatpush1.bf16.msra.mxu0 0
      %1079 = vmatprep.subr.bf16.mxu0 0
      %1080 = vmatpush1.bf16.msra.mxu0 0
      %1081 = vmatprep.subr.bf16.mxu0 0
      %1082 = vmatpush1.bf16.msra.mxu0 0
      %1083 = vmatprep.subr.bf16.mxu0 0
      %1084 = vmatpush1.bf16.msra.mxu0 0
      %1085 = vmatprep.mubr.bf16.mxu0 0
      %1086 = vmatmul.mubr.bf16.gmra.mrb[0].mxu0 %v1006
      %v1087 = vpop.f32.mrb[0].mxu0
      %v1088 = vadd.f32 %v787, %v1087
      %v1089 = vpop.f32.mrb[0].mxu0
      %v1090 = vpop.f32.mrb[0].mxu0
      %v1091 = vadd.f32 %v790, %v1090
      %v1092 = vpop.f32.mrb[0].mxu0
      %1093 = vmatprep.mubr.bf16.mxu0 0
      %1094 = vmatmul.mubr.bf16.gmra.mrb[0].mxu0 %v1009
      %v1095 = vpop.f32.mrb[0].mxu0
      %v1096 = vadd.f32 %v795, %v1095
      %v1097 = vpop.f32.mrb[0].mxu0
      %v1098 = vpop.f32.mrb[0].mxu0
      %v1099 = vadd.f32 %v798, %v1098
      %v1100 = vpop.f32.mrb[0].mxu0
      %1101 = vmatprep.mubr.bf16.mxu0 0
      %1102 = vmatmul.mubr.bf16.gmra.mrb[0].mxu0 %v1012
      %v1103 = vpop.f32.mrb[0].mxu0
      %v1104 = vadd.f32 %v803, %v1103
      %v1105 = vpop.f32.mrb[0].mxu0
      %v1106 = vpop.f32.mrb[0].mxu0
      %v1107 = vadd.f32 %v806, %v1106
      %v1108 = vpop.f32.mrb[0].mxu0
      %1109 = vmatprep.mubr.bf16.mxu0 0
      %1110 = vmatmul.mubr.bf16.gmra.mrb[0].mxu0 %v1015
      %v1111 = vpop.f32.mrb[0].mxu0
      %v1112 = vadd.f32 %v811, %v1111
      %v1113 = vpop.f32.mrb[0].mxu0
      %v1114 = vpop.f32.mrb[0].mxu0
      %v1115 = vadd.f32 %v814, %v1114
      %v1116 = vpop.f32.mrb[0].mxu0
      %1117 = vmatprep.mubr.bf16.mxu0 0
      %1118 = vmatmul.mubr.bf16.gmra.mrb[0].mxu0 %v1018
      %v1119 = vpop.f32.mrb[0].mxu0
      %v1120 = vadd.f32 %v819, %v1119
      %v1121 = vpop.f32.mrb[0].mxu0
      %v1122 = vpop.f32.mrb[0].mxu0
      %v1123 = vadd.f32 %v822, %v1122
      %v1124 = vpop.f32.mrb[0].mxu0
      %1125 = vmatprep.mubr.bf16.mxu0 0
      %1126 = vmatmul.mubr.bf16.gmra.mrb[0].mxu0 %v1021
      %v1127 = vpop.f32.mrb[0].mxu0
      %v1128 = vadd.f32 %v827, %v1127
      %v1129 = vpop.f32.mrb[0].mxu0
      %v1130 = vpop.f32.mrb[0].mxu0
      %v1131 = vadd.f32 %v830, %v1130
      %v1132 = vpop.f32.mrb[0].mxu0
      %1133 = vmatprep.mubr.bf16.mxu0 0
      %1134 = vmatmul.mubr.bf16.gmra.mrb[0].mxu0 %v1024
      %v1135 = vpop.f32.mrb[0].mxu0
      %v1136 = vadd.f32 %v835, %v1135
      %v1137 = vpop.f32.mrb[0].mxu0
      %v1138 = vpop.f32.mrb[0].mxu0
      %v1139 = vadd.f32 %v838, %v1138
      %v1140 = vpop.f32.mrb[0].mxu0
      %1141 = vmatprep.mubr.bf16.mxu0 0
      %1142 = vmatmul.mubr.bf16.gmra.mrb[0].mxu0 %v1027
      %v1143 = vpop.f32.mrb[0].mxu0
      %v1144 = vadd.f32 %v843, %v1143
      %v1145 = vpop.f32.mrb[0].mxu0
      %v1146 = vpop.f32.mrb[0].mxu0
      %v1147 = vadd.f32 %v846, %v1146
      %v1148 = vpop.f32.mrb[0].mxu0
      %1149 = vmatprep.mubr.bf16.mxu0 0
      %1150 = vmatmul.mubr.bf16.gmra.mrb[0].mxu0 %v1030
      %v1151 = vpop.f32.mrb[0].mxu0
      %v1152 = vadd.f32 %v851, %v1151
      %v1153 = vpop.f32.mrb[0].mxu0
      %v1154 = vpop.f32.mrb[0].mxu0
      %v1155 = vadd.f32 %v854, %v1154
      %v1156 = vpop.f32.mrb[0].mxu0
      %1157 = vmatprep.mubr.bf16.mxu0 0
      %1158 = vmatmul.mubr.bf16.gmra.mrb[0].mxu0 %v1033
      %v1159 = vpop.f32.mrb[0].mxu0
      %v1160 = vadd.f32 %v859, %v1159
      %v1161 = vpop.f32.mrb[0].mxu0
      %v1162 = vpop.f32.mrb[0].mxu0
      %v1163 = vadd.f32 %v862, %v1162
      %v1164 = vpop.f32.mrb[0].mxu0
      %1165 = vmatprep.mubr.bf16.mxu0 0
      %1166 = vmatmul.mubr.bf16.gmra.mrb[0].mxu0 %v1036
      %v1167 = vpop.f32.mrb[0].mxu0
      %v1168 = vadd.f32 %v867, %v1167
      %v1169 = vpop.f32.mrb[0].mxu0
      %v1170 = vpop.f32.mrb[0].mxu0
      %v1171 = vadd.f32 %v870, %v1170
      %v1172 = vpop.f32.mrb[0].mxu0
      %1173 = vmatprep.mubr.bf16.mxu0 0
      %1174 = vmatmul.mubr.bf16.gmra.mrb[0].mxu0 %v1039
      %v1175 = vpop.f32.mrb[0].mxu0
      %v1176 = vadd.f32 %v875, %v1175
      %v1177 = vpop.f32.mrb[0].mxu0
      %v1178 = vpop.f32.mrb[0].mxu0
      %v1179 = vadd.f32 %v878, %v1178
      %v1180 = vpop.f32.mrb[0].mxu0
      %1181 = vmatprep.mubr.bf16.mxu0 0
      %1182 = vmatmul.mubr.bf16.gmra.mrb[0].mxu0 %v1042
      %v1183 = vpop.f32.mrb[0].mxu0
      %v1184 = vadd.f32 %v883, %v1183
      %v1185 = vpop.f32.mrb[0].mxu0
      %v1186 = vpop.f32.mrb[0].mxu0
      %v1187 = vadd.f32 %v886, %v1186
      %v1188 = vpop.f32.mrb[0].mxu0
      %1189 = vmatprep.mubr.bf16.mxu0 0
      %1190 = vmatmul.mubr.bf16.gmra.mrb[0].mxu0 %v1045
      %v1191 = vpop.f32.mrb[0].mxu0
      %v1192 = vadd.f32 %v891, %v1191
      %v1193 = vpop.f32.mrb[0].mxu0
      %v1194 = vpop.f32.mrb[0].mxu0
      %v1195 = vadd.f32 %v894, %v1194
      %v1196 = vpop.f32.mrb[0].mxu0
      %1197 = vmatprep.mubr.bf16.mxu0 0
      %1198 = vmatmul.mubr.bf16.gmra.mrb[0].mxu0 %v1048
      %v1199 = vpop.f32.mrb[0].mxu0
      %v1200 = vadd.f32 %v899, %v1199
      %v1201 = vpop.f32.mrb[0].mxu0
      %v1202 = vpop.f32.mrb[0].mxu0
      %v1203 = vadd.f32 %v902, %v1202
      %v1204 = vpop.f32.mrb[0].mxu0
      %1205 = vmatprep.mubr.bf16.mxu0 0
      %1206 = vmatmul.mubr.bf16.gmra.mrb[0].mxu0 %v1051
      %v1207 = vpop.f32.mrb[0].mxu0
      %v1208 = vadd.f32 %v907, %v1207
      %v1209 = vpop.f32.mrb[0].mxu0
      %v1210 = vpop.f32.mrb[0].mxu0
      %v1211 = vadd.f32 %v910, %v1210
      %v1212 = vpop.f32.mrb[0].mxu0
      %1213 = vdwg.mxu0
      %v1214 = vld [vmem:[%s192] sm:$0xe]
      %v1215 = vld [vmem:[%s192 + $0xc] sm:$0xe]
      %v1216 = vld [vmem:[%s192 + $0x18] sm:$0xe]
      %v1217 = vld [vmem:[%s192 + $0x24] sm:$0xe]
      %v1218 = vld [vmem:[%s192 + $0x30] sm:$0xe]
      %v1219 = vld [vmem:[%s192 + $0x3c] sm:$0xe]
      %v1220 = vld [vmem:[%s192 + $0x48] sm:$0xe]
      %v1221 = vld [vmem:[%s192 + $0x54] sm:$0xe]
      %v1222 = vld [vmem:[%s192 + $0x60] sm:$0xe]
      %v1223 = vld [vmem:[%s192 + $0x6c] sm:$0xe]
      %v1224 = vld [vmem:[%s192 + $0x78] sm:$0xe]
      %v1225 = vld [vmem:[%s192 + $0x84] sm:$0xe]
      %v1226 = vld [vmem:[%s192 + $0x90] sm:$0xe]
      %v1227 = vld [vmem:[%s192 + $0x9c] sm:$0xe]
      %v1228 = vld [vmem:[%s192 + $0xa8] sm:$0xe]
      %v1229 = vld [vmem:[%s192 + $0xb4] sm:$0xe]
      %vm1262 = vcmask 1042432
      %vm1263 = vcmask 1046532
      %vm1264 = vmor %vm1262, %vm1263
      %v1265 = vrot.slane %v1214, 5
      %v1266 = vrot.slane %v1265, 4
      %v1267 = vrot.slane %v200, 5
      %v1268 = vsel %vm1264, %v1266, %v1267
      %v1269 = vrot.slane %v1267, 4
      %v1270 = vrot.slane %v235, 5
      %v1271 = vsel %vm1264, %v1269, %v1270
      %v1272 = vrot.slane %v1215, 5
      %v1273 = vrot.slane %v1272, 4
      %v1274 = vrot.slane %v202, 5
      %v1275 = vsel %vm1264, %v1273, %v1274
      %v1276 = vrot.slane %v1274, 4
      %v1277 = vrot.slane %v236, 5
      %v1278 = vsel %vm1264, %v1276, %v1277
      %v1279 = vrot.slane %v1216, 5
      %v1280 = vrot.slane %v1279, 4
      %v1281 = vrot.slane %v204, 5
      %v1282 = vsel %vm1264, %v1280, %v1281
      %v1283 = vrot.slane %v1281, 4
      %v1284 = vrot.slane %v237, 5
      %v1285 = vsel %vm1264, %v1283, %v1284
      %v1286 = vrot.slane %v1217, 5
      %v1287 = vrot.slane %v1286, 4
      %v1288 = vrot.slane %v206, 5
      %v1289 = vsel %vm1264, %v1287, %v1288
      %v1290 = vrot.slane %v1288, 4
      %v1291 = vrot.slane %v238, 5
      %v1292 = vsel %vm1264, %v1290, %v1291
      %v1293 = vrot.slane %v1218, 5
      %v1294 = vrot.slane %v1293, 4
      %v1295 = vrot.slane %v208, 5
      %v1296 = vsel %vm1264, %v1294, %v1295
      %v1297 = vrot.slane %v1295, 4
      %v1298 = vrot.slane %v239, 5
      %v1299 = vsel %vm1264, %v1297, %v1298
      %v1300 = vrot.slane %v1219, 5
      %v1301 = vrot.slane %v1300, 4
      %v1302 = vrot.slane %v210, 5
      %v1303 = vsel %vm1264, %v1301, %v1302
      %v1304 = vrot.slane %v1302, 4
      %v1305 = vrot.slane %v240, 5
      %v1306 = vsel %vm1264, %v1304, %v1305
      %v1307 = vrot.slane %v1220, 5
      %v1308 = vrot.slane %v1307, 4
      %v1309 = vrot.slane %v212, 5
      %v1310 = vsel %vm1264, %v1308, %v1309
      %v1311 = vrot.slane %v1309, 4
      %v1312 = vrot.slane %v241, 5
      %v1313 = vsel %vm1264, %v1311, %v1312
      %v1314 = vrot.slane %v1221, 5
      %v1315 = vrot.slane %v1314, 4
      %v1316 = vrot.slane %v214, 5
      %v1317 = vsel %vm1264, %v1315, %v1316
      %v1318 = vrot.slane %v1316, 4
      %v1319 = vrot.slane %v242, 5
      %v1320 = vsel %vm1264, %v1318, %v1319
      %v1321 = vrot.slane %v1222, 5
      %v1322 = vrot.slane %v1321, 4
      %v1323 = vrot.slane %v216, 5
      %v1324 = vsel %vm1264, %v1322, %v1323
      %v1325 = vrot.slane %v1323, 4
      %v1326 = vrot.slane %v243, 5
      %v1327 = vsel %vm1264, %v1325, %v1326
      %v1328 = vrot.slane %v1223, 5
      %v1329 = vrot.slane %v1328, 4
      %v1330 = vrot.slane %v218, 5
      %v1331 = vsel %vm1264, %v1329, %v1330
      %v1332 = vrot.slane %v1330, 4
      %v1333 = vrot.slane %v244, 5
      %v1334 = vsel %vm1264, %v1332, %v1333
      %v1335 = vrot.slane %v1224, 5
      %v1336 = vrot.slane %v1335, 4
      %v1337 = vrot.slane %v220, 5
      %v1338 = vsel %vm1264, %v1336, %v1337
      %v1339 = vrot.slane %v1337, 4
      %v1340 = vrot.slane %v245, 5
      %v1341 = vsel %vm1264, %v1339, %v1340
      %v1342 = vrot.slane %v1225, 5
      %v1343 = vrot.slane %v1342, 4
      %v1344 = vrot.slane %v222, 5
      %v1345 = vsel %vm1264, %v1343, %v1344
      %v1346 = vrot.slane %v1344, 4
      %v1347 = vrot.slane %v246, 5
      %v1348 = vsel %vm1264, %v1346, %v1347
      %v1349 = vrot.slane %v1226, 5
      %v1350 = vrot.slane %v1349, 4
      %v1351 = vrot.slane %v224, 5
      %v1352 = vsel %vm1264, %v1350, %v1351
      %v1353 = vrot.slane %v1351, 4
      %v1354 = vrot.slane %v247, 5
      %v1355 = vsel %vm1264, %v1353, %v1354
      %v1356 = vrot.slane %v1227, 5
      %v1357 = vrot.slane %v1356, 4
      %v1358 = vrot.slane %v226, 5
      %v1359 = vsel %vm1264, %v1357, %v1358
      %v1360 = vrot.slane %v1358, 4
      %v1361 = vrot.slane %v248, 5
      %v1362 = vsel %vm1264, %v1360, %v1361
      %v1363 = vrot.slane %v1228, 5
      %v1364 = vrot.slane %v1363, 4
      %v1365 = vrot.slane %v228, 5
      %v1366 = vsel %vm1264, %v1364, %v1365
      %v1367 = vrot.slane %v1365, 4
      %v1368 = vrot.slane %v249, 5
      %v1369 = vsel %vm1264, %v1367, %v1368
      %v1370 = vrot.slane %v1229, 5
      %v1371 = vrot.slane %v1370, 4
      %v1372 = vrot.slane %v230, 5
      %v1373 = vsel %vm1264, %v1371, %v1372
      %v1374 = vrot.slane %v1372, 4
      %v1375 = vrot.slane %v250, 5
      %v1376 = vsel %vm1264, %v1374, %v1375
      %s1377 = scalar_lea.vmem %s1, 32
      %v1378 = vld [vmem:[%s1377] sm:$0xf]
      %v1379 = vld [vmem:[%s1377 + $0x4] sm:$0xf]
      %v1380 = vld [vmem:[%s1377 + $0x8] sm:$0xf]
      %v1381 = vld [vmem:[%s1377 + $0xc] sm:$0xf]
      %v1382 = vunpack.c.l.b16 %v1268
      %v1383 = vunpack.c.l.b16 %v1271
      %v1384 = vunpack.c.l.b16 %v1275
      %v1385 = vunpack.c.l.b16 %v1278
      %v1386 = vunpack.c.l.b16 %v1282
      %v1387 = vunpack.c.l.b16 %v1285
      %v1388 = vunpack.c.l.b16 %v1289
      %v1389 = vunpack.c.l.b16 %v1292
      %v1390 = vunpack.c.l.b16 %v1296
      %v1391 = vunpack.c.l.b16 %v1299
      %v1392 = vunpack.c.l.b16 %v1303
      %v1393 = vunpack.c.l.b16 %v1306
      %v1394 = vunpack.c.l.b16 %v1310
      %v1395 = vunpack.c.l.b16 %v1313
      %v1396 = vunpack.c.l.b16 %v1317
      %v1397 = vunpack.c.l.b16 %v1320
      %v1398 = vunpack.c.l.b16 %v1324
      %v1399 = vunpack.c.l.b16 %v1327
      %v1400 = vunpack.c.l.b16 %v1331
      %v1401 = vunpack.c.l.b16 %v1334
      %v1402 = vunpack.c.l.b16 %v1338
      %v1403 = vunpack.c.l.b16 %v1341
      %v1404 = vunpack.c.l.b16 %v1345
      %v1405 = vunpack.c.l.b16 %v1348
      %v1406 = vunpack.c.l.b16 %v1352
      %v1407 = vunpack.c.l.b16 %v1355
      %v1408 = vunpack.c.l.b16 %v1359
      %v1409 = vunpack.c.l.b16 %v1362
      %v1410 = vunpack.c.l.b16 %v1366
      %v1411 = vunpack.c.l.b16 %v1369
      %v1412 = vunpack.c.l.b16 %v1373
      %v1413 = vunpack.c.l.b16 %v1376
      %v1414 = vpack.c.b16 %v1383, %v1382
      %v1415 = vpack.c.b16 %v1385, %v1384
      %v1416 = vpack.c.b16 %v1387, %v1386
      %v1417 = vpack.c.b16 %v1389, %v1388
      %v1418 = vpack.c.b16 %v1391, %v1390
      %v1419 = vpack.c.b16 %v1393, %v1392
      %v1420 = vpack.c.b16 %v1395, %v1394
      %v1421 = vpack.c.b16 %v1397, %v1396
      %v1422 = vpack.c.b16 %v1399, %v1398
      %v1423 = vpack.c.b16 %v1401, %v1400
      %v1424 = vpack.c.b16 %v1403, %v1402
      %v1425 = vpack.c.b16 %v1405, %v1404
      %v1426 = vpack.c.b16 %v1407, %v1406
      %v1427 = vpack.c.b16 %v1409, %v1408
      %v1428 = vpack.c.b16 %v1411, %v1410
      %v1429 = vpack.c.b16 %v1413, %v1412
      %v1434 = vunpack.c.l.b16 %v1378
      %v1435 = vunpack.c.l.b16 %v1379
      %v1436 = vunpack.c.l.b16 %v1380
      %v1437 = vunpack.c.l.b16 %v1381
      %v1438 = vpack.c.b16 %v1435, %v1434
      %v1439 = vpack.c.b16 %v1437, %v1436
      %v1443 = vsel %vm703, %v1414, 0
      %v1446 = vsel %vm703, %v1415, 0
      %v1449 = vsel %vm703, %v1416, 0
      %v1452 = vsel %vm703, %v1417, 0
      %v1455 = vsel %vm703, %v1418, 0
      %v1458 = vsel %vm703, %v1419, 0
      %v1461 = vsel %vm703, %v1420, 0
      %v1464 = vsel %vm703, %v1421, 0
      %v1467 = vsel %vm703, %v1422, 0
      %v1470 = vsel %vm703, %v1423, 0
      %v1473 = vsel %vm703, %v1424, 0
      %v1476 = vsel %vm703, %v1425, 0
      %v1479 = vsel %vm703, %v1426, 0
      %v1482 = vsel %vm703, %v1427, 0
      %v1485 = vsel %vm703, %v1428, 0
      %v1488 = vsel %vm703, %v1429, 0
      %1490 = vmatprep.subr.bf16.mxu0 0
      %1491 = vmatpush1.bf16.msra.mxu0 %v1438
      %1492 = vmatprep.subr.bf16.mxu0 0
      %1493 = vmatpush1.bf16.msra.mxu0 %v1439
      %1494 = vmatprep.subr.bf16.mxu0 0
      %1495 = vmatpush1.bf16.msra.mxu0 0
      %1496 = vmatprep.subr.bf16.mxu0 0
      %1497 = vmatpush1.bf16.msra.mxu0 0
      %1498 = vmatprep.subr.bf16.mxu0 0
      %1499 = vmatpush1.bf16.msra.mxu0 0
      %1500 = vmatprep.subr.bf16.mxu0 0
      %1501 = vmatpush1.bf16.msra.mxu0 0
      %1502 = vmatprep.subr.bf16.mxu0 0
      %1503 = vmatpush1.bf16.msra.mxu0 0
      %1504 = vmatprep.subr.bf16.mxu0 0
      %1505 = vmatpush1.bf16.msra.mxu0 0
      %1506 = vmatprep.subr.bf16.mxu0 0
      %1507 = vmatpush1.bf16.msra.mxu0 0
      %1508 = vmatprep.subr.bf16.mxu0 0
      %1509 = vmatpush1.bf16.msra.mxu0 0
      %1510 = vmatprep.subr.bf16.mxu0 0
      %1511 = vmatpush1.bf16.msra.mxu0 0
      %1512 = vmatprep.subr.bf16.mxu0 0
      %1513 = vmatpush1.bf16.msra.mxu0 0
      %1514 = vmatprep.subr.bf16.mxu0 0
      %1515 = vmatpush1.bf16.msra.mxu0 0
      %1516 = vmatprep.subr.bf16.mxu0 0
      %1517 = vmatpush1.bf16.msra.mxu0 0
      %1518 = vmatprep.subr.bf16.mxu0 0
      %1519 = vmatpush1.bf16.msra.mxu0 0
      %1520 = vmatprep.subr.bf16.mxu0 0
      %1521 = vmatpush1.bf16.msra.mxu0 0
      %1522 = vmatprep.mubr.bf16.mxu0 0
      %1523 = vmatmul.mubr.bf16.gmra.mrb[0].mxu0 %v1443
      %v1524 = vpop.f32.mrb[0].mxu0
      %v1525 = vadd.f32 0.0, %v1524
      %v1526 = vpop.f32.mrb[0].mxu0
      %v1527 = vpop.f32.mrb[0].mxu0
      %v1528 = vadd.f32 0.0, %v1527
      %v1529 = vpop.f32.mrb[0].mxu0
      %1530 = vmatprep.mubr.bf16.mxu0 0
      %1531 = vmatmul.mubr.bf16.gmra.mrb[0].mxu0 %v1446
      %v1532 = vpop.f32.mrb[0].mxu0
      %v1533 = vadd.f32 0.0, %v1532
      %v1534 = vpop.f32.mrb[0].mxu0
      %v1535 = vpop.f32.mrb[0].mxu0
      %v1536 = vadd.f32 0.0, %v1535
      %v1537 = vpop.f32.mrb[0].mxu0
      %1538 = vmatprep.mubr.bf16.mxu0 0
      %1539 = vmatmul.mubr.bf16.gmra.mrb[0].mxu0 %v1449
      %v1540 = vpop.f32.mrb[0].mxu0
      %v1541 = vadd.f32 0.0, %v1540
      %v1542 = vpop.f32.mrb[0].mxu0
      %v1543 = vpop.f32.mrb[0].mxu0
      %v1544 = vadd.f32 0.0, %v1543
      %v1545 = vpop.f32.mrb[0].mxu0
      %1546 = vmatprep.mubr.bf16.mxu0 0
      %1547 = vmatmul.mubr.bf16.gmra.mrb[0].mxu0 %v1452
      %v1548 = vpop.f32.mrb[0].mxu0
      %v1549 = vadd.f32 0.0, %v1548
      %v1550 = vpop.f32.mrb[0].mxu0
      %v1551 = vpop.f32.mrb[0].mxu0
      %v1552 = vadd.f32 0.0, %v1551
      %v1553 = vpop.f32.mrb[0].mxu0
      %1554 = vmatprep.mubr.bf16.mxu0 0
      %1555 = vmatmul.mubr.bf16.gmra.mrb[0].mxu0 %v1455
      %v1556 = vpop.f32.mrb[0].mxu0
      %v1557 = vadd.f32 0.0, %v1556
      %v1558 = vpop.f32.mrb[0].mxu0
      %v1559 = vpop.f32.mrb[0].mxu0
      %v1560 = vadd.f32 0.0, %v1559
      %v1561 = vpop.f32.mrb[0].mxu0
      %1562 = vmatprep.mubr.bf16.mxu0 0
      %1563 = vmatmul.mubr.bf16.gmra.mrb[0].mxu0 %v1458
      %v1564 = vpop.f32.mrb[0].mxu0
      %v1565 = vadd.f32 0.0, %v1564
      %v1566 = vpop.f32.mrb[0].mxu0
      %v1567 = vpop.f32.mrb[0].mxu0
      %v1568 = vadd.f32 0.0, %v1567
      %v1569 = vpop.f32.mrb[0].mxu0
      %1570 = vmatprep.mubr.bf16.mxu0 0
      %1571 = vmatmul.mubr.bf16.gmra.mrb[0].mxu0 %v1461
      %v1572 = vpop.f32.mrb[0].mxu0
      %v1573 = vadd.f32 0.0, %v1572
      %v1574 = vpop.f32.mrb[0].mxu0
      %v1575 = vpop.f32.mrb[0].mxu0
      %v1576 = vadd.f32 0.0, %v1575
      %v1577 = vpop.f32.mrb[0].mxu0
      %1578 = vmatprep.mubr.bf16.mxu0 0
      %1579 = vmatmul.mubr.bf16.gmra.mrb[0].mxu0 %v1464
      %v1580 = vpop.f32.mrb[0].mxu0
      %v1581 = vadd.f32 0.0, %v1580
      %v1582 = vpop.f32.mrb[0].mxu0
      %v1583 = vpop.f32.mrb[0].mxu0
      %v1584 = vadd.f32 0.0, %v1583
      %v1585 = vpop.f32.mrb[0].mxu0
      %1586 = vmatprep.mubr.bf16.mxu0 0
      %1587 = vmatmul.mubr.bf16.gmra.mrb[0].mxu0 %v1467
      %v1588 = vpop.f32.mrb[0].mxu0
      %v1589 = vadd.f32 0.0, %v1588
      %v1590 = vpop.f32.mrb[0].mxu0
      %v1591 = vpop.f32.mrb[0].mxu0
      %v1592 = vadd.f32 0.0, %v1591
      %v1593 = vpop.f32.mrb[0].mxu0
      %1594 = vmatprep.mubr.bf16.mxu0 0
      %1595 = vmatmul.mubr.bf16.gmra.mrb[0].mxu0 %v1470
      %v1596 = vpop.f32.mrb[0].mxu0
      %v1597 = vadd.f32 0.0, %v1596
      %v1598 = vpop.f32.mrb[0].mxu0
      %v1599 = vpop.f32.mrb[0].mxu0
      %v1600 = vadd.f32 0.0, %v1599
      %v1601 = vpop.f32.mrb[0].mxu0
      %1602 = vmatprep.mubr.bf16.mxu0 0
      %1603 = vmatmul.mubr.bf16.gmra.mrb[0].mxu0 %v1473
      %v1604 = vpop.f32.mrb[0].mxu0
      %v1605 = vadd.f32 0.0, %v1604
      %v1606 = vpop.f32.mrb[0].mxu0
      %v1607 = vpop.f32.mrb[0].mxu0
      %v1608 = vadd.f32 0.0, %v1607
      %v1609 = vpop.f32.mrb[0].mxu0
      %1610 = vmatprep.mubr.bf16.mxu0 0
      %1611 = vmatmul.mubr.bf16.gmra.mrb[0].mxu0 %v1476
      %v1612 = vpop.f32.mrb[0].mxu0
      %v1613 = vadd.f32 0.0, %v1612
      %v1614 = vpop.f32.mrb[0].mxu0
      %v1615 = vpop.f32.mrb[0].mxu0
      %v1616 = vadd.f32 0.0, %v1615
      %v1617 = vpop.f32.mrb[0].mxu0
      %1618 = vmatprep.mubr.bf16.mxu0 0
      %1619 = vmatmul.mubr.bf16.gmra.mrb[0].mxu0 %v1479
      %v1620 = vpop.f32.mrb[0].mxu0
      %v1621 = vadd.f32 0.0, %v1620
      %v1622 = vpop.f32.mrb[0].mxu0
      %v1623 = vpop.f32.mrb[0].mxu0
      %v1624 = vadd.f32 0.0, %v1623
      %v1625 = vpop.f32.mrb[0].mxu0
      %1626 = vmatprep.mubr.bf16.mxu0 0
      %1627 = vmatmul.mubr.bf16.gmra.mrb[0].mxu0 %v1482
      %v1628 = vpop.f32.mrb[0].mxu0
      %v1629 = vadd.f32 0.0, %v1628
      %v1630 = vpop.f32.mrb[0].mxu0
      %v1631 = vpop.f32.mrb[0].mxu0
      %v1632 = vadd.f32 0.0, %v1631
      %v1633 = vpop.f32.mrb[0].mxu0
      %1634 = vmatprep.mubr.bf16.mxu0 0
      %1635 = vmatmul.mubr.bf16.gmra.mrb[0].mxu0 %v1485
      %v1636 = vpop.f32.mrb[0].mxu0
      %v1637 = vadd.f32 0.0, %v1636
      %v1638 = vpop.f32.mrb[0].mxu0
      %v1639 = vpop.f32.mrb[0].mxu0
      %v1640 = vadd.f32 0.0, %v1639
      %v1641 = vpop.f32.mrb[0].mxu0
      %1642 = vmatprep.mubr.bf16.mxu0 0
      %1643 = vmatmul.mubr.bf16.gmra.mrb[0].mxu0 %v1488
      %v1644 = vpop.f32.mrb[0].mxu0
      %v1645 = vadd.f32 0.0, %v1644
      %v1646 = vpop.f32.mrb[0].mxu0
      %v1647 = vpop.f32.mrb[0].mxu0
      %v1648 = vadd.f32 0.0, %v1647
      %v1649 = vpop.f32.mrb[0].mxu0
      %1650 = vdwg.mxu0
      %v1651 = vadd.f32 %v1088, %v1525
      %v1652 = vadd.f32 %v1091, %v1528
      %v1653 = vadd.f32 %v1096, %v1533
      %v1654 = vadd.f32 %v1099, %v1536
      %v1655 = vadd.f32 %v1104, %v1541
      %v1656 = vadd.f32 %v1107, %v1544
      %v1657 = vadd.f32 %v1112, %v1549
      %v1658 = vadd.f32 %v1115, %v1552
      %v1659 = vadd.f32 %v1120, %v1557
      %v1660 = vadd.f32 %v1123, %v1560
      %v1661 = vadd.f32 %v1128, %v1565
      %v1662 = vadd.f32 %v1131, %v1568
      %v1663 = vadd.f32 %v1136, %v1573
      %v1664 = vadd.f32 %v1139, %v1576
      %v1665 = vadd.f32 %v1144, %v1581
      %v1666 = vadd.f32 %v1147, %v1584
      %v1667 = vadd.f32 %v1152, %v1589
      %v1668 = vadd.f32 %v1155, %v1592
      %v1669 = vadd.f32 %v1160, %v1597
      %v1670 = vadd.f32 %v1163, %v1600
      %v1671 = vadd.f32 %v1168, %v1605
      %v1672 = vadd.f32 %v1171, %v1608
      %v1673 = vadd.f32 %v1176, %v1613
      %v1674 = vadd.f32 %v1179, %v1616
      %v1675 = vadd.f32 %v1184, %v1621
      %v1676 = vadd.f32 %v1187, %v1624
      %v1677 = vadd.f32 %v1192, %v1629
      %v1678 = vadd.f32 %v1195, %v1632
      %v1679 = vadd.f32 %v1200, %v1637
      %v1680 = vadd.f32 %v1203, %v1640
      %v1681 = vadd.f32 %v1208, %v1645
      %v1682 = vadd.f32 %v1211, %v1648
      %s1683 = scalar_lea.vmem %s192, 12
      %v1684 = vld [vmem:[%s1683] sm:$0xf]
      %v1685 = vld [vmem:[%s1683 + $0x4] sm:$0xf]
      %v1686 = vld [vmem:[%s1683 + $0xc] sm:$0xf]
      %v1687 = vld [vmem:[%s1683 + $0x10] sm:$0xf]
      %v1688 = vld [vmem:[%s1683 + $0x18] sm:$0xf]
      %v1689 = vld [vmem:[%s1683 + $0x1c] sm:$0xf]
      %v1690 = vld [vmem:[%s1683 + $0x24] sm:$0xf]
      %v1691 = vld [vmem:[%s1683 + $0x28] sm:$0xf]
      %v1692 = vld [vmem:[%s1683 + $0x30] sm:$0xf]
      %v1693 = vld [vmem:[%s1683 + $0x34] sm:$0xf]
      %v1694 = vld [vmem:[%s1683 + $0x3c] sm:$0xf]
      %v1695 = vld [vmem:[%s1683 + $0x40] sm:$0xf]
      %v1696 = vld [vmem:[%s1683 + $0x48] sm:$0xf]
      %v1697 = vld [vmem:[%s1683 + $0x4c] sm:$0xf]
      %v1698 = vld [vmem:[%s1683 + $0x54] sm:$0xf]
      %v1699 = vld [vmem:[%s1683 + $0x58] sm:$0xf]
      %v1700 = vld [vmem:[%s1683 + $0x60] sm:$0xf]
      %v1701 = vld [vmem:[%s1683 + $0x64] sm:$0xf]
      %v1702 = vld [vmem:[%s1683 + $0x6c] sm:$0xf]
      %v1703 = vld [vmem:[%s1683 + $0x70] sm:$0xf]
      %v1704 = vld [vmem:[%s1683 + $0x78] sm:$0xf]
      %v1705 = vld [vmem:[%s1683 + $0x7c] sm:$0xf]
      %v1706 = vld [vmem:[%s1683 + $0x84] sm:$0xf]
      %v1707 = vld [vmem:[%s1683 + $0x88] sm:$0xf]
      %v1708 = vld [vmem:[%s1683 + $0x90] sm:$0xf]
      %v1709 = vld [vmem:[%s1683 + $0x94] sm:$0xf]
      %v1710 = vld [vmem:[%s1683 + $0x9c] sm:$0xf]
      %v1711 = vld [vmem:[%s1683 + $0xa0] sm:$0xf]
      %v1712 = vld [vmem:[%s1683 + $0xa8] sm:$0xf]
      %v1713 = vld [vmem:[%s1683 + $0xac] sm:$0xf]
      %v1714 = vld [vmem:[%s1683 + $0xb4] sm:$0xf]
      %v1715 = vld [vmem:[%s1683 + $0xb8] sm:$0xf]
      %s1716 = scalar_lea.vmem %s1, 48
      %v1717 = vld [vmem:[%s1716] sm:$0xf]
      %v1718 = vld [vmem:[%s1716 + $0x4] sm:$0xf]
      %v1719 = vld [vmem:[%s1716 + $0x8] sm:$0xf]
      %v1720 = vld [vmem:[%s1716 + $0xc] sm:$0xf]
      %v1753 = vunpack.c.l.b16 %v1684
      %v1754 = vunpack.c.l.b16 %v1685
      %v1755 = vunpack.c.l.b16 %v1686
      %v1756 = vunpack.c.l.b16 %v1687
      %v1757 = vunpack.c.l.b16 %v1688
      %v1758 = vunpack.c.l.b16 %v1689
      %v1759 = vunpack.c.l.b16 %v1690
      %v1760 = vunpack.c.l.b16 %v1691
      %v1761 = vunpack.c.l.b16 %v1692
      %v1762 = vunpack.c.l.b16 %v1693
      %v1763 = vunpack.c.l.b16 %v1694
      %v1764 = vunpack.c.l.b16 %v1695
      %v1765 = vunpack.c.l.b16 %v1696
      %v1766 = vunpack.c.l.b16 %v1697
      %v1767 = vunpack.c.l.b16 %v1698
      %v1768 = vunpack.c.l.b16 %v1699
      %v1769 = vunpack.c.l.b16 %v1700
      %v1770 = vunpack.c.l.b16 %v1701
      %v1771 = vunpack.c.l.b16 %v1702
      %v1772 = vunpack.c.l.b16 %v1703
      %v1773 = vunpack.c.l.b16 %v1704
      %v1774 = vunpack.c.l.b16 %v1705
      %v1775 = vunpack.c.l.b16 %v1706
      %v1776 = vunpack.c.l.b16 %v1707
      %v1777 = vunpack.c.l.b16 %v1708
      %v1778 = vunpack.c.l.b16 %v1709
      %v1779 = vunpack.c.l.b16 %v1710
      %v1780 = vunpack.c.l.b16 %v1711
      %v1781 = vunpack.c.l.b16 %v1712
      %v1782 = vunpack.c.l.b16 %v1713
      %v1783 = vunpack.c.l.b16 %v1714
      %v1784 = vunpack.c.l.b16 %v1715
      %v1785 = vpack.c.b16 %v1754, %v1753
      %v1786 = vpack.c.b16 %v1756, %v1755
      %v1787 = vpack.c.b16 %v1758, %v1757
      %v1788 = vpack.c.b16 %v1760, %v1759
      %v1789 = vpack.c.b16 %v1762, %v1761
      %v1790 = vpack.c.b16 %v1764, %v1763
      %v1791 = vpack.c.b16 %v1766, %v1765
      %v1792 = vpack.c.b16 %v1768, %v1767
      %v1793 = vpack.c.b16 %v1770, %v1769
      %v1794 = vpack.c.b16 %v1772, %v1771
      %v1795 = vpack.c.b16 %v1774, %v1773
      %v1796 = vpack.c.b16 %v1776, %v1775
      %v1797 = vpack.c.b16 %v1778, %v1777
      %v1798 = vpack.c.b16 %v1780, %v1779
      %v1799 = vpack.c.b16 %v1782, %v1781
      %v1800 = vpack.c.b16 %v1784, %v1783
      %v1805 = vunpack.c.l.b16 %v1717
      %v1806 = vunpack.c.l.b16 %v1718
      %v1807 = vunpack.c.l.b16 %v1719
      %v1808 = vunpack.c.l.b16 %v1720
      %v1809 = vpack.c.b16 %v1806, %v1805
      %v1810 = vpack.c.b16 %v1808, %v1807
      %v1814 = vsel %vm703, %v1785, 0
      %v1817 = vsel %vm703, %v1786, 0
      %v1820 = vsel %vm703, %v1787, 0
      %v1823 = vsel %vm703, %v1788, 0
      %v1826 = vsel %vm703, %v1789, 0
      %v1829 = vsel %vm703, %v1790, 0
      %v1832 = vsel %vm703, %v1791, 0
      %v1835 = vsel %vm703, %v1792, 0
      %v1838 = vsel %vm703, %v1793, 0
      %v1841 = vsel %vm703, %v1794, 0
      %v1844 = vsel %vm703, %v1795, 0
      %v1847 = vsel %vm703, %v1796, 0
      %v1850 = vsel %vm703, %v1797, 0
      %v1853 = vsel %vm703, %v1798, 0
      %v1856 = vsel %vm703, %v1799, 0
      %v1859 = vsel %vm703, %v1800, 0
      %1861 = vmatprep.subr.bf16.mxu0 0
      %1862 = vmatpush1.bf16.msra.mxu0 %v1809
      %1863 = vmatprep.subr.bf16.mxu0 0
      %1864 = vmatpush1.bf16.msra.mxu0 %v1810
      %1865 = vmatprep.subr.bf16.mxu0 0
      %1866 = vmatpush1.bf16.msra.mxu0 0
      %1867 = vmatprep.subr.bf16.mxu0 0
      %1868 = vmatpush1.bf16.msra.mxu0 0
      %1869 = vmatprep.subr.bf16.mxu0 0
      %1870 = vmatpush1.bf16.msra.mxu0 0
      %1871 = vmatprep.subr.bf16.mxu0 0
      %1872 = vmatpush1.bf16.msra.mxu0 0
      %1873 = vmatprep.subr.bf16.mxu0 0
      %1874 = vmatpush1.bf16.msra.mxu0 0
      %1875 = vmatprep.subr.bf16.mxu0 0
      %1876 = vmatpush1.bf16.msra.mxu0 0
      %1877 = vmatprep.subr.bf16.mxu0 0
      %1878 = vmatpush1.bf16.msra.mxu0 0
      %1879 = vmatprep.subr.bf16.mxu0 0
      %1880 = vmatpush1.bf16.msra.mxu0 0
      %1881 = vmatprep.subr.bf16.mxu0 0
      %1882 = vmatpush1.bf16.msra.mxu0 0
      %1883 = vmatprep.subr.bf16.mxu0 0
      %1884 = vmatpush1.bf16.msra.mxu0 0
      %1885 = vmatprep.subr.bf16.mxu0 0
      %1886 = vmatpush1.bf16.msra.mxu0 0
      %1887 = vmatprep.subr.bf16.mxu0 0
      %1888 = vmatpush1.bf16.msra.mxu0 0
      %1889 = vmatprep.subr.bf16.mxu0 0
      %1890 = vmatpush1.bf16.msra.mxu0 0
      %1891 = vmatprep.subr.bf16.mxu0 0
      %1892 = vmatpush1.bf16.msra.mxu0 0
      %1893 = vmatprep.mubr.bf16.mxu0 0
      %1894 = vmatmul.mubr.bf16.gmra.mrb[0].mxu0 %v1814
      %v1895 = vpop.f32.mrb[0].mxu0
      %v1896 = vadd.f32 0.0, %v1895
      %v1897 = vpop.f32.mrb[0].mxu0
      %v1898 = vpop.f32.mrb[0].mxu0
      %v1899 = vadd.f32 0.0, %v1898
      %v1900 = vpop.f32.mrb[0].mxu0
      %1901 = vmatprep.mubr.bf16.mxu0 0
      %1902 = vmatmul.mubr.bf16.gmra.mrb[0].mxu0 %v1817
      %v1903 = vpop.f32.mrb[0].mxu0
      %v1904 = vadd.f32 0.0, %v1903
      %v1905 = vpop.f32.mrb[0].mxu0
      %v1906 = vpop.f32.mrb[0].mxu0
      %v1907 = vadd.f32 0.0, %v1906
      %v1908 = vpop.f32.mrb[0].mxu0
      %1909 = vmatprep.mubr.bf16.mxu0 0
      %1910 = vmatmul.mubr.bf16.gmra.mrb[0].mxu0 %v1820
      %v1911 = vpop.f32.mrb[0].mxu0
      %v1912 = vadd.f32 0.0, %v1911
      %v1913 = vpop.f32.mrb[0].mxu0
      %v1914 = vpop.f32.mrb[0].mxu0
      %v1915 = vadd.f32 0.0, %v1914
      %v1916 = vpop.f32.mrb[0].mxu0
      %1917 = vmatprep.mubr.bf16.mxu0 0
      %1918 = vmatmul.mubr.bf16.gmra.mrb[0].mxu0 %v1823
      %v1919 = vpop.f32.mrb[0].mxu0
      %v1920 = vadd.f32 0.0, %v1919
      %v1921 = vpop.f32.mrb[0].mxu0
      %v1922 = vpop.f32.mrb[0].mxu0
      %v1923 = vadd.f32 0.0, %v1922
      %v1924 = vpop.f32.mrb[0].mxu0
      %1925 = vmatprep.mubr.bf16.mxu0 0
      %1926 = vmatmul.mubr.bf16.gmra.mrb[0].mxu0 %v1826
      %v1927 = vpop.f32.mrb[0].mxu0
      %v1928 = vadd.f32 0.0, %v1927
      %v1929 = vpop.f32.mrb[0].mxu0
      %v1930 = vpop.f32.mrb[0].mxu0
      %v1931 = vadd.f32 0.0, %v1930
      %v1932 = vpop.f32.mrb[0].mxu0
      %1933 = vmatprep.mubr.bf16.mxu0 0
      %1934 = vmatmul.mubr.bf16.gmra.mrb[0].mxu0 %v1829
      %v1935 = vpop.f32.mrb[0].mxu0
      %v1936 = vadd.f32 0.0, %v1935
      %v1937 = vpop.f32.mrb[0].mxu0
      %v1938 = vpop.f32.mrb[0].mxu0
      %v1939 = vadd.f32 0.0, %v1938
      %v1940 = vpop.f32.mrb[0].mxu0
      %1941 = vmatprep.mubr.bf16.mxu0 0
      %1942 = vmatmul.mubr.bf16.gmra.mrb[0].mxu0 %v1832
      %v1943 = vpop.f32.mrb[0].mxu0
      %v1944 = vadd.f32 0.0, %v1943
      %v1945 = vpop.f32.mrb[0].mxu0
      %v1946 = vpop.f32.mrb[0].mxu0
      %v1947 = vadd.f32 0.0, %v1946
      %v1948 = vpop.f32.mrb[0].mxu0
      %1949 = vmatprep.mubr.bf16.mxu0 0
      %1950 = vmatmul.mubr.bf16.gmra.mrb[0].mxu0 %v1835
      %v1951 = vpop.f32.mrb[0].mxu0
      %v1952 = vadd.f32 0.0, %v1951
      %v1953 = vpop.f32.mrb[0].mxu0
      %v1954 = vpop.f32.mrb[0].mxu0
      %v1955 = vadd.f32 0.0, %v1954
      %v1956 = vpop.f32.mrb[0].mxu0
      %1957 = vmatprep.mubr.bf16.mxu0 0
      %1958 = vmatmul.mubr.bf16.gmra.mrb[0].mxu0 %v1838
      %v1959 = vpop.f32.mrb[0].mxu0
      %v1960 = vadd.f32 0.0, %v1959
      %v1961 = vpop.f32.mrb[0].mxu0
      %v1962 = vpop.f32.mrb[0].mxu0
      %v1963 = vadd.f32 0.0, %v1962
      %v1964 = vpop.f32.mrb[0].mxu0
      %1965 = vmatprep.mubr.bf16.mxu0 0
      %1966 = vmatmul.mubr.bf16.gmra.mrb[0].mxu0 %v1841
      %v1967 = vpop.f32.mrb[0].mxu0
      %v1968 = vadd.f32 0.0, %v1967
      %v1969 = vpop.f32.mrb[0].mxu0
      %v1970 = vpop.f32.mrb[0].mxu0
      %v1971 = vadd.f32 0.0, %v1970
      %v1972 = vpop.f32.mrb[0].mxu0
      %1973 = vmatprep.mubr.bf16.mxu0 0
      %1974 = vmatmul.mubr.bf16.gmra.mrb[0].mxu0 %v1844
      %v1975 = vpop.f32.mrb[0].mxu0
      %v1976 = vadd.f32 0.0, %v1975
      %v1977 = vpop.f32.mrb[0].mxu0
      %v1978 = vpop.f32.mrb[0].mxu0
      %v1979 = vadd.f32 0.0, %v1978
      %v1980 = vpop.f32.mrb[0].mxu0
      %1981 = vmatprep.mubr.bf16.mxu0 0
      %1982 = vmatmul.mubr.bf16.gmra.mrb[0].mxu0 %v1847
      %v1983 = vpop.f32.mrb[0].mxu0
      %v1984 = vadd.f32 0.0, %v1983
      %v1985 = vpop.f32.mrb[0].mxu0
      %v1986 = vpop.f32.mrb[0].mxu0
      %v1987 = vadd.f32 0.0, %v1986
      %v1988 = vpop.f32.mrb[0].mxu0
      %1989 = vmatprep.mubr.bf16.mxu0 0
      %1990 = vmatmul.mubr.bf16.gmra.mrb[0].mxu0 %v1850
      %v1991 = vpop.f32.mrb[0].mxu0
      %v1992 = vadd.f32 0.0, %v1991
      %v1993 = vpop.f32.mrb[0].mxu0
      %v1994 = vpop.f32.mrb[0].mxu0
      %v1995 = vadd.f32 0.0, %v1994
      %v1996 = vpop.f32.mrb[0].mxu0
      %1997 = vmatprep.mubr.bf16.mxu0 0
      %1998 = vmatmul.mubr.bf16.gmra.mrb[0].mxu0 %v1853
      %v1999 = vpop.f32.mrb[0].mxu0
      %v2000 = vadd.f32 0.0, %v1999
      %v2001 = vpop.f32.mrb[0].mxu0
      %v2002 = vpop.f32.mrb[0].mxu0
      %v2003 = vadd.f32 0.0, %v2002
      %v2004 = vpop.f32.mrb[0].mxu0
      %2005 = vmatprep.mubr.bf16.mxu0 0
      %2006 = vmatmul.mubr.bf16.gmra.mrb[0].mxu0 %v1856
      %v2007 = vpop.f32.mrb[0].mxu0
      %v2008 = vadd.f32 0.0, %v2007
      %v2009 = vpop.f32.mrb[0].mxu0
      %v2010 = vpop.f32.mrb[0].mxu0
      %v2011 = vadd.f32 0.0, %v2010
      %v2012 = vpop.f32.mrb[0].mxu0
      %2013 = vmatprep.mubr.bf16.mxu0 0
      %2014 = vmatmul.mubr.bf16.gmra.mrb[0].mxu0 %v1859
      %v2015 = vpop.f32.mrb[0].mxu0
      %v2016 = vadd.f32 0.0, %v2015
      %v2017 = vpop.f32.mrb[0].mxu0
      %v2018 = vpop.f32.mrb[0].mxu0
      %v2019 = vadd.f32 0.0, %v2018
      %v2020 = vpop.f32.mrb[0].mxu0
      %2021 = vdwg.mxu0
      %v2022 = vadd.f32 %v1651, %v1896
      %v2023 = vadd.f32 %v1652, %v1899
      %v2024 = vadd.f32 %v1653, %v1904
      %v2025 = vadd.f32 %v1654, %v1907
      %v2026 = vadd.f32 %v1655, %v1912
      %v2027 = vadd.f32 %v1656, %v1915
      %v2028 = vadd.f32 %v1657, %v1920
      %v2029 = vadd.f32 %v1658, %v1923
      %v2030 = vadd.f32 %v1659, %v1928
      %v2031 = vadd.f32 %v1660, %v1931
      %v2032 = vadd.f32 %v1661, %v1936
      %v2033 = vadd.f32 %v1662, %v1939
      %v2034 = vadd.f32 %v1663, %v1944
      %v2035 = vadd.f32 %v1664, %v1947
      %v2036 = vadd.f32 %v1665, %v1952
      %v2037 = vadd.f32 %v1666, %v1955
      %v2038 = vadd.f32 %v1667, %v1960
      %v2039 = vadd.f32 %v1668, %v1963
      %v2040 = vadd.f32 %v1669, %v1968
      %v2041 = vadd.f32 %v1670, %v1971
      %v2042 = vadd.f32 %v1671, %v1976
      %v2043 = vadd.f32 %v1672, %v1979
      %v2044 = vadd.f32 %v1673, %v1984
      %v2045 = vadd.f32 %v1674, %v1987
      %v2046 = vadd.f32 %v1675, %v1992
      %v2047 = vadd.f32 %v1676, %v1995
      %v2048 = vadd.f32 %v1677, %v2000
      %v2049 = vadd.f32 %v1678, %v2003
      %v2050 = vadd.f32 %v1679, %v2008
      %v2051 = vadd.f32 %v1680, %v2011
      %v2052 = vadd.f32 %v1681, %v2016
      %v2053 = vadd.f32 %v1682, %v2019
      %v2054 = vld [vmem:[%s1683] sm:$0xf]
      %v2055 = vld [vmem:[%s1683 + $0x4] sm:$0xf]
      %v2056 = vld [vmem:[%s1683 + $0x8] sm:$0x1]
      %v2057 = vld [vmem:[%s1683 + $0xc] sm:$0xf]
      %v2058 = vld [vmem:[%s1683 + $0x10] sm:$0xf]
      %v2059 = vld [vmem:[%s1683 + $0x14] sm:$0x1]
      %v2060 = vld [vmem:[%s1683 + $0x18] sm:$0xf]
      %v2061 = vld [vmem:[%s1683 + $0x1c] sm:$0xf]
      %v2062 = vld [vmem:[%s1683 + $0x20] sm:$0x1]
      %v2063 = vld [vmem:[%s1683 + $0x24] sm:$0xf]
      %v2064 = vld [vmem:[%s1683 + $0x28] sm:$0xf]
      %v2065 = vld [vmem:[%s1683 + $0x2c] sm:$0x1]
      %v2066 = vld [vmem:[%s1683 + $0x30] sm:$0xf]
      %v2067 = vld [vmem:[%s1683 + $0x34] sm:$0xf]
      %v2068 = vld [vmem:[%s1683 + $0x38] sm:$0x1]
      %v2069 = vld [vmem:[%s1683 + $0x3c] sm:$0xf]
      %v2070 = vld [vmem:[%s1683 + $0x40] sm:$0xf]
      %v2071 = vld [vmem:[%s1683 + $0x44] sm:$0x1]
      %v2072 = vld [vmem:[%s1683 + $0x48] sm:$0xf]
      %v2073 = vld [vmem:[%s1683 + $0x4c] sm:$0xf]
      %v2074 = vld [vmem:[%s1683 + $0x50] sm:$0x1]
      %v2075 = vld [vmem:[%s1683 + $0x54] sm:$0xf]
      %v2076 = vld [vmem:[%s1683 + $0x58] sm:$0xf]
      %v2077 = vld [vmem:[%s1683 + $0x5c] sm:$0x1]
      %v2078 = vld [vmem:[%s1683 + $0x60] sm:$0xf]
      %v2079 = vld [vmem:[%s1683 + $0x64] sm:$0xf]
      %v2080 = vld [vmem:[%s1683 + $0x68] sm:$0x1]
      %v2081 = vld [vmem:[%s1683 + $0x6c] sm:$0xf]
      %v2082 = vld [vmem:[%s1683 + $0x70] sm:$0xf]
      %v2083 = vld [vmem:[%s1683 + $0x74] sm:$0x1]
      %v2084 = vld [vmem:[%s1683 + $0x78] sm:$0xf]
      %v2085 = vld [vmem:[%s1683 + $0x7c] sm:$0xf]
      %v2086 = vld [vmem:[%s1683 + $0x80] sm:$0x1]
      %v2087 = vld [vmem:[%s1683 + $0x84] sm:$0xf]
      %v2088 = vld [vmem:[%s1683 + $0x88] sm:$0xf]
      %v2089 = vld [vmem:[%s1683 + $0x8c] sm:$0x1]
      %v2090 = vld [vmem:[%s1683 + $0x90] sm:$0xf]
      %v2091 = vld [vmem:[%s1683 + $0x94] sm:$0xf]
      %v2092 = vld [vmem:[%s1683 + $0x98] sm:$0x1]
      %v2093 = vld [vmem:[%s1683 + $0x9c] sm:$0xf]
      %v2094 = vld [vmem:[%s1683 + $0xa0] sm:$0xf]
      %v2095 = vld [vmem:[%s1683 + $0xa4] sm:$0x1]
      %v2096 = vld [vmem:[%s1683 + $0xa8] sm:$0xf]
      %v2097 = vld [vmem:[%s1683 + $0xac] sm:$0xf]
      %v2098 = vld [vmem:[%s1683 + $0xb0] sm:$0x1]
      %v2099 = vld [vmem:[%s1683 + $0xb4] sm:$0xf]
      %v2100 = vld [vmem:[%s1683 + $0xb8] sm:$0xf]
      %v2101 = vld [vmem:[%s1683 + $0xbc] sm:$0x1]
      %v2103 = vshrl.u32 %v2054, 16
      %v2105 = vrot.slane %v2103, 4
      %v2106 = vshll.u32 %v2054, 16
      %v2108 = vrot.slane %v2106, 5
      %v2109 = vor.u32 %v2105, %v2108
      %v2110 = vrot.slane %v2109, 4
      %v2112 = vshll.u32 %v2055, 16
      %v2114 = vrot.slane %v2112, 5
      %v2115 = vsel %vm253, %v2110, %v2114
      %v2116 = vshrl.u32 %v2055, 16
      %v2118 = vrot.slane %v2116, 4
      %v2119 = vor.u32 %v2118, %v2114
      %v2120 = vrot.slane %v2119, 4
      %v2122 = vshll.u32 %v2056, 16
      %v2124 = vrot.slane %v2122, 5
      %v2125 = vsel %vm253, %v2120, %v2124
      %v2127 = vshrl.u32 %v2057, 16
      %v2129 = vrot.slane %v2127, 4
      %v2130 = vshll.u32 %v2057, 16
      %v2132 = vrot.slane %v2130, 5
      %v2133 = vor.u32 %v2129, %v2132
      %v2134 = vrot.slane %v2133, 4
      %v2136 = vshll.u32 %v2058, 16
      %v2138 = vrot.slane %v2136, 5
      %v2139 = vsel %vm253, %v2134, %v2138
      %v2140 = vshrl.u32 %v2058, 16
      %v2142 = vrot.slane %v2140, 4
      %v2143 = vor.u32 %v2142, %v2138
      %v2144 = vrot.slane %v2143, 4
      %v2146 = vshll.u32 %v2059, 16
      %v2148 = vrot.slane %v2146, 5
      %v2149 = vsel %vm253, %v2144, %v2148
      %v2151 = vshrl.u32 %v2060, 16
      %v2153 = vrot.slane %v2151, 4
      %v2154 = vshll.u32 %v2060, 16
      %v2156 = vrot.slane %v2154, 5
      %v2157 = vor.u32 %v2153, %v2156
      %v2158 = vrot.slane %v2157, 4
      %v2160 = vshll.u32 %v2061, 16
      %v2162 = vrot.slane %v2160, 5
      %v2163 = vsel %vm253, %v2158, %v2162
      %v2164 = vshrl.u32 %v2061, 16
      %v2166 = vrot.slane %v2164, 4
      %v2167 = vor.u32 %v2166, %v2162
      %v2168 = vrot.slane %v2167, 4
      %v2170 = vshll.u32 %v2062, 16
      %v2172 = vrot.slane %v2170, 5
      %v2173 = vsel %vm253, %v2168, %v2172
      %v2175 = vshrl.u32 %v2063, 16
      %v2177 = vrot.slane %v2175, 4
      %v2178 = vshll.u32 %v2063, 16
      %v2180 = vrot.slane %v2178, 5
      %v2181 = vor.u32 %v2177, %v2180
      %v2182 = vrot.slane %v2181, 4
      %v2184 = vshll.u32 %v2064, 16
      %v2186 = vrot.slane %v2184, 5
      %v2187 = vsel %vm253, %v2182, %v2186
      %v2188 = vshrl.u32 %v2064, 16
      %v2190 = vrot.slane %v2188, 4
      %v2191 = vor.u32 %v2190, %v2186
      %v2192 = vrot.slane %v2191, 4
      %v2194 = vshll.u32 %v2065, 16
      %v2196 = vrot.slane %v2194, 5
      %v2197 = vsel %vm253, %v2192, %v2196
      %v2199 = vshrl.u32 %v2066, 16
      %v2201 = vrot.slane %v2199, 4
      %v2202 = vshll.u32 %v2066, 16
      %v2204 = vrot.slane %v2202, 5
      %v2205 = vor.u32 %v2201, %v2204
      %v2206 = vrot.slane %v2205, 4
      %v2208 = vshll.u32 %v2067, 16
      %v2210 = vrot.slane %v2208, 5
      %v2211 = vsel %vm253, %v2206, %v2210
      %v2212 = vshrl.u32 %v2067, 16
      %v2214 = vrot.slane %v2212, 4
      %v2215 = vor.u32 %v2214, %v2210
      %v2216 = vrot.slane %v2215, 4
      %v2218 = vshll.u32 %v2068, 16
      %v2220 = vrot.slane %v2218, 5
      %v2221 = vsel %vm253, %v2216, %v2220
      %v2223 = vshrl.u32 %v2069, 16
      %v2225 = vrot.slane %v2223, 4
      %v2226 = vshll.u32 %v2069, 16
      %v2228 = vrot.slane %v2226, 5
      %v2229 = vor.u32 %v2225, %v2228
      %v2230 = vrot.slane %v2229, 4
      %v2232 = vshll.u32 %v2070, 16
      %v2234 = vrot.slane %v2232, 5
      %v2235 = vsel %vm253, %v2230, %v2234
      %v2236 = vshrl.u32 %v2070, 16
      %v2238 = vrot.slane %v2236, 4
      %v2239 = vor.u32 %v2238, %v2234
      %v2240 = vrot.slane %v2239, 4
      %v2242 = vshll.u32 %v2071, 16
      %v2244 = vrot.slane %v2242, 5
      %v2245 = vsel %vm253, %v2240, %v2244
      %v2247 = vshrl.u32 %v2072, 16
      %v2249 = vrot.slane %v2247, 4
      %v2250 = vshll.u32 %v2072, 16
      %v2252 = vrot.slane %v2250, 5
      %v2253 = vor.u32 %v2249, %v2252
      %v2254 = vrot.slane %v2253, 4
      %v2256 = vshll.u32 %v2073, 16
      %v2258 = vrot.slane %v2256, 5
      %v2259 = vsel %vm253, %v2254, %v2258
      %v2260 = vshrl.u32 %v2073, 16
      %v2262 = vrot.slane %v2260, 4
      %v2263 = vor.u32 %v2262, %v2258
      %v2264 = vrot.slane %v2263, 4
      %v2266 = vshll.u32 %v2074, 16
      %v2268 = vrot.slane %v2266, 5
      %v2269 = vsel %vm253, %v2264, %v2268
      %v2271 = vshrl.u32 %v2075, 16
      %v2273 = vrot.slane %v2271, 4
      %v2274 = vshll.u32 %v2075, 16
      %v2276 = vrot.slane %v2274, 5
      %v2277 = vor.u32 %v2273, %v2276
      %v2278 = vrot.slane %v2277, 4
      %v2280 = vshll.u32 %v2076, 16
      %v2282 = vrot.slane %v2280, 5
      %v2283 = vsel %vm253, %v2278, %v2282
      %v2284 = vshrl.u32 %v2076, 16
      %v2286 = vrot.slane %v2284, 4
      %v2287 = vor.u32 %v2286, %v2282
      %v2288 = vrot.slane %v2287, 4
      %v2290 = vshll.u32 %v2077, 16
      %v2292 = vrot.slane %v2290, 5
      %v2293 = vsel %vm253, %v2288, %v2292
      %v2295 = vshrl.u32 %v2078, 16
      %v2297 = vrot.slane %v2295, 4
      %v2298 = vshll.u32 %v2078, 16
      %v2300 = vrot.slane %v2298, 5
      %v2301 = vor.u32 %v2297, %v2300
      %v2302 = vrot.slane %v2301, 4
      %v2304 = vshll.u32 %v2079, 16
      %v2306 = vrot.slane %v2304, 5
      %v2307 = vsel %vm253, %v2302, %v2306
      %v2308 = vshrl.u32 %v2079, 16
      %v2310 = vrot.slane %v2308, 4
      %v2311 = vor.u32 %v2310, %v2306
      %v2312 = vrot.slane %v2311, 4
      %v2314 = vshll.u32 %v2080, 16
      %v2316 = vrot.slane %v2314, 5
      %v2317 = vsel %vm253, %v2312, %v2316
      %v2319 = vshrl.u32 %v2081, 16
      %v2321 = vrot.slane %v2319, 4
      %v2322 = vshll.u32 %v2081, 16
      %v2324 = vrot.slane %v2322, 5
      %v2325 = vor.u32 %v2321, %v2324
      %v2326 = vrot.slane %v2325, 4
      %v2328 = vshll.u32 %v2082, 16
      %v2330 = vrot.slane %v2328, 5
      %v2331 = vsel %vm253, %v2326, %v2330
      %v2332 = vshrl.u32 %v2082, 16
      %v2334 = vrot.slane %v2332, 4
      %v2335 = vor.u32 %v2334, %v2330
      %v2336 = vrot.slane %v2335, 4
      %v2338 = vshll.u32 %v2083, 16
      %v2340 = vrot.slane %v2338, 5
      %v2341 = vsel %vm253, %v2336, %v2340
      %v2343 = vshrl.u32 %v2084, 16
      %v2345 = vrot.slane %v2343, 4
      %v2346 = vshll.u32 %v2084, 16
      %v2348 = vrot.slane %v2346, 5
      %v2349 = vor.u32 %v2345, %v2348
      %v2350 = vrot.slane %v2349, 4
      %v2352 = vshll.u32 %v2085, 16
      %v2354 = vrot.slane %v2352, 5
      %v2355 = vsel %vm253, %v2350, %v2354
      %v2356 = vshrl.u32 %v2085, 16
      %v2358 = vrot.slane %v2356, 4
      %v2359 = vor.u32 %v2358, %v2354
      %v2360 = vrot.slane %v2359, 4
      %v2362 = vshll.u32 %v2086, 16
      %v2364 = vrot.slane %v2362, 5
      %v2365 = vsel %vm253, %v2360, %v2364
      %v2367 = vshrl.u32 %v2087, 16
      %v2369 = vrot.slane %v2367, 4
      %v2370 = vshll.u32 %v2087, 16
      %v2372 = vrot.slane %v2370, 5
      %v2373 = vor.u32 %v2369, %v2372
      %v2374 = vrot.slane %v2373, 4
      %v2376 = vshll.u32 %v2088, 16
      %v2378 = vrot.slane %v2376, 5
      %v2379 = vsel %vm253, %v2374, %v2378
      %v2380 = vshrl.u32 %v2088, 16
      %v2382 = vrot.slane %v2380, 4
      %v2383 = vor.u32 %v2382, %v2378
      %v2384 = vrot.slane %v2383, 4
      %v2386 = vshll.u32 %v2089, 16
      %v2388 = vrot.slane %v2386, 5
      %v2389 = vsel %vm253, %v2384, %v2388
      %v2391 = vshrl.u32 %v2090, 16
      %v2393 = vrot.slane %v2391, 4
      %v2394 = vshll.u32 %v2090, 16
      %v2396 = vrot.slane %v2394, 5
      %v2397 = vor.u32 %v2393, %v2396
      %v2398 = vrot.slane %v2397, 4
      %v2400 = vshll.u32 %v2091, 16
      %v2402 = vrot.slane %v2400, 5
      %v2403 = vsel %vm253, %v2398, %v2402
      %v2404 = vshrl.u32 %v2091, 16
      %v2406 = vrot.slane %v2404, 4
      %v2407 = vor.u32 %v2406, %v2402
      %v2408 = vrot.slane %v2407, 4
      %v2410 = vshll.u32 %v2092, 16
      %v2412 = vrot.slane %v2410, 5
      %v2413 = vsel %vm253, %v2408, %v2412
      %v2415 = vshrl.u32 %v2093, 16
      %v2417 = vrot.slane %v2415, 4
      %v2418 = vshll.u32 %v2093, 16
      %v2420 = vrot.slane %v2418, 5
      %v2421 = vor.u32 %v2417, %v2420
      %v2422 = vrot.slane %v2421, 4
      %v2424 = vshll.u32 %v2094, 16
      %v2426 = vrot.slane %v2424, 5
      %v2427 = vsel %vm253, %v2422, %v2426
      %v2428 = vshrl.u32 %v2094, 16
      %v2430 = vrot.slane %v2428, 4
      %v2431 = vor.u32 %v2430, %v2426
      %v2432 = vrot.slane %v2431, 4
      %v2434 = vshll.u32 %v2095, 16
      %v2436 = vrot.slane %v2434, 5
      %v2437 = vsel %vm253, %v2432, %v2436
      %v2439 = vshrl.u32 %v2096, 16
      %v2441 = vrot.slane %v2439, 4
      %v2442 = vshll.u32 %v2096, 16
      %v2444 = vrot.slane %v2442, 5
      %v2445 = vor.u32 %v2441, %v2444
      %v2446 = vrot.slane %v2445, 4
      %v2448 = vshll.u32 %v2097, 16
      %v2450 = vrot.slane %v2448, 5
      %v2451 = vsel %vm253, %v2446, %v2450
      %v2452 = vshrl.u32 %v2097, 16
      %v2454 = vrot.slane %v2452, 4
      %v2455 = vor.u32 %v2454, %v2450
      %v2456 = vrot.slane %v2455, 4
      %v2458 = vshll.u32 %v2098, 16
      %v2460 = vrot.slane %v2458, 5
      %v2461 = vsel %vm253, %v2456, %v2460
      %v2463 = vshrl.u32 %v2099, 16
      %v2465 = vrot.slane %v2463, 4
      %v2466 = vshll.u32 %v2099, 16
      %v2468 = vrot.slane %v2466, 5
      %v2469 = vor.u32 %v2465, %v2468
      %v2470 = vrot.slane %v2469, 4
      %v2472 = vshll.u32 %v2100, 16
      %v2474 = vrot.slane %v2472, 5
      %v2475 = vsel %vm253, %v2470, %v2474
      %v2476 = vshrl.u32 %v2100, 16
      %v2478 = vrot.slane %v2476, 4
      %v2479 = vor.u32 %v2478, %v2474
      %v2480 = vrot.slane %v2479, 4
      %v2482 = vshll.u32 %v2101, 16
      %v2484 = vrot.slane %v2482, 5
      %v2485 = vsel %vm253, %v2480, %v2484
      %s2486 = scalar_lea.vmem %s1, 64
      %v2487 = vld [vmem:[%s2486] sm:$0xf]
      %v2488 = vld [vmem:[%s2486 + $0x4] sm:$0xf]
      %v2489 = vld [vmem:[%s2486 + $0x8] sm:$0xf]
      %v2490 = vld [vmem:[%s2486 + $0xc] sm:$0xf]
      %v2491 = vunpack.c.l.b16 %v2115
      %v2492 = vunpack.c.l.b16 %v2125
      %v2493 = vunpack.c.l.b16 %v2139
      %v2494 = vunpack.c.l.b16 %v2149
      %v2495 = vunpack.c.l.b16 %v2163
      %v2496 = vunpack.c.l.b16 %v2173
      %v2497 = vunpack.c.l.b16 %v2187
      %v2498 = vunpack.c.l.b16 %v2197
      %v2499 = vunpack.c.l.b16 %v2211
      %v2500 = vunpack.c.l.b16 %v2221
      %v2501 = vunpack.c.l.b16 %v2235
      %v2502 = vunpack.c.l.b16 %v2245
      %v2503 = vunpack.c.l.b16 %v2259
      %v2504 = vunpack.c.l.b16 %v2269
      %v2505 = vunpack.c.l.b16 %v2283
      %v2506 = vunpack.c.l.b16 %v2293
      %v2507 = vunpack.c.l.b16 %v2307
      %v2508 = vunpack.c.l.b16 %v2317
      %v2509 = vunpack.c.l.b16 %v2331
      %v2510 = vunpack.c.l.b16 %v2341
      %v2511 = vunpack.c.l.b16 %v2355
      %v2512 = vunpack.c.l.b16 %v2365
      %v2513 = vunpack.c.l.b16 %v2379
      %v2514 = vunpack.c.l.b16 %v2389
      %v2515 = vunpack.c.l.b16 %v2403
      %v2516 = vunpack.c.l.b16 %v2413
      %v2517 = vunpack.c.l.b16 %v2427
      %v2518 = vunpack.c.l.b16 %v2437
      %v2519 = vunpack.c.l.b16 %v2451
      %v2520 = vunpack.c.l.b16 %v2461
      %v2521 = vunpack.c.l.b16 %v2475
      %v2522 = vunpack.c.l.b16 %v2485
      %v2523 = vpack.c.b16 %v2492, %v2491
      %v2524 = vpack.c.b16 %v2494, %v2493
      %v2525 = vpack.c.b16 %v2496, %v2495
      %v2526 = vpack.c.b16 %v2498, %v2497
      %v2527 = vpack.c.b16 %v2500, %v2499
      %v2528 = vpack.c.b16 %v2502, %v2501
      %v2529 = vpack.c.b16 %v2504, %v2503
      %v2530 = vpack.c.b16 %v2506, %v2505
      %v2531 = vpack.c.b16 %v2508, %v2507
      %v2532 = vpack.c.b16 %v2510, %v2509
      %v2533 = vpack.c.b16 %v2512, %v2511
      %v2534 = vpack.c.b16 %v2514, %v2513
      %v2535 = vpack.c.b16 %v2516, %v2515
      %v2536 = vpack.c.b16 %v2518, %v2517
      %v2537 = vpack.c.b16 %v2520, %v2519
      %v2538 = vpack.c.b16 %v2522, %v2521
      %v2543 = vunpack.c.l.b16 %v2487
      %v2544 = vunpack.c.l.b16 %v2488
      %v2545 = vunpack.c.l.b16 %v2489
      %v2546 = vunpack.c.l.b16 %v2490
      %v2547 = vpack.c.b16 %v2544, %v2543
      %v2548 = vpack.c.b16 %v2546, %v2545
      %v2552 = vsel %vm703, %v2523, 0
      %v2555 = vsel %vm703, %v2524, 0
      %v2558 = vsel %vm703, %v2525, 0
      %v2561 = vsel %vm703, %v2526, 0
      %v2564 = vsel %vm703, %v2527, 0
      %v2567 = vsel %vm703, %v2528, 0
      %v2570 = vsel %vm703, %v2529, 0
      %v2573 = vsel %vm703, %v2530, 0
      %v2576 = vsel %vm703, %v2531, 0
      %v2579 = vsel %vm703, %v2532, 0
      %v2582 = vsel %vm703, %v2533, 0
      %v2585 = vsel %vm703, %v2534, 0
      %v2588 = vsel %vm703, %v2535, 0
      %v2591 = vsel %vm703, %v2536, 0
      %v2594 = vsel %vm703, %v2537, 0
      %v2597 = vsel %vm703, %v2538, 0
      %2599 = vmatprep.subr.bf16.mxu0 0
      %2600 = vmatpush1.bf16.msra.mxu0 %v2547
      %2601 = vmatprep.subr.bf16.mxu0 0
      %2602 = vmatpush1.bf16.msra.mxu0 %v2548
      %2603 = vmatprep.subr.bf16.mxu0 0
      %2604 = vmatpush1.bf16.msra.mxu0 0
      %2605 = vmatprep.subr.bf16.mxu0 0
      %2606 = vmatpush1.bf16.msra.mxu0 0
      %2607 = vmatprep.subr.bf16.mxu0 0
      %2608 = vmatpush1.bf16.msra.mxu0 0
      %2609 = vmatprep.subr.bf16.mxu0 0
      %2610 = vmatpush1.bf16.msra.mxu0 0
      %2611 = vmatprep.subr.bf16.mxu0 0
      %2612 = vmatpush1.bf16.msra.mxu0 0
      %2613 = vmatprep.subr.bf16.mxu0 0
      %2614 = vmatpush1.bf16.msra.mxu0 0
      %2615 = vmatprep.subr.bf16.mxu0 0
      %2616 = vmatpush1.bf16.msra.mxu0 0
      %2617 = vmatprep.subr.bf16.mxu0 0
      %2618 = vmatpush1.bf16.msra.mxu0 0
      %2619 = vmatprep.subr.bf16.mxu0 0
      %2620 = vmatpush1.bf16.msra.mxu0 0
      %2621 = vmatprep.subr.bf16.mxu0 0
      %2622 = vmatpush1.bf16.msra.mxu0 0
      %2623 = vmatprep.subr.bf16.mxu0 0
      %2624 = vmatpush1.bf16.msra.mxu0 0
      %2625 = vmatprep.subr.bf16.mxu0 0
      %2626 = vmatpush1.bf16.msra.mxu0 0
      %2627 = vmatprep.subr.bf16.mxu0 0
      %2628 = vmatpush1.bf16.msra.mxu0 0
      %2629 = vmatprep.subr.bf16.mxu0 0
      %2630 = vmatpush1.bf16.msra.mxu0 0
      %2631 = vmatprep.mubr.bf16.mxu0 0
      %2632 = vmatmul.mubr.bf16.gmra.mrb[0].mxu0 %v2552
      %v2633 = vpop.f32.mrb[0].mxu0
      %v2634 = vadd.f32 0.0, %v2633
      %v2635 = vpop.f32.mrb[0].mxu0
      %v2636 = vpop.f32.mrb[0].mxu0
      %v2637 = vadd.f32 0.0, %v2636
      %v2638 = vpop.f32.mrb[0].mxu0
      %2639 = vmatprep.mubr.bf16.mxu0 0
      %2640 = vmatmul.mubr.bf16.gmra.mrb[0].mxu0 %v2555
      %v2641 = vpop.f32.mrb[0].mxu0
      %v2642 = vadd.f32 0.0, %v2641
      %v2643 = vpop.f32.mrb[0].mxu0
      %v2644 = vpop.f32.mrb[0].mxu0
      %v2645 = vadd.f32 0.0, %v2644
      %v2646 = vpop.f32.mrb[0].mxu0
      %2647 = vmatprep.mubr.bf16.mxu0 0
      %2648 = vmatmul.mubr.bf16.gmra.mrb[0].mxu0 %v2558
      %v2649 = vpop.f32.mrb[0].mxu0
      %v2650 = vadd.f32 0.0, %v2649
      %v2651 = vpop.f32.mrb[0].mxu0
      %v2652 = vpop.f32.mrb[0].mxu0
      %v2653 = vadd.f32 0.0, %v2652
      %v2654 = vpop.f32.mrb[0].mxu0
      %2655 = vmatprep.mubr.bf16.mxu0 0
      %2656 = vmatmul.mubr.bf16.gmra.mrb[0].mxu0 %v2561
      %v2657 = vpop.f32.mrb[0].mxu0
      %v2658 = vadd.f32 0.0, %v2657
      %v2659 = vpop.f32.mrb[0].mxu0
      %v2660 = vpop.f32.mrb[0].mxu0
      %v2661 = vadd.f32 0.0, %v2660
      %v2662 = vpop.f32.mrb[0].mxu0
      %2663 = vmatprep.mubr.bf16.mxu0 0
      %2664 = vmatmul.mubr.bf16.gmra.mrb[0].mxu0 %v2564
      %v2665 = vpop.f32.mrb[0].mxu0
      %v2666 = vadd.f32 0.0, %v2665
      %v2667 = vpop.f32.mrb[0].mxu0
      %v2668 = vpop.f32.mrb[0].mxu0
      %v2669 = vadd.f32 0.0, %v2668
      %v2670 = vpop.f32.mrb[0].mxu0
      %2671 = vmatprep.mubr.bf16.mxu0 0
      %2672 = vmatmul.mubr.bf16.gmra.mrb[0].mxu0 %v2567
      %v2673 = vpop.f32.mrb[0].mxu0
      %v2674 = vadd.f32 0.0, %v2673
      %v2675 = vpop.f32.mrb[0].mxu0
      %v2676 = vpop.f32.mrb[0].mxu0
      %v2677 = vadd.f32 0.0, %v2676
      %v2678 = vpop.f32.mrb[0].mxu0
      %2679 = vmatprep.mubr.bf16.mxu0 0
      %2680 = vmatmul.mubr.bf16.gmra.mrb[0].mxu0 %v2570
      %v2681 = vpop.f32.mrb[0].mxu0
      %v2682 = vadd.f32 0.0, %v2681
      %v2683 = vpop.f32.mrb[0].mxu0
      %v2684 = vpop.f32.mrb[0].mxu0
      %v2685 = vadd.f32 0.0, %v2684
      %v2686 = vpop.f32.mrb[0].mxu0
      %2687 = vmatprep.mubr.bf16.mxu0 0
      %2688 = vmatmul.mubr.bf16.gmra.mrb[0].mxu0 %v2573
      %v2689 = vpop.f32.mrb[0].mxu0
      %v2690 = vadd.f32 0.0, %v2689
      %v2691 = vpop.f32.mrb[0].mxu0
      %v2692 = vpop.f32.mrb[0].mxu0
      %v2693 = vadd.f32 0.0, %v2692
      %v2694 = vpop.f32.mrb[0].mxu0
      %2695 = vmatprep.mubr.bf16.mxu0 0
      %2696 = vmatmul.mubr.bf16.gmra.mrb[0].mxu0 %v2576
      %v2697 = vpop.f32.mrb[0].mxu0
      %v2698 = vadd.f32 0.0, %v2697
      %v2699 = vpop.f32.mrb[0].mxu0
      %v2700 = vpop.f32.mrb[0].mxu0
      %v2701 = vadd.f32 0.0, %v2700
      %v2702 = vpop.f32.mrb[0].mxu0
      %2703 = vmatprep.mubr.bf16.mxu0 0
      %2704 = vmatmul.mubr.bf16.gmra.mrb[0].mxu0 %v2579
      %v2705 = vpop.f32.mrb[0].mxu0
      %v2706 = vadd.f32 0.0, %v2705
      %v2707 = vpop.f32.mrb[0].mxu0
      %v2708 = vpop.f32.mrb[0].mxu0
      %v2709 = vadd.f32 0.0, %v2708
      %v2710 = vpop.f32.mrb[0].mxu0
      %2711 = vmatprep.mubr.bf16.mxu0 0
      %2712 = vmatmul.mubr.bf16.gmra.mrb[0].mxu0 %v2582
      %v2713 = vpop.f32.mrb[0].mxu0
      %v2714 = vadd.f32 0.0, %v2713
      %v2715 = vpop.f32.mrb[0].mxu0
      %v2716 = vpop.f32.mrb[0].mxu0
      %v2717 = vadd.f32 0.0, %v2716
      %v2718 = vpop.f32.mrb[0].mxu0
      %2719 = vmatprep.mubr.bf16.mxu0 0
      %2720 = vmatmul.mubr.bf16.gmra.mrb[0].mxu0 %v2585
      %v2721 = vpop.f32.mrb[0].mxu0
      %v2722 = vadd.f32 0.0, %v2721
      %v2723 = vpop.f32.mrb[0].mxu0
      %v2724 = vpop.f32.mrb[0].mxu0
      %v2725 = vadd.f32 0.0, %v2724
      %v2726 = vpop.f32.mrb[0].mxu0
      %2727 = vmatprep.mubr.bf16.mxu0 0
      %2728 = vmatmul.mubr.bf16.gmra.mrb[0].mxu0 %v2588
      %v2729 = vpop.f32.mrb[0].mxu0
      %v2730 = vadd.f32 0.0, %v2729
      %v2731 = vpop.f32.mrb[0].mxu0
      %v2732 = vpop.f32.mrb[0].mxu0
      %v2733 = vadd.f32 0.0, %v2732
      %v2734 = vpop.f32.mrb[0].mxu0
      %2735 = vmatprep.mubr.bf16.mxu0 0
      %2736 = vmatmul.mubr.bf16.gmra.mrb[0].mxu0 %v2591
      %v2737 = vpop.f32.mrb[0].mxu0
      %v2738 = vadd.f32 0.0, %v2737
      %v2739 = vpop.f32.mrb[0].mxu0
      %v2740 = vpop.f32.mrb[0].mxu0
      %v2741 = vadd.f32 0.0, %v2740
      %v2742 = vpop.f32.mrb[0].mxu0
      %2743 = vmatprep.mubr.bf16.mxu0 0
      %2744 = vmatmul.mubr.bf16.gmra.mrb[0].mxu0 %v2594
      %v2745 = vpop.f32.mrb[0].mxu0
      %v2746 = vadd.f32 0.0, %v2745
      %v2747 = vpop.f32.mrb[0].mxu0
      %v2748 = vpop.f32.mrb[0].mxu0
      %v2749 = vadd.f32 0.0, %v2748
      %v2750 = vpop.f32.mrb[0].mxu0
      %2751 = vmatprep.mubr.bf16.mxu0 0
      %2752 = vmatmul.mubr.bf16.gmra.mrb[0].mxu0 %v2597
      %v2753 = vpop.f32.mrb[0].mxu0
      %v2754 = vadd.f32 0.0, %v2753
      %v2755 = vpop.f32.mrb[0].mxu0
      %v2756 = vpop.f32.mrb[0].mxu0
      %v2757 = vadd.f32 0.0, %v2756
      %v2758 = vpop.f32.mrb[0].mxu0
      %2759 = vdwg.mxu0
      %v2760 = vadd.f32 %v2022, %v2634
      %v2761 = vadd.f32 %v2023, %v2637
      %v2762 = vadd.f32 %v2024, %v2642
      %v2763 = vadd.f32 %v2025, %v2645
      %v2764 = vadd.f32 %v2026, %v2650
      %v2765 = vadd.f32 %v2027, %v2653
      %v2766 = vadd.f32 %v2028, %v2658
      %v2767 = vadd.f32 %v2029, %v2661
      %v2768 = vadd.f32 %v2030, %v2666
      %v2769 = vadd.f32 %v2031, %v2669
      %v2770 = vadd.f32 %v2032, %v2674
      %v2771 = vadd.f32 %v2033, %v2677
      %v2772 = vadd.f32 %v2034, %v2682
      %v2773 = vadd.f32 %v2035, %v2685
      %v2774 = vadd.f32 %v2036, %v2690
      %v2775 = vadd.f32 %v2037, %v2693
      %v2776 = vadd.f32 %v2038, %v2698
      %v2777 = vadd.f32 %v2039, %v2701
      %v2778 = vadd.f32 %v2040, %v2706
      %v2779 = vadd.f32 %v2041, %v2709
      %v2780 = vadd.f32 %v2042, %v2714
      %v2781 = vadd.f32 %v2043, %v2717
      %v2782 = vadd.f32 %v2044, %v2722
      %v2783 = vadd.f32 %v2045, %v2725
      %v2784 = vadd.f32 %v2046, %v2730
      %v2785 = vadd.f32 %v2047, %v2733
      %v2786 = vadd.f32 %v2048, %v2738
      %v2787 = vadd.f32 %v2049, %v2741
      %v2788 = vadd.f32 %v2050, %v2746
      %v2789 = vadd.f32 %v2051, %v2749
      %v2790 = vadd.f32 %v2052, %v2754
      %v2791 = vadd.f32 %v2053, %v2757
      %v2792 = vld [vmem:[%s1683] sm:$0xe]
      %v2793 = vld [vmem:[%s1683 + $0xc] sm:$0xe]
      %v2794 = vld [vmem:[%s1683 + $0x18] sm:$0xe]
      %v2795 = vld [vmem:[%s1683 + $0x24] sm:$0xe]
      %v2796 = vld [vmem:[%s1683 + $0x30] sm:$0xe]
      %v2797 = vld [vmem:[%s1683 + $0x3c] sm:$0xe]
      %v2798 = vld [vmem:[%s1683 + $0x48] sm:$0xe]
      %v2799 = vld [vmem:[%s1683 + $0x54] sm:$0xe]
      %v2800 = vld [vmem:[%s1683 + $0x60] sm:$0xe]
      %v2801 = vld [vmem:[%s1683 + $0x6c] sm:$0xe]
      %v2802 = vld [vmem:[%s1683 + $0x78] sm:$0xe]
      %v2803 = vld [vmem:[%s1683 + $0x84] sm:$0xe]
      %v2804 = vld [vmem:[%s1683 + $0x90] sm:$0xe]
      %v2805 = vld [vmem:[%s1683 + $0x9c] sm:$0xe]
      %v2806 = vld [vmem:[%s1683 + $0xa8] sm:$0xe]
      %v2807 = vld [vmem:[%s1683 + $0xb4] sm:$0xe]
      %v2856 = vrot.slane %v2792, 5
      %v2857 = vrot.slane %v2856, 4
      %v2858 = vrot.slane %v2055, 5
      %v2859 = vsel %vm1264, %v2857, %v2858
      %v2860 = vrot.slane %v2858, 4
      %v2861 = vrot.slane %v2056, 5
      %v2862 = vsel %vm1264, %v2860, %v2861
      %v2863 = vrot.slane %v2793, 5
      %v2864 = vrot.slane %v2863, 4
      %v2865 = vrot.slane %v2058, 5
      %v2866 = vsel %vm1264, %v2864, %v2865
      %v2867 = vrot.slane %v2865, 4
      %v2868 = vrot.slane %v2059, 5
      %v2869 = vsel %vm1264, %v2867, %v2868
      %v2870 = vrot.slane %v2794, 5
      %v2871 = vrot.slane %v2870, 4
      %v2872 = vrot.slane %v2061, 5
      %v2873 = vsel %vm1264, %v2871, %v2872
      %v2874 = vrot.slane %v2872, 4
      %v2875 = vrot.slane %v2062, 5
      %v2876 = vsel %vm1264, %v2874, %v2875
      %v2877 = vrot.slane %v2795, 5
      %v2878 = vrot.slane %v2877, 4
      %v2879 = vrot.slane %v2064, 5
      %v2880 = vsel %vm1264, %v2878, %v2879
      %v2881 = vrot.slane %v2879, 4
      %v2882 = vrot.slane %v2065, 5
      %v2883 = vsel %vm1264, %v2881, %v2882
      %v2884 = vrot.slane %v2796, 5
      %v2885 = vrot.slane %v2884, 4
      %v2886 = vrot.slane %v2067, 5
      %v2887 = vsel %vm1264, %v2885, %v2886
      %v2888 = vrot.slane %v2886, 4
      %v2889 = vrot.slane %v2068, 5
      %v2890 = vsel %vm1264, %v2888, %v2889
      %v2891 = vrot.slane %v2797, 5
      %v2892 = vrot.slane %v2891, 4
      %v2893 = vrot.slane %v2070, 5
      %v2894 = vsel %vm1264, %v2892, %v2893
      %v2895 = vrot.slane %v2893, 4
      %v2896 = vrot.slane %v2071, 5
      %v2897 = vsel %vm1264, %v2895, %v2896
      %v2898 = vrot.slane %v2798, 5
      %v2899 = vrot.slane %v2898, 4
      %v2900 = vrot.slane %v2073, 5
      %v2901 = vsel %vm1264, %v2899, %v2900
      %v2902 = vrot.slane %v2900, 4
      %v2903 = vrot.slane %v2074, 5
      %v2904 = vsel %vm1264, %v2902, %v2903
      %v2905 = vrot.slane %v2799, 5
      %v2906 = vrot.slane %v2905, 4
      %v2907 = vrot.slane %v2076, 5
      %v2908 = vsel %vm1264, %v2906, %v2907
      %v2909 = vrot.slane %v2907, 4
      %v2910 = vrot.slane %v2077, 5
      %v2911 = vsel %vm1264, %v2909, %v2910
      %v2912 = vrot.slane %v2800, 5
      %v2913 = vrot.slane %v2912, 4
      %v2914 = vrot.slane %v2079, 5
      %v2915 = vsel %vm1264, %v2913, %v2914
      %v2916 = vrot.slane %v2914, 4
      %v2917 = vrot.slane %v2080, 5
      %v2918 = vsel %vm1264, %v2916, %v2917
      %v2919 = vrot.slane %v2801, 5
      %v2920 = vrot.slane %v2919, 4
      %v2921 = vrot.slane %v2082, 5
      %v2922 = vsel %vm1264, %v2920, %v2921
      %v2923 = vrot.slane %v2921, 4
      %v2924 = vrot.slane %v2083, 5
      %v2925 = vsel %vm1264, %v2923, %v2924
      %v2926 = vrot.slane %v2802, 5
      %v2927 = vrot.slane %v2926, 4
      %v2928 = vrot.slane %v2085, 5
      %v2929 = vsel %vm1264, %v2927, %v2928
      %v2930 = vrot.slane %v2928, 4
      %v2931 = vrot.slane %v2086, 5
      %v2932 = vsel %vm1264, %v2930, %v2931
      %v2933 = vrot.slane %v2803, 5
      %v2934 = vrot.slane %v2933, 4
      %v2935 = vrot.slane %v2088, 5
      %v2936 = vsel %vm1264, %v2934, %v2935
      %v2937 = vrot.slane %v2935, 4
      %v2938 = vrot.slane %v2089, 5
      %v2939 = vsel %vm1264, %v2937, %v2938
      %v2940 = vrot.slane %v2804, 5
      %v2941 = vrot.slane %v2940, 4
      %v2942 = vrot.slane %v2091, 5
      %v2943 = vsel %vm1264, %v2941, %v2942
      %v2944 = vrot.slane %v2942, 4
      %v2945 = vrot.slane %v2092, 5
      %v2946 = vsel %vm1264, %v2944, %v2945
      %v2947 = vrot.slane %v2805, 5
      %v2948 = vrot.slane %v2947, 4
      %v2949 = vrot.slane %v2094, 5
      %v2950 = vsel %vm1264, %v2948, %v2949
      %v2951 = vrot.slane %v2949, 4
      %v2952 = vrot.slane %v2095, 5
      %v2953 = vsel %vm1264, %v2951, %v2952
      %v2954 = vrot.slane %v2806, 5
      %v2955 = vrot.slane %v2954, 4
      %v2956 = vrot.slane %v2097, 5
      %v2957 = vsel %vm1264, %v2955, %v2956
      %v2958 = vrot.slane %v2956, 4
      %v2959 = vrot.slane %v2098, 5
      %v2960 = vsel %vm1264, %v2958, %v2959
      %v2961 = vrot.slane %v2807, 5
      %v2962 = vrot.slane %v2961, 4
      %v2963 = vrot.slane %v2100, 5
      %v2964 = vsel %vm1264, %v2962, %v2963
      %v2965 = vrot.slane %v2963, 4
      %v2966 = vrot.slane %v2101, 5
      %v2967 = vsel %vm1264, %v2965, %v2966
      %s2968 = scalar_lea.vmem %s1, 80
      %v2969 = vld [vmem:[%s2968] sm:$0xf]
      %v2970 = vld [vmem:[%s2968 + $0x4] sm:$0xf]
      %v2971 = vld [vmem:[%s2968 + $0x8] sm:$0xf]
      %v2972 = vld [vmem:[%s2968 + $0xc] sm:$0xf]
      %v2973 = vunpack.c.l.b16 %v2859
      %v2974 = vunpack.c.l.b16 %v2862
      %v2975 = vunpack.c.l.b16 %v2866
      %v2976 = vunpack.c.l.b16 %v2869
      %v2977 = vunpack.c.l.b16 %v2873
      %v2978 = vunpack.c.l.b16 %v2876
      %v2979 = vunpack.c.l.b16 %v2880
      %v2980 = vunpack.c.l.b16 %v2883
      %v2981 = vunpack.c.l.b16 %v2887
      %v2982 = vunpack.c.l.b16 %v2890
      %v2983 = vunpack.c.l.b16 %v2894
      %v2984 = vunpack.c.l.b16 %v2897
      %v2985 = vunpack.c.l.b16 %v2901
      %v2986 = vunpack.c.l.b16 %v2904
      %v2987 = vunpack.c.l.b16 %v2908
      %v2988 = vunpack.c.l.b16 %v2911
      %v2989 = vunpack.c.l.b16 %v2915
      %v2990 = vunpack.c.l.b16 %v2918
      %v2991 = vunpack.c.l.b16 %v2922
      %v2992 = vunpack.c.l.b16 %v2925
      %v2993 = vunpack.c.l.b16 %v2929
      %v2994 = vunpack.c.l.b16 %v2932
      %v2995 = vunpack.c.l.b16 %v2936
      %v2996 = vunpack.c.l.b16 %v2939
      %v2997 = vunpack.c.l.b16 %v2943
      %v2998 = vunpack.c.l.b16 %v2946
      %v2999 = vunpack.c.l.b16 %v2950
      %v3000 = vunpack.c.l.b16 %v2953
      %v3001 = vunpack.c.l.b16 %v2957
      %v3002 = vunpack.c.l.b16 %v2960
      %v3003 = vunpack.c.l.b16 %v2964
      %v3004 = vunpack.c.l.b16 %v2967
      %v3005 = vpack.c.b16 %v2974, %v2973
      %v3006 = vpack.c.b16 %v2976, %v2975
      %v3007 = vpack.c.b16 %v2978, %v2977
      %v3008 = vpack.c.b16 %v2980, %v2979
      %v3009 = vpack.c.b16 %v2982, %v2981
      %v3010 = vpack.c.b16 %v2984, %v2983
      %v3011 = vpack.c.b16 %v2986, %v2985
      %v3012 = vpack.c.b16 %v2988, %v2987
      %v3013 = vpack.c.b16 %v2990, %v2989
      %v3014 = vpack.c.b16 %v2992, %v2991
      %v3015 = vpack.c.b16 %v2994, %v2993
      %v3016 = vpack.c.b16 %v2996, %v2995
      %v3017 = vpack.c.b16 %v2998, %v2997
      %v3018 = vpack.c.b16 %v3000, %v2999
      %v3019 = vpack.c.b16 %v3002, %v3001
      %v3020 = vpack.c.b16 %v3004, %v3003
      %v3025 = vunpack.c.l.b16 %v2969
      %v3026 = vunpack.c.l.b16 %v2970
      %v3027 = vunpack.c.l.b16 %v2971
      %v3028 = vunpack.c.l.b16 %v2972
      %v3029 = vpack.c.b16 %v3026, %v3025
      %v3030 = vpack.c.b16 %v3028, %v3027
      %v3034 = vsel %vm703, %v3005, 0
      %v3037 = vsel %vm703, %v3006, 0
      %v3040 = vsel %vm703, %v3007, 0
      %v3043 = vsel %vm703, %v3008, 0
      %v3046 = vsel %vm703, %v3009, 0
      %v3049 = vsel %vm703, %v3010, 0
      %v3052 = vsel %vm703, %v3011, 0
      %v3055 = vsel %vm703, %v3012, 0
      %v3058 = vsel %vm703, %v3013, 0
      %v3061 = vsel %vm703, %v3014, 0
      %v3064 = vsel %vm703, %v3015, 0
      %v3067 = vsel %vm703, %v3016, 0
      %v3070 = vsel %vm703, %v3017, 0
      %v3073 = vsel %vm703, %v3018, 0
      %v3076 = vsel %vm703, %v3019, 0
      %v3079 = vsel %vm703, %v3020, 0
      %3081 = vmatprep.subr.bf16.mxu0 0
      %3082 = vmatpush1.bf16.msra.mxu0 %v3029
      %3083 = vmatprep.subr.bf16.mxu0 0
      %3084 = vmatpush1.bf16.msra.mxu0 %v3030
      %3085 = vmatprep.subr.bf16.mxu0 0
      %3086 = vmatpush1.bf16.msra.mxu0 0
      %3087 = vmatprep.subr.bf16.mxu0 0
      %3088 = vmatpush1.bf16.msra.mxu0 0
      %3089 = vmatprep.subr.bf16.mxu0 0
      %3090 = vmatpush1.bf16.msra.mxu0 0
      %3091 = vmatprep.subr.bf16.mxu0 0
      %3092 = vmatpush1.bf16.msra.mxu0 0
      %3093 = vmatprep.subr.bf16.mxu0 0
      %3094 = vmatpush1.bf16.msra.mxu0 0
      %3095 = vmatprep.subr.bf16.mxu0 0
      %3096 = vmatpush1.bf16.msra.mxu0 0
      %3097 = vmatprep.subr.bf16.mxu0 0
      %3098 = vmatpush1.bf16.msra.mxu0 0
      %3099 = vmatprep.subr.bf16.mxu0 0
      %3100 = vmatpush1.bf16.msra.mxu0 0
      %3101 = vmatprep.subr.bf16.mxu0 0
      %3102 = vmatpush1.bf16.msra.mxu0 0
      %3103 = vmatprep.subr.bf16.mxu0 0
      %3104 = vmatpush1.bf16.msra.mxu0 0
      %3105 = vmatprep.subr.bf16.mxu0 0
      %3106 = vmatpush1.bf16.msra.mxu0 0
      %3107 = vmatprep.subr.bf16.mxu0 0
      %3108 = vmatpush1.bf16.msra.mxu0 0
      %3109 = vmatprep.subr.bf16.mxu0 0
      %3110 = vmatpush1.bf16.msra.mxu0 0
      %3111 = vmatprep.subr.bf16.mxu0 0
      %3112 = vmatpush1.bf16.msra.mxu0 0
      %3113 = vmatprep.mubr.bf16.mxu0 0
      %3114 = vmatmul.mubr.bf16.gmra.mrb[0].mxu0 %v3034
      %v3115 = vpop.f32.mrb[0].mxu0
      %v3116 = vadd.f32 0.0, %v3115
      %v3117 = vpop.f32.mrb[0].mxu0
      %v3118 = vpop.f32.mrb[0].mxu0
      %v3119 = vadd.f32 0.0, %v3118
      %v3120 = vpop.f32.mrb[0].mxu0
      %3121 = vmatprep.mubr.bf16.mxu0 0
      %3122 = vmatmul.mubr.bf16.gmra.mrb[0].mxu0 %v3037
      %v3123 = vpop.f32.mrb[0].mxu0
      %v3124 = vadd.f32 0.0, %v3123
      %v3125 = vpop.f32.mrb[0].mxu0
      %v3126 = vpop.f32.mrb[0].mxu0
      %v3127 = vadd.f32 0.0, %v3126
      %v3128 = vpop.f32.mrb[0].mxu0
      %3129 = vmatprep.mubr.bf16.mxu0 0
      %3130 = vmatmul.mubr.bf16.gmra.mrb[0].mxu0 %v3040
      %v3131 = vpop.f32.mrb[0].mxu0
      %v3132 = vadd.f32 0.0, %v3131
      %v3133 = vpop.f32.mrb[0].mxu0
      %v3134 = vpop.f32.mrb[0].mxu0
      %v3135 = vadd.f32 0.0, %v3134
      %v3136 = vpop.f32.mrb[0].mxu0
      %3137 = vmatprep.mubr.bf16.mxu0 0
      %3138 = vmatmul.mubr.bf16.gmra.mrb[0].mxu0 %v3043
      %v3139 = vpop.f32.mrb[0].mxu0
      %v3140 = vadd.f32 0.0, %v3139
      %v3141 = vpop.f32.mrb[0].mxu0
      %v3142 = vpop.f32.mrb[0].mxu0
      %v3143 = vadd.f32 0.0, %v3142
      %v3144 = vpop.f32.mrb[0].mxu0
      %3145 = vmatprep.mubr.bf16.mxu0 0
      %3146 = vmatmul.mubr.bf16.gmra.mrb[0].mxu0 %v3046
      %v3147 = vpop.f32.mrb[0].mxu0
      %v3148 = vadd.f32 0.0, %v3147
      %v3149 = vpop.f32.mrb[0].mxu0
      %v3150 = vpop.f32.mrb[0].mxu0
      %v3151 = vadd.f32 0.0, %v3150
      %v3152 = vpop.f32.mrb[0].mxu0
      %3153 = vmatprep.mubr.bf16.mxu0 0
      %3154 = vmatmul.mubr.bf16.gmra.mrb[0].mxu0 %v3049
      %v3155 = vpop.f32.mrb[0].mxu0
      %v3156 = vadd.f32 0.0, %v3155
      %v3157 = vpop.f32.mrb[0].mxu0
      %v3158 = vpop.f32.mrb[0].mxu0
      %v3159 = vadd.f32 0.0, %v3158
      %v3160 = vpop.f32.mrb[0].mxu0
      %3161 = vmatprep.mubr.bf16.mxu0 0
      %3162 = vmatmul.mubr.bf16.gmra.mrb[0].mxu0 %v3052
      %v3163 = vpop.f32.mrb[0].mxu0
      %v3164 = vadd.f32 0.0, %v3163
      %v3165 = vpop.f32.mrb[0].mxu0
      %v3166 = vpop.f32.mrb[0].mxu0
      %v3167 = vadd.f32 0.0, %v3166
      %v3168 = vpop.f32.mrb[0].mxu0
      %3169 = vmatprep.mubr.bf16.mxu0 0
      %3170 = vmatmul.mubr.bf16.gmra.mrb[0].mxu0 %v3055
      %v3171 = vpop.f32.mrb[0].mxu0
      %v3172 = vadd.f32 0.0, %v3171
      %v3173 = vpop.f32.mrb[0].mxu0
      %v3174 = vpop.f32.mrb[0].mxu0
      %v3175 = vadd.f32 0.0, %v3174
      %v3176 = vpop.f32.mrb[0].mxu0
      %3177 = vmatprep.mubr.bf16.mxu0 0
      %3178 = vmatmul.mubr.bf16.gmra.mrb[0].mxu0 %v3058
      %v3179 = vpop.f32.mrb[0].mxu0
      %v3180 = vadd.f32 0.0, %v3179
      %v3181 = vpop.f32.mrb[0].mxu0
      %v3182 = vpop.f32.mrb[0].mxu0
      %v3183 = vadd.f32 0.0, %v3182
      %v3184 = vpop.f32.mrb[0].mxu0
      %3185 = vmatprep.mubr.bf16.mxu0 0
      %3186 = vmatmul.mubr.bf16.gmra.mrb[0].mxu0 %v3061
      %v3187 = vpop.f32.mrb[0].mxu0
      %v3188 = vadd.f32 0.0, %v3187
      %v3189 = vpop.f32.mrb[0].mxu0
      %v3190 = vpop.f32.mrb[0].mxu0
      %v3191 = vadd.f32 0.0, %v3190
      %v3192 = vpop.f32.mrb[0].mxu0
      %3193 = vmatprep.mubr.bf16.mxu0 0
      %3194 = vmatmul.mubr.bf16.gmra.mrb[0].mxu0 %v3064
      %v3195 = vpop.f32.mrb[0].mxu0
      %v3196 = vadd.f32 0.0, %v3195
      %v3197 = vpop.f32.mrb[0].mxu0
      %v3198 = vpop.f32.mrb[0].mxu0
      %v3199 = vadd.f32 0.0, %v3198
      %v3200 = vpop.f32.mrb[0].mxu0
      %3201 = vmatprep.mubr.bf16.mxu0 0
      %3202 = vmatmul.mubr.bf16.gmra.mrb[0].mxu0 %v3067
      %v3203 = vpop.f32.mrb[0].mxu0
      %v3204 = vadd.f32 0.0, %v3203
      %v3205 = vpop.f32.mrb[0].mxu0
      %v3206 = vpop.f32.mrb[0].mxu0
      %v3207 = vadd.f32 0.0, %v3206
      %v3208 = vpop.f32.mrb[0].mxu0
      %3209 = vmatprep.mubr.bf16.mxu0 0
      %3210 = vmatmul.mubr.bf16.gmra.mrb[0].mxu0 %v3070
      %v3211 = vpop.f32.mrb[0].mxu0
      %v3212 = vadd.f32 0.0, %v3211
      %v3213 = vpop.f32.mrb[0].mxu0
      %v3214 = vpop.f32.mrb[0].mxu0
      %v3215 = vadd.f32 0.0, %v3214
      %v3216 = vpop.f32.mrb[0].mxu0
      %3217 = vmatprep.mubr.bf16.mxu0 0
      %3218 = vmatmul.mubr.bf16.gmra.mrb[0].mxu0 %v3073
      %v3219 = vpop.f32.mrb[0].mxu0
      %v3220 = vadd.f32 0.0, %v3219
      %v3221 = vpop.f32.mrb[0].mxu0
      %v3222 = vpop.f32.mrb[0].mxu0
      %v3223 = vadd.f32 0.0, %v3222
      %v3224 = vpop.f32.mrb[0].mxu0
      %3225 = vmatprep.mubr.bf16.mxu0 0
      %3226 = vmatmul.mubr.bf16.gmra.mrb[0].mxu0 %v3076
      %v3227 = vpop.f32.mrb[0].mxu0
      %v3228 = vadd.f32 0.0, %v3227
      %v3229 = vpop.f32.mrb[0].mxu0
      %v3230 = vpop.f32.mrb[0].mxu0
      %v3231 = vadd.f32 0.0, %v3230
      %v3232 = vpop.f32.mrb[0].mxu0
      %3233 = vmatprep.mubr.bf16.mxu0 0
      %3234 = vmatmul.mubr.bf16.gmra.mrb[0].mxu0 %v3079
      %v3235 = vpop.f32.mrb[0].mxu0
      %v3236 = vadd.f32 0.0, %v3235
      %v3237 = vpop.f32.mrb[0].mxu0
      %v3238 = vpop.f32.mrb[0].mxu0
      %v3239 = vadd.f32 0.0, %v3238
      %v3240 = vpop.f32.mrb[0].mxu0
      %3241 = vdwg.mxu0
      %v3242 = vadd.f32 %v2760, %v3116
      %v3243 = vadd.f32 %v2761, %v3119
      %v3244 = vadd.f32 %v2762, %v3124
      %v3245 = vadd.f32 %v2763, %v3127
      %v3246 = vadd.f32 %v2764, %v3132
      %v3247 = vadd.f32 %v2765, %v3135
      %v3248 = vadd.f32 %v2766, %v3140
      %v3249 = vadd.f32 %v2767, %v3143
      %v3250 = vadd.f32 %v2768, %v3148
      %v3251 = vadd.f32 %v2769, %v3151
      %v3252 = vadd.f32 %v2770, %v3156
      %v3253 = vadd.f32 %v2771, %v3159
      %v3254 = vadd.f32 %v2772, %v3164
      %v3255 = vadd.f32 %v2773, %v3167
      %v3256 = vadd.f32 %v2774, %v3172
      %v3257 = vadd.f32 %v2775, %v3175
      %v3258 = vadd.f32 %v2776, %v3180
      %v3259 = vadd.f32 %v2777, %v3183
      %v3260 = vadd.f32 %v2778, %v3188
      %v3261 = vadd.f32 %v2779, %v3191
      %v3262 = vadd.f32 %v2780, %v3196
      %v3263 = vadd.f32 %v2781, %v3199
      %v3264 = vadd.f32 %v2782, %v3204
      %v3265 = vadd.f32 %v2783, %v3207
      %v3266 = vadd.f32 %v2784, %v3212
      %v3267 = vadd.f32 %v2785, %v3215
      %v3268 = vadd.f32 %v2786, %v3220
      %v3269 = vadd.f32 %v2787, %v3223
      %v3270 = vadd.f32 %v2788, %v3228
      %v3271 = vadd.f32 %v2789, %v3231
      %v3272 = vadd.f32 %v2790, %v3236
      %v3273 = vadd.f32 %v2791, %v3239
      %s3274 = scalar_lea.vmem %s192, 24
      %v3275 = vld [vmem:[%s3274] sm:$0xf]
      %v3276 = vld [vmem:[%s3274 + $0x4] sm:$0xf]
      %v3277 = vld [vmem:[%s3274 + $0xc] sm:$0xf]
      %v3278 = vld [vmem:[%s3274 + $0x10] sm:$0xf]
      %v3279 = vld [vmem:[%s3274 + $0x18] sm:$0xf]
      %v3280 = vld [vmem:[%s3274 + $0x1c] sm:$0xf]
      %v3281 = vld [vmem:[%s3274 + $0x24] sm:$0xf]
      %v3282 = vld [vmem:[%s3274 + $0x28] sm:$0xf]
      %v3283 = vld [vmem:[%s3274 + $0x30] sm:$0xf]
      %v3284 = vld [vmem:[%s3274 + $0x34] sm:$0xf]
      %v3285 = vld [vmem:[%s3274 + $0x3c] sm:$0xf]
      %v3286 = vld [vmem:[%s3274 + $0x40] sm:$0xf]
      %v3287 = vld [vmem:[%s3274 + $0x48] sm:$0xf]
      %v3288 = vld [vmem:[%s3274 + $0x4c] sm:$0xf]
      %v3289 = vld [vmem:[%s3274 + $0x54] sm:$0xf]
      %v3290 = vld [vmem:[%s3274 + $0x58] sm:$0xf]
      %v3291 = vld [vmem:[%s3274 + $0x60] sm:$0xf]
      %v3292 = vld [vmem:[%s3274 + $0x64] sm:$0xf]
      %v3293 = vld [vmem:[%s3274 + $0x6c] sm:$0xf]
      %v3294 = vld [vmem:[%s3274 + $0x70] sm:$0xf]
      %v3295 = vld [vmem:[%s3274 + $0x78] sm:$0xf]
      %v3296 = vld [vmem:[%s3274 + $0x7c] sm:$0xf]
      %v3297 = vld [vmem:[%s3274 + $0x84] sm:$0xf]
      %v3298 = vld [vmem:[%s3274 + $0x88] sm:$0xf]
      %v3299 = vld [vmem:[%s3274 + $0x90] sm:$0xf]
      %v3300 = vld [vmem:[%s3274 + $0x94] sm:$0xf]
      %v3301 = vld [vmem:[%s3274 + $0x9c] sm:$0xf]
      %v3302 = vld [vmem:[%s3274 + $0xa0] sm:$0xf]
      %v3303 = vld [vmem:[%s3274 + $0xa8] sm:$0xf]
      %v3304 = vld [vmem:[%s3274 + $0xac] sm:$0xf]
      %v3305 = vld [vmem:[%s3274 + $0xb4] sm:$0xf]
      %v3306 = vld [vmem:[%s3274 + $0xb8] sm:$0xf]
      %s3307 = scalar_lea.vmem %s1, 96
      %v3308 = vld [vmem:[%s3307] sm:$0xf]
      %v3309 = vld [vmem:[%s3307 + $0x4] sm:$0xf]
      %v3310 = vld [vmem:[%s3307 + $0x8] sm:$0xf]
      %v3311 = vld [vmem:[%s3307 + $0xc] sm:$0xf]
      %v3344 = vunpack.c.l.b16 %v3275
      %v3345 = vunpack.c.l.b16 %v3276
      %v3346 = vunpack.c.l.b16 %v3277
      %v3347 = vunpack.c.l.b16 %v3278
      %v3348 = vunpack.c.l.b16 %v3279
      %v3349 = vunpack.c.l.b16 %v3280
      %v3350 = vunpack.c.l.b16 %v3281
      %v3351 = vunpack.c.l.b16 %v3282
      %v3352 = vunpack.c.l.b16 %v3283
      %v3353 = vunpack.c.l.b16 %v3284
      %v3354 = vunpack.c.l.b16 %v3285
      %v3355 = vunpack.c.l.b16 %v3286
      %v3356 = vunpack.c.l.b16 %v3287
      %v3357 = vunpack.c.l.b16 %v3288
      %v3358 = vunpack.c.l.b16 %v3289
      %v3359 = vunpack.c.l.b16 %v3290
      %v3360 = vunpack.c.l.b16 %v3291
      %v3361 = vunpack.c.l.b16 %v3292
      %v3362 = vunpack.c.l.b16 %v3293
      %v3363 = vunpack.c.l.b16 %v3294
      %v3364 = vunpack.c.l.b16 %v3295
      %v3365 = vunpack.c.l.b16 %v3296
      %v3366 = vunpack.c.l.b16 %v3297
      %v3367 = vunpack.c.l.b16 %v3298
      %v3368 = vunpack.c.l.b16 %v3299
      %v3369 = vunpack.c.l.b16 %v3300
      %v3370 = vunpack.c.l.b16 %v3301
      %v3371 = vunpack.c.l.b16 %v3302
      %v3372 = vunpack.c.l.b16 %v3303
      %v3373 = vunpack.c.l.b16 %v3304
      %v3374 = vunpack.c.l.b16 %v3305
      %v3375 = vunpack.c.l.b16 %v3306
      %v3376 = vpack.c.b16 %v3345, %v3344
      %v3377 = vpack.c.b16 %v3347, %v3346
      %v3378 = vpack.c.b16 %v3349, %v3348
      %v3379 = vpack.c.b16 %v3351, %v3350
      %v3380 = vpack.c.b16 %v3353, %v3352
      %v3381 = vpack.c.b16 %v3355, %v3354
      %v3382 = vpack.c.b16 %v3357, %v3356
      %v3383 = vpack.c.b16 %v3359, %v3358
      %v3384 = vpack.c.b16 %v3361, %v3360
      %v3385 = vpack.c.b16 %v3363, %v3362
      %v3386 = vpack.c.b16 %v3365, %v3364
      %v3387 = vpack.c.b16 %v3367, %v3366
      %v3388 = vpack.c.b16 %v3369, %v3368
      %v3389 = vpack.c.b16 %v3371, %v3370
      %v3390 = vpack.c.b16 %v3373, %v3372
      %v3391 = vpack.c.b16 %v3375, %v3374
      %v3396 = vunpack.c.l.b16 %v3308
      %v3397 = vunpack.c.l.b16 %v3309
      %v3398 = vunpack.c.l.b16 %v3310
      %v3399 = vunpack.c.l.b16 %v3311
      %v3400 = vpack.c.b16 %v3397, %v3396
      %v3401 = vpack.c.b16 %v3399, %v3398
      %v3405 = vsel %vm703, %v3376, 0
      %v3408 = vsel %vm703, %v3377, 0
      %v3411 = vsel %vm703, %v3378, 0
      %v3414 = vsel %vm703, %v3379, 0
      %v3417 = vsel %vm703, %v3380, 0
      %v3420 = vsel %vm703, %v3381, 0
      %v3423 = vsel %vm703, %v3382, 0
      %v3426 = vsel %vm703, %v3383, 0
      %v3429 = vsel %vm703, %v3384, 0
      %v3432 = vsel %vm703, %v3385, 0
      %v3435 = vsel %vm703, %v3386, 0
      %v3438 = vsel %vm703, %v3387, 0
      %v3441 = vsel %vm703, %v3388, 0
      %v3444 = vsel %vm703, %v3389, 0
      %v3447 = vsel %vm703, %v3390, 0
      %v3450 = vsel %vm703, %v3391, 0
      %3452 = vmatprep.subr.bf16.mxu0 0
      %3453 = vmatpush1.bf16.msra.mxu0 %v3400
      %3454 = vmatprep.subr.bf16.mxu0 0
      %3455 = vmatpush1.bf16.msra.mxu0 %v3401
      %3456 = vmatprep.subr.bf16.mxu0 0
      %3457 = vmatpush1.bf16.msra.mxu0 0
      %3458 = vmatprep.subr.bf16.mxu0 0
      %3459 = vmatpush1.bf16.msra.mxu0 0
      %3460 = vmatprep.subr.bf16.mxu0 0
      %3461 = vmatpush1.bf16.msra.mxu0 0
      %3462 = vmatprep.subr.bf16.mxu0 0
      %3463 = vmatpush1.bf16.msra.mxu0 0
      %3464 = vmatprep.subr.bf16.mxu0 0
      %3465 = vmatpush1.bf16.msra.mxu0 0
      %3466 = vmatprep.subr.bf16.mxu0 0
      %3467 = vmatpush1.bf16.msra.mxu0 0
      %3468 = vmatprep.subr.bf16.mxu0 0
      %3469 = vmatpush1.bf16.msra.mxu0 0
      %3470 = vmatprep.subr.bf16.mxu0 0
      %3471 = vmatpush1.bf16.msra.mxu0 0
      %3472 = vmatprep.subr.bf16.mxu0 0
      %3473 = vmatpush1.bf16.msra.mxu0 0
      %3474 = vmatprep.subr.bf16.mxu0 0
      %3475 = vmatpush1.bf16.msra.mxu0 0
      %3476 = vmatprep.subr.bf16.mxu0 0
      %3477 = vmatpush1.bf16.msra.mxu0 0
      %3478 = vmatprep.subr.bf16.mxu0 0
      %3479 = vmatpush1.bf16.msra.mxu0 0
      %3480 = vmatprep.subr.bf16.mxu0 0
      %3481 = vmatpush1.bf16.msra.mxu0 0
      %3482 = vmatprep.subr.bf16.mxu0 0
      %3483 = vmatpush1.bf16.msra.mxu0 0
      %3484 = vmatprep.mubr.bf16.mxu0 0
      %3485 = vmatmul.mubr.bf16.gmra.mrb[0].mxu0 %v3405
      %v3486 = vpop.f32.mrb[0].mxu0
      %v3487 = vadd.f32 0.0, %v3486
      %v3488 = vpop.f32.mrb[0].mxu0
      %v3489 = vpop.f32.mrb[0].mxu0
      %v3490 = vadd.f32 0.0, %v3489
      %v3491 = vpop.f32.mrb[0].mxu0
      %3492 = vmatprep.mubr.bf16.mxu0 0
      %3493 = vmatmul.mubr.bf16.gmra.mrb[0].mxu0 %v3408
      %v3494 = vpop.f32.mrb[0].mxu0
      %v3495 = vadd.f32 0.0, %v3494
      %v3496 = vpop.f32.mrb[0].mxu0
      %v3497 = vpop.f32.mrb[0].mxu0
      %v3498 = vadd.f32 0.0, %v3497
      %v3499 = vpop.f32.mrb[0].mxu0
      %3500 = vmatprep.mubr.bf16.mxu0 0
      %3501 = vmatmul.mubr.bf16.gmra.mrb[0].mxu0 %v3411
      %v3502 = vpop.f32.mrb[0].mxu0
      %v3503 = vadd.f32 0.0, %v3502
      %v3504 = vpop.f32.mrb[0].mxu0
      %v3505 = vpop.f32.mrb[0].mxu0
      %v3506 = vadd.f32 0.0, %v3505
      %v3507 = vpop.f32.mrb[0].mxu0
      %3508 = vmatprep.mubr.bf16.mxu0 0
      %3509 = vmatmul.mubr.bf16.gmra.mrb[0].mxu0 %v3414
      %v3510 = vpop.f32.mrb[0].mxu0
      %v3511 = vadd.f32 0.0, %v3510
      %v3512 = vpop.f32.mrb[0].mxu0
      %v3513 = vpop.f32.mrb[0].mxu0
      %v3514 = vadd.f32 0.0, %v3513
      %v3515 = vpop.f32.mrb[0].mxu0
      %3516 = vmatprep.mubr.bf16.mxu0 0
      %3517 = vmatmul.mubr.bf16.gmra.mrb[0].mxu0 %v3417
      %v3518 = vpop.f32.mrb[0].mxu0
      %v3519 = vadd.f32 0.0, %v3518
      %v3520 = vpop.f32.mrb[0].mxu0
      %v3521 = vpop.f32.mrb[0].mxu0
      %v3522 = vadd.f32 0.0, %v3521
      %v3523 = vpop.f32.mrb[0].mxu0
      %3524 = vmatprep.mubr.bf16.mxu0 0
      %3525 = vmatmul.mubr.bf16.gmra.mrb[0].mxu0 %v3420
      %v3526 = vpop.f32.mrb[0].mxu0
      %v3527 = vadd.f32 0.0, %v3526
      %v3528 = vpop.f32.mrb[0].mxu0
      %v3529 = vpop.f32.mrb[0].mxu0
      %v3530 = vadd.f32 0.0, %v3529
      %v3531 = vpop.f32.mrb[0].mxu0
      %3532 = vmatprep.mubr.bf16.mxu0 0
      %3533 = vmatmul.mubr.bf16.gmra.mrb[0].mxu0 %v3423
      %v3534 = vpop.f32.mrb[0].mxu0
      %v3535 = vadd.f32 0.0, %v3534
      %v3536 = vpop.f32.mrb[0].mxu0
      %v3537 = vpop.f32.mrb[0].mxu0
      %v3538 = vadd.f32 0.0, %v3537
      %v3539 = vpop.f32.mrb[0].mxu0
      %3540 = vmatprep.mubr.bf16.mxu0 0
      %3541 = vmatmul.mubr.bf16.gmra.mrb[0].mxu0 %v3426
      %v3542 = vpop.f32.mrb[0].mxu0
      %v3543 = vadd.f32 0.0, %v3542
      %v3544 = vpop.f32.mrb[0].mxu0
      %v3545 = vpop.f32.mrb[0].mxu0
      %v3546 = vadd.f32 0.0, %v3545
      %v3547 = vpop.f32.mrb[0].mxu0
      %3548 = vmatprep.mubr.bf16.mxu0 0
      %3549 = vmatmul.mubr.bf16.gmra.mrb[0].mxu0 %v3429
      %v3550 = vpop.f32.mrb[0].mxu0
      %v3551 = vadd.f32 0.0, %v3550
      %v3552 = vpop.f32.mrb[0].mxu0
      %v3553 = vpop.f32.mrb[0].mxu0
      %v3554 = vadd.f32 0.0, %v3553
      %v3555 = vpop.f32.mrb[0].mxu0
      %3556 = vmatprep.mubr.bf16.mxu0 0
      %3557 = vmatmul.mubr.bf16.gmra.mrb[0].mxu0 %v3432
      %v3558 = vpop.f32.mrb[0].mxu0
      %v3559 = vadd.f32 0.0, %v3558
      %v3560 = vpop.f32.mrb[0].mxu0
      %v3561 = vpop.f32.mrb[0].mxu0
      %v3562 = vadd.f32 0.0, %v3561
      %v3563 = vpop.f32.mrb[0].mxu0
      %3564 = vmatprep.mubr.bf16.mxu0 0
      %3565 = vmatmul.mubr.bf16.gmra.mrb[0].mxu0 %v3435
      %v3566 = vpop.f32.mrb[0].mxu0
      %v3567 = vadd.f32 0.0, %v3566
      %v3568 = vpop.f32.mrb[0].mxu0
      %v3569 = vpop.f32.mrb[0].mxu0
      %v3570 = vadd.f32 0.0, %v3569
      %v3571 = vpop.f32.mrb[0].mxu0
      %3572 = vmatprep.mubr.bf16.mxu0 0
      %3573 = vmatmul.mubr.bf16.gmra.mrb[0].mxu0 %v3438
      %v3574 = vpop.f32.mrb[0].mxu0
      %v3575 = vadd.f32 0.0, %v3574
      %v3576 = vpop.f32.mrb[0].mxu0
      %v3577 = vpop.f32.mrb[0].mxu0
      %v3578 = vadd.f32 0.0, %v3577
      %v3579 = vpop.f32.mrb[0].mxu0
      %3580 = vmatprep.mubr.bf16.mxu0 0
      %3581 = vmatmul.mubr.bf16.gmra.mrb[0].mxu0 %v3441
      %v3582 = vpop.f32.mrb[0].mxu0
      %v3583 = vadd.f32 0.0, %v3582
      %v3584 = vpop.f32.mrb[0].mxu0
      %v3585 = vpop.f32.mrb[0].mxu0
      %v3586 = vadd.f32 0.0, %v3585
      %v3587 = vpop.f32.mrb[0].mxu0
      %3588 = vmatprep.mubr.bf16.mxu0 0
      %3589 = vmatmul.mubr.bf16.gmra.mrb[0].mxu0 %v3444
      %v3590 = vpop.f32.mrb[0].mxu0
      %v3591 = vadd.f32 0.0, %v3590
      %v3592 = vpop.f32.mrb[0].mxu0
      %v3593 = vpop.f32.mrb[0].mxu0
      %v3594 = vadd.f32 0.0, %v3593
      %v3595 = vpop.f32.mrb[0].mxu0
      %3596 = vmatprep.mubr.bf16.mxu0 0
      %3597 = vmatmul.mubr.bf16.gmra.mrb[0].mxu0 %v3447
      %v3598 = vpop.f32.mrb[0].mxu0
      %v3599 = vadd.f32 0.0, %v3598
      %v3600 = vpop.f32.mrb[0].mxu0
      %v3601 = vpop.f32.mrb[0].mxu0
      %v3602 = vadd.f32 0.0, %v3601
      %v3603 = vpop.f32.mrb[0].mxu0
      %3604 = vmatprep.mubr.bf16.mxu0 0
      %3605 = vmatmul.mubr.bf16.gmra.mrb[0].mxu0 %v3450
      %v3606 = vpop.f32.mrb[0].mxu0
      %v3607 = vadd.f32 0.0, %v3606
      %v3608 = vpop.f32.mrb[0].mxu0
      %v3609 = vpop.f32.mrb[0].mxu0
      %v3610 = vadd.f32 0.0, %v3609
      %v3611 = vpop.f32.mrb[0].mxu0
      %3612 = vdwg.mxu0
      %v3613 = vadd.f32 %v3242, %v3487
      %v3614 = vadd.f32 %v3243, %v3490
      %v3615 = vadd.f32 %v3244, %v3495
      %v3616 = vadd.f32 %v3245, %v3498
      %v3617 = vadd.f32 %v3246, %v3503
      %v3618 = vadd.f32 %v3247, %v3506
      %v3619 = vadd.f32 %v3248, %v3511
      %v3620 = vadd.f32 %v3249, %v3514
      %v3621 = vadd.f32 %v3250, %v3519
      %v3622 = vadd.f32 %v3251, %v3522
      %v3623 = vadd.f32 %v3252, %v3527
      %v3624 = vadd.f32 %v3253, %v3530
      %v3625 = vadd.f32 %v3254, %v3535
      %v3626 = vadd.f32 %v3255, %v3538
      %v3627 = vadd.f32 %v3256, %v3543
      %v3628 = vadd.f32 %v3257, %v3546
      %v3629 = vadd.f32 %v3258, %v3551
      %v3630 = vadd.f32 %v3259, %v3554
      %v3631 = vadd.f32 %v3260, %v3559
      %v3632 = vadd.f32 %v3261, %v3562
      %v3633 = vadd.f32 %v3262, %v3567
      %v3634 = vadd.f32 %v3263, %v3570
      %v3635 = vadd.f32 %v3264, %v3575
      %v3636 = vadd.f32 %v3265, %v3578
      %v3637 = vadd.f32 %v3266, %v3583
      %v3638 = vadd.f32 %v3267, %v3586
      %v3639 = vadd.f32 %v3268, %v3591
      %v3640 = vadd.f32 %v3269, %v3594
      %v3641 = vadd.f32 %v3270, %v3599
      %v3642 = vadd.f32 %v3271, %v3602
      %v3643 = vadd.f32 %v3272, %v3607
      %v3644 = vadd.f32 %v3273, %v3610
      %v3645 = vld [vmem:[%s3274] sm:$0xf]
      %v3646 = vld [vmem:[%s3274 + $0x4] sm:$0xf]
      %v3647 = vld [vmem:[%s3274 + $0x8] sm:$0x1]
      %v3648 = vld [vmem:[%s3274 + $0xc] sm:$0xf]
      %v3649 = vld [vmem:[%s3274 + $0x10] sm:$0xf]
      %v3650 = vld [vmem:[%s3274 + $0x14] sm:$0x1]
      %v3651 = vld [vmem:[%s3274 + $0x18] sm:$0xf]
      %v3652 = vld [vmem:[%s3274 + $0x1c] sm:$0xf]
      %v3653 = vld [vmem:[%s3274 + $0x20] sm:$0x1]
      %v3654 = vld [vmem:[%s3274 + $0x24] sm:$0xf]
      %v3655 = vld [vmem:[%s3274 + $0x28] sm:$0xf]
      %v3656 = vld [vmem:[%s3274 + $0x2c] sm:$0x1]
      %v3657 = vld [vmem:[%s3274 + $0x30] sm:$0xf]
      %v3658 = vld [vmem:[%s3274 + $0x34] sm:$0xf]
      %v3659 = vld [vmem:[%s3274 + $0x38] sm:$0x1]
      %v3660 = vld [vmem:[%s3274 + $0x3c] sm:$0xf]
      %v3661 = vld [vmem:[%s3274 + $0x40] sm:$0xf]
      %v3662 = vld [vmem:[%s3274 + $0x44] sm:$0x1]
      %v3663 = vld [vmem:[%s3274 + $0x48] sm:$0xf]
      %v3664 = vld [vmem:[%s3274 + $0x4c] sm:$0xf]
      %v3665 = vld [vmem:[%s3274 + $0x50] sm:$0x1]
      %v3666 = vld [vmem:[%s3274 + $0x54] sm:$0xf]
      %v3667 = vld [vmem:[%s3274 + $0x58] sm:$0xf]
      %v3668 = vld [vmem:[%s3274 + $0x5c] sm:$0x1]
      %v3669 = vld [vmem:[%s3274 + $0x60] sm:$0xf]
      %v3670 = vld [vmem:[%s3274 + $0x64] sm:$0xf]
      %v3671 = vld [vmem:[%s3274 + $0x68] sm:$0x1]
      %v3672 = vld [vmem:[%s3274 + $0x6c] sm:$0xf]
      %v3673 = vld [vmem:[%s3274 + $0x70] sm:$0xf]
      %v3674 = vld [vmem:[%s3274 + $0x74] sm:$0x1]
      %v3675 = vld [vmem:[%s3274 + $0x78] sm:$0xf]
      %v3676 = vld [vmem:[%s3274 + $0x7c] sm:$0xf]
      %v3677 = vld [vmem:[%s3274 + $0x80] sm:$0x1]
      %v3678 = vld [vmem:[%s3274 + $0x84] sm:$0xf]
      %v3679 = vld [vmem:[%s3274 + $0x88] sm:$0xf]
      %v3680 = vld [vmem:[%s3274 + $0x8c] sm:$0x1]
      %v3681 = vld [vmem:[%s3274 + $0x90] sm:$0xf]
      %v3682 = vld [vmem:[%s3274 + $0x94] sm:$0xf]
      %v3683 = vld [vmem:[%s3274 + $0x98] sm:$0x1]
      %v3684 = vld [vmem:[%s3274 + $0x9c] sm:$0xf]
      %v3685 = vld [vmem:[%s3274 + $0xa0] sm:$0xf]
      %v3686 = vld [vmem:[%s3274 + $0xa4] sm:$0x1]
      %v3687 = vld [vmem:[%s3274 + $0xa8] sm:$0xf]
      %v3688 = vld [vmem:[%s3274 + $0xac] sm:$0xf]
      %v3689 = vld [vmem:[%s3274 + $0xb0] sm:$0x1]
      %v3690 = vld [vmem:[%s3274 + $0xb4] sm:$0xf]
      %v3691 = vld [vmem:[%s3274 + $0xb8] sm:$0xf]
      %v3692 = vld [vmem:[%s3274 + $0xbc] sm:$0x1]
      %v3694 = vshrl.u32 %v3645, 16
      %v3696 = vrot.slane %v3694, 4
      %v3697 = vshll.u32 %v3645, 16
      %v3699 = vrot.slane %v3697, 5
      %v3700 = vor.u32 %v3696, %v3699
      %v3701 = vrot.slane %v3700, 4
      %v3703 = vshll.u32 %v3646, 16
      %v3705 = vrot.slane %v3703, 5
      %v3706 = vsel %vm253, %v3701, %v3705
      %v3707 = vshrl.u32 %v3646, 16
      %v3709 = vrot.slane %v3707, 4
      %v3710 = vor.u32 %v3709, %v3705
      %v3711 = vrot.slane %v3710, 4
      %v3713 = vshll.u32 %v3647, 16
      %v3715 = vrot.slane %v3713, 5
      %v3716 = vsel %vm253, %v3711, %v3715
      %v3718 = vshrl.u32 %v3648, 16
      %v3720 = vrot.slane %v3718, 4
      %v3721 = vshll.u32 %v3648, 16
      %v3723 = vrot.slane %v3721, 5
      %v3724 = vor.u32 %v3720, %v3723
      %v3725 = vrot.slane %v3724, 4
      %v3727 = vshll.u32 %v3649, 16
      %v3729 = vrot.slane %v3727, 5
      %v3730 = vsel %vm253, %v3725, %v3729
      %v3731 = vshrl.u32 %v3649, 16
      %v3733 = vrot.slane %v3731, 4
      %v3734 = vor.u32 %v3733, %v3729
      %v3735 = vrot.slane %v3734, 4
      %v3737 = vshll.u32 %v3650, 16
      %v3739 = vrot.slane %v3737, 5
      %v3740 = vsel %vm253, %v3735, %v3739
      %v3742 = vshrl.u32 %v3651, 16
      %v3744 = vrot.slane %v3742, 4
      %v3745 = vshll.u32 %v3651, 16
      %v3747 = vrot.slane %v3745, 5
      %v3748 = vor.u32 %v3744, %v3747
      %v3749 = vrot.slane %v3748, 4
      %v3751 = vshll.u32 %v3652, 16
      %v3753 = vrot.slane %v3751, 5
      %v3754 = vsel %vm253, %v3749, %v3753
      %v3755 = vshrl.u32 %v3652, 16
      %v3757 = vrot.slane %v3755, 4
      %v3758 = vor.u32 %v3757, %v3753
      %v3759 = vrot.slane %v3758, 4
      %v3761 = vshll.u32 %v3653, 16
      %v3763 = vrot.slane %v3761, 5
      %v3764 = vsel %vm253, %v3759, %v3763
      %v3766 = vshrl.u32 %v3654, 16
      %v3768 = vrot.slane %v3766, 4
      %v3769 = vshll.u32 %v3654, 16
      %v3771 = vrot.slane %v3769, 5
      %v3772 = vor.u32 %v3768, %v3771
      %v3773 = vrot.slane %v3772, 4
      %v3775 = vshll.u32 %v3655, 16
      %v3777 = vrot.slane %v3775, 5
      %v3778 = vsel %vm253, %v3773, %v3777
      %v3779 = vshrl.u32 %v3655, 16
      %v3781 = vrot.slane %v3779, 4
      %v3782 = vor.u32 %v3781, %v3777
      %v3783 = vrot.slane %v3782, 4
      %v3785 = vshll.u32 %v3656, 16
      %v3787 = vrot.slane %v3785, 5
      %v3788 = vsel %vm253, %v3783, %v3787
      %v3790 = vshrl.u32 %v3657, 16
      %v3792 = vrot.slane %v3790, 4
      %v3793 = vshll.u32 %v3657, 16
      %v3795 = vrot.slane %v3793, 5
      %v3796 = vor.u32 %v3792, %v3795
      %v3797 = vrot.slane %v3796, 4
      %v3799 = vshll.u32 %v3658, 16
      %v3801 = vrot.slane %v3799, 5
      %v3802 = vsel %vm253, %v3797, %v3801
      %v3803 = vshrl.u32 %v3658, 16
      %v3805 = vrot.slane %v3803, 4
      %v3806 = vor.u32 %v3805, %v3801
      %v3807 = vrot.slane %v3806, 4
      %v3809 = vshll.u32 %v3659, 16
      %v3811 = vrot.slane %v3809, 5
      %v3812 = vsel %vm253, %v3807, %v3811
      %v3814 = vshrl.u32 %v3660, 16
      %v3816 = vrot.slane %v3814, 4
      %v3817 = vshll.u32 %v3660, 16
      %v3819 = vrot.slane %v3817, 5
      %v3820 = vor.u32 %v3816, %v3819
      %v3821 = vrot.slane %v3820, 4
      %v3823 = vshll.u32 %v3661, 16
      %v3825 = vrot.slane %v3823, 5
      %v3826 = vsel %vm253, %v3821, %v3825
      %v3827 = vshrl.u32 %v3661, 16
      %v3829 = vrot.slane %v3827, 4
      %v3830 = vor.u32 %v3829, %v3825
      %v3831 = vrot.slane %v3830, 4
      %v3833 = vshll.u32 %v3662, 16
      %v3835 = vrot.slane %v3833, 5
      %v3836 = vsel %vm253, %v3831, %v3835
      %v3838 = vshrl.u32 %v3663, 16
      %v3840 = vrot.slane %v3838, 4
      %v3841 = vshll.u32 %v3663, 16
      %v3843 = vrot.slane %v3841, 5
      %v3844 = vor.u32 %v3840, %v3843
      %v3845 = vrot.slane %v3844, 4
      %v3847 = vshll.u32 %v3664, 16
      %v3849 = vrot.slane %v3847, 5
      %v3850 = vsel %vm253, %v3845, %v3849
      %v3851 = vshrl.u32 %v3664, 16
      %v3853 = vrot.slane %v3851, 4
      %v3854 = vor.u32 %v3853, %v3849
      %v3855 = vrot.slane %v3854, 4
      %v3857 = vshll.u32 %v3665, 16
      %v3859 = vrot.slane %v3857, 5
      %v3860 = vsel %vm253, %v3855, %v3859
      %v3862 = vshrl.u32 %v3666, 16
      %v3864 = vrot.slane %v3862, 4
      %v3865 = vshll.u32 %v3666, 16
      %v3867 = vrot.slane %v3865, 5
      %v3868 = vor.u32 %v3864, %v3867
      %v3869 = vrot.slane %v3868, 4
      %v3871 = vshll.u32 %v3667, 16
      %v3873 = vrot.slane %v3871, 5
      %v3874 = vsel %vm253, %v3869, %v3873
      %v3875 = vshrl.u32 %v3667, 16
      %v3877 = vrot.slane %v3875, 4
      %v3878 = vor.u32 %v3877, %v3873
      %v3879 = vrot.slane %v3878, 4
      %v3881 = vshll.u32 %v3668, 16
      %v3883 = vrot.slane %v3881, 5
      %v3884 = vsel %vm253, %v3879, %v3883
      %v3886 = vshrl.u32 %v3669, 16
      %v3888 = vrot.slane %v3886, 4
      %v3889 = vshll.u32 %v3669, 16
      %v3891 = vrot.slane %v3889, 5
      %v3892 = vor.u32 %v3888, %v3891
      %v3893 = vrot.slane %v3892, 4
      %v3895 = vshll.u32 %v3670, 16
      %v3897 = vrot.slane %v3895, 5
      %v3898 = vsel %vm253, %v3893, %v3897
      %v3899 = vshrl.u32 %v3670, 16
      %v3901 = vrot.slane %v3899, 4
      %v3902 = vor.u32 %v3901, %v3897
      %v3903 = vrot.slane %v3902, 4
      %v3905 = vshll.u32 %v3671, 16
      %v3907 = vrot.slane %v3905, 5
      %v3908 = vsel %vm253, %v3903, %v3907
      %v3910 = vshrl.u32 %v3672, 16
      %v3912 = vrot.slane %v3910, 4
      %v3913 = vshll.u32 %v3672, 16
      %v3915 = vrot.slane %v3913, 5
      %v3916 = vor.u32 %v3912, %v3915
      %v3917 = vrot.slane %v3916, 4
      %v3919 = vshll.u32 %v3673, 16
      %v3921 = vrot.slane %v3919, 5
      %v3922 = vsel %vm253, %v3917, %v3921
      %v3923 = vshrl.u32 %v3673, 16
      %v3925 = vrot.slane %v3923, 4
      %v3926 = vor.u32 %v3925, %v3921
      %v3927 = vrot.slane %v3926, 4
      %v3929 = vshll.u32 %v3674, 16
      %v3931 = vrot.slane %v3929, 5
      %v3932 = vsel %vm253, %v3927, %v3931
      %v3934 = vshrl.u32 %v3675, 16
      %v3936 = vrot.slane %v3934, 4
      %v3937 = vshll.u32 %v3675, 16
      %v3939 = vrot.slane %v3937, 5
      %v3940 = vor.u32 %v3936, %v3939
      %v3941 = vrot.slane %v3940, 4
      %v3943 = vshll.u32 %v3676, 16
      %v3945 = vrot.slane %v3943, 5
      %v3946 = vsel %vm253, %v3941, %v3945
      %v3947 = vshrl.u32 %v3676, 16
      %v3949 = vrot.slane %v3947, 4
      %v3950 = vor.u32 %v3949, %v3945
      %v3951 = vrot.slane %v3950, 4
      %v3953 = vshll.u32 %v3677, 16
      %v3955 = vrot.slane %v3953, 5
      %v3956 = vsel %vm253, %v3951, %v3955
      %v3958 = vshrl.u32 %v3678, 16
      %v3960 = vrot.slane %v3958, 4
      %v3961 = vshll.u32 %v3678, 16
      %v3963 = vrot.slane %v3961, 5
      %v3964 = vor.u32 %v3960, %v3963
      %v3965 = vrot.slane %v3964, 4
      %v3967 = vshll.u32 %v3679, 16
      %v3969 = vrot.slane %v3967, 5
      %v3970 = vsel %vm253, %v3965, %v3969
      %v3971 = vshrl.u32 %v3679, 16
      %v3973 = vrot.slane %v3971, 4
      %v3974 = vor.u32 %v3973, %v3969
      %v3975 = vrot.slane %v3974, 4
      %v3977 = vshll.u32 %v3680, 16
      %v3979 = vrot.slane %v3977, 5
      %v3980 = vsel %vm253, %v3975, %v3979
      %v3982 = vshrl.u32 %v3681, 16
      %v3984 = vrot.slane %v3982, 4
      %v3985 = vshll.u32 %v3681, 16
      %v3987 = vrot.slane %v3985, 5
      %v3988 = vor.u32 %v3984, %v3987
      %v3989 = vrot.slane %v3988, 4
      %v3991 = vshll.u32 %v3682, 16
      %v3993 = vrot.slane %v3991, 5
      %v3994 = vsel %vm253, %v3989, %v3993
      %v3995 = vshrl.u32 %v3682, 16
      %v3997 = vrot.slane %v3995, 4
      %v3998 = vor.u32 %v3997, %v3993
      %v3999 = vrot.slane %v3998, 4
      %v4001 = vshll.u32 %v3683, 16
      %v4003 = vrot.slane %v4001, 5
      %v4004 = vsel %vm253, %v3999, %v4003
      %v4006 = vshrl.u32 %v3684, 16
      %v4008 = vrot.slane %v4006, 4
      %v4009 = vshll.u32 %v3684, 16
      %v4011 = vrot.slane %v4009, 5
      %v4012 = vor.u32 %v4008, %v4011
      %v4013 = vrot.slane %v4012, 4
      %v4015 = vshll.u32 %v3685, 16
      %v4017 = vrot.slane %v4015, 5
      %v4018 = vsel %vm253, %v4013, %v4017
      %v4019 = vshrl.u32 %v3685, 16
      %v4021 = vrot.slane %v4019, 4
      %v4022 = vor.u32 %v4021, %v4017
      %v4023 = vrot.slane %v4022, 4
      %v4025 = vshll.u32 %v3686, 16
      %v4027 = vrot.slane %v4025, 5
      %v4028 = vsel %vm253, %v4023, %v4027
      %v4030 = vshrl.u32 %v3687, 16
      %v4032 = vrot.slane %v4030, 4
      %v4033 = vshll.u32 %v3687, 16
      %v4035 = vrot.slane %v4033, 5
      %v4036 = vor.u32 %v4032, %v4035
      %v4037 = vrot.slane %v4036, 4
      %v4039 = vshll.u32 %v3688, 16
      %v4041 = vrot.slane %v4039, 5
      %v4042 = vsel %vm253, %v4037, %v4041
      %v4043 = vshrl.u32 %v3688, 16
      %v4045 = vrot.slane %v4043, 4
      %v4046 = vor.u32 %v4045, %v4041
      %v4047 = vrot.slane %v4046, 4
      %v4049 = vshll.u32 %v3689, 16
      %v4051 = vrot.slane %v4049, 5
      %v4052 = vsel %vm253, %v4047, %v4051
      %v4054 = vshrl.u32 %v3690, 16
      %v4056 = vrot.slane %v4054, 4
      %v4057 = vshll.u32 %v3690, 16
      %v4059 = vrot.slane %v4057, 5
      %v4060 = vor.u32 %v4056, %v4059
      %v4061 = vrot.slane %v4060, 4
      %v4063 = vshll.u32 %v3691, 16
      %v4065 = vrot.slane %v4063, 5
      %v4066 = vsel %vm253, %v4061, %v4065
      %v4067 = vshrl.u32 %v3691, 16
      %v4069 = vrot.slane %v4067, 4
      %v4070 = vor.u32 %v4069, %v4065
      %v4071 = vrot.slane %v4070, 4
      %v4073 = vshll.u32 %v3692, 16
      %v4075 = vrot.slane %v4073, 5
      %v4076 = vsel %vm253, %v4071, %v4075
      %s4077 = scalar_lea.vmem %s1, 112
      %v4078 = vld [vmem:[%s4077] sm:$0xf]
      %v4079 = vld [vmem:[%s4077 + $0x4] sm:$0xf]
      %v4080 = vld [vmem:[%s4077 + $0x8] sm:$0xf]
      %v4081 = vld [vmem:[%s4077 + $0xc] sm:$0xf]
      %v4082 = vunpack.c.l.b16 %v3706
      %v4083 = vunpack.c.l.b16 %v3716
      %v4084 = vunpack.c.l.b16 %v3730
      %v4085 = vunpack.c.l.b16 %v3740
      %v4086 = vunpack.c.l.b16 %v3754
      %v4087 = vunpack.c.l.b16 %v3764
      %v4088 = vunpack.c.l.b16 %v3778
      %v4089 = vunpack.c.l.b16 %v3788
      %v4090 = vunpack.c.l.b16 %v3802
      %v4091 = vunpack.c.l.b16 %v3812
      %v4092 = vunpack.c.l.b16 %v3826
      %v4093 = vunpack.c.l.b16 %v3836
      %v4094 = vunpack.c.l.b16 %v3850
      %v4095 = vunpack.c.l.b16 %v3860
      %v4096 = vunpack.c.l.b16 %v3874
      %v4097 = vunpack.c.l.b16 %v3884
      %v4098 = vunpack.c.l.b16 %v3898
      %v4099 = vunpack.c.l.b16 %v3908
      %v4100 = vunpack.c.l.b16 %v3922
      %v4101 = vunpack.c.l.b16 %v3932
      %v4102 = vunpack.c.l.b16 %v3946
      %v4103 = vunpack.c.l.b16 %v3956
      %v4104 = vunpack.c.l.b16 %v3970
      %v4105 = vunpack.c.l.b16 %v3980
      %v4106 = vunpack.c.l.b16 %v3994
      %v4107 = vunpack.c.l.b16 %v4004
      %v4108 = vunpack.c.l.b16 %v4018
      %v4109 = vunpack.c.l.b16 %v4028
      %v4110 = vunpack.c.l.b16 %v4042
      %v4111 = vunpack.c.l.b16 %v4052
      %v4112 = vunpack.c.l.b16 %v4066
      %v4113 = vunpack.c.l.b16 %v4076
      %v4114 = vpack.c.b16 %v4083, %v4082
      %v4115 = vpack.c.b16 %v4085, %v4084
      %v4116 = vpack.c.b16 %v4087, %v4086
      %v4117 = vpack.c.b16 %v4089, %v4088
      %v4118 = vpack.c.b16 %v4091, %v4090
      %v4119 = vpack.c.b16 %v4093, %v4092
      %v4120 = vpack.c.b16 %v4095, %v4094
      %v4121 = vpack.c.b16 %v4097, %v4096
      %v4122 = vpack.c.b16 %v4099, %v4098
      %v4123 = vpack.c.b16 %v4101, %v4100
      %v4124 = vpack.c.b16 %v4103, %v4102
      %v4125 = vpack.c.b16 %v4105, %v4104
      %v4126 = vpack.c.b16 %v4107, %v4106
      %v4127 = vpack.c.b16 %v4109, %v4108
      %v4128 = vpack.c.b16 %v4111, %v4110
      %v4129 = vpack.c.b16 %v4113, %v4112
      %v4134 = vunpack.c.l.b16 %v4078
      %v4135 = vunpack.c.l.b16 %v4079
      %v4136 = vunpack.c.l.b16 %v4080
      %v4137 = vunpack.c.l.b16 %v4081
      %v4138 = vpack.c.b16 %v4135, %v4134
      %v4139 = vpack.c.b16 %v4137, %v4136
      %v4143 = vsel %vm703, %v4114, 0
      %v4146 = vsel %vm703, %v4115, 0
      %v4149 = vsel %vm703, %v4116, 0
      %v4152 = vsel %vm703, %v4117, 0
      %v4155 = vsel %vm703, %v4118, 0
      %v4158 = vsel %vm703, %v4119, 0
      %v4161 = vsel %vm703, %v4120, 0
      %v4164 = vsel %vm703, %v4121, 0
      %v4167 = vsel %vm703, %v4122, 0
      %v4170 = vsel %vm703, %v4123, 0
      %v4173 = vsel %vm703, %v4124, 0
      %v4176 = vsel %vm703, %v4125, 0
      %v4179 = vsel %vm703, %v4126, 0
      %v4182 = vsel %vm703, %v4127, 0
      %v4185 = vsel %vm703, %v4128, 0
      %v4188 = vsel %vm703, %v4129, 0
      %4190 = vmatprep.subr.bf16.mxu0 0
      %4191 = vmatpush1.bf16.msra.mxu0 %v4138
      %4192 = vmatprep.subr.bf16.mxu0 0
      %4193 = vmatpush1.bf16.msra.mxu0 %v4139
      %4194 = vmatprep.subr.bf16.mxu0 0
      %4195 = vmatpush1.bf16.msra.mxu0 0
      %4196 = vmatprep.subr.bf16.mxu0 0
      %4197 = vmatpush1.bf16.msra.mxu0 0
      %4198 = vmatprep.subr.bf16.mxu0 0
      %4199 = vmatpush1.bf16.msra.mxu0 0
      %4200 = vmatprep.subr.bf16.mxu0 0
      %4201 = vmatpush1.bf16.msra.mxu0 0
      %4202 = vmatprep.subr.bf16.mxu0 0
      %4203 = vmatpush1.bf16.msra.mxu0 0
      %4204 = vmatprep.subr.bf16.mxu0 0
      %4205 = vmatpush1.bf16.msra.mxu0 0
      %4206 = vmatprep.subr.bf16.mxu0 0
      %4207 = vmatpush1.bf16.msra.mxu0 0
      %4208 = vmatprep.subr.bf16.mxu0 0
      %4209 = vmatpush1.bf16.msra.mxu0 0
      %4210 = vmatprep.subr.bf16.mxu0 0
      %4211 = vmatpush1.bf16.msra.mxu0 0
      %4212 = vmatprep.subr.bf16.mxu0 0
      %4213 = vmatpush1.bf16.msra.mxu0 0
      %4214 = vmatprep.subr.bf16.mxu0 0
      %4215 = vmatpush1.bf16.msra.mxu0 0
      %4216 = vmatprep.subr.bf16.mxu0 0
      %4217 = vmatpush1.bf16.msra.mxu0 0
      %4218 = vmatprep.subr.bf16.mxu0 0
      %4219 = vmatpush1.bf16.msra.mxu0 0
      %4220 = vmatprep.subr.bf16.mxu0 0
      %4221 = vmatpush1.bf16.msra.mxu0 0
      %4222 = vmatprep.mubr.bf16.mxu0 0
      %4223 = vmatmul.mubr.bf16.gmra.mrb[0].mxu0 %v4143
      %v4224 = vpop.f32.mrb[0].mxu0
      %v4225 = vadd.f32 0.0, %v4224
      %v4226 = vpop.f32.mrb[0].mxu0
      %v4227 = vpop.f32.mrb[0].mxu0
      %v4228 = vadd.f32 0.0, %v4227
      %v4229 = vpop.f32.mrb[0].mxu0
      %4230 = vmatprep.mubr.bf16.mxu0 0
      %4231 = vmatmul.mubr.bf16.gmra.mrb[0].mxu0 %v4146
      %v4232 = vpop.f32.mrb[0].mxu0
      %v4233 = vadd.f32 0.0, %v4232
      %v4234 = vpop.f32.mrb[0].mxu0
      %v4235 = vpop.f32.mrb[0].mxu0
      %v4236 = vadd.f32 0.0, %v4235
      %v4237 = vpop.f32.mrb[0].mxu0
      %4238 = vmatprep.mubr.bf16.mxu0 0
      %4239 = vmatmul.mubr.bf16.gmra.mrb[0].mxu0 %v4149
      %v4240 = vpop.f32.mrb[0].mxu0
      %v4241 = vadd.f32 0.0, %v4240
      %v4242 = vpop.f32.mrb[0].mxu0
      %v4243 = vpop.f32.mrb[0].mxu0
      %v4244 = vadd.f32 0.0, %v4243
      %v4245 = vpop.f32.mrb[0].mxu0
      %4246 = vmatprep.mubr.bf16.mxu0 0
      %4247 = vmatmul.mubr.bf16.gmra.mrb[0].mxu0 %v4152
      %v4248 = vpop.f32.mrb[0].mxu0
      %v4249 = vadd.f32 0.0, %v4248
      %v4250 = vpop.f32.mrb[0].mxu0
      %v4251 = vpop.f32.mrb[0].mxu0
      %v4252 = vadd.f32 0.0, %v4251
      %v4253 = vpop.f32.mrb[0].mxu0
      %4254 = vmatprep.mubr.bf16.mxu0 0
      %4255 = vmatmul.mubr.bf16.gmra.mrb[0].mxu0 %v4155
      %v4256 = vpop.f32.mrb[0].mxu0
      %v4257 = vadd.f32 0.0, %v4256
      %v4258 = vpop.f32.mrb[0].mxu0
      %v4259 = vpop.f32.mrb[0].mxu0
      %v4260 = vadd.f32 0.0, %v4259
      %v4261 = vpop.f32.mrb[0].mxu0
      %4262 = vmatprep.mubr.bf16.mxu0 0
      %4263 = vmatmul.mubr.bf16.gmra.mrb[0].mxu0 %v4158
      %v4264 = vpop.f32.mrb[0].mxu0
      %v4265 = vadd.f32 0.0, %v4264
      %v4266 = vpop.f32.mrb[0].mxu0
      %v4267 = vpop.f32.mrb[0].mxu0
      %v4268 = vadd.f32 0.0, %v4267
      %v4269 = vpop.f32.mrb[0].mxu0
      %4270 = vmatprep.mubr.bf16.mxu0 0
      %4271 = vmatmul.mubr.bf16.gmra.mrb[0].mxu0 %v4161
      %v4272 = vpop.f32.mrb[0].mxu0
      %v4273 = vadd.f32 0.0, %v4272
      %v4274 = vpop.f32.mrb[0].mxu0
      %v4275 = vpop.f32.mrb[0].mxu0
      %v4276 = vadd.f32 0.0, %v4275
      %v4277 = vpop.f32.mrb[0].mxu0
      %4278 = vmatprep.mubr.bf16.mxu0 0
      %4279 = vmatmul.mubr.bf16.gmra.mrb[0].mxu0 %v4164
      %v4280 = vpop.f32.mrb[0].mxu0
      %v4281 = vadd.f32 0.0, %v4280
      %v4282 = vpop.f32.mrb[0].mxu0
      %v4283 = vpop.f32.mrb[0].mxu0
      %v4284 = vadd.f32 0.0, %v4283
      %v4285 = vpop.f32.mrb[0].mxu0
      %4286 = vmatprep.mubr.bf16.mxu0 0
      %4287 = vmatmul.mubr.bf16.gmra.mrb[0].mxu0 %v4167
      %v4288 = vpop.f32.mrb[0].mxu0
      %v4289 = vadd.f32 0.0, %v4288
      %v4290 = vpop.f32.mrb[0].mxu0
      %v4291 = vpop.f32.mrb[0].mxu0
      %v4292 = vadd.f32 0.0, %v4291
      %v4293 = vpop.f32.mrb[0].mxu0
      %4294 = vmatprep.mubr.bf16.mxu0 0
      %4295 = vmatmul.mubr.bf16.gmra.mrb[0].mxu0 %v4170
      %v4296 = vpop.f32.mrb[0].mxu0
      %v4297 = vadd.f32 0.0, %v4296
      %v4298 = vpop.f32.mrb[0].mxu0
      %v4299 = vpop.f32.mrb[0].mxu0
      %v4300 = vadd.f32 0.0, %v4299
      %v4301 = vpop.f32.mrb[0].mxu0
      %4302 = vmatprep.mubr.bf16.mxu0 0
      %4303 = vmatmul.mubr.bf16.gmra.mrb[0].mxu0 %v4173
      %v4304 = vpop.f32.mrb[0].mxu0
      %v4305 = vadd.f32 0.0, %v4304
      %v4306 = vpop.f32.mrb[0].mxu0
      %v4307 = vpop.f32.mrb[0].mxu0
      %v4308 = vadd.f32 0.0, %v4307
      %v4309 = vpop.f32.mrb[0].mxu0
      %4310 = vmatprep.mubr.bf16.mxu0 0
      %4311 = vmatmul.mubr.bf16.gmra.mrb[0].mxu0 %v4176
      %v4312 = vpop.f32.mrb[0].mxu0
      %v4313 = vadd.f32 0.0, %v4312
      %v4314 = vpop.f32.mrb[0].mxu0
      %v4315 = vpop.f32.mrb[0].mxu0
      %v4316 = vadd.f32 0.0, %v4315
      %v4317 = vpop.f32.mrb[0].mxu0
      %4318 = vmatprep.mubr.bf16.mxu0 0
      %4319 = vmatmul.mubr.bf16.gmra.mrb[0].mxu0 %v4179
      %v4320 = vpop.f32.mrb[0].mxu0
      %v4321 = vadd.f32 0.0, %v4320
      %v4322 = vpop.f32.mrb[0].mxu0
      %v4323 = vpop.f32.mrb[0].mxu0
      %v4324 = vadd.f32 0.0, %v4323
      %v4325 = vpop.f32.mrb[0].mxu0
      %4326 = vmatprep.mubr.bf16.mxu0 0
      %4327 = vmatmul.mubr.bf16.gmra.mrb[0].mxu0 %v4182
      %v4328 = vpop.f32.mrb[0].mxu0
      %v4329 = vadd.f32 0.0, %v4328
      %v4330 = vpop.f32.mrb[0].mxu0
      %v4331 = vpop.f32.mrb[0].mxu0
      %v4332 = vadd.f32 0.0, %v4331
      %v4333 = vpop.f32.mrb[0].mxu0
      %4334 = vmatprep.mubr.bf16.mxu0 0
      %4335 = vmatmul.mubr.bf16.gmra.mrb[0].mxu0 %v4185
      %v4336 = vpop.f32.mrb[0].mxu0
      %v4337 = vadd.f32 0.0, %v4336
      %v4338 = vpop.f32.mrb[0].mxu0
      %v4339 = vpop.f32.mrb[0].mxu0
      %v4340 = vadd.f32 0.0, %v4339
      %v4341 = vpop.f32.mrb[0].mxu0
      %4342 = vmatprep.mubr.bf16.mxu0 0
      %4343 = vmatmul.mubr.bf16.gmra.mrb[0].mxu0 %v4188
      %v4344 = vpop.f32.mrb[0].mxu0
      %v4345 = vadd.f32 0.0, %v4344
      %v4346 = vpop.f32.mrb[0].mxu0
      %v4347 = vpop.f32.mrb[0].mxu0
      %v4348 = vadd.f32 0.0, %v4347
      %v4349 = vpop.f32.mrb[0].mxu0
      %4350 = vdwg.mxu0
      %v4351 = vadd.f32 %v3613, %v4225
      %v4352 = vadd.f32 %v3614, %v4228
      %v4353 = vadd.f32 %v3615, %v4233
      %v4354 = vadd.f32 %v3616, %v4236
      %v4355 = vadd.f32 %v3617, %v4241
      %v4356 = vadd.f32 %v3618, %v4244
      %v4357 = vadd.f32 %v3619, %v4249
      %v4358 = vadd.f32 %v3620, %v4252
      %v4359 = vadd.f32 %v3621, %v4257
      %v4360 = vadd.f32 %v3622, %v4260
      %v4361 = vadd.f32 %v3623, %v4265
      %v4362 = vadd.f32 %v3624, %v4268
      %v4363 = vadd.f32 %v3625, %v4273
      %v4364 = vadd.f32 %v3626, %v4276
      %v4365 = vadd.f32 %v3627, %v4281
      %v4366 = vadd.f32 %v3628, %v4284
      %v4367 = vadd.f32 %v3629, %v4289
      %v4368 = vadd.f32 %v3630, %v4292
      %v4369 = vadd.f32 %v3631, %v4297
      %v4370 = vadd.f32 %v3632, %v4300
      %v4371 = vadd.f32 %v3633, %v4305
      %v4372 = vadd.f32 %v3634, %v4308
      %v4373 = vadd.f32 %v3635, %v4313
      %v4374 = vadd.f32 %v3636, %v4316
      %v4375 = vadd.f32 %v3637, %v4321
      %v4376 = vadd.f32 %v3638, %v4324
      %v4377 = vadd.f32 %v3639, %v4329
      %v4378 = vadd.f32 %v3640, %v4332
      %v4379 = vadd.f32 %v3641, %v4337
      %v4380 = vadd.f32 %v3642, %v4340
      %v4381 = vadd.f32 %v3643, %v4345
      %v4382 = vadd.f32 %v3644, %v4348
      %v4383 = vld [vmem:[%s3274] sm:$0xe]
      %v4384 = vld [vmem:[%s3274 + $0xc] sm:$0xe]
      %v4385 = vld [vmem:[%s3274 + $0x18] sm:$0xe]
      %v4386 = vld [vmem:[%s3274 + $0x24] sm:$0xe]
      %v4387 = vld [vmem:[%s3274 + $0x30] sm:$0xe]
      %v4388 = vld [vmem:[%s3274 + $0x3c] sm:$0xe]
      %v4389 = vld [vmem:[%s3274 + $0x48] sm:$0xe]
      %v4390 = vld [vmem:[%s3274 + $0x54] sm:$0xe]
      %v4391 = vld [vmem:[%s3274 + $0x60] sm:$0xe]
      %v4392 = vld [vmem:[%s3274 + $0x6c] sm:$0xe]
      %v4393 = vld [vmem:[%s3274 + $0x78] sm:$0xe]
      %v4394 = vld [vmem:[%s3274 + $0x84] sm:$0xe]
      %v4395 = vld [vmem:[%s3274 + $0x90] sm:$0xe]
      %v4396 = vld [vmem:[%s3274 + $0x9c] sm:$0xe]
      %v4397 = vld [vmem:[%s3274 + $0xa8] sm:$0xe]
      %v4398 = vld [vmem:[%s3274 + $0xb4] sm:$0xe]
      %v4447 = vrot.slane %v4383, 5
      %v4448 = vrot.slane %v4447, 4
      %v4449 = vrot.slane %v3646, 5
      %v4450 = vsel %vm1264, %v4448, %v4449
      %v4451 = vrot.slane %v4449, 4
      %v4452 = vrot.slane %v3647, 5
      %v4453 = vsel %vm1264, %v4451, %v4452
      %v4454 = vrot.slane %v4384, 5
      %v4455 = vrot.slane %v4454, 4
      %v4456 = vrot.slane %v3649, 5
      %v4457 = vsel %vm1264, %v4455, %v4456
      %v4458 = vrot.slane %v4456, 4
      %v4459 = vrot.slane %v3650, 5
      %v4460 = vsel %vm1264, %v4458, %v4459
      %v4461 = vrot.slane %v4385, 5
      %v4462 = vrot.slane %v4461, 4
      %v4463 = vrot.slane %v3652, 5
      %v4464 = vsel %vm1264, %v4462, %v4463
      %v4465 = vrot.slane %v4463, 4
      %v4466 = vrot.slane %v3653, 5
      %v4467 = vsel %vm1264, %v4465, %v4466
      %v4468 = vrot.slane %v4386, 5
      %v4469 = vrot.slane %v4468, 4
      %v4470 = vrot.slane %v3655, 5
      %v4471 = vsel %vm1264, %v4469, %v4470
      %v4472 = vrot.slane %v4470, 4
      %v4473 = vrot.slane %v3656, 5
      %v4474 = vsel %vm1264, %v4472, %v4473
      %v4475 = vrot.slane %v4387, 5
      %v4476 = vrot.slane %v4475, 4
      %v4477 = vrot.slane %v3658, 5
      %v4478 = vsel %vm1264, %v4476, %v4477
      %v4479 = vrot.slane %v4477, 4
      %v4480 = vrot.slane %v3659, 5
      %v4481 = vsel %vm1264, %v4479, %v4480
      %v4482 = vrot.slane %v4388, 5
      %v4483 = vrot.slane %v4482, 4
      %v4484 = vrot.slane %v3661, 5
      %v4485 = vsel %vm1264, %v4483, %v4484
      %v4486 = vrot.slane %v4484, 4
      %v4487 = vrot.slane %v3662, 5
      %v4488 = vsel %vm1264, %v4486, %v4487
      %v4489 = vrot.slane %v4389, 5
      %v4490 = vrot.slane %v4489, 4
      %v4491 = vrot.slane %v3664, 5
      %v4492 = vsel %vm1264, %v4490, %v4491
      %v4493 = vrot.slane %v4491, 4
      %v4494 = vrot.slane %v3665, 5
      %v4495 = vsel %vm1264, %v4493, %v4494
      %v4496 = vrot.slane %v4390, 5
      %v4497 = vrot.slane %v4496, 4
      %v4498 = vrot.slane %v3667, 5
      %v4499 = vsel %vm1264, %v4497, %v4498
      %v4500 = vrot.slane %v4498, 4
      %v4501 = vrot.slane %v3668, 5
      %v4502 = vsel %vm1264, %v4500, %v4501
      %v4503 = vrot.slane %v4391, 5
      %v4504 = vrot.slane %v4503, 4
      %v4505 = vrot.slane %v3670, 5
      %v4506 = vsel %vm1264, %v4504, %v4505
      %v4507 = vrot.slane %v4505, 4
      %v4508 = vrot.slane %v3671, 5
      %v4509 = vsel %vm1264, %v4507, %v4508
      %v4510 = vrot.slane %v4392, 5
      %v4511 = vrot.slane %v4510, 4
      %v4512 = vrot.slane %v3673, 5
      %v4513 = vsel %vm1264, %v4511, %v4512
      %v4514 = vrot.slane %v4512, 4
      %v4515 = vrot.slane %v3674, 5
      %v4516 = vsel %vm1264, %v4514, %v4515
      %v4517 = vrot.slane %v4393, 5
      %v4518 = vrot.slane %v4517, 4
      %v4519 = vrot.slane %v3676, 5
      %v4520 = vsel %vm1264, %v4518, %v4519
      %v4521 = vrot.slane %v4519, 4
      %v4522 = vrot.slane %v3677, 5
      %v4523 = vsel %vm1264, %v4521, %v4522
      %v4524 = vrot.slane %v4394, 5
      %v4525 = vrot.slane %v4524, 4
      %v4526 = vrot.slane %v3679, 5
      %v4527 = vsel %vm1264, %v4525, %v4526
      %v4528 = vrot.slane %v4526, 4
      %v4529 = vrot.slane %v3680, 5
      %v4530 = vsel %vm1264, %v4528, %v4529
      %v4531 = vrot.slane %v4395, 5
      %v4532 = vrot.slane %v4531, 4
      %v4533 = vrot.slane %v3682, 5
      %v4534 = vsel %vm1264, %v4532, %v4533
      %v4535 = vrot.slane %v4533, 4
      %v4536 = vrot.slane %v3683, 5
      %v4537 = vsel %vm1264, %v4535, %v4536
      %v4538 = vrot.slane %v4396, 5
      %v4539 = vrot.slane %v4538, 4
      %v4540 = vrot.slane %v3685, 5
      %v4541 = vsel %vm1264, %v4539, %v4540
      %v4542 = vrot.slane %v4540, 4
      %v4543 = vrot.slane %v3686, 5
      %v4544 = vsel %vm1264, %v4542, %v4543
      %v4545 = vrot.slane %v4397, 5
      %v4546 = vrot.slane %v4545, 4
      %v4547 = vrot.slane %v3688, 5
      %v4548 = vsel %vm1264, %v4546, %v4547
      %v4549 = vrot.slane %v4547, 4
      %v4550 = vrot.slane %v3689, 5
      %v4551 = vsel %vm1264, %v4549, %v4550
      %v4552 = vrot.slane %v4398, 5
      %v4553 = vrot.slane %v4552, 4
      %v4554 = vrot.slane %v3691, 5
      %v4555 = vsel %vm1264, %v4553, %v4554
      %v4556 = vrot.slane %v4554, 4
      %v4557 = vrot.slane %v3692, 5
      %v4558 = vsel %vm1264, %v4556, %v4557
      %s4559 = scalar_lea.vmem %s1, 128
      %v4560 = vld [vmem:[%s4559] sm:$0xf]
      %v4561 = vld [vmem:[%s4559 + $0x4] sm:$0xf]
      %v4562 = vld [vmem:[%s4559 + $0x8] sm:$0xf]
      %v4563 = vld [vmem:[%s4559 + $0xc] sm:$0xf]
      %v4564 = vunpack.c.l.b16 %v4450
      %v4565 = vunpack.c.l.b16 %v4453
      %v4566 = vunpack.c.l.b16 %v4457
      %v4567 = vunpack.c.l.b16 %v4460
      %v4568 = vunpack.c.l.b16 %v4464
      %v4569 = vunpack.c.l.b16 %v4467
      %v4570 = vunpack.c.l.b16 %v4471
      %v4571 = vunpack.c.l.b16 %v4474
      %v4572 = vunpack.c.l.b16 %v4478
      %v4573 = vunpack.c.l.b16 %v4481
      %v4574 = vunpack.c.l.b16 %v4485
      %v4575 = vunpack.c.l.b16 %v4488
      %v4576 = vunpack.c.l.b16 %v4492
      %v4577 = vunpack.c.l.b16 %v4495
      %v4578 = vunpack.c.l.b16 %v4499
      %v4579 = vunpack.c.l.b16 %v4502
      %v4580 = vunpack.c.l.b16 %v4506
      %v4581 = vunpack.c.l.b16 %v4509
      %v4582 = vunpack.c.l.b16 %v4513
      %v4583 = vunpack.c.l.b16 %v4516
      %v4584 = vunpack.c.l.b16 %v4520
      %v4585 = vunpack.c.l.b16 %v4523
      %v4586 = vunpack.c.l.b16 %v4527
      %v4587 = vunpack.c.l.b16 %v4530
      %v4588 = vunpack.c.l.b16 %v4534
      %v4589 = vunpack.c.l.b16 %v4537
      %v4590 = vunpack.c.l.b16 %v4541
      %v4591 = vunpack.c.l.b16 %v4544
      %v4592 = vunpack.c.l.b16 %v4548
      %v4593 = vunpack.c.l.b16 %v4551
      %v4594 = vunpack.c.l.b16 %v4555
      %v4595 = vunpack.c.l.b16 %v4558
      %v4596 = vpack.c.b16 %v4565, %v4564
      %v4597 = vpack.c.b16 %v4567, %v4566
      %v4598 = vpack.c.b16 %v4569, %v4568
      %v4599 = vpack.c.b16 %v4571, %v4570
      %v4600 = vpack.c.b16 %v4573, %v4572
      %v4601 = vpack.c.b16 %v4575, %v4574
      %v4602 = vpack.c.b16 %v4577, %v4576
      %v4603 = vpack.c.b16 %v4579, %v4578
      %v4604 = vpack.c.b16 %v4581, %v4580
      %v4605 = vpack.c.b16 %v4583, %v4582
      %v4606 = vpack.c.b16 %v4585, %v4584
      %v4607 = vpack.c.b16 %v4587, %v4586
      %v4608 = vpack.c.b16 %v4589, %v4588
      %v4609 = vpack.c.b16 %v4591, %v4590
      %v4610 = vpack.c.b16 %v4593, %v4592
      %v4611 = vpack.c.b16 %v4595, %v4594
      %v4616 = vunpack.c.l.b16 %v4560
      %v4617 = vunpack.c.l.b16 %v4561
      %v4618 = vunpack.c.l.b16 %v4562
      %v4619 = vunpack.c.l.b16 %v4563
      %v4620 = vpack.c.b16 %v4617, %v4616
      %v4621 = vpack.c.b16 %v4619, %v4618
      %v4625 = vsel %vm703, %v4596, 0
      %v4628 = vsel %vm703, %v4597, 0
      %v4631 = vsel %vm703, %v4598, 0
      %v4634 = vsel %vm703, %v4599, 0
      %v4637 = vsel %vm703, %v4600, 0
      %v4640 = vsel %vm703, %v4601, 0
      %v4643 = vsel %vm703, %v4602, 0
      %v4646 = vsel %vm703, %v4603, 0
      %v4649 = vsel %vm703, %v4604, 0
      %v4652 = vsel %vm703, %v4605, 0
      %v4655 = vsel %vm703, %v4606, 0
      %v4658 = vsel %vm703, %v4607, 0
      %v4661 = vsel %vm703, %v4608, 0
      %v4664 = vsel %vm703, %v4609, 0
      %v4667 = vsel %vm703, %v4610, 0
      %v4670 = vsel %vm703, %v4611, 0
      %4672 = vmatprep.subr.bf16.mxu0 0
      %4673 = vmatpush1.bf16.msra.mxu0 %v4620
      %4674 = vmatprep.subr.bf16.mxu0 0
      %4675 = vmatpush1.bf16.msra.mxu0 %v4621
      %4676 = vmatprep.subr.bf16.mxu0 0
      %4677 = vmatpush1.bf16.msra.mxu0 0
      %4678 = vmatprep.subr.bf16.mxu0 0
      %4679 = vmatpush1.bf16.msra.mxu0 0
      %4680 = vmatprep.subr.bf16.mxu0 0
      %4681 = vmatpush1.bf16.msra.mxu0 0
      %4682 = vmatprep.subr.bf16.mxu0 0
      %4683 = vmatpush1.bf16.msra.mxu0 0
      %4684 = vmatprep.subr.bf16.mxu0 0
      %4685 = vmatpush1.bf16.msra.mxu0 0
      %4686 = vmatprep.subr.bf16.mxu0 0
      %4687 = vmatpush1.bf16.msra.mxu0 0
      %4688 = vmatprep.subr.bf16.mxu0 0
      %4689 = vmatpush1.bf16.msra.mxu0 0
      %4690 = vmatprep.subr.bf16.mxu0 0
      %4691 = vmatpush1.bf16.msra.mxu0 0
      %4692 = vmatprep.subr.bf16.mxu0 0
      %4693 = vmatpush1.bf16.msra.mxu0 0
      %4694 = vmatprep.subr.bf16.mxu0 0
      %4695 = vmatpush1.bf16.msra.mxu0 0
      %4696 = vmatprep.subr.bf16.mxu0 0
      %4697 = vmatpush1.bf16.msra.mxu0 0
      %4698 = vmatprep.subr.bf16.mxu0 0
      %4699 = vmatpush1.bf16.msra.mxu0 0
      %4700 = vmatprep.subr.bf16.mxu0 0
      %4701 = vmatpush1.bf16.msra.mxu0 0
      %4702 = vmatprep.subr.bf16.mxu0 0
      %4703 = vmatpush1.bf16.msra.mxu0 0
      %4704 = vmatprep.mubr.bf16.mxu0 0
      %4705 = vmatmul.mubr.bf16.gmra.mrb[0].mxu0 %v4625
      %v4706 = vpop.f32.mrb[0].mxu0
      %v4707 = vadd.f32 0.0, %v4706
      %v4708 = vpop.f32.mrb[0].mxu0
      %v4709 = vpop.f32.mrb[0].mxu0
      %v4710 = vadd.f32 0.0, %v4709
      %v4711 = vpop.f32.mrb[0].mxu0
      %4712 = vmatprep.mubr.bf16.mxu0 0
      %4713 = vmatmul.mubr.bf16.gmra.mrb[0].mxu0 %v4628
      %v4714 = vpop.f32.mrb[0].mxu0
      %v4715 = vadd.f32 0.0, %v4714
      %v4716 = vpop.f32.mrb[0].mxu0
      %v4717 = vpop.f32.mrb[0].mxu0
      %v4718 = vadd.f32 0.0, %v4717
      %v4719 = vpop.f32.mrb[0].mxu0
      %4720 = vmatprep.mubr.bf16.mxu0 0
      %4721 = vmatmul.mubr.bf16.gmra.mrb[0].mxu0 %v4631
      %v4722 = vpop.f32.mrb[0].mxu0
      %v4723 = vadd.f32 0.0, %v4722
      %v4724 = vpop.f32.mrb[0].mxu0
      %v4725 = vpop.f32.mrb[0].mxu0
      %v4726 = vadd.f32 0.0, %v4725
      %v4727 = vpop.f32.mrb[0].mxu0
      %4728 = vmatprep.mubr.bf16.mxu0 0
      %4729 = vmatmul.mubr.bf16.gmra.mrb[0].mxu0 %v4634
      %v4730 = vpop.f32.mrb[0].mxu0
      %v4731 = vadd.f32 0.0, %v4730
      %v4732 = vpop.f32.mrb[0].mxu0
      %v4733 = vpop.f32.mrb[0].mxu0
      %v4734 = vadd.f32 0.0, %v4733
      %v4735 = vpop.f32.mrb[0].mxu0
      %4736 = vmatprep.mubr.bf16.mxu0 0
      %4737 = vmatmul.mubr.bf16.gmra.mrb[0].mxu0 %v4637
      %v4738 = vpop.f32.mrb[0].mxu0
      %v4739 = vadd.f32 0.0, %v4738
      %v4740 = vpop.f32.mrb[0].mxu0
      %v4741 = vpop.f32.mrb[0].mxu0
      %v4742 = vadd.f32 0.0, %v4741
      %v4743 = vpop.f32.mrb[0].mxu0
      %4744 = vmatprep.mubr.bf16.mxu0 0
      %4745 = vmatmul.mubr.bf16.gmra.mrb[0].mxu0 %v4640
      %v4746 = vpop.f32.mrb[0].mxu0
      %v4747 = vadd.f32 0.0, %v4746
      %v4748 = vpop.f32.mrb[0].mxu0
      %v4749 = vpop.f32.mrb[0].mxu0
      %v4750 = vadd.f32 0.0, %v4749
      %v4751 = vpop.f32.mrb[0].mxu0
      %4752 = vmatprep.mubr.bf16.mxu0 0
      %4753 = vmatmul.mubr.bf16.gmra.mrb[0].mxu0 %v4643
      %v4754 = vpop.f32.mrb[0].mxu0
      %v4755 = vadd.f32 0.0, %v4754
      %v4756 = vpop.f32.mrb[0].mxu0
      %v4757 = vpop.f32.mrb[0].mxu0
      %v4758 = vadd.f32 0.0, %v4757
      %v4759 = vpop.f32.mrb[0].mxu0
      %4760 = vmatprep.mubr.bf16.mxu0 0
      %4761 = vmatmul.mubr.bf16.gmra.mrb[0].mxu0 %v4646
      %v4762 = vpop.f32.mrb[0].mxu0
      %v4763 = vadd.f32 0.0, %v4762
      %v4764 = vpop.f32.mrb[0].mxu0
      %v4765 = vpop.f32.mrb[0].mxu0
      %v4766 = vadd.f32 0.0, %v4765
      %v4767 = vpop.f32.mrb[0].mxu0
      %4768 = vmatprep.mubr.bf16.mxu0 0
      %4769 = vmatmul.mubr.bf16.gmra.mrb[0].mxu0 %v4649
      %v4770 = vpop.f32.mrb[0].mxu0
      %v4771 = vadd.f32 0.0, %v4770
      %v4772 = vpop.f32.mrb[0].mxu0
      %v4773 = vpop.f32.mrb[0].mxu0
      %v4774 = vadd.f32 0.0, %v4773
      %v4775 = vpop.f32.mrb[0].mxu0
      %4776 = vmatprep.mubr.bf16.mxu0 0
      %4777 = vmatmul.mubr.bf16.gmra.mrb[0].mxu0 %v4652
      %v4778 = vpop.f32.mrb[0].mxu0
      %v4779 = vadd.f32 0.0, %v4778
      %v4780 = vpop.f32.mrb[0].mxu0
      %v4781 = vpop.f32.mrb[0].mxu0
      %v4782 = vadd.f32 0.0, %v4781
      %v4783 = vpop.f32.mrb[0].mxu0
      %4784 = vmatprep.mubr.bf16.mxu0 0
      %4785 = vmatmul.mubr.bf16.gmra.mrb[0].mxu0 %v4655
      %v4786 = vpop.f32.mrb[0].mxu0
      %v4787 = vadd.f32 0.0, %v4786
      %v4788 = vpop.f32.mrb[0].mxu0
      %v4789 = vpop.f32.mrb[0].mxu0
      %v4790 = vadd.f32 0.0, %v4789
      %v4791 = vpop.f32.mrb[0].mxu0
      %4792 = vmatprep.mubr.bf16.mxu0 0
      %4793 = vmatmul.mubr.bf16.gmra.mrb[0].mxu0 %v4658
      %v4794 = vpop.f32.mrb[0].mxu0
      %v4795 = vadd.f32 0.0, %v4794
      %v4796 = vpop.f32.mrb[0].mxu0
      %v4797 = vpop.f32.mrb[0].mxu0
      %v4798 = vadd.f32 0.0, %v4797
      %v4799 = vpop.f32.mrb[0].mxu0
      %4800 = vmatprep.mubr.bf16.mxu0 0
      %4801 = vmatmul.mubr.bf16.gmra.mrb[0].mxu0 %v4661
      %v4802 = vpop.f32.mrb[0].mxu0
      %v4803 = vadd.f32 0.0, %v4802
      %v4804 = vpop.f32.mrb[0].mxu0
      %v4805 = vpop.f32.mrb[0].mxu0
      %v4806 = vadd.f32 0.0, %v4805
      %v4807 = vpop.f32.mrb[0].mxu0
      %4808 = vmatprep.mubr.bf16.mxu0 0
      %4809 = vmatmul.mubr.bf16.gmra.mrb[0].mxu0 %v4664
      %v4810 = vpop.f32.mrb[0].mxu0
      %v4811 = vadd.f32 0.0, %v4810
      %v4812 = vpop.f32.mrb[0].mxu0
      %v4813 = vpop.f32.mrb[0].mxu0
      %v4814 = vadd.f32 0.0, %v4813
      %v4815 = vpop.f32.mrb[0].mxu0
      %4816 = vmatprep.mubr.bf16.mxu0 0
      %4817 = vmatmul.mubr.bf16.gmra.mrb[0].mxu0 %v4667
      %v4818 = vpop.f32.mrb[0].mxu0
      %v4819 = vadd.f32 0.0, %v4818
      %v4820 = vpop.f32.mrb[0].mxu0
      %v4821 = vpop.f32.mrb[0].mxu0
      %v4822 = vadd.f32 0.0, %v4821
      %v4823 = vpop.f32.mrb[0].mxu0
      %4824 = vmatprep.mubr.bf16.mxu0 0
      %4825 = vmatmul.mubr.bf16.gmra.mrb[0].mxu0 %v4670
      %v4826 = vpop.f32.mrb[0].mxu0
      %v4827 = vadd.f32 0.0, %v4826
      %v4828 = vpop.f32.mrb[0].mxu0
      %v4829 = vpop.f32.mrb[0].mxu0
      %v4830 = vadd.f32 0.0, %v4829
      %v4831 = vpop.f32.mrb[0].mxu0
      %4832 = vdwg.mxu0
      %v4833 = vadd.f32 %v4351, %v4707
      %v4834 = vadd.f32 %v4352, %v4710
      %v4835 = vadd.f32 %v4353, %v4715
      %v4836 = vadd.f32 %v4354, %v4718
      %v4837 = vadd.f32 %v4355, %v4723
      %v4838 = vadd.f32 %v4356, %v4726
      %v4839 = vadd.f32 %v4357, %v4731
      %v4840 = vadd.f32 %v4358, %v4734
      %v4841 = vadd.f32 %v4359, %v4739
      %v4842 = vadd.f32 %v4360, %v4742
      %v4843 = vadd.f32 %v4361, %v4747
      %v4844 = vadd.f32 %v4362, %v4750
      %v4845 = vadd.f32 %v4363, %v4755
      %v4846 = vadd.f32 %v4364, %v4758
      %v4847 = vadd.f32 %v4365, %v4763
      %v4848 = vadd.f32 %v4366, %v4766
      %v4849 = vadd.f32 %v4367, %v4771
      %v4850 = vadd.f32 %v4368, %v4774
      %v4851 = vadd.f32 %v4369, %v4779
      %v4852 = vadd.f32 %v4370, %v4782
      %v4853 = vadd.f32 %v4371, %v4787
      %v4854 = vadd.f32 %v4372, %v4790
      %v4855 = vadd.f32 %v4373, %v4795
      %v4856 = vadd.f32 %v4374, %v4798
      %v4857 = vadd.f32 %v4375, %v4803
      %v4858 = vadd.f32 %v4376, %v4806
      %v4859 = vadd.f32 %v4377, %v4811
      %v4860 = vadd.f32 %v4378, %v4814
      %v4861 = vadd.f32 %v4379, %v4819
      %v4862 = vadd.f32 %v4380, %v4822
      %v4863 = vadd.f32 %v4381, %v4827
      %v4864 = vadd.f32 %v4382, %v4830
      %v4865 = vld [vmem:[%s2] sm:$0x1]
      %v4867 = vlaneseq
      %v4868 = vshrl.u32 %v4867, 7
      %v4869 = vsub.s32 0, %v4868
      %v4870 = vrot.slane %v4865, %v4869
      %v4872 = vmul.f32 %v4833, %v4870
      %v4873 = vmul.f32 %v4834, %v4870
      %v4874 = vmul.f32 %v4835, %v4870
      %v4875 = vmul.f32 %v4836, %v4870
      %v4876 = vmul.f32 %v4837, %v4870
      %v4877 = vmul.f32 %v4838, %v4870
      %v4878 = vmul.f32 %v4839, %v4870
      %v4879 = vmul.f32 %v4840, %v4870
      %v4880 = vmul.f32 %v4841, %v4870
      %v4881 = vmul.f32 %v4842, %v4870
      %v4882 = vmul.f32 %v4843, %v4870
      %v4883 = vmul.f32 %v4844, %v4870
      %v4884 = vmul.f32 %v4845, %v4870
      %v4885 = vmul.f32 %v4846, %v4870
      %v4886 = vmul.f32 %v4847, %v4870
      %v4887 = vmul.f32 %v4848, %v4870
      %v4888 = vmul.f32 %v4849, %v4870
      %v4889 = vmul.f32 %v4850, %v4870
      %v4890 = vmul.f32 %v4851, %v4870
      %v4891 = vmul.f32 %v4852, %v4870
      %v4892 = vmul.f32 %v4853, %v4870
      %v4893 = vmul.f32 %v4854, %v4870
      %v4894 = vmul.f32 %v4855, %v4870
      %v4895 = vmul.f32 %v4856, %v4870
      %v4896 = vmul.f32 %v4857, %v4870
      %v4897 = vmul.f32 %v4858, %v4870
      %v4898 = vmul.f32 %v4859, %v4870
      %v4899 = vmul.f32 %v4860, %v4870
      %v4900 = vmul.f32 %v4861, %v4870
      %v4901 = vmul.f32 %v4862, %v4870
      %v4902 = vmul.f32 %v4863, %v4870
      %v4903 = vmul.f32 %v4864, %v4870
      %v4904 = vld [vmem:[%s3] sm:$0x1]
      %v4906 = vlaneseq
      %v4907 = vshrl.u32 %v4906, 7
      %v4908 = vsub.s32 0, %v4907
      %v4909 = vrot.slane %v4904, %v4908
      %v4911 = vadd.f32 %v4872, %v4909
      %v4912 = vadd.f32 %v4873, %v4909
      %v4913 = vadd.f32 %v4874, %v4909
      %v4914 = vadd.f32 %v4875, %v4909
      %v4915 = vadd.f32 %v4876, %v4909
      %v4916 = vadd.f32 %v4877, %v4909
      %v4917 = vadd.f32 %v4878, %v4909
      %v4918 = vadd.f32 %v4879, %v4909
      %v4919 = vadd.f32 %v4880, %v4909
      %v4920 = vadd.f32 %v4881, %v4909
      %v4921 = vadd.f32 %v4882, %v4909
      %v4922 = vadd.f32 %v4883, %v4909
      %v4923 = vadd.f32 %v4884, %v4909
      %v4924 = vadd.f32 %v4885, %v4909
      %v4925 = vadd.f32 %v4886, %v4909
      %v4926 = vadd.f32 %v4887, %v4909
      %v4927 = vadd.f32 %v4888, %v4909
      %v4928 = vadd.f32 %v4889, %v4909
      %v4929 = vadd.f32 %v4890, %v4909
      %v4930 = vadd.f32 %v4891, %v4909
      %v4931 = vadd.f32 %v4892, %v4909
      %v4932 = vadd.f32 %v4893, %v4909
      %v4933 = vadd.f32 %v4894, %v4909
      %v4934 = vadd.f32 %v4895, %v4909
      %v4935 = vadd.f32 %v4896, %v4909
      %v4936 = vadd.f32 %v4897, %v4909
      %v4937 = vadd.f32 %v4898, %v4909
      %v4938 = vadd.f32 %v4899, %v4909
      %v4939 = vadd.f32 %v4900, %v4909
      %v4940 = vadd.f32 %v4901, %v4909
      %v4941 = vadd.f32 %v4902, %v4909
      %v4942 = vadd.f32 %v4903, %v4909
      %v4943 = vmax.f32 %v4911, 0.0
      %v4944 = vmax.f32 %v4912, 0.0
      %v4945 = vmax.f32 %v4913, 0.0
      %v4946 = vmax.f32 %v4914, 0.0
      %v4947 = vmax.f32 %v4915, 0.0
      %v4948 = vmax.f32 %v4916, 0.0
      %v4949 = vmax.f32 %v4917, 0.0
      %v4950 = vmax.f32 %v4918, 0.0
      %v4951 = vmax.f32 %v4919, 0.0
      %v4952 = vmax.f32 %v4920, 0.0
      %v4953 = vmax.f32 %v4921, 0.0
      %v4954 = vmax.f32 %v4922, 0.0
      %v4955 = vmax.f32 %v4923, 0.0
      %v4956 = vmax.f32 %v4924, 0.0
      %v4957 = vmax.f32 %v4925, 0.0
      %v4958 = vmax.f32 %v4926, 0.0
      %v4959 = vmax.f32 %v4927, 0.0
      %v4960 = vmax.f32 %v4928, 0.0
      %v4961 = vmax.f32 %v4929, 0.0
      %v4962 = vmax.f32 %v4930, 0.0
      %v4963 = vmax.f32 %v4931, 0.0
      %v4964 = vmax.f32 %v4932, 0.0
      %v4965 = vmax.f32 %v4933, 0.0
      %v4966 = vmax.f32 %v4934, 0.0
      %v4967 = vmax.f32 %v4935, 0.0
      %v4968 = vmax.f32 %v4936, 0.0
      %v4969 = vmax.f32 %v4937, 0.0
      %v4970 = vmax.f32 %v4938, 0.0
      %v4971 = vmax.f32 %v4939, 0.0
      %v4972 = vmax.f32 %v4940, 0.0
      %v4973 = vmax.f32 %v4941, 0.0
      %v4974 = vmax.f32 %v4942, 0.0
      %v4975 = vpack.c.bf16 %v4944, %v4943
      %v4976 = vpack.c.bf16 %v4946, %v4945
      %v4977 = vpack.c.bf16 %v4948, %v4947
      %v4978 = vpack.c.bf16 %v4950, %v4949
      %v4979 = vpack.c.bf16 %v4952, %v4951
      %v4980 = vpack.c.bf16 %v4954, %v4953
      %v4981 = vpack.c.bf16 %v4956, %v4955
      %v4982 = vpack.c.bf16 %v4958, %v4957
      %v4983 = vpack.c.bf16 %v4960, %v4959
      %v4984 = vpack.c.bf16 %v4962, %v4961
      %v4985 = vpack.c.bf16 %v4964, %v4963
      %v4986 = vpack.c.bf16 %v4966, %v4965
      %v4987 = vpack.c.bf16 %v4968, %v4967
      %v4988 = vpack.c.bf16 %v4970, %v4969
      %v4989 = vpack.c.bf16 %v4972, %v4971
      %v4990 = vpack.c.bf16 %v4974, %v4973
      %v5007 = vunpack.c.l.b16 %v4975
      %v5008 = vunpack.c.h.b16 %v4975
      %v5009 = vunpack.c.l.b16 %v4976
      %v5010 = vunpack.c.h.b16 %v4976
      %v5011 = vunpack.c.l.b16 %v4977
      %v5012 = vunpack.c.h.b16 %v4977
      %v5013 = vunpack.c.l.b16 %v4978
      %v5014 = vunpack.c.h.b16 %v4978
      %v5015 = vunpack.c.l.b16 %v4979
      %v5016 = vunpack.c.h.b16 %v4979
      %v5017 = vunpack.c.l.b16 %v4980
      %v5018 = vunpack.c.h.b16 %v4980
      %v5019 = vunpack.c.l.b16 %v4981
      %v5020 = vunpack.c.h.b16 %v4981
      %v5021 = vunpack.c.l.b16 %v4982
      %v5022 = vunpack.c.h.b16 %v4982
      %v5023 = vunpack.c.l.b16 %v4983
      %v5024 = vunpack.c.h.b16 %v4983
      %v5025 = vunpack.c.l.b16 %v4984
      %v5026 = vunpack.c.h.b16 %v4984
      %v5027 = vunpack.c.l.b16 %v4985
      %v5028 = vunpack.c.h.b16 %v4985
      %v5029 = vunpack.c.l.b16 %v4986
      %v5030 = vunpack.c.h.b16 %v4986
      %v5031 = vunpack.c.l.b16 %v4987
      %v5032 = vunpack.c.h.b16 %v4987
      %v5033 = vunpack.c.l.b16 %v4988
      %v5034 = vunpack.c.h.b16 %v4988
      %v5035 = vunpack.c.l.b16 %v4989
      %v5036 = vunpack.c.h.b16 %v4989
      %v5037 = vunpack.c.l.b16 %v4990
      %v5038 = vunpack.c.h.b16 %v4990
      %v5039 = vpack.c.b16 %v5007, %v5007
      %v5040 = vpack.c.b16 %v5008, %v5008
      %v5041 = vpack.c.b16 %v5009, %v5009
      %v5042 = vpack.c.b16 %v5010, %v5010
      %v5043 = vpack.c.b16 %v5011, %v5011
      %v5044 = vpack.c.b16 %v5012, %v5012
      %v5045 = vpack.c.b16 %v5013, %v5013
      %v5046 = vpack.c.b16 %v5014, %v5014
      %v5047 = vpack.c.b16 %v5015, %v5015
      %v5048 = vpack.c.b16 %v5016, %v5016
      %v5049 = vpack.c.b16 %v5017, %v5017
      %v5050 = vpack.c.b16 %v5018, %v5018
      %v5051 = vpack.c.b16 %v5019, %v5019
      %v5052 = vpack.c.b16 %v5020, %v5020
      %v5053 = vpack.c.b16 %v5021, %v5021
      %v5054 = vpack.c.b16 %v5022, %v5022
      %v5055 = vpack.c.b16 %v5023, %v5023
      %v5056 = vpack.c.b16 %v5024, %v5024
      %v5057 = vpack.c.b16 %v5025, %v5025
      %v5058 = vpack.c.b16 %v5026, %v5026
      %v5059 = vpack.c.b16 %v5027, %v5027
      %v5060 = vpack.c.b16 %v5028, %v5028
      %v5061 = vpack.c.b16 %v5029, %v5029
      %v5062 = vpack.c.b16 %v5030, %v5030
      %v5063 = vpack.c.b16 %v5031, %v5031
      %v5064 = vpack.c.b16 %v5032, %v5032
      %v5065 = vpack.c.b16 %v5033, %v5033
      %v5066 = vpack.c.b16 %v5034, %v5034
      %v5067 = vpack.c.b16 %v5035, %v5035
      %v5068 = vpack.c.b16 %v5036, %v5036
      %v5069 = vpack.c.b16 %v5037, %v5037
      %v5070 = vpack.c.b16 %v5038, %v5038
      %vm5103 = vcmask 257024
      %5104 = vst.msk [vmem:[%s197] sm:$0xf] %vm5103, %v5039
      %5105 = vst.msk [vmem:[%s197 + $0x4] sm:$0xf] %vm5103, %v5040
      %5106 = vst.msk [vmem:[%s197 + $0x8] sm:$0xf] %vm5103, %v5041
      %5107 = vst.msk [vmem:[%s197 + $0xc] sm:$0xf] %vm5103, %v5042
      %5108 = vst.msk [vmem:[%s197 + $0x10] sm:$0xf] %vm5103, %v5043
      %5109 = vst.msk [vmem:[%s197 + $0x14] sm:$0xf] %vm5103, %v5044
      %5110 = vst.msk [vmem:[%s197 + $0x18] sm:$0xf] %vm5103, %v5045
      %5111 = vst.msk [vmem:[%s197 + $0x1c] sm:$0xf] %vm5103, %v5046
      %5112 = vst.msk [vmem:[%s197 + $0x20] sm:$0xf] %vm5103, %v5047
      %5113 = vst.msk [vmem:[%s197 + $0x24] sm:$0xf] %vm5103, %v5048
      %5114 = vst.msk [vmem:[%s197 + $0x28] sm:$0xf] %vm5103, %v5049
      %5115 = vst.msk [vmem:[%s197 + $0x2c] sm:$0xf] %vm5103, %v5050
      %5116 = vst.msk [vmem:[%s197 + $0x30] sm:$0xf] %vm5103, %v5051
      %5117 = vst.msk [vmem:[%s197 + $0x34] sm:$0xf] %vm5103, %v5052
      %5118 = vst.msk [vmem:[%s197 + $0x38] sm:$0xf] %vm5103, %v5053
      %5119 = vst.msk [vmem:[%s197 + $0x3c] sm:$0xf] %vm5103, %v5054
      %5120 = vst.msk [vmem:[%s197 + $0x40] sm:$0xf] %vm5103, %v5055
      %5121 = vst.msk [vmem:[%s197 + $0x44] sm:$0xf] %vm5103, %v5056
      %5122 = vst.msk [vmem:[%s197 + $0x48] sm:$0xf] %vm5103, %v5057
      %5123 = vst.msk [vmem:[%s197 + $0x4c] sm:$0xf] %vm5103, %v5058
      %5124 = vst.msk [vmem:[%s197 + $0x50] sm:$0xf] %vm5103, %v5059
      %5125 = vst.msk [vmem:[%s197 + $0x54] sm:$0xf] %vm5103, %v5060
      %5126 = vst.msk [vmem:[%s197 + $0x58] sm:$0xf] %vm5103, %v5061
      %5127 = vst.msk [vmem:[%s197 + $0x5c] sm:$0xf] %vm5103, %v5062
      %5128 = vst.msk [vmem:[%s197 + $0x60] sm:$0xf] %vm5103, %v5063
      %5129 = vst.msk [vmem:[%s197 + $0x64] sm:$0xf] %vm5103, %v5064
      %5130 = vst.msk [vmem:[%s197 + $0x68] sm:$0xf] %vm5103, %v5065
      %5131 = vst.msk [vmem:[%s197 + $0x6c] sm:$0xf] %vm5103, %v5066
      %5132 = vst.msk [vmem:[%s197 + $0x70] sm:$0xf] %vm5103, %v5067
      %5133 = vst.msk [vmem:[%s197 + $0x74] sm:$0xf] %vm5103, %v5068
      %5134 = vst.msk [vmem:[%s197 + $0x78] sm:$0xf] %vm5103, %v5069
      %5135 = vst.msk [vmem:[%s197 + $0x7c] sm:$0xf] %vm5103, %v5070
      %p5136 = scmp.lt.s32.totalorder %s15, 1
      %s5137 = scalar_select %p5136, %s15, 1
      %s5138 = smul.addr %s5137, 32
      %s5139 = smul.addr %s5138, 4
      %s5140 = scalar_lea.vmem %s4, %s5139
      // Predicated region
      $region37: #{preact_bottleneck_forward.6} parent=35 // pred_check
        %p5141 = pneg %p122
      $region38: #{preact_bottleneck_forward.6} parent=35 // pred_check_branch
        %5143 = sbr.rel (%p5141) target = $region40
      $region39: #{preact_bottleneck_forward.6} parent=35 // pred_region
        _
      $region40: #{preact_bottleneck_forward.6} parent=35 // pred_fallthru
        _
    $region36: #{preact_bottleneck_forward.6} parent=5 // pred_fallthru
      _
    %p5144 = scmp.le.s32.totalorder 2, %s10
    // Predicated region
    $region41: #{preact_bottleneck_forward.6} parent=5 // pred_check
      %p5145 = pneg %p5144
    $region42: #{preact_bottleneck_forward.6} parent=5 // pred_check_branch
      %5147 = sbr.rel (%p5145) target = $region44
    $region43: #{preact_bottleneck_forward.6} parent=5 // pred_region
      %s5148 = ssub.s32 %s10, 2
      // Predicated region
      $region45: #{preact_bottleneck_forward.6} parent=43 // pred_check
        %p5149 = pneg %p128
      $region46: #{preact_bottleneck_forward.6} parent=43 // pred_check_branch
        %5151 = sbr.rel (%p5149) target = $region48
      $region47: #{preact_bottleneck_forward.6} parent=43 // pred_region
        %p5152 = scmp.lt.s32.totalorder %s16, 1
        %s5153 = scalar_select %p5152, %s16, 1
        %s5154 = smul.addr %s5153, 32
        %s5155 = smul.addr %s5154, 4
        %s5156 = scalar_lea.vmem %s4, %s5155
      $region48: #{preact_bottleneck_forward.6} parent=43 // pred_fallthru
        _
    $region44: #{preact_bottleneck_forward.6} parent=5 // pred_fallthru
      _
  $region6: #{preact_bottleneck_forward.6} parent=0 // loop_footer
    %s14 = sadd.s32 1, %s10
  $region7: #{preact_bottleneck_forward.6} parent=0 // loop_footer_branch
    %9 = sbr.rel target = $region3
  $region8: #{preact_bottleneck_forward.6} parent=0 // loop_exit
    _

</llo_original>
